<compile_context>
chip_gen: v7x
topology: tpu7x:2x2x1
jax: 0.10.0
libtpu: 0.0.40
codegen_flags: <defaults>
</compile_context>

<pallas_src>
import jax
import jax.numpy as jnp
from jax.experimental import pallas as pl
from jax.experimental.pallas import tpu as pltpu

NHID = 256     # LSTM hidden size
NEMB = 128     # embedding size == fc_dr output size
T_BLOCK = 16   # LSTM timesteps handled per grid step


def _round_up(x, m):
    return (x + m - 1) // m * m


# --------------------------------------------------------------------------
# Kernel 1: sequential LSTM recurrence (only h @ W_hh + elementwise per step)
# --------------------------------------------------------------------------
def _lstm_kernel(ig_ref, whh_ref, h_out_ref, h_ref, c_ref):
    """Grid = (batch chunks ["parallel"], time chunks ["arbitrary"]).

    ig_ref    : (T, Bc, 4*NHID)  precomputed x_t @ W_ih^T + (b_ih + b_hh)
    whh_ref   : (NHID, 4*NHID)   W_hh^T (gate order i, f, g, o as in PyTorch)
    h_out_ref : (T, Bc, NHID)    hidden states for this chunk (f32)
    h_ref/c_ref : (Bc, NHID)     recurrent state, persists across time chunks
    """
    @pl.when(pl.program_id(1) == 0)
    def _():
        # init_hidden(): zero hidden / cell state at t == 0 of each batch chunk
        h_ref[...] = jnp.zeros_like(h_ref)
        c_ref[...] = jnp.zeros_like(c_ref)

    def step(t, carry):
        del carry
        h_prev = h_ref[...]                       # (Bc, NHID) f32
        c_prev = c_ref[...]
        # bf16 MXU operands, f32 accumulation; gate sum + state math stay f32.
        gates = (ig_ref[t].astype(jnp.float32)
                 + jnp.dot(h_prev.astype(whh_ref.dtype), whh_ref[...],
                           preferred_element_type=jnp.float32))
        i_g = jax.nn.sigmoid(gates[:, 0 * NHID:1 * NHID])
        f_g = jax.nn.sigmoid(gates[:, 1 * NHID:2 * NHID])
        g_g = jnp.tanh(gates[:, 2 * NHID:3 * NHID])
        o_g = jax.nn.sigmoid(gates[:, 3 * NHID:4 * NHID])
        c_new = f_g * c_prev + i_g * g_g
        h_new = o_g * jnp.tanh(c_new)
        c_ref[...] = c_new
        h_ref[...] = h_new
        h_out_ref[t] = h_new
        return 0

    # short fixed trip-count -> unrolled fori_loop (LLO scheduler visibility)
    jax.lax.fori_loop(0, ig_ref.shape[0], step, 0, unroll=True)


# --------------------------------------------------------------------------
# Kernel 2: batched tanh(fc_dr) + tied-weight decoder, tiled rows x vocab
# --------------------------------------------------------------------------
def _proj_kernel(h_ref, wfc_ref, bfc_ref, wdec_ref, bdec_ref, out_ref, dr_ref):
    """Grid = (row tiles of M = seq*bsz ["parallel"], vocab tiles ["arbitrary"]).

    h_ref   : (TM, NHID)      LSTM outputs (rows of flattened (seq*bsz, NHID))
    wfc_ref : (NHID, NEMB)    fc_dr.weight^T   (MXU dtype)
    bfc_ref : (1, NEMB)       fc_dr.bias       (f32)
    wdec_ref: (NEMB, TN)      decoder.weight^T tile (tied to embedding)
    bdec_ref: (1, TN)         decoder.bias tile (f32)
    out_ref : (TM, TN)        logits tile (bf16 by default, f32 accumulation)
    dr_ref  : (TM, NEMB)      scratch: tanh(fc_dr(h)) cached across vocab tiles
    """
    @pl.when(pl.program_id(1) == 0)
    def _():
        pre = jnp.dot(h_ref[...].astype(wfc_ref.dtype), wfc_ref[...],
                      preferred_element_type=jnp.float32) + bfc_ref[...]
        dr_ref[...] = jnp.tanh(pre).astype(dr_ref.dtype)

    logits = jnp.dot(dr_ref[...], wdec_ref[...],
                     preferred_element_type=jnp.float32) + bdec_ref[...]
    out_ref[...] = logits.astype(out_ref.dtype)


# --------------------------------------------------------------------------
# One-time parameter preparation (hoisted out of the per-call forward path)
# --------------------------------------------------------------------------
def prepare_params(params, *, matmul_dtype=jnp.bfloat16, tn=2048):
    """Transposes / pads / casts all weights once. tn is the vocab tile width."""
    ntoken = params["emb"].shape[0]
    ntok_pad = _round_up(ntoken, 128)            # lane-dense decoder / logits
    tn = min(tn, ntok_pad)
    ntok_pad = _round_up(ntok_pad, tn)

    emb_f32 = params["emb"].astype(jnp.float32)                      # (V, 128)
    wdec_t = jnp.pad(emb_f32.T, ((0, 0), (0, ntok_pad - ntoken)))    # (128, Vp)
    return {
        "ntoken": ntoken,
        "ntok_pad": ntok_pad,
        "tn": tn,
        "matmul_dtype": matmul_dtype,
        # embedding table in MXU dtype for the gather feeding stage 1
        "emb_mm": params["emb"].astype(matmul_dtype),                 # (V, 128)
        "wih_t": params["w_ih"].T.astype(matmul_dtype),               # (128, 1024)
        "gate_bias": (params["b_ih"] + params["b_hh"]).astype(jnp.float32),
        "whh_t": params["w_hh"].T.astype(matmul_dtype),               # (256, 1024)
        "wfc_t": params["w_fc"].T.astype(matmul_dtype),               # (256, 128)
        "bfc": params["b_fc"].reshape(1, NEMB).astype(jnp.float32),
        "wdec_t": wdec_t.astype(matmul_dtype),                        # (128, Vp)
        "bdec": jnp.pad(params["b_dec"].astype(jnp.float32),
                        (0, ntok_pad - ntoken)).reshape(1, ntok_pad),
    }


# --------------------------------------------------------------------------
# Forward
# --------------------------------------------------------------------------
def rnn_model_forward(tokens, prep, *, t_block=T_BLOCK, tm=256,
                      logits_dtype=jnp.bfloat16, lstm_batch_chunks=1):
    """tokens: int32 (seq, batch). Returns (seq, batch, ntoken) in logits_dtype.

    lstm_batch_chunks > 1 only pays off on v7x (2 TensorCores) with b_pad >= 16;
    keep it at 1 on v5e / v6e (single TC).
    """
    seq, bsz = tokens.shape
    ntoken, ntok_pad, tn = prep["ntoken"], prep["ntok_pad"], prep["tn"]
    mm_dtype = prep["matmul_dtype"]

    # ---- TPU-friendly padded sizes ----------------------------------------
    b_unit = 8 * lstm_batch_chunks
    b_pad = max(b_unit, _round_up(bsz, b_unit))   # full sublane group per chunk
    b_chunk = b_pad // lstm_batch_chunks
    seq_pad = _round_up(seq, t_block)

    # ---- Stage 0 (glue): embedding gather + pad batch/time -----------------
    emb = jnp.take(prep["emb_mm"], tokens, axis=0)        # (seq, bsz, 128)
    emb = jnp.pad(emb, ((0, seq_pad - seq), (0, b_pad - bsz), (0, 0)))

    # ---- Stage 1 (glue): hoisted input->gate projection, bf16 ops / f32 acc -
    igates = (jnp.einsum("sbe,eg->sbg", emb, prep["wih_t"],
                         preferred_element_type=jnp.float32)
              + prep["gate_bias"]).astype(mm_dtype)       # (seq_pad, b_pad, 1024)

    # ---- Stage 2 (Pallas): sequential recurrence, t_block steps / grid step -
    hs = pl.pallas_call(
        _lstm_kernel,
        out_shape=jax.ShapeDtypeStruct((seq_pad, b_pad, NHID), jnp.float32),
        grid_spec=pltpu.PrefetchScalarGridSpec(
            num_scalar_prefetch=0,
            grid=(lstm_batch_chunks, seq_pad // t_block),
            in_specs=[
                pl.BlockSpec((t_block, b_chunk, 4 * NHID),
                             lambda bi, ti: (ti, bi, 0)),
                pl.BlockSpec((NHID, 4 * NHID), lambda bi, ti: (0, 0)),
            ],
            out_specs=pl.BlockSpec((t_block, b_chunk, NHID),
                                   lambda bi, ti: (ti, bi, 0)),
            scratch_shapes=[
                pltpu.VMEM((b_chunk, NHID), jnp.float32),   # h state
                pltpu.VMEM((b_chunk, NHID), jnp.float32),   # c state
            ],
        ),
        compiler_params=pltpu.CompilerParams(
            # batch chunks independent; time is the true recurrence
            dimension_semantics=("parallel", "arbitrary")),
    )(igates, prep["whh_t"])

    # ---- Stage 3 (Pallas): compact real rows, then tanh(fc) + tied decoder --
    # Only the real seq*bsz rows reach the FLOP/HBM-dominant decoder stage.
    m = seq * bsz
    h_flat = hs[:seq, :bsz].reshape(m, NHID)
    tm_eff = max(8, min(tm, _round_up(m, 8)))     # keep sublane-aligned tiles
    m_pad = _round_up(m, tm_eff)
    if m_pad != m:
        h_flat = jnp.pad(h_flat, ((0, m_pad - m), (0, 0)))

    mm_bytes = jnp.dtype(mm_dtype).itemsize
    out_bytes = jnp.dtype(logits_dtype).itemsize
    cost = pl.CostEstimate(
        flops=2 * m_pad * NEMB * ntok_pad + 2 * m_pad * NHID * NEMB,
        transcendentals=m_pad * NEMB,
        bytes_accessed=(m_pad * NHID * 4
                        + (m_pad // tm_eff) * NEMB * ntok_pad * mm_bytes
                        + m_pad * ntok_pad * out_bytes),
    )

    logits = pl.pallas_call(
        _proj_kernel,
        out_shape=jax.ShapeDtypeStruct((m_pad, ntok_pad), logits_dtype),
        grid_spec=pltpu.PrefetchScalarGridSpec(
            num_scalar_prefetch=0,
            grid=(m_pad // tm_eff, ntok_pad // tn),
            in_specs=[
                pl.BlockSpec((tm_eff, NHID), lambda i, j: (i, 0)),   # h rows
                pl.BlockSpec((NHID, NEMB), lambda i, j: (0, 0)),     # W_fc^T
                pl.BlockSpec((1, NEMB), lambda i, j: (0, 0)),        # b_fc
                pl.BlockSpec((NEMB, tn), lambda i, j: (0, j)),       # W_dec^T
                pl.BlockSpec((1, tn), lambda i, j: (0, j)),          # b_dec
            ],
            out_specs=pl.BlockSpec((tm_eff, tn), lambda i, j: (i, j)),
            scratch_shapes=[pltpu.VMEM((tm_eff, NEMB), mm_dtype)],   # dr cache
        ),
        compiler_params=pltpu.CompilerParams(
            dimension_semantics=("parallel", "arbitrary")),
        cost_estimate=cost,
    )(h_flat, prep["wfc_t"], prep["bfc"], prep["wdec_t"], prep["bdec"])

    return logits[:m].reshape(seq, bsz, ntok_pad)[:, :, :ntoken]


# --------------------------------------------------------------------------
# Pure-JAX reference (mirrors PyTorch eval-mode semantics)
# --------------------------------------------------------------------------
def ref_forward(tokens, params):
    emb = jnp.take(params["emb"], tokens, axis=0)
    b = params["b_ih"] + params["b_hh"]

    def step(carry, x_t):
        h, c = carry
        gates = x_t @ params["w_ih"].T + h @ params["w_hh"].T + b
        i, f, g, o = jnp.split(gates, 4, axis=-1)
        i, f, g, o = (jax.nn.sigmoid(i), jax.nn.sigmoid(f),
                      jnp.tanh(g), jax.nn.sigmoid(o))
        c = f * c + i * g
        h = o * jnp.tanh(c)
        return (h, c), h

    bsz = tokens.shape[1]
    h0 = jnp.zeros((bsz, NHID), jnp.float32)
    c0 = jnp.zeros((bsz, NHID), jnp.float32)
    _, hs = jax.lax.scan(step, (h0, c0), emb)
    dr = jnp.tanh(hs @ params["w_fc"].T + params["b_fc"])
    return dr @ params["emb"].T + params["b_dec"]


def init_params(key, ntoken):
    ks = jax.random.split(key, 7)
    initrange = 0.1
    lstm_range = 1.0 / jnp.sqrt(NHID)
    return {
        "emb": jax.random.uniform(ks[0], (ntoken, NEMB), jnp.float32,
                                  -initrange, initrange),   # tied enc/dec weight
        "w_ih": jax.random.uniform(ks[1], (4 * NHID, NEMB), jnp.float32,
                                   -lstm_range, lstm_range),
        "w_hh": jax.random.uniform(ks[2], (4 * NHID, NHID), jnp.float32,
                                   -lstm_range, lstm_range),
        "b_ih": jax.random.uniform(ks[3], (4 * NHID,), jnp.float32,
                                   -lstm_range, lstm_range),
        "b_hh": jax.random.uniform(ks[4], (4 * NHID,), jnp.float32,
                                   -lstm_range, lstm_range),
        "w_fc": jax.random.uniform(ks[5], (NEMB, NHID), jnp.float32,
                                   -initrange, initrange),
        "b_fc": jnp.zeros((NEMB,), jnp.float32),
        "b_dec": jnp.zeros((ntoken,), jnp.float32),
    }


if __name__ == "__main__":
    # Small shapes that still exercise padding (ntoken->256, bsz->8, seq->16)
    # and multi-tile grids in both kernels.
    ntoken, bsz, seq = 200, 4, 12
    key = jax.random.PRNGKey(0)
    pkey, tkey = jax.random.split(key)
    params = init_params(pkey, ntoken)
    tokens = jax.random.randint(tkey, (seq, bsz), 0, ntoken, dtype=jnp.int32)

    ref = jax.block_until_ready(ref_forward(tokens, params))

    # Exact-dtype path (f32 MXU operands, f32 logits): tight check against the
    # reference; small tiles exercise multi-tile grids in both kernels.
    prep_f32 = prepare_params(params, matmul_dtype=jnp.float32, tn=128)
    out_f32 = jax.block_until_ready(
        rnn_model_forward(tokens, prep_f32, t_block=8, tm=64,
                          logits_dtype=jnp.float32))
    assert out_f32.shape == (seq, bsz, ntoken), out_f32.shape
    assert jnp.allclose(out_f32, ref, atol=2e-3, rtol=2e-3), \
        float(jnp.max(jnp.abs(out_f32 - ref)))

    # Default perf path: bf16 MXU operands / bf16 igates / bf16 logits
    # (f32 accumulation everywhere; f32 h/c recurrent state).
    prep = prepare_params(params)
    out_bf16 = jax.block_until_ready(rnn_model_forward(tokens, prep))
    assert out_bf16.shape == (seq, bsz, ntoken), out_bf16.shape
    assert jnp.allclose(out_bf16.astype(jnp.float32), ref,
                        atol=5e-2, rtol=5e-2), \
        float(jnp.max(jnp.abs(out_bf16.astype(jnp.float32) - ref)))

    print("KERNEL_OK")
</pallas_src>

<mosaic_0001>
module attributes {stable_mosaic.version = 11 : i64} {
  func.func @_lstm_kernel(%arg0: i32, %arg1: i32, %arg2: memref<8x8x1024xf32, #tpu.memory_space<vmem>>, %arg3: memref<256x1024xf32, #tpu.memory_space<vmem>>, %arg4: memref<8x8x256xf32, #tpu.memory_space<vmem>>, %arg5: memref<8x256xf32, #tpu.memory_space<vmem>>, %arg6: memref<8x256xf32, #tpu.memory_space<vmem>>) attributes {dimension_semantics = [#tpu.dimension_semantics<parallel>, #tpu.dimension_semantics<arbitrary>], iteration_bounds = array<i64: 1, 2>, scalar_prefetch = 0 : i64, scratch_operands = 2 : i64, tpu.core_type = #tpu.core_type<tc>, window_params = [{transform_indices = @transform_0, window_bounds = array<i64: 8, 8, 1024>}, {pipeline_mode = #tpu.pipeline_mode<synchronous>, transform_indices = @transform_1, window_bounds = array<i64: 256, 1024>}, {transform_indices = @transform_2, window_bounds = array<i64: 8, 8, 256>}]} {
    %c0_i32 = arith.constant 0 : i32
    %0 = arith.cmpi eq, %arg1, %c0_i32 : i32
    %1 = arith.extui %0 : i1 to i32
    %c0_i32_0 = arith.constant 0 : i32
    %2 = arith.cmpi ne, %1, %c0_i32_0 : i32
    scf.if %2 {
      %cst_144 = arith.constant 0.000000e+00 : f32
      %315 = vector.broadcast %cst_144 : f32 to vector<8x256xf32>
      %c0_145 = arith.constant 0 : index
      %c0_146 = arith.constant 0 : index
      %316 = vector.load %arg5[%c0_145, %c0_146] : memref<8x256xf32, #tpu.memory_space<vmem>>, vector<8x256xf32>
      tpu.vector_store %arg5[%c0_145, %c0_146], %315 {strides = array<i32>} : memref<8x256xf32, #tpu.memory_space<vmem>>, vector<8x256xf32>,
      %cst_147 = arith.constant 0.000000e+00 : f32
      %317 = vector.broadcast %cst_147 : f32 to vector<8x256xf32>
      %c0_148 = arith.constant 0 : index
      %c0_149 = arith.constant 0 : index
      %318 = vector.load %arg6[%c0_148, %c0_149] : memref<8x256xf32, #tpu.memory_space<vmem>>, vector<8x256xf32>
      tpu.vector_store %arg6[%c0_148, %c0_149], %317 {strides = array<i32>} : memref<8x256xf32, #tpu.memory_space<vmem>>, vector<8x256xf32>,
    } else {
    }
    %c0_i32_1 = arith.constant 0 : i32
    %c0 = arith.constant 0 : index
    %c0_2 = arith.constant 0 : index
    %3 = vector.load %arg5[%c0, %c0_2] : memref<8x256xf32, #tpu.memory_space<vmem>>, vector<8x256xf32>
    %c0_3 = arith.constant 0 : index
    %c0_4 = arith.constant 0 : index
    %4 = vector.load %arg6[%c0_3, %c0_4] : memref<8x256xf32, #tpu.memory_space<vmem>>, vector<8x256xf32>
    %5 = arith.index_cast %c0_i32_1 : i32 to index
    %c0_5 = arith.constant 0 : index
    %c0_6 = arith.constant 0 : index
    %6 = vector.load %arg2[%5, %c0_5, %c0_6] : memref<8x8x1024xf32, #tpu.memory_space<vmem>>, vector<1x8x1024xf32>
    %7 = vector.shape_cast %6 : vector<1x8x1024xf32> to vector<8x1024xf32>
    %c0_7 = arith.constant 0 : index
    %c0_8 = arith.constant 0 : index
    %8 = vector.load %arg3[%c0_7, %c0_8] : memref<256x1024xf32, #tpu.memory_space<vmem>>, vector<256x1024xf32>
    %cst = arith.constant dense<0.000000e+00> : vector<8x1024xf32>
    %9 = tpu.matmul %3, %8, %cst {dimension_numbers = #tpu.dot_dimension_numbers<[1], [0], [0], [1], [0, 0, 1, 1], [], []>} : vector<8x256xf32>, vector<256x1024xf32>, vector<8x1024xf32> -> vector<8x1024xf32>
    %10 = arith.addf %7, %9 : vector<8x1024xf32>
    %11 = vector.extract_strided_slice %10 {offsets = [0, 0], sizes = [8, 256], strides = [1, 1]} : vector<8x1024xf32> to vector<8x256xf32>
    %12 = arith.negf %11 : vector<8x256xf32>
    %13 = math.exp %12 : vector<8x256xf32>
    %cst_9 = arith.constant 1.000000e+00 : f32
    %14 = vector.broadcast %cst_9 : f32 to vector<8x256xf32>
    %15 = arith.addf %14, %13 : vector<8x256xf32>
    %16 = arith.divf %14, %15 : vector<8x256xf32>
    %17 = vector.extract_strided_slice %10 {offsets = [0, 256], sizes = [8, 256], strides = [1, 1]} : vector<8x1024xf32> to vector<8x256xf32>
    %18 = arith.negf %17 : vector<8x256xf32>
    %19 = math.exp %18 : vector<8x256xf32>
    %cst_10 = arith.constant 1.000000e+00 : f32
    %20 = vector.broadcast %cst_10 : f32 to vector<8x256xf32>
    %21 = arith.addf %20, %19 : vector<8x256xf32>
    %22 = arith.divf %20, %21 : vector<8x256xf32>
    %23 = vector.extract_strided_slice %10 {offsets = [0, 512], sizes = [8, 256], strides = [1, 1]} : vector<8x1024xf32> to vector<8x256xf32>
    %24 = math.tanh %23 : vector<8x256xf32>
    %25 = vector.extract_strided_slice %10 {offsets = [0, 768], sizes = [8, 256], strides = [1, 1]} : vector<8x1024xf32> to vector<8x256xf32>
    %26 = arith.negf %25 : vector<8x256xf32>
    %27 = math.exp %26 : vector<8x256xf32>
    %cst_11 = arith.constant 1.000000e+00 : f32
    %28 = vector.broadcast %cst_11 : f32 to vector<8x256xf32>
    %29 = arith.addf %28, %27 : vector<8x256xf32>
    %30 = arith.divf %28, %29 : vector<8x256xf32>
    %31 = arith.mulf %22, %4 : vector<8x256xf32>
    %32 = arith.mulf %16, %24 : vector<8x256xf32>
    %33 = arith.addf %31, %32 : vector<8x256xf32>
    %34 = math.tanh %33 : vector<8x256xf32>
    %35 = arith.mulf %30, %34 : vector<8x256xf32>
    %c0_12 = arith.constant 0 : index
    %c0_13 = arith.constant 0 : index
    %36 = vector.load %arg6[%c0_12, %c0_13] : memref<8x256xf32, #tpu.memory_space<vmem>>, vector<8x256xf32>
    tpu.vector_store %arg6[%c0_12, %c0_13], %33 {strides = array<i32>} : memref<8x256xf32, #tpu.memory_space<vmem>>, vector<8x256xf32>,
    %c0_14 = arith.constant 0 : index
    %c0_15 = arith.constant 0 : index
    %37 = vector.load %arg5[%c0_14, %c0_15] : memref<8x256xf32, #tpu.memory_space<vmem>>, vector<8x256xf32>
    tpu.vector_store %arg5[%c0_14, %c0_15], %35 {strides = array<i32>} : memref<8x256xf32, #tpu.memory_space<vmem>>, vector<8x256xf32>,
    %38 = arith.index_cast %c0_i32_1 : i32 to index
    %c0_16 = arith.constant 0 : index
    %c0_17 = arith.constant 0 : index
    %39 = vector.load %arg4[%38, %c0_16, %c0_17] : memref<8x8x256xf32, #tpu.memory_space<vmem>>, vector<1x8x256xf32>
    %40 = vector.shape_cast %39 : vector<1x8x256xf32> to vector<8x256xf32>
    %41 = vector.shape_cast %35 : vector<8x256xf32> to vector<1x8x256xf32>
    tpu.vector_store %arg4[%38, %c0_16, %c0_17], %41 {strides = array<i32>} : memref<8x8x256xf32, #tpu.memory_space<vmem>>, vector<1x8x256xf32>,
    %c1_i32 = arith.constant 1 : i32
    %c0_18 = arith.constant 0 : index
    %c0_19 = arith.constant 0 : index
    %42 = vector.load %arg5[%c0_18, %c0_19] : memref<8x256xf32, #tpu.memory_space<vmem>>, vector<8x256xf32>
    %c0_20 = arith.constant 0 : index
    %c0_21 = arith.constant 0 : index
    %43 = vector.load %arg6[%c0_20, %c0_21] : memref<8x256xf32, #tpu.memory_space<vmem>>, vector<8x256xf32>
    %44 = arith.index_cast %c1_i32 : i32 to index
    %c0_22 = arith.constant 0 : index
    %c0_23 = arith.constant 0 : index
    %45 = vector.load %arg2[%44, %c0_22, %c0_23] : memref<8x8x1024xf32, #tpu.memory_space<vmem>>, vector<1x8x1024xf32>
    %46 = vector.shape_cast %45 : vector<1x8x1024xf32> to vector<8x1024xf32>
    %c0_24 = arith.constant 0 : index
    %c0_25 = arith.constant 0 : index
    %47 = vector.load %arg3[%c0_24, %c0_25] : memref<256x1024xf32, #tpu.memory_space<vmem>>, vector<256x1024xf32>
    %cst_26 = arith.constant dense<0.000000e+00> : vector<8x1024xf32>
    %48 = tpu.matmul %42, %47, %cst_26 {dimension_numbers = #tpu.dot_dimension_numbers<[1], [0], [0], [1], [0, 0, 1, 1], [], []>} : vector<8x256xf32>, vector<256x1024xf32>, vector<8x1024xf32> -> vector<8x1024xf32>
    %49 = arith.addf %46, %48 : vector<8x1024xf32>
    %50 = vector.extract_strided_slice %49 {offsets = [0, 0], sizes = [8, 256], strides = [1, 1]} : vector<8x1024xf32> to vector<8x256xf32>
    %51 = arith.negf %50 : vector<8x256xf32>
    %52 = math.exp %51 : vector<8x256xf32>
    %cst_27 = arith.constant 1.000000e+00 : f32
    %53 = vector.broadcast %cst_27 : f32 to vector<8x256xf32>
    %54 = arith.addf %53, %52 : vector<8x256xf32>
    %55 = arith.divf %53, %54 : vector<8x256xf32>
    %56 = vector.extract_strided_slice %49 {offsets = [0, 256], sizes = [8, 256], strides = [1, 1]} : vector<8x1024xf32> to vector<8x256xf32>
    %57 = arith.negf %56 : vector<8x256xf32>
    %58 = math.exp %57 : vector<8x256xf32>
    %cst_28 = arith.constant 1.000000e+00 : f32
    %59 = vector.broadcast %cst_28 : f32 to vector<8x256xf32>
    %60 = arith.addf %59, %58 : vector<8x256xf32>
    %61 = arith.divf %59, %60 : vector<8x256xf32>
    %62 = vector.extract_strided_slice %49 {offsets = [0, 512], sizes = [8, 256], strides = [1, 1]} : vector<8x1024xf32> to vector<8x256xf32>
    %63 = math.tanh %62 : vector<8x256xf32>
    %64 = vector.extract_strided_slice %49 {offsets = [0, 768], sizes = [8, 256], strides = [1, 1]} : vector<8x1024xf32> to vector<8x256xf32>
    %65 = arith.negf %64 : vector<8x256xf32>
    %66 = math.exp %65 : vector<8x256xf32>
    %cst_29 = arith.constant 1.000000e+00 : f32
    %67 = vector.broadcast %cst_29 : f32 to vector<8x256xf32>
    %68 = arith.addf %67, %66 : vector<8x256xf32>
    %69 = arith.divf %67, %68 : vector<8x256xf32>
    %70 = arith.mulf %61, %43 : vector<8x256xf32>
    %71 = arith.mulf %55, %63 : vector<8x256xf32>
    %72 = arith.addf %70, %71 : vector<8x256xf32>
    %73 = math.tanh %72 : vector<8x256xf32>
    %74 = arith.mulf %69, %73 : vector<8x256xf32>
    %c0_30 = arith.constant 0 : index
    %c0_31 = arith.constant 0 : index
    %75 = vector.load %arg6[%c0_30, %c0_31] : memref<8x256xf32, #tpu.memory_space<vmem>>, vector<8x256xf32>
    tpu.vector_store %arg6[%c0_30, %c0_31], %72 {strides = array<i32>} : memref<8x256xf32, #tpu.memory_space<vmem>>, vector<8x256xf32>,
    %c0_32 = arith.constant 0 : index
    %c0_33 = arith.constant 0 : index
    %76 = vector.load %arg5[%c0_32, %c0_33] : memref<8x256xf32, #tpu.memory_space<vmem>>, vector<8x256xf32>
    tpu.vector_store %arg5[%c0_32, %c0_33], %74 {strides = array<i32>} : memref<8x256xf32, #tpu.memory_space<vmem>>, vector<8x256xf32>,
    %77 = arith.index_cast %c1_i32 : i32 to index
    %c0_34 = arith.constant 0 : index
    %c0_35 = arith.constant 0 : index
    %78 = vector.load %arg4[%77, %c0_34, %c0_35] : memref<8x8x256xf32, #tpu.memory_space<vmem>>, vector<1x8x256xf32>
    %79 = vector.shape_cast %78 : vector<1x8x256xf32> to vector<8x256xf32>
    %80 = vector.shape_cast %74 : vector<8x256xf32> to vector<1x8x256xf32>
    tpu.vector_store %arg4[%77, %c0_34, %c0_35], %80 {strides = array<i32>} : memref<8x8x256xf32, #tpu.memory_space<vmem>>, vector<1x8x256xf32>,
    %c2_i32 = arith.constant 2 : i32
    %c0_36 = arith.constant 0 : index
    %c0_37 = arith.constant 0 : index
    %81 = vector.load %arg5[%c0_36, %c0_37] : memref<8x256xf32, #tpu.memory_space<vmem>>, vector<8x256xf32>
    %c0_38 = arith.constant 0 : index
    %c0_39 = arith.constant 0 : index
    %82 = vector.load %arg6[%c0_38, %c0_39] : memref<8x256xf32, #tpu.memory_space<vmem>>, vector<8x256xf32>
    %83 = arith.index_cast %c2_i32 : i32 to index
    %c0_40 = arith.constant 0 : index
    %c0_41 = arith.constant 0 : index
    %84 = vector.load %arg2[%83, %c0_40, %c0_41] : memref<8x8x1024xf32, #tpu.memory_space<vmem>>, vector<1x8x1024xf32>
    %85 = vector.shape_cast %84 : vector<1x8x1024xf32> to vector<8x1024xf32>
    %c0_42 = arith.constant 0 : index
    %c0_43 = arith.constant 0 : index
    %86 = vector.load %arg3[%c0_42, %c0_43] : memref<256x1024xf32, #tpu.memory_space<vmem>>, vector<256x1024xf32>
    %cst_44 = arith.constant dense<0.000000e+00> : vector<8x1024xf32>
    %87 = tpu.matmul %81, %86, %cst_44 {dimension_numbers = #tpu.dot_dimension_numbers<[1], [0], [0], [1], [0, 0, 1, 1], [], []>} : vector<8x256xf32>, vector<256x1024xf32>, vector<8x1024xf32> -> vector<8x1024xf32>
    %88 = arith.addf %85, %87 : vector<8x1024xf32>
    %89 = vector.extract_strided_slice %88 {offsets = [0, 0], sizes = [8, 256], strides = [1, 1]} : vector<8x1024xf32> to vector<8x256xf32>
    %90 = arith.negf %89 : vector<8x256xf32>
    %91 = math.exp %90 : vector<8x256xf32>
    %cst_45 = arith.constant 1.000000e+00 : f32
    %92 = vector.broadcast %cst_45 : f32 to vector<8x256xf32>
    %93 = arith.addf %92, %91 : vector<8x256xf32>
    %94 = arith.divf %92, %93 : vector<8x256xf32>
    %95 = vector.extract_strided_slice %88 {offsets = [0, 256], sizes = [8, 256], strides = [1, 1]} : vector<8x1024xf32> to vector<8x256xf32>
    %96 = arith.negf %95 : vector<8x256xf32>
    %97 = math.exp %96 : vector<8x256xf32>
    %cst_46 = arith.constant 1.000000e+00 : f32
    %98 = vector.broadcast %cst_46 : f32 to vector<8x256xf32>
    %99 = arith.addf %98, %97 : vector<8x256xf32>
    %100 = arith.divf %98, %99 : vector<8x256xf32>
    %101 = vector.extract_strided_slice %88 {offsets = [0, 512], sizes = [8, 256], strides = [1, 1]} : vector<8x1024xf32> to vector<8x256xf32>
    %102 = math.tanh %101 : vector<8x256xf32>
    %103 = vector.extract_strided_slice %88 {offsets = [0, 768], sizes = [8, 256], strides = [1, 1]} : vector<8x1024xf32> to vector<8x256xf32>
    %104 = arith.negf %103 : vector<8x256xf32>
    %105 = math.exp %104 : vector<8x256xf32>
    %cst_47 = arith.constant 1.000000e+00 : f32
    %106 = vector.broadcast %cst_47 : f32 to vector<8x256xf32>
    %107 = arith.addf %106, %105 : vector<8x256xf32>
    %108 = arith.divf %106, %107 : vector<8x256xf32>
    %109 = arith.mulf %100, %82 : vector<8x256xf32>
    %110 = arith.mulf %94, %102 : vector<8x256xf32>
    %111 = arith.addf %109, %110 : vector<8x256xf32>
    %112 = math.tanh %111 : vector<8x256xf32>
    %113 = arith.mulf %108, %112 : vector<8x256xf32>
    %c0_48 = arith.constant 0 : index
    %c0_49 = arith.constant 0 : index
    %114 = vector.load %arg6[%c0_48, %c0_49] : memref<8x256xf32, #tpu.memory_space<vmem>>, vector<8x256xf32>
    tpu.vector_store %arg6[%c0_48, %c0_49], %111 {strides = array<i32>} : memref<8x256xf32, #tpu.memory_space<vmem>>, vector<8x256xf32>,
    %c0_50 = arith.constant 0 : index
    %c0_51 = arith.constant 0 : index
    %115 = vector.load %arg5[%c0_50, %c0_51] : memref<8x256xf32, #tpu.memory_space<vmem>>, vector<8x256xf32>
    tpu.vector_store %arg5[%c0_50, %c0_51], %113 {strides = array<i32>} : memref<8x256xf32, #tpu.memory_space<vmem>>, vector<8x256xf32>,
    %116 = arith.index_cast %c2_i32 : i32 to index
    %c0_52 = arith.constant 0 : index
    %c0_53 = arith.constant 0 : index
    %117 = vector.load %arg4[%116, %c0_52, %c0_53] : memref<8x8x256xf32, #tpu.memory_space<vmem>>, vector<1x8x256xf32>
    %118 = vector.shape_cast %117 : vector<1x8x256xf32> to vector<8x256xf32>
    %119 = vector.shape_cast %113 : vector<8x256xf32> to vector<1x8x256xf32>
    tpu.vector_store %arg4[%116, %c0_52, %c0_53], %119 {strides = array<i32>} : memref<8x8x256xf32, #tpu.memory_space<vmem>>, vector<1x8x256xf32>,
    %c3_i32 = arith.constant 3 : i32
    %c0_54 = arith.constant 0 : index
    %c0_55 = arith.constant 0 : index
    %120 = vector.load %arg5[%c0_54, %c0_55] : memref<8x256xf32, #tpu.memory_space<vmem>>, vector<8x256xf32>
    %c0_56 = arith.constant 0 : index
    %c0_57 = arith.constant 0 : index
    %121 = vector.load %arg6[%c0_56, %c0_57] : memref<8x256xf32, #tpu.memory_space<vmem>>, vector<8x256xf32>
    %122 = arith.index_cast %c3_i32 : i32 to index
    %c0_58 = arith.constant 0 : index
    %c0_59 = arith.constant 0 : index
    %123 = vector.load %arg2[%122, %c0_58, %c0_59] : memref<8x8x1024xf32, #tpu.memory_space<vmem>>, vector<1x8x1024xf32>
    %124 = vector.shape_cast %123 : vector<1x8x1024xf32> to vector<8x1024xf32>
    %c0_60 = arith.constant 0 : index
    %c0_61 = arith.constant 0 : index
    %125 = vector.load %arg3[%c0_60, %c0_61] : memref<256x1024xf32, #tpu.memory_space<vmem>>, vector<256x1024xf32>
    %cst_62 = arith.constant dense<0.000000e+00> : vector<8x1024xf32>
    %126 = tpu.matmul %120, %125, %cst_62 {dimension_numbers = #tpu.dot_dimension_numbers<[1], [0], [0], [1], [0, 0, 1, 1], [], []>} : vector<8x256xf32>, vector<256x1024xf32>, vector<8x1024xf32> -> vector<8x1024xf32>
    %127 = arith.addf %124, %126 : vector<8x1024xf32>
    %128 = vector.extract_strided_slice %127 {offsets = [0, 0], sizes = [8, 256], strides = [1, 1]} : vector<8x1024xf32> to vector<8x256xf32>
    %129 = arith.negf %128 : vector<8x256xf32>
    %130 = math.exp %129 : vector<8x256xf32>
    %cst_63 = arith.constant 1.000000e+00 : f32
    %131 = vector.broadcast %cst_63 : f32 to vector<8x256xf32>
    %132 = arith.addf %131, %130 : vector<8x256xf32>
    %133 = arith.divf %131, %132 : vector<8x256xf32>
    %134 = vector.extract_strided_slice %127 {offsets = [0, 256], sizes = [8, 256], strides = [1, 1]} : vector<8x1024xf32> to vector<8x256xf32>
    %135 = arith.negf %134 : vector<8x256xf32>
    %136 = math.exp %135 : vector<8x256xf32>
    %cst_64 = arith.constant 1.000000e+00 : f32
    %137 = vector.broadcast %cst_64 : f32 to vector<8x256xf32>
    %138 = arith.addf %137, %136 : vector<8x256xf32>
    %139 = arith.divf %137, %138 : vector<8x256xf32>
    %140 = vector.extract_strided_slice %127 {offsets = [0, 512], sizes = [8, 256], strides = [1, 1]} : vector<8x1024xf32> to vector<8x256xf32>
    %141 = math.tanh %140 : vector<8x256xf32>
    %142 = vector.extract_strided_slice %127 {offsets = [0, 768], sizes = [8, 256], strides = [1, 1]} : vector<8x1024xf32> to vector<8x256xf32>
    %143 = arith.negf %142 : vector<8x256xf32>
    %144 = math.exp %143 : vector<8x256xf32>
    %cst_65 = arith.constant 1.000000e+00 : f32
    %145 = vector.broadcast %cst_65 : f32 to vector<8x256xf32>
    %146 = arith.addf %145, %144 : vector<8x256xf32>
    %147 = arith.divf %145, %146 : vector<8x256xf32>
    %148 = arith.mulf %139, %121 : vector<8x256xf32>
    %149 = arith.mulf %133, %141 : vector<8x256xf32>
    %150 = arith.addf %148, %149 : vector<8x256xf32>
    %151 = math.tanh %150 : vector<8x256xf32>
    %152 = arith.mulf %147, %151 : vector<8x256xf32>
    %c0_66 = arith.constant 0 : index
    %c0_67 = arith.constant 0 : index
    %153 = vector.load %arg6[%c0_66, %c0_67] : memref<8x256xf32, #tpu.memory_space<vmem>>, vector<8x256xf32>
    tpu.vector_store %arg6[%c0_66, %c0_67], %150 {strides = array<i32>} : memref<8x256xf32, #tpu.memory_space<vmem>>, vector<8x256xf32>,
    %c0_68 = arith.constant 0 : index
    %c0_69 = arith.constant 0 : index
    %154 = vector.load %arg5[%c0_68, %c0_69] : memref<8x256xf32, #tpu.memory_space<vmem>>, vector<8x256xf32>
    tpu.vector_store %arg5[%c0_68, %c0_69], %152 {strides = array<i32>} : memref<8x256xf32, #tpu.memory_space<vmem>>, vector<8x256xf32>,
    %155 = arith.index_cast %c3_i32 : i32 to index
    %c0_70 = arith.constant 0 : index
    %c0_71 = arith.constant 0 : index
    %156 = vector.load %arg4[%155, %c0_70, %c0_71] : memref<8x8x256xf32, #tpu.memory_space<vmem>>, vector<1x8x256xf32>
    %157 = vector.shape_cast %156 : vector<1x8x256xf32> to vector<8x256xf32>
    %158 = vector.shape_cast %152 : vector<8x256xf32> to vector<1x8x256xf32>
    tpu.vector_store %arg4[%155, %c0_70, %c0_71], %158 {strides = array<i32>} : memref<8x8x256xf32, #tpu.memory_space<vmem>>, vector<1x8x256xf32>,
    %c4_i32 = arith.constant 4 : i32
    %c0_72 = arith.constant 0 : index
    %c0_73 = arith.constant 0 : index
    %159 = vector.load %arg5[%c0_72, %c0_73] : memref<8x256xf32, #tpu.memory_space<vmem>>, vector<8x256xf32>
    %c0_74 = arith.constant 0 : index
    %c0_75 = arith.constant 0 : index
    %160 = vector.load %arg6[%c0_74, %c0_75] : memref<8x256xf32, #tpu.memory_space<vmem>>, vector<8x256xf32>
    %161 = arith.index_cast %c4_i32 : i32 to index
    %c0_76 = arith.constant 0 : index
    %c0_77 = arith.constant 0 : index
    %162 = vector.load %arg2[%161, %c0_76, %c0_77] : memref<8x8x1024xf32, #tpu.memory_space<vmem>>, vector<1x8x1024xf32>
    %163 = vector.shape_cast %162 : vector<1x8x1024xf32> to vector<8x1024xf32>
    %c0_78 = arith.constant 0 : index
    %c0_79 = arith.constant 0 : index
    %164 = vector.load %arg3[%c0_78, %c0_79] : memref<256x1024xf32, #tpu.memory_space<vmem>>, vector<256x1024xf32>
    %cst_80 = arith.constant dense<0.000000e+00> : vector<8x1024xf32>
    %165 = tpu.matmul %159, %164, %cst_80 {dimension_numbers = #tpu.dot_dimension_numbers<[1], [0], [0], [1], [0, 0, 1, 1], [], []>} : vector<8x256xf32>, vector<256x1024xf32>, vector<8x1024xf32> -> vector<8x1024xf32>
    %166 = arith.addf %163, %165 : vector<8x1024xf32>
    %167 = vector.extract_strided_slice %166 {offsets = [0, 0], sizes = [8, 256], strides = [1, 1]} : vector<8x1024xf32> to vector<8x256xf32>
    %168 = arith.negf %167 : vector<8x256xf32>
    %169 = math.exp %168 : vector<8x256xf32>
    %cst_81 = arith.constant 1.000000e+00 : f32
    %170 = vector.broadcast %cst_81 : f32 to vector<8x256xf32>
    %171 = arith.addf %170, %169 : vector<8x256xf32>
    %172 = arith.divf %170, %171 : vector<8x256xf32>
    %173 = vector.extract_strided_slice %166 {offsets = [0, 256], sizes = [8, 256], strides = [1, 1]} : vector<8x1024xf32> to vector<8x256xf32>
    %174 = arith.negf %173 : vector<8x256xf32>
    %175 = math.exp %174 : vector<8x256xf32>
    %cst_82 = arith.constant 1.000000e+00 : f32
    %176 = vector.broadcast %cst_82 : f32 to vector<8x256xf32>
    %177 = arith.addf %176, %175 : vector<8x256xf32>
    %178 = arith.divf %176, %177 : vector<8x256xf32>
    %179 = vector.extract_strided_slice %166 {offsets = [0, 512], sizes = [8, 256], strides = [1, 1]} : vector<8x1024xf32> to vector<8x256xf32>
    %180 = math.tanh %179 : vector<8x256xf32>
    %181 = vector.extract_strided_slice %166 {offsets = [0, 768], sizes = [8, 256], strides = [1, 1]} : vector<8x1024xf32> to vector<8x256xf32>
    %182 = arith.negf %181 : vector<8x256xf32>
    %183 = math.exp %182 : vector<8x256xf32>
    %cst_83 = arith.constant 1.000000e+00 : f32
    %184 = vector.broadcast %cst_83 : f32 to vector<8x256xf32>
    %185 = arith.addf %184, %183 : vector<8x256xf32>
    %186 = arith.divf %184, %185 : vector<8x256xf32>
    %187 = arith.mulf %178, %160 : vector<8x256xf32>
    %188 = arith.mulf %172, %180 : vector<8x256xf32>
    %189 = arith.addf %187, %188 : vector<8x256xf32>
    %190 = math.tanh %189 : vector<8x256xf32>
    %191 = arith.mulf %186, %190 : vector<8x256xf32>
    %c0_84 = arith.constant 0 : index
    %c0_85 = arith.constant 0 : index
    %192 = vector.load %arg6[%c0_84, %c0_85] : memref<8x256xf32, #tpu.memory_space<vmem>>, vector<8x256xf32>
    tpu.vector_store %arg6[%c0_84, %c0_85], %189 {strides = array<i32>} : memref<8x256xf32, #tpu.memory_space<vmem>>, vector<8x256xf32>,
    %c0_86 = arith.constant 0 : index
    %c0_87 = arith.constant 0 : index
    %193 = vector.load %arg5[%c0_86, %c0_87] : memref<8x256xf32, #tpu.memory_space<vmem>>, vector<8x256xf32>
    tpu.vector_store %arg5[%c0_86, %c0_87], %191 {strides = array<i32>} : memref<8x256xf32, #tpu.memory_space<vmem>>, vector<8x256xf32>,
    %194 = arith.index_cast %c4_i32 : i32 to index
    %c0_88 = arith.constant 0 : index
    %c0_89 = arith.constant 0 : index
    %195 = vector.load %arg4[%194, %c0_88, %c0_89] : memref<8x8x256xf32, #tpu.memory_space<vmem>>, vector<1x8x256xf32>
    %196 = vector.shape_cast %195 : vector<1x8x256xf32> to vector<8x256xf32>
    %197 = vector.shape_cast %191 : vector<8x256xf32> to vector<1x8x256xf32>
    tpu.vector_store %arg4[%194, %c0_88, %c0_89], %197 {strides = array<i32>} : memref<8x8x256xf32, #tpu.memory_space<vmem>>, vector<1x8x256xf32>,
    %c5_i32 = arith.constant 5 : i32
    %c0_90 = arith.constant 0 : index
    %c0_91 = arith.constant 0 : index
    %198 = vector.load %arg5[%c0_90, %c0_91] : memref<8x256xf32, #tpu.memory_space<vmem>>, vector<8x256xf32>
    %c0_92 = arith.constant 0 : index
    %c0_93 = arith.constant 0 : index
    %199 = vector.load %arg6[%c0_92, %c0_93] : memref<8x256xf32, #tpu.memory_space<vmem>>, vector<8x256xf32>
    %200 = arith.index_cast %c5_i32 : i32 to index
    %c0_94 = arith.constant 0 : index
    %c0_95 = arith.constant 0 : index
    %201 = vector.load %arg2[%200, %c0_94, %c0_95] : memref<8x8x1024xf32, #tpu.memory_space<vmem>>, vector<1x8x1024xf32>
    %202 = vector.shape_cast %201 : vector<1x8x1024xf32> to vector<8x1024xf32>
    %c0_96 = arith.constant 0 : index
    %c0_97 = arith.constant 0 : index
    %203 = vector.load %arg3[%c0_96, %c0_97] : memref<256x1024xf32, #tpu.memory_space<vmem>>, vector<256x1024xf32>
    %cst_98 = arith.constant dense<0.000000e+00> : vector<8x1024xf32>
    %204 = tpu.matmul %198, %203, %cst_98 {dimension_numbers = #tpu.dot_dimension_numbers<[1], [0], [0], [1], [0, 0, 1, 1], [], []>} : vector<8x256xf32>, vector<256x1024xf32>, vector<8x1024xf32> -> vector<8x1024xf32>
    %205 = arith.addf %202, %204 : vector<8x1024xf32>
    %206 = vector.extract_strided_slice %205 {offsets = [0, 0], sizes = [8, 256], strides = [1, 1]} : vector<8x1024xf32> to vector<8x256xf32>
    %207 = arith.negf %206 : vector<8x256xf32>
    %208 = math.exp %207 : vector<8x256xf32>
    %cst_99 = arith.constant 1.000000e+00 : f32
    %209 = vector.broadcast %cst_99 : f32 to vector<8x256xf32>
    %210 = arith.addf %209, %208 : vector<8x256xf32>
    %211 = arith.divf %209, %210 : vector<8x256xf32>
    %212 = vector.extract_strided_slice %205 {offsets = [0, 256], sizes = [8, 256], strides = [1, 1]} : vector<8x1024xf32> to vector<8x256xf32>
    %213 = arith.negf %212 : vector<8x256xf32>
    %214 = math.exp %213 : vector<8x256xf32>
    %cst_100 = arith.constant 1.000000e+00 : f32
    %215 = vector.broadcast %cst_100 : f32 to vector<8x256xf32>
    %216 = arith.addf %215, %214 : vector<8x256xf32>
    %217 = arith.divf %215, %216 : vector<8x256xf32>
    %218 = vector.extract_strided_slice %205 {offsets = [0, 512], sizes = [8, 256], strides = [1, 1]} : vector<8x1024xf32> to vector<8x256xf32>
    %219 = math.tanh %218 : vector<8x256xf32>
    %220 = vector.extract_strided_slice %205 {offsets = [0, 768], sizes = [8, 256], strides = [1, 1]} : vector<8x1024xf32> to vector<8x256xf32>
    %221 = arith.negf %220 : vector<8x256xf32>
    %222 = math.exp %221 : vector<8x256xf32>
    %cst_101 = arith.constant 1.000000e+00 : f32
    %223 = vector.broadcast %cst_101 : f32 to vector<8x256xf32>
    %224 = arith.addf %223, %222 : vector<8x256xf32>
    %225 = arith.divf %223, %224 : vector<8x256xf32>
    %226 = arith.mulf %217, %199 : vector<8x256xf32>
    %227 = arith.mulf %211, %219 : vector<8x256xf32>
    %228 = arith.addf %226, %227 : vector<8x256xf32>
    %229 = math.tanh %228 : vector<8x256xf32>
    %230 = arith.mulf %225, %229 : vector<8x256xf32>
    %c0_102 = arith.constant 0 : index
    %c0_103 = arith.constant 0 : index
    %231 = vector.load %arg6[%c0_102, %c0_103] : memref<8x256xf32, #tpu.memory_space<vmem>>, vector<8x256xf32>
    tpu.vector_store %arg6[%c0_102, %c0_103], %228 {strides = array<i32>} : memref<8x256xf32, #tpu.memory_space<vmem>>, vector<8x256xf32>,
    %c0_104 = arith.constant 0 : index
    %c0_105 = arith.constant 0 : index
    %232 = vector.load %arg5[%c0_104, %c0_105] : memref<8x256xf32, #tpu.memory_space<vmem>>, vector<8x256xf32>
    tpu.vector_store %arg5[%c0_104, %c0_105], %230 {strides = array<i32>} : memref<8x256xf32, #tpu.memory_space<vmem>>, vector<8x256xf32>,
    %233 = arith.index_cast %c5_i32 : i32 to index
    %c0_106 = arith.constant 0 : index
    %c0_107 = arith.constant 0 : index
    %234 = vector.load %arg4[%233, %c0_106, %c0_107] : memref<8x8x256xf32, #tpu.memory_space<vmem>>, vector<1x8x256xf32>
    %235 = vector.shape_cast %234 : vector<1x8x256xf32> to vector<8x256xf32>
    %236 = vector.shape_cast %230 : vector<8x256xf32> to vector<1x8x256xf32>
    tpu.vector_store %arg4[%233, %c0_106, %c0_107], %236 {strides = array<i32>} : memref<8x8x256xf32, #tpu.memory_space<vmem>>, vector<1x8x256xf32>,
    %c6_i32 = arith.constant 6 : i32
    %c0_108 = arith.constant 0 : index
    %c0_109 = arith.constant 0 : index
    %237 = vector.load %arg5[%c0_108, %c0_109] : memref<8x256xf32, #tpu.memory_space<vmem>>, vector<8x256xf32>
    %c0_110 = arith.constant 0 : index
    %c0_111 = arith.constant 0 : index
    %238 = vector.load %arg6[%c0_110, %c0_111] : memref<8x256xf32, #tpu.memory_space<vmem>>, vector<8x256xf32>
    %239 = arith.index_cast %c6_i32 : i32 to index
    %c0_112 = arith.constant 0 : index
    %c0_113 = arith.constant 0 : index
    %240 = vector.load %arg2[%239, %c0_112, %c0_113] : memref<8x8x1024xf32, #tpu.memory_space<vmem>>, vector<1x8x1024xf32>
    %241 = vector.shape_cast %240 : vector<1x8x1024xf32> to vector<8x1024xf32>
    %c0_114 = arith.constant 0 : index
    %c0_115 = arith.constant 0 : index
    %242 = vector.load %arg3[%c0_114, %c0_115] : memref<256x1024xf32, #tpu.memory_space<vmem>>, vector<256x1024xf32>
    %cst_116 = arith.constant dense<0.000000e+00> : vector<8x1024xf32>
    %243 = tpu.matmul %237, %242, %cst_116 {dimension_numbers = #tpu.dot_dimension_numbers<[1], [0], [0], [1], [0, 0, 1, 1], [], []>} : vector<8x256xf32>, vector<256x1024xf32>, vector<8x1024xf32> -> vector<8x1024xf32>
    %244 = arith.addf %241, %243 : vector<8x1024xf32>
    %245 = vector.extract_strided_slice %244 {offsets = [0, 0], sizes = [8, 256], strides = [1, 1]} : vector<8x1024xf32> to vector<8x256xf32>
    %246 = arith.negf %245 : vector<8x256xf32>
    %247 = math.exp %246 : vector<8x256xf32>
    %cst_117 = arith.constant 1.000000e+00 : f32
    %248 = vector.broadcast %cst_117 : f32 to vector<8x256xf32>
    %249 = arith.addf %248, %247 : vector<8x256xf32>
    %250 = arith.divf %248, %249 : vector<8x256xf32>
    %251 = vector.extract_strided_slice %244 {offsets = [0, 256], sizes = [8, 256], strides = [1, 1]} : vector<8x1024xf32> to vector<8x256xf32>
    %252 = arith.negf %251 : vector<8x256xf32>
    %253 = math.exp %252 : vector<8x256xf32>
    %cst_118 = arith.constant 1.000000e+00 : f32
    %254 = vector.broadcast %cst_118 : f32 to vector<8x256xf32>
    %255 = arith.addf %254, %253 : vector<8x256xf32>
    %256 = arith.divf %254, %255 : vector<8x256xf32>
    %257 = vector.extract_strided_slice %244 {offsets = [0, 512], sizes = [8, 256], strides = [1, 1]} : vector<8x1024xf32> to vector<8x256xf32>
    %258 = math.tanh %257 : vector<8x256xf32>
    %259 = vector.extract_strided_slice %244 {offsets = [0, 768], sizes = [8, 256], strides = [1, 1]} : vector<8x1024xf32> to vector<8x256xf32>
    %260 = arith.negf %259 : vector<8x256xf32>
    %261 = math.exp %260 : vector<8x256xf32>
    %cst_119 = arith.constant 1.000000e+00 : f32
    %262 = vector.broadcast %cst_119 : f32 to vector<8x256xf32>
    %263 = arith.addf %262, %261 : vector<8x256xf32>
    %264 = arith.divf %262, %263 : vector<8x256xf32>
    %265 = arith.mulf %256, %238 : vector<8x256xf32>
    %266 = arith.mulf %250, %258 : vector<8x256xf32>
    %267 = arith.addf %265, %266 : vector<8x256xf32>
    %268 = math.tanh %267 : vector<8x256xf32>
    %269 = arith.mulf %264, %268 : vector<8x256xf32>
    %c0_120 = arith.constant 0 : index
    %c0_121 = arith.constant 0 : index
    %270 = vector.load %arg6[%c0_120, %c0_121] : memref<8x256xf32, #tpu.memory_space<vmem>>, vector<8x256xf32>
    tpu.vector_store %arg6[%c0_120, %c0_121], %267 {strides = array<i32>} : memref<8x256xf32, #tpu.memory_space<vmem>>, vector<8x256xf32>,
    %c0_122 = arith.constant 0 : index
    %c0_123 = arith.constant 0 : index
    %271 = vector.load %arg5[%c0_122, %c0_123] : memref<8x256xf32, #tpu.memory_space<vmem>>, vector<8x256xf32>
    tpu.vector_store %arg5[%c0_122, %c0_123], %269 {strides = array<i32>} : memref<8x256xf32, #tpu.memory_space<vmem>>, vector<8x256xf32>,
    %272 = arith.index_cast %c6_i32 : i32 to index
    %c0_124 = arith.constant 0 : index
    %c0_125 = arith.constant 0 : index
    %273 = vector.load %arg4[%272, %c0_124, %c0_125] : memref<8x8x256xf32, #tpu.memory_space<vmem>>, vector<1x8x256xf32>
    %274 = vector.shape_cast %273 : vector<1x8x256xf32> to vector<8x256xf32>
    %275 = vector.shape_cast %269 : vector<8x256xf32> to vector<1x8x256xf32>
    tpu.vector_store %arg4[%272, %c0_124, %c0_125], %275 {strides = array<i32>} : memref<8x8x256xf32, #tpu.memory_space<vmem>>, vector<1x8x256xf32>,
    %c7_i32 = arith.constant 7 : i32
    %c0_126 = arith.constant 0 : index
    %c0_127 = arith.constant 0 : index
    %276 = vector.load %arg5[%c0_126, %c0_127] : memref<8x256xf32, #tpu.memory_space<vmem>>, vector<8x256xf32>
    %c0_128 = arith.constant 0 : index
    %c0_129 = arith.constant 0 : index
    %277 = vector.load %arg6[%c0_128, %c0_129] : memref<8x256xf32, #tpu.memory_space<vmem>>, vector<8x256xf32>
    %278 = arith.index_cast %c7_i32 : i32 to index
    %c0_130 = arith.constant 0 : index
    %c0_131 = arith.constant 0 : index
    %279 = vector.load %arg2[%278, %c0_130, %c0_131] : memref<8x8x1024xf32, #tpu.memory_space<vmem>>, vector<1x8x1024xf32>
    %280 = vector.shape_cast %279 : vector<1x8x1024xf32> to vector<8x1024xf32>
    %c0_132 = arith.constant 0 : index
    %c0_133 = arith.constant 0 : index
    %281 = vector.load %arg3[%c0_132, %c0_133] : memref<256x1024xf32, #tpu.memory_space<vmem>>, vector<256x1024xf32>
    %cst_134 = arith.constant dense<0.000000e+00> : vector<8x1024xf32>
    %282 = tpu.matmul %276, %281, %cst_134 {dimension_numbers = #tpu.dot_dimension_numbers<[1], [0], [0], [1], [0, 0, 1, 1], [], []>} : vector<8x256xf32>, vector<256x1024xf32>, vector<8x1024xf32> -> vector<8x1024xf32>
    %283 = arith.addf %280, %282 : vector<8x1024xf32>
    %284 = vector.extract_strided_slice %283 {offsets = [0, 0], sizes = [8, 256], strides = [1, 1]} : vector<8x1024xf32> to vector<8x256xf32>
    %285 = arith.negf %284 : vector<8x256xf32>
    %286 = math.exp %285 : vector<8x256xf32>
    %cst_135 = arith.constant 1.000000e+00 : f32
    %287 = vector.broadcast %cst_135 : f32 to vector<8x256xf32>
    %288 = arith.addf %287, %286 : vector<8x256xf32>
    %289 = arith.divf %287, %288 : vector<8x256xf32>
    %290 = vector.extract_strided_slice %283 {offsets = [0, 256], sizes = [8, 256], strides = [1, 1]} : vector<8x1024xf32> to vector<8x256xf32>
    %291 = arith.negf %290 : vector<8x256xf32>
    %292 = math.exp %291 : vector<8x256xf32>
    %cst_136 = arith.constant 1.000000e+00 : f32
    %293 = vector.broadcast %cst_136 : f32 to vector<8x256xf32>
    %294 = arith.addf %293, %292 : vector<8x256xf32>
    %295 = arith.divf %293, %294 : vector<8x256xf32>
    %296 = vector.extract_strided_slice %283 {offsets = [0, 512], sizes = [8, 256], strides = [1, 1]} : vector<8x1024xf32> to vector<8x256xf32>
    %297 = math.tanh %296 : vector<8x256xf32>
    %298 = vector.extract_strided_slice %283 {offsets = [0, 768], sizes = [8, 256], strides = [1, 1]} : vector<8x1024xf32> to vector<8x256xf32>
    %299 = arith.negf %298 : vector<8x256xf32>
    %300 = math.exp %299 : vector<8x256xf32>
    %cst_137 = arith.constant 1.000000e+00 : f32
    %301 = vector.broadcast %cst_137 : f32 to vector<8x256xf32>
    %302 = arith.addf %301, %300 : vector<8x256xf32>
    %303 = arith.divf %301, %302 : vector<8x256xf32>
    %304 = arith.mulf %295, %277 : vector<8x256xf32>
    %305 = arith.mulf %289, %297 : vector<8x256xf32>
    %306 = arith.addf %304, %305 : vector<8x256xf32>
    %307 = math.tanh %306 : vector<8x256xf32>
    %308 = arith.mulf %303, %307 : vector<8x256xf32>
    %c0_138 = arith.constant 0 : index
    %c0_139 = arith.constant 0 : index
    %309 = vector.load %arg6[%c0_138, %c0_139] : memref<8x256xf32, #tpu.memory_space<vmem>>, vector<8x256xf32>
    tpu.vector_store %arg6[%c0_138, %c0_139], %306 {strides = array<i32>} : memref<8x256xf32, #tpu.memory_space<vmem>>, vector<8x256xf32>,
    %c0_140 = arith.constant 0 : index
    %c0_141 = arith.constant 0 : index
    %310 = vector.load %arg5[%c0_140, %c0_141] : memref<8x256xf32, #tpu.memory_space<vmem>>, vector<8x256xf32>
    tpu.vector_store %arg5[%c0_140, %c0_141], %308 {strides = array<i32>} : memref<8x256xf32, #tpu.memory_space<vmem>>, vector<8x256xf32>,
    %311 = arith.index_cast %c7_i32 : i32 to index
    %c0_142 = arith.constant 0 : index
    %c0_143 = arith.constant 0 : index
    %312 = vector.load %arg4[%311, %c0_142, %c0_143] : memref<8x8x256xf32, #tpu.memory_space<vmem>>, vector<1x8x256xf32>
    %313 = vector.shape_cast %312 : vector<1x8x256xf32> to vector<8x256xf32>
    %314 = vector.shape_cast %308 : vector<8x256xf32> to vector<1x8x256xf32>
    tpu.vector_store %arg4[%311, %c0_142, %c0_143], %314 {strides = array<i32>} : memref<8x8x256xf32, #tpu.memory_space<vmem>>, vector<1x8x256xf32>,
    %c8_i32 = arith.constant 8 : i32
    return
  }
  func.func @transform_0(%arg0: i32, %arg1: i32) -> (i32, i32, i32) {
    %c0_i32 = arith.constant 0 : i32
    %c0_i32_0 = arith.constant 0 : i32
    return %arg1, %arg0, %c0_i32 : i32, i32, i32
  }
  func.func @transform_1(%arg0: i32, %arg1: i32) -> (i32, i32) {
    %c0_i32 = arith.constant 0 : i32
    %c0_i32_0 = arith.constant 0 : i32
    %c0_i32_1 = arith.constant 0 : i32
    return %c0_i32, %c0_i32_0 : i32, i32
  }
  func.func @transform_2(%arg0: i32, %arg1: i32) -> (i32, i32, i32) {
    %c0_i32 = arith.constant 0 : i32
    %c0_i32_0 = arith.constant 0 : i32
    return %arg1, %arg0, %c0_i32 : i32, i32, i32
  }
}

</mosaic_0001>

<llo_original>
// kernel: tpu_custom_call.1
$region0: #{tpu_custom_call.1}
  #allocation0 [shape = 'u32[]', space=smem, size = 0x4, offset = 0x4, fixed_abs, tag = 'smem constant byte address 0x4 - core index']
  #allocation1 [shape = 'u32[144,128]{1,0:T(1,128)}', space=vmem, size = 0x12000, scoped, tag = 'internal scratch']
  #allocation2 [shape = 'f32[8,256]{1,0:T(8,128)}', space=vmem, size = 0x2000, scoped, tag = 'scratch operand']
  #allocation3 [shape = 'f32[8,256]{1,0:T(8,128)}', space=vmem, size = 0x2000, scoped, tag = 'scratch operand']
  %s0 = inlined_call_operand.hbm [shape: f32[16,8,1024], index: 0, kind: input, shape index: {}]
  %s1 = inlined_call_operand.hbm [shape: f32[256,1024], index: 1, kind: input, shape index: {}]
  %s2 = inlined_call_operand.hbm [shape: f32[16,8,256], index: 2, kind: output, shape index: {}]
  %s3 = sld [smem:[#allocation0]]
  $region53: #{tpu_custom_call.1} parent=0
    _
  %s5 = ssub.s32 1, %s3
  %s6 = scalar_select 0, %s5, %s3
  $region1: #{tpu_custom_call.1} parent=0
    #allocation4 [shape = 'u8[524288]{0}', space=vmem, size = 0x80000, scoped, tag = 'input window, operand 0']
    #allocation5 [shape = 's32[2]{0}', space=sflag, size = 0x8, scoped, tag = 'scoped memory for tpu_custom_call.1']
    #allocation6 [shape = 's32[2]{0}', space=sflag, size = 0x8, scoped, tag = 'scoped memory for tpu_custom_call.1']
    #allocation7 [shape = 'u8[1048576]{0}', space=vmem, size = 0x100000, scoped, tag = 'input window, operand 1, single buffered']
    #allocation8 [shape = 's32[1]{0}', space=sflag, size = 0x4, scoped, tag = 'scoped memory for tpu_custom_call.1']
    #allocation9 [shape = 'u8[131072]{0}', space=vmem, size = 0x20000, scoped, tag = 'output window, operand 0']
    %7 = vsyncpa [#allocation5], 0
    %s8 = scalar_lea.sflag [#allocation5], 1
    %9 = vsyncpa %s8, 0
    %10 = vsyncpa [#allocation8], 0
    %11 = vsyncpa [#allocation6], 0
    %s12 = scalar_lea.sflag [#allocation6], 1
    %13 = vsyncpa %s12, 0
    loop: start=0, step=1, limit=4
    $region2: #{tpu_custom_call.1} parent=1 // loop_pre_header
      _
    $region3: #{tpu_custom_call.1} parent=1 // loop_header
      %s15 = sphi 0, %s19
      %p16 = scmp.ge.s32.totalorder %s15, 4
      %s22 = sphi 0, %s34
      %s23 = sphi 0, %s30
      %s24 = sphi 0, %s22
      %s25 = sphi 0, %s23
      %s26 = sphi 0, %s24
      %s27 = sphi 0, %s25
      %s39 = sphi 0, %s41
      %s42 = sphi 0, %s39
      %s43 = sphi 0, %s42
      %s59 = sphi 0, %s43
      %s63 = sphi 0, %s63
      %s65 = sphi 0, %s63
      %s66 = sphi 0, %s65
      %s80 = sphi 0, %s66
      %s88 = sphi 0, %s90
      %s91 = sphi 0, %s88
      %s92 = sphi 0, %s91
      %s108 = sphi 0, %s92
    $region4: #{tpu_custom_call.1} parent=1 // loop_header_branch
      %18 = sbr.rel (%p16) target = $region8
    $region5: #{tpu_custom_call.1} parent=1 // loop_body
      %s20 = ssub.s32 %s15, 1
      %s21 = ssub.s32 %s15, 2
      %s28 = sadd.s32 1, %s23
      %p29 = scmp.ge.s32.totalorder %s28, 2
      %s30 = scalar_select %p29, 0, %s28
      %s31 = sadd.s32 1, %s22
      %s32 = scalar_select %p29, %s31, %s22
      %p33 = scmp.ge.s32.totalorder %s32, 1
      %s34 = scalar_select %p33, 0, %s32
      %s35 = ssub.s32 %s23, %s30
      %s36 = ssub.s32 %s22, %s34
      %s37 = sor.u32 %s35, %s36
      %p38 = scmp.eq.s32.totalorder %s37, 0
      %s40 = sadd.s32 %s39, 1
      %s41 = scalar_select %p38, %s39, %s40
      %p44 = pneg %p38
      %p45 = scmp.eq.s32.totalorder %s15, 1
      %p46 = por %p44, %p45
      %p47 = scmp.ne.s32.totalorder %s39, %s42
      %p48 = scmp.eq.s32.totalorder %s15, 0
      %p49 = por %p47, %p48
      %p50 = scmp.ne.s32.totalorder %s39, %s42
      %p51 = scmp.eq.s32.totalorder %s20, 1
      %p52 = por %p50, %p51
      %p53 = scmp.ne.s32.totalorder %s42, %s43
      %p54 = scmp.eq.s32.totalorder %s20, 0
      %p55 = por %p53, %p54
      %p56 = scmp.ne.s32.totalorder %s42, %s43
      %p57 = scmp.eq.s32.totalorder %s21, 1
      %p58 = por %p56, %p57
      %p60 = scmp.ne.s32.totalorder %s43, %s59
      %p61 = scmp.eq.s32.totalorder %s21, 0
      %p62 = por %p60, %p61
      %s64 = sadd.s32 %s63, 1
      %p67 = scmp.eq.s32.totalorder %s15, 1
      %p68 = scmp.ne.s32.totalorder %s63, %s65
      %p69 = scmp.eq.s32.totalorder %s15, 0
      %p70 = por %p68, %p69
      %p71 = scmp.ne.s32.totalorder %s63, %s65
      %p72 = scmp.eq.s32.totalorder %s20, 1
      %p73 = por %p71, %p72
      %p74 = scmp.ne.s32.totalorder %s65, %s66
      %p75 = scmp.eq.s32.totalorder %s20, 0
      %p76 = por %p74, %p75
      %p77 = scmp.ne.s32.totalorder %s65, %s66
      %p78 = scmp.eq.s32.totalorder %s21, 1
      %p79 = por %p77, %p78
      %p81 = scmp.ne.s32.totalorder %s66, %s80
      %p82 = scmp.eq.s32.totalorder %s21, 0
      %p83 = por %p81, %p82
      %s84 = ssub.s32 %s23, %s30
      %s85 = ssub.s32 %s22, %s34
      %s86 = sor.u32 %s84, %s85
      %p87 = scmp.eq.s32.totalorder %s86, 0
      %s89 = sadd.s32 %s88, 1
      %s90 = scalar_select %p87, %s88, %s89
      %p93 = pneg %p87
      %p94 = scmp.eq.s32.totalorder %s15, 1
      %p95 = por %p93, %p94
      %p96 = scmp.ne.s32.totalorder %s88, %s91
      %p97 = scmp.eq.s32.totalorder %s15, 0
      %p98 = por %p96, %p97
      %p99 = scmp.ne.s32.totalorder %s88, %s91
      %p100 = scmp.eq.s32.totalorder %s20, 1
      %p101 = por %p99, %p100
      %p102 = scmp.ne.s32.totalorder %s91, %s92
      %p103 = scmp.eq.s32.totalorder %s20, 0
      %p104 = por %p102, %p103
      %p105 = scmp.ne.s32.totalorder %s91, %s92
      %p106 = scmp.eq.s32.totalorder %s21, 1
      %p107 = por %p105, %p106
      %p109 = scmp.ne.s32.totalorder %s92, %s108
      %p110 = scmp.eq.s32.totalorder %s21, 0
      %p111 = por %p109, %p110
      %p112 = scmp.le.s32.totalorder 1, %s15
      %p113 = scmp.lt.s32.totalorder %s15, 3
      %p114 = pnand %p112, %p113
      %p115 = pneg %p114
      // Predicated region
      $region9: #{tpu_custom_call.1} parent=5 // pred_check
        _
      $region10: #{tpu_custom_call.1} parent=5 // pred_check_branch
        %117 = sbr.rel (%p114) target = $region12
      $region11: #{tpu_custom_call.1} parent=5 // pred_region
        %s118 = ssub.s32 %s15, 1
        // Predicated region
        $region13: #{tpu_custom_call.1} parent=11 // pred_check
          %p119 = pneg %p76
        $region14: #{tpu_custom_call.1} parent=11 // pred_check_branch
          %121 = sbr.rel (%p119) target = $region16
        $region15: #{tpu_custom_call.1} parent=11 // pred_region
          %s123 = ssub.s32 32768, 32768
          %124 = vsyncadd [#allocation8], %s123
          %s125 = sshll.u32 [#allocation7], 4
          %s126 = int_to_ptr.vmem [resolvable:$true] %s125
          %131 = dma.hbm_to_vmem [thread:$0]  %s1, 32768, %s126, [#allocation8], 1024, 1024, 64
        $region16: #{tpu_custom_call.1} parent=11 // pred_fallthru
          _
      $region12: #{tpu_custom_call.1} parent=5 // pred_fallthru
        _
      %p132 = scmp.lt.s32.totalorder %s15, 2
      // Predicated region
      $region17: #{tpu_custom_call.1} parent=5 // pred_check
        %p133 = pneg %p132
      $region18: #{tpu_custom_call.1} parent=5 // pred_check_branch
        %135 = sbr.rel (%p133) target = $region20
      $region19: #{tpu_custom_call.1} parent=5 // pred_region
        // Predicated region
        $region21: #{tpu_custom_call.1} parent=19 // pred_check
          %p136 = pneg %p49
        $region22: #{tpu_custom_call.1} parent=19 // pred_check_branch
          %138 = sbr.rel (%p136) target = $region24
        $region23: #{tpu_custom_call.1} parent=19 // pred_region
          %s139 = sand.u32 %s39, 1
          %s140 = scalar_lea.sflag [#allocation5], %s139
          %s141 = sand.u32 %s39, 1
          %s142 = smul.addr %s141, 512
          %s143 = scalar_lea.vmem [#allocation4], %s142
          %s144 = smul.u32 8, %s23
          %s146 = ssub.s32 8192, 8192
          %147 = vsyncadd %s140, %s146
          %s148 = smul.addr %s22, 8
          %s149 = smul.addr %s144, 8
          %s150 = sadd.s32 %s148, %s149
          %s151 = smul.addr %s150, 128
          %s152 = scalar_lea.hbm %s0, %s151
          %s153 = sshll.u32 %s143, 4
          %s154 = int_to_ptr.vmem [resolvable:$true] %s153
          %159 = dma.hbm_to_vmem [thread:$0]  %s152, 8192, %s154, %s140, 1024, 1024, 64
        $region24: #{tpu_custom_call.1} parent=19 // pred_fallthru
          _
      $region20: #{tpu_custom_call.1} parent=5 // pred_fallthru
        _
      %p160 = scmp.le.s32.totalorder 1, %s15
      %p161 = scmp.lt.s32.totalorder %s15, 3
      %p162 = pnand %p160, %p161
      %p163 = pneg %p162
      // Predicated region
      $region25: #{tpu_custom_call.1} parent=5 // pred_check
        _
      $region26: #{tpu_custom_call.1} parent=5 // pred_check_branch
        %165 = sbr.rel (%p162) target = $region28
      $region27: #{tpu_custom_call.1} parent=5 // pred_region
        %s166 = ssub.s32 %s15, 1
        %s167 = sand.u32 %s42, 1
        %s168 = scalar_lea.sflag [#allocation5], %s167
        %s169 = sand.u32 %s42, 1
        %s170 = smul.addr %s169, 512
        %s171 = scalar_lea.vmem [#allocation4], %s170
        // Predicated region
        $region29: #{tpu_custom_call.1} parent=27 // pred_check
          %p172 = pneg %p55
        $region30: #{tpu_custom_call.1} parent=27 // pred_check_branch
          %174 = sbr.rel (%p172) target = $region32
        $region31: #{tpu_custom_call.1} parent=27 // pred_region
          %175 = dma.done %s168, 8192
        $region32: #{tpu_custom_call.1} parent=27 // pred_fallthru
          _
        // Predicated region
        $region33: #{tpu_custom_call.1} parent=27 // pred_check
          %p176 = pneg %p76
        $region34: #{tpu_custom_call.1} parent=27 // pred_check_branch
          %178 = sbr.rel (%p176) target = $region36
        $region35: #{tpu_custom_call.1} parent=27 // pred_region
          %179 = dma.done [#allocation8], 32768
        $region36: #{tpu_custom_call.1} parent=27 // pred_fallthru
          _
        %s180 = sand.u32 %s42, 1
        %s181 = scalar_lea.sflag [#allocation5], %s180
        %s182 = sand.u32 %s42, 1
        %s183 = smul.addr %s182, 512
        %s184 = scalar_lea.vmem [#allocation4], %s183
        %p185 = pneg %p55
        %p186 = pneg %p52
        %p187 = pneg %p76
        %p188 = pneg %p73
        %p189 = pneg %p104
        %p190 = pneg %p101
        %s191 = sand.u32 %s91, 1
        %s192 = scalar_lea.sflag [#allocation6], %s191
        %s193 = sand.u32 %s91, 1
        %s194 = smul.addr %s193, 128
        %s195 = scalar_lea.vmem [#allocation9], %s194
        %s196 = smul.u32 8, %s25
        %s197 = smul.u32 8, %s25
        %p198 = scmp.eq.s32.totalorder %s25, 0
        // Predicated region
        $region37: #{tpu_custom_call.1} parent=27 // pred_check
          %p199 = pneg %p198
        $region38: #{tpu_custom_call.1} parent=27 // pred_check_branch
          %201 = sbr.rel (%p199) target = $region40
        $region39: #{tpu_custom_call.1} parent=27 // pred_region
          %202 = vst [vmem:[#allocation2] sm:$0xff] 0.0
          %203 = vst [vmem:[#allocation2 + $0x8] sm:$0xff] 0.0
          %204 = vst [vmem:[#allocation3] sm:$0xff] 0.0
          %205 = vst [vmem:[#allocation3 + $0x8] sm:$0xff] 0.0
        $region40: #{tpu_custom_call.1} parent=27 // pred_fallthru
          _
        %v206 = vld [vmem:[#allocation2] sm:$0xff]
        %v207 = vld [vmem:[#allocation2 + $0x8] sm:$0xff]
        %v208 = vld [vmem:[#allocation3] sm:$0xff]
        %v209 = vld [vmem:[#allocation3 + $0x8] sm:$0xff]
        %v210 = vld [vmem:[%s171] sm:$0xff]
        %v211 = vld [vmem:[%s171 + $0x8] sm:$0xff]
        %v212 = vld [vmem:[%s171 + $0x10] sm:$0xff]
        %v213 = vld [vmem:[%s171 + $0x18] sm:$0xff]
        %v214 = vld [vmem:[%s171 + $0x20] sm:$0xff]
        %v215 = vld [vmem:[%s171 + $0x28] sm:$0xff]
        %v216 = vld [vmem:[%s171 + $0x30] sm:$0xff]
        %v217 = vld [vmem:[%s171 + $0x38] sm:$0xff]
        %v218 = vld [vmem:[#allocation7] sm:$0xff]
        %v219 = vld [vmem:[#allocation7 + $0x8] sm:$0xff]
        %v220 = vld [vmem:[#allocation7 + $0x10] sm:$0xff]
        %v221 = vld [vmem:[#allocation7 + $0x18] sm:$0xff]
        %v222 = vld [vmem:[#allocation7 + $0x20] sm:$0xff]
        %v223 = vld [vmem:[#allocation7 + $0x28] sm:$0xff]
        %v224 = vld [vmem:[#allocation7 + $0x30] sm:$0xff]
        %v225 = vld [vmem:[#allocation7 + $0x38] sm:$0xff]
        %v226 = vld [vmem:[#allocation7 + $0x40] sm:$0xff]
        %v227 = vld [vmem:[#allocation7 + $0x48] sm:$0xff]
        %v228 = vld [vmem:[#allocation7 + $0x50] sm:$0xff]
        %v229 = vld [vmem:[#allocation7 + $0x58] sm:$0xff]
        %v230 = vld [vmem:[#allocation7 + $0x60] sm:$0xff]
        %v231 = vld [vmem:[#allocation7 + $0x68] sm:$0xff]
        %v232 = vld [vmem:[#allocation7 + $0x70] sm:$0xff]
        %v233 = vld [vmem:[#allocation7 + $0x78] sm:$0xff]
        %v234 = vld [vmem:[#allocation7 + $0x80] sm:$0xff]
        %v235 = vld [vmem:[#allocation7 + $0x88] sm:$0xff]
        %v236 = vld [vmem:[#allocation7 + $0x90] sm:$0xff]
        %v237 = vld [vmem:[#allocation7 + $0x98] sm:$0xff]
        %v238 = vld [vmem:[#allocation7 + $0xa0] sm:$0xff]
        %v239 = vld [vmem:[#allocation7 + $0xa8] sm:$0xff]
        %v240 = vld [vmem:[#allocation7 + $0xb0] sm:$0xff]
        %v241 = vld [vmem:[#allocation7 + $0xb8] sm:$0xff]
        %v242 = vld [vmem:[#allocation7 + $0xc0] sm:$0xff]
        %v243 = vld [vmem:[#allocation7 + $0xc8] sm:$0xff]
        %v244 = vld [vmem:[#allocation7 + $0xd0] sm:$0xff]
        %v245 = vld [vmem:[#allocation7 + $0xd8] sm:$0xff]
        %v246 = vld [vmem:[#allocation7 + $0xe0] sm:$0xff]
        %v247 = vld [vmem:[#allocation7 + $0xe8] sm:$0xff]
        %v248 = vld [vmem:[#allocation7 + $0xf0] sm:$0xff]
        %v249 = vld [vmem:[#allocation7 + $0xf8] sm:$0xff]
        %v250 = vld [vmem:[#allocation7 + $0x100] sm:$0xff]
        %v251 = vld [vmem:[#allocation7 + $0x108] sm:$0xff]
        %v252 = vld [vmem:[#allocation7 + $0x110] sm:$0xff]
        %v253 = vld [vmem:[#allocation7 + $0x118] sm:$0xff]
        %v254 = vld [vmem:[#allocation7 + $0x120] sm:$0xff]
        %v255 = vld [vmem:[#allocation7 + $0x128] sm:$0xff]
        %v256 = vld [vmem:[#allocation7 + $0x130] sm:$0xff]
        %v257 = vld [vmem:[#allocation7 + $0x138] sm:$0xff]
        %v258 = vld [vmem:[#allocation7 + $0x140] sm:$0xff]
        %v259 = vld [vmem:[#allocation7 + $0x148] sm:$0xff]
        %v260 = vld [vmem:[#allocation7 + $0x150] sm:$0xff]
        %v261 = vld [vmem:[#allocation7 + $0x158] sm:$0xff]
        %v262 = vld [vmem:[#allocation7 + $0x160] sm:$0xff]
        %v263 = vld [vmem:[#allocation7 + $0x168] sm:$0xff]
        %v264 = vld [vmem:[#allocation7 + $0x170] sm:$0xff]
        %v265 = vld [vmem:[#allocation7 + $0x178] sm:$0xff]
        %v266 = vld [vmem:[#allocation7 + $0x180] sm:$0xff]
        %v267 = vld [vmem:[#allocation7 + $0x188] sm:$0xff]
        %v268 = vld [vmem:[#allocation7 + $0x190] sm:$0xff]
        %v269 = vld [vmem:[#allocation7 + $0x198] sm:$0xff]
        %v270 = vld [vmem:[#allocation7 + $0x1a0] sm:$0xff]
        %v271 = vld [vmem:[#allocation7 + $0x1a8] sm:$0xff]
        %v272 = vld [vmem:[#allocation7 + $0x1b0] sm:$0xff]
        %v273 = vld [vmem:[#allocation7 + $0x1b8] sm:$0xff]
        %v274 = vld [vmem:[#allocation7 + $0x1c0] sm:$0xff]
        %v275 = vld [vmem:[#allocation7 + $0x1c8] sm:$0xff]
        %v276 = vld [vmem:[#allocation7 + $0x1d0] sm:$0xff]
        %v277 = vld [vmem:[#allocation7 + $0x1d8] sm:$0xff]
        %v278 = vld [vmem:[#allocation7 + $0x1e0] sm:$0xff]
        %v279 = vld [vmem:[#allocation7 + $0x1e8] sm:$0xff]
        %v280 = vld [vmem:[#allocation7 + $0x1f0] sm:$0xff]
        %v281 = vld [vmem:[#allocation7 + $0x1f8] sm:$0xff]
        %v282 = vld [vmem:[#allocation7 + $0x200] sm:$0xff]
        %v283 = vld [vmem:[#allocation7 + $0x208] sm:$0xff]
        %v284 = vld [vmem:[#allocation7 + $0x210] sm:$0xff]
        %v285 = vld [vmem:[#allocation7 + $0x218] sm:$0xff]
        %v286 = vld [vmem:[#allocation7 + $0x220] sm:$0xff]
        %v287 = vld [vmem:[#allocation7 + $0x228] sm:$0xff]
        %v288 = vld [vmem:[#allocation7 + $0x230] sm:$0xff]
        %v289 = vld [vmem:[#allocation7 + $0x238] sm:$0xff]
        %v290 = vld [vmem:[#allocation7 + $0x240] sm:$0xff]
        %v291 = vld [vmem:[#allocation7 + $0x248] sm:$0xff]
        %v292 = vld [vmem:[#allocation7 + $0x250] sm:$0xff]
        %v293 = vld [vmem:[#allocation7 + $0x258] sm:$0xff]
        %v294 = vld [vmem:[#allocation7 + $0x260] sm:$0xff]
        %v295 = vld [vmem:[#allocation7 + $0x268] sm:$0xff]
        %v296 = vld [vmem:[#allocation7 + $0x270] sm:$0xff]
        %v297 = vld [vmem:[#allocation7 + $0x278] sm:$0xff]
        %v298 = vld [vmem:[#allocation7 + $0x280] sm:$0xff]
        %v299 = vld [vmem:[#allocation7 + $0x288] sm:$0xff]
        %v300 = vld [vmem:[#allocation7 + $0x290] sm:$0xff]
        %v301 = vld [vmem:[#allocation7 + $0x298] sm:$0xff]
        %v302 = vld [vmem:[#allocation7 + $0x2a0] sm:$0xff]
        %v303 = vld [vmem:[#allocation7 + $0x2a8] sm:$0xff]
        %v304 = vld [vmem:[#allocation7 + $0x2b0] sm:$0xff]
        %v305 = vld [vmem:[#allocation7 + $0x2b8] sm:$0xff]
        %v306 = vld [vmem:[#allocation7 + $0x2c0] sm:$0xff]
        %v307 = vld [vmem:[#allocation7 + $0x2c8] sm:$0xff]
        %v308 = vld [vmem:[#allocation7 + $0x2d0] sm:$0xff]
        %v309 = vld [vmem:[#allocation7 + $0x2d8] sm:$0xff]
        %v310 = vld [vmem:[#allocation7 + $0x2e0] sm:$0xff]
        %v311 = vld [vmem:[#allocation7 + $0x2e8] sm:$0xff]
        %v312 = vld [vmem:[#allocation7 + $0x2f0] sm:$0xff]
        %v313 = vld [vmem:[#allocation7 + $0x2f8] sm:$0xff]
        %v314 = vld [vmem:[#allocation7 + $0x300] sm:$0xff]
        %v315 = vld [vmem:[#allocation7 + $0x308] sm:$0xff]
        %v316 = vld [vmem:[#allocation7 + $0x310] sm:$0xff]
        %v317 = vld [vmem:[#allocation7 + $0x318] sm:$0xff]
        %v318 = vld [vmem:[#allocation7 + $0x320] sm:$0xff]
        %v319 = vld [vmem:[#allocation7 + $0x328] sm:$0xff]
        %v320 = vld [vmem:[#allocation7 + $0x330] sm:$0xff]
        %v321 = vld [vmem:[#allocation7 + $0x338] sm:$0xff]
        %v322 = vld [vmem:[#allocation7 + $0x340] sm:$0xff]
        %v323 = vld [vmem:[#allocation7 + $0x348] sm:$0xff]
        %v324 = vld [vmem:[#allocation7 + $0x350] sm:$0xff]
        %v325 = vld [vmem:[#allocation7 + $0x358] sm:$0xff]
        %v326 = vld [vmem:[#allocation7 + $0x360] sm:$0xff]
        %v327 = vld [vmem:[#allocation7 + $0x368] sm:$0xff]
        %v328 = vld [vmem:[#allocation7 + $0x370] sm:$0xff]
        %v329 = vld [vmem:[#allocation7 + $0x378] sm:$0xff]
        %v330 = vld [vmem:[#allocation7 + $0x380] sm:$0xff]
        %v331 = vld [vmem:[#allocation7 + $0x388] sm:$0xff]
        %v332 = vld [vmem:[#allocation7 + $0x390] sm:$0xff]
        %v333 = vld [vmem:[#allocation7 + $0x398] sm:$0xff]
        %v334 = vld [vmem:[#allocation7 + $0x3a0] sm:$0xff]
        %v335 = vld [vmem:[#allocation7 + $0x3a8] sm:$0xff]
        %v336 = vld [vmem:[#allocation7 + $0x3b0] sm:$0xff]
        %v337 = vld [vmem:[#allocation7 + $0x3b8] sm:$0xff]
        %v338 = vld [vmem:[#allocation7 + $0x3c0] sm:$0xff]
        %v339 = vld [vmem:[#allocation7 + $0x3c8] sm:$0xff]
        %v340 = vld [vmem:[#allocation7 + $0x3d0] sm:$0xff]
        %v341 = vld [vmem:[#allocation7 + $0x3d8] sm:$0xff]
        %v342 = vld [vmem:[#allocation7 + $0x3e0] sm:$0xff]
        %v343 = vld [vmem:[#allocation7 + $0x3e8] sm:$0xff]
        %v344 = vld [vmem:[#allocation7 + $0x3f0] sm:$0xff]
        %v345 = vld [vmem:[#allocation7 + $0x3f8] sm:$0xff]
        %v346 = vld [vmem:[#allocation7 + $0x400] sm:$0xff]
        %v347 = vld [vmem:[#allocation7 + $0x408] sm:$0xff]
        %v348 = vld [vmem:[#allocation7 + $0x410] sm:$0xff]
        %v349 = vld [vmem:[#allocation7 + $0x418] sm:$0xff]
        %v350 = vld [vmem:[#allocation7 + $0x420] sm:$0xff]
        %v351 = vld [vmem:[#allocation7 + $0x428] sm:$0xff]
        %v352 = vld [vmem:[#allocation7 + $0x430] sm:$0xff]
        %v353 = vld [vmem:[#allocation7 + $0x438] sm:$0xff]
        %v354 = vld [vmem:[#allocation7 + $0x440] sm:$0xff]
        %v355 = vld [vmem:[#allocation7 + $0x448] sm:$0xff]
        %v356 = vld [vmem:[#allocation7 + $0x450] sm:$0xff]
        %v357 = vld [vmem:[#allocation7 + $0x458] sm:$0xff]
        %v358 = vld [vmem:[#allocation7 + $0x460] sm:$0xff]
        %v359 = vld [vmem:[#allocation7 + $0x468] sm:$0xff]
        %v360 = vld [vmem:[#allocation7 + $0x470] sm:$0xff]
        %v361 = vld [vmem:[#allocation7 + $0x478] sm:$0xff]
        %v362 = vld [vmem:[#allocation7 + $0x480] sm:$0xff]
        %v363 = vld [vmem:[#allocation7 + $0x488] sm:$0xff]
        %v364 = vld [vmem:[#allocation7 + $0x490] sm:$0xff]
        %v365 = vld [vmem:[#allocation7 + $0x498] sm:$0xff]
        %v366 = vld [vmem:[#allocation7 + $0x4a0] sm:$0xff]
        %v367 = vld [vmem:[#allocation7 + $0x4a8] sm:$0xff]
        %v368 = vld [vmem:[#allocation7 + $0x4b0] sm:$0xff]
        %v369 = vld [vmem:[#allocation7 + $0x4b8] sm:$0xff]
        %v370 = vld [vmem:[#allocation7 + $0x4c0] sm:$0xff]
        %v371 = vld [vmem:[#allocation7 + $0x4c8] sm:$0xff]
        %v372 = vld [vmem:[#allocation7 + $0x4d0] sm:$0xff]
        %v373 = vld [vmem:[#allocation7 + $0x4d8] sm:$0xff]
        %v374 = vld [vmem:[#allocation7 + $0x4e0] sm:$0xff]
        %v375 = vld [vmem:[#allocation7 + $0x4e8] sm:$0xff]
        %v376 = vld [vmem:[#allocation7 + $0x4f0] sm:$0xff]
        %v377 = vld [vmem:[#allocation7 + $0x4f8] sm:$0xff]
        %v378 = vld [vmem:[#allocation7 + $0x500] sm:$0xff]
        %v379 = vld [vmem:[#allocation7 + $0x508] sm:$0xff]
        %v380 = vld [vmem:[#allocation7 + $0x510] sm:$0xff]
        %v381 = vld [vmem:[#allocation7 + $0x518] sm:$0xff]
        %v382 = vld [vmem:[#allocation7 + $0x520] sm:$0xff]
        %v383 = vld [vmem:[#allocation7 + $0x528] sm:$0xff]
        %v384 = vld [vmem:[#allocation7 + $0x530] sm:$0xff]
        %v385 = vld [vmem:[#allocation7 + $0x538] sm:$0xff]
        %v386 = vld [vmem:[#allocation7 + $0x540] sm:$0xff]
        %v387 = vld [vmem:[#allocation7 + $0x548] sm:$0xff]
        %v388 = vld [vmem:[#allocation7 + $0x550] sm:$0xff]
        %v389 = vld [vmem:[#allocation7 + $0x558] sm:$0xff]
        %v390 = vld [vmem:[#allocation7 + $0x560] sm:$0xff]
        %v391 = vld [vmem:[#allocation7 + $0x568] sm:$0xff]
        %v392 = vld [vmem:[#allocation7 + $0x570] sm:$0xff]
        %v393 = vld [vmem:[#allocation7 + $0x578] sm:$0xff]
        %v394 = vld [vmem:[#allocation7 + $0x580] sm:$0xff]
        %v395 = vld [vmem:[#allocation7 + $0x588] sm:$0xff]
        %v396 = vld [vmem:[#allocation7 + $0x590] sm:$0xff]
        %v397 = vld [vmem:[#allocation7 + $0x598] sm:$0xff]
        %v398 = vld [vmem:[#allocation7 + $0x5a0] sm:$0xff]
        %v399 = vld [vmem:[#allocation7 + $0x5a8] sm:$0xff]
        %v400 = vld [vmem:[#allocation7 + $0x5b0] sm:$0xff]
        %v401 = vld [vmem:[#allocation7 + $0x5b8] sm:$0xff]
        %v402 = vld [vmem:[#allocation7 + $0x5c0] sm:$0xff]
        %v403 = vld [vmem:[#allocation7 + $0x5c8] sm:$0xff]
        %v404 = vld [vmem:[#allocation7 + $0x5d0] sm:$0xff]
        %v405 = vld [vmem:[#allocation7 + $0x5d8] sm:$0xff]
        %v406 = vld [vmem:[#allocation7 + $0x5e0] sm:$0xff]
        %v407 = vld [vmem:[#allocation7 + $0x5e8] sm:$0xff]
        %v408 = vld [vmem:[#allocation7 + $0x5f0] sm:$0xff]
        %v409 = vld [vmem:[#allocation7 + $0x5f8] sm:$0xff]
        %v410 = vld [vmem:[#allocation7 + $0x600] sm:$0xff]
        %v411 = vld [vmem:[#allocation7 + $0x608] sm:$0xff]
        %v412 = vld [vmem:[#allocation7 + $0x610] sm:$0xff]
        %v413 = vld [vmem:[#allocation7 + $0x618] sm:$0xff]
        %v414 = vld [vmem:[#allocation7 + $0x620] sm:$0xff]
        %v415 = vld [vmem:[#allocation7 + $0x628] sm:$0xff]
        %v416 = vld [vmem:[#allocation7 + $0x630] sm:$0xff]
        %v417 = vld [vmem:[#allocation7 + $0x638] sm:$0xff]
        %v418 = vld [vmem:[#allocation7 + $0x640] sm:$0xff]
        %v419 = vld [vmem:[#allocation7 + $0x648] sm:$0xff]
        %v420 = vld [vmem:[#allocation7 + $0x650] sm:$0xff]
        %v421 = vld [vmem:[#allocation7 + $0x658] sm:$0xff]
        %v422 = vld [vmem:[#allocation7 + $0x660] sm:$0xff]
        %v423 = vld [vmem:[#allocation7 + $0x668] sm:$0xff]
        %v424 = vld [vmem:[#allocation7 + $0x670] sm:$0xff]
        %v425 = vld [vmem:[#allocation7 + $0x678] sm:$0xff]
        %v426 = vld [vmem:[#allocation7 + $0x680] sm:$0xff]
        %v427 = vld [vmem:[#allocation7 + $0x688] sm:$0xff]
        %v428 = vld [vmem:[#allocation7 + $0x690] sm:$0xff]
        %v429 = vld [vmem:[#allocation7 + $0x698] sm:$0xff]
        %v430 = vld [vmem:[#allocation7 + $0x6a0] sm:$0xff]
        %v431 = vld [vmem:[#allocation7 + $0x6a8] sm:$0xff]
        %v432 = vld [vmem:[#allocation7 + $0x6b0] sm:$0xff]
        %v433 = vld [vmem:[#allocation7 + $0x6b8] sm:$0xff]
        %v434 = vld [vmem:[#allocation7 + $0x6c0] sm:$0xff]
        %v435 = vld [vmem:[#allocation7 + $0x6c8] sm:$0xff]
        %v436 = vld [vmem:[#allocation7 + $0x6d0] sm:$0xff]
        %v437 = vld [vmem:[#allocation7 + $0x6d8] sm:$0xff]
        %v438 = vld [vmem:[#allocation7 + $0x6e0] sm:$0xff]
        %v439 = vld [vmem:[#allocation7 + $0x6e8] sm:$0xff]
        %v440 = vld [vmem:[#allocation7 + $0x6f0] sm:$0xff]
        %v441 = vld [vmem:[#allocation7 + $0x6f8] sm:$0xff]
        %v442 = vld [vmem:[#allocation7 + $0x700] sm:$0xff]
        %v443 = vld [vmem:[#allocation7 + $0x708] sm:$0xff]
        %v444 = vld [vmem:[#allocation7 + $0x710] sm:$0xff]
        %v445 = vld [vmem:[#allocation7 + $0x718] sm:$0xff]
        %v446 = vld [vmem:[#allocation7 + $0x720] sm:$0xff]
        %v447 = vld [vmem:[#allocation7 + $0x728] sm:$0xff]
        %v448 = vld [vmem:[#allocation7 + $0x730] sm:$0xff]
        %v449 = vld [vmem:[#allocation7 + $0x738] sm:$0xff]
        %v450 = vld [vmem:[#allocation7 + $0x740] sm:$0xff]
        %v451 = vld [vmem:[#allocation7 + $0x748] sm:$0xff]
        %v452 = vld [vmem:[#allocation7 + $0x750] sm:$0xff]
        %v453 = vld [vmem:[#allocation7 + $0x758] sm:$0xff]
        %v454 = vld [vmem:[#allocation7 + $0x760] sm:$0xff]
        %v455 = vld [vmem:[#allocation7 + $0x768] sm:$0xff]
        %v456 = vld [vmem:[#allocation7 + $0x770] sm:$0xff]
        %v457 = vld [vmem:[#allocation7 + $0x778] sm:$0xff]
        %v458 = vld [vmem:[#allocation7 + $0x780] sm:$0xff]
        %v459 = vld [vmem:[#allocation7 + $0x788] sm:$0xff]
        %v460 = vld [vmem:[#allocation7 + $0x790] sm:$0xff]
        %v461 = vld [vmem:[#allocation7 + $0x798] sm:$0xff]
        %v462 = vld [vmem:[#allocation7 + $0x7a0] sm:$0xff]
        %v463 = vld [vmem:[#allocation7 + $0x7a8] sm:$0xff]
        %v464 = vld [vmem:[#allocation7 + $0x7b0] sm:$0xff]
        %v465 = vld [vmem:[#allocation7 + $0x7b8] sm:$0xff]
        %v466 = vld [vmem:[#allocation7 + $0x7c0] sm:$0xff]
        %v467 = vld [vmem:[#allocation7 + $0x7c8] sm:$0xff]
        %v468 = vld [vmem:[#allocation7 + $0x7d0] sm:$0xff]
        %v469 = vld [vmem:[#allocation7 + $0x7d8] sm:$0xff]
        %v470 = vld [vmem:[#allocation7 + $0x7e0] sm:$0xff]
        %v471 = vld [vmem:[#allocation7 + $0x7e8] sm:$0xff]
        %v472 = vld [vmem:[#allocation7 + $0x7f0] sm:$0xff]
        %v473 = vld [vmem:[#allocation7 + $0x7f8] sm:$0xff]
        %474 = vmatprep.subr.mxu0 %v219
        %475 = vmatpush1.msra.mxu0 %v218
        %476 = vmatprep.subr.mxu0 %v227
        %477 = vmatpush1.msra.mxu0 %v226
        %478 = vmatprep.subr.mxu0 %v235
        %479 = vmatpush1.msra.mxu0 %v234
        %480 = vmatprep.subr.mxu0 %v243
        %481 = vmatpush1.msra.mxu0 %v242
        %482 = vmatprep.subr.mxu0 %v251
        %483 = vmatpush1.msra.mxu0 %v250
        %484 = vmatprep.subr.mxu0 %v259
        %485 = vmatpush1.msra.mxu0 %v258
        %486 = vmatprep.subr.mxu0 %v267
        %487 = vmatpush1.msra.mxu0 %v266
        %488 = vmatprep.subr.mxu0 %v275
        %489 = vmatpush1.msra.mxu0 %v274
        %490 = vmatprep.subr.mxu0 %v283
        %491 = vmatpush1.msra.mxu0 %v282
        %492 = vmatprep.subr.mxu0 %v291
        %493 = vmatpush1.msra.mxu0 %v290
        %494 = vmatprep.subr.mxu0 %v299
        %495 = vmatpush1.msra.mxu0 %v298
        %496 = vmatprep.subr.mxu0 %v307
        %497 = vmatpush1.msra.mxu0 %v306
        %498 = vmatprep.subr.mxu0 %v315
        %499 = vmatpush1.msra.mxu0 %v314
        %500 = vmatprep.subr.mxu0 %v323
        %501 = vmatpush1.msra.mxu0 %v322
        %502 = vmatprep.subr.mxu0 %v331
        %503 = vmatpush1.msra.mxu0 %v330
        %504 = vmatprep.subr.mxu0 %v339
        %505 = vmatpush1.msra.mxu0 %v338
        %506 = vmatprep.subr.mxu0 %v347
        %507 = vmatpush1.msra.mxu0 %v346
        %508 = vmatprep.subr.mxu0 %v355
        %509 = vmatpush1.msra.mxu0 %v354
        %510 = vmatprep.subr.mxu0 %v363
        %511 = vmatpush1.msra.mxu0 %v362
        %512 = vmatprep.subr.mxu0 %v371
        %513 = vmatpush1.msra.mxu0 %v370
        %514 = vmatprep.subr.mxu0 %v379
        %515 = vmatpush1.msra.mxu0 %v378
        %516 = vmatprep.subr.mxu0 %v387
        %517 = vmatpush1.msra.mxu0 %v386
        %518 = vmatprep.subr.mxu0 %v395
        %519 = vmatpush1.msra.mxu0 %v394
        %520 = vmatprep.subr.mxu0 %v403
        %521 = vmatpush1.msra.mxu0 %v402
        %522 = vmatprep.subr.mxu0 %v411
        %523 = vmatpush1.msra.mxu0 %v410
        %524 = vmatprep.subr.mxu0 %v419
        %525 = vmatpush1.msra.mxu0 %v418
        %526 = vmatprep.subr.mxu0 %v427
        %527 = vmatpush1.msra.mxu0 %v426
        %528 = vmatprep.subr.mxu0 %v435
        %529 = vmatpush1.msra.mxu0 %v434
        %530 = vmatprep.subr.mxu0 %v443
        %531 = vmatpush1.msra.mxu0 %v442
        %532 = vmatprep.subr.mxu0 %v451
        %533 = vmatpush1.msra.mxu0 %v450
        %534 = vmatprep.subr.mxu0 %v459
        %535 = vmatpush1.msra.mxu0 %v458
        %536 = vmatprep.subr.mxu0 %v467
        %537 = vmatpush1.msra.mxu0 %v466
        %538 = vmatprep.mubr.f32.mxu0 %v207
        %539 = vmatmul.mubr.f32.gmra.mrb[0].mxu0 %v206
        %v540 = vpop.f32.mrb[0].mxu0
        %v541 = vadd.f32 0.0, %v540
        %v542 = vpop.f32.mrb[0].mxu0
        %v543 = vadd.f32 0.0, %v542
        %544 = vdwg.mxu0
        %545 = vmatprep.subr.mxu0 %v221
        %546 = vmatpush1.msra.mxu0 %v220
        %547 = vmatprep.subr.mxu0 %v229
        %548 = vmatpush1.msra.mxu0 %v228
        %549 = vmatprep.subr.mxu0 %v237
        %550 = vmatpush1.msra.mxu0 %v236
        %551 = vmatprep.subr.mxu0 %v245
        %552 = vmatpush1.msra.mxu0 %v244
        %553 = vmatprep.subr.mxu0 %v253
        %554 = vmatpush1.msra.mxu0 %v252
        %555 = vmatprep.subr.mxu0 %v261
        %556 = vmatpush1.msra.mxu0 %v260
        %557 = vmatprep.subr.mxu0 %v269
        %558 = vmatpush1.msra.mxu0 %v268
        %559 = vmatprep.subr.mxu0 %v277
        %560 = vmatpush1.msra.mxu0 %v276
        %561 = vmatprep.subr.mxu0 %v285
        %562 = vmatpush1.msra.mxu0 %v284
        %563 = vmatprep.subr.mxu0 %v293
        %564 = vmatpush1.msra.mxu0 %v292
        %565 = vmatprep.subr.mxu0 %v301
        %566 = vmatpush1.msra.mxu0 %v300
        %567 = vmatprep.subr.mxu0 %v309
        %568 = vmatpush1.msra.mxu0 %v308
        %569 = vmatprep.subr.mxu0 %v317
        %570 = vmatpush1.msra.mxu0 %v316
        %571 = vmatprep.subr.mxu0 %v325
        %572 = vmatpush1.msra.mxu0 %v324
        %573 = vmatprep.subr.mxu0 %v333
        %574 = vmatpush1.msra.mxu0 %v332
        %575 = vmatprep.subr.mxu0 %v341
        %576 = vmatpush1.msra.mxu0 %v340
        %577 = vmatprep.subr.mxu0 %v349
        %578 = vmatpush1.msra.mxu0 %v348
        %579 = vmatprep.subr.mxu0 %v357
        %580 = vmatpush1.msra.mxu0 %v356
        %581 = vmatprep.subr.mxu0 %v365
        %582 = vmatpush1.msra.mxu0 %v364
        %583 = vmatprep.subr.mxu0 %v373
        %584 = vmatpush1.msra.mxu0 %v372
        %585 = vmatprep.subr.mxu0 %v381
        %586 = vmatpush1.msra.mxu0 %v380
        %587 = vmatprep.subr.mxu0 %v389
        %588 = vmatpush1.msra.mxu0 %v388
        %589 = vmatprep.subr.mxu0 %v397
        %590 = vmatpush1.msra.mxu0 %v396
        %591 = vmatprep.subr.mxu0 %v405
        %592 = vmatpush1.msra.mxu0 %v404
        %593 = vmatprep.subr.mxu0 %v413
        %594 = vmatpush1.msra.mxu0 %v412
        %595 = vmatprep.subr.mxu0 %v421
        %596 = vmatpush1.msra.mxu0 %v420
        %597 = vmatprep.subr.mxu0 %v429
        %598 = vmatpush1.msra.mxu0 %v428
        %599 = vmatprep.subr.mxu0 %v437
        %600 = vmatpush1.msra.mxu0 %v436
        %601 = vmatprep.subr.mxu0 %v445
        %602 = vmatpush1.msra.mxu0 %v444
        %603 = vmatprep.subr.mxu0 %v453
        %604 = vmatpush1.msra.mxu0 %v452
        %605 = vmatprep.subr.mxu0 %v461
        %606 = vmatpush1.msra.mxu0 %v460
        %607 = vmatprep.subr.mxu0 %v469
        %608 = vmatpush1.msra.mxu0 %v468
        %609 = vmatprep.mubr.f32.mxu0 %v207
        %610 = vmatmul.mubr.f32.gmra.mrb[0].mxu0 %v206
        %v611 = vpop.f32.mrb[0].mxu0
        %v612 = vadd.f32 0.0, %v611
        %v613 = vpop.f32.mrb[0].mxu0
        %v614 = vadd.f32 0.0, %v613
        %615 = vdwg.mxu0
        %616 = vmatprep.subr.mxu0 %v223
        %617 = vmatpush1.msra.mxu0 %v222
        %618 = vmatprep.subr.mxu0 %v231
        %619 = vmatpush1.msra.mxu0 %v230
        %620 = vmatprep.subr.mxu0 %v239
        %621 = vmatpush1.msra.mxu0 %v238
        %622 = vmatprep.subr.mxu0 %v247
        %623 = vmatpush1.msra.mxu0 %v246
        %624 = vmatprep.subr.mxu0 %v255
        %625 = vmatpush1.msra.mxu0 %v254
        %626 = vmatprep.subr.mxu0 %v263
        %627 = vmatpush1.msra.mxu0 %v262
        %628 = vmatprep.subr.mxu0 %v271
        %629 = vmatpush1.msra.mxu0 %v270
        %630 = vmatprep.subr.mxu0 %v279
        %631 = vmatpush1.msra.mxu0 %v278
        %632 = vmatprep.subr.mxu0 %v287
        %633 = vmatpush1.msra.mxu0 %v286
        %634 = vmatprep.subr.mxu0 %v295
        %635 = vmatpush1.msra.mxu0 %v294
        %636 = vmatprep.subr.mxu0 %v303
        %637 = vmatpush1.msra.mxu0 %v302
        %638 = vmatprep.subr.mxu0 %v311
        %639 = vmatpush1.msra.mxu0 %v310
        %640 = vmatprep.subr.mxu0 %v319
        %641 = vmatpush1.msra.mxu0 %v318
        %642 = vmatprep.subr.mxu0 %v327
        %643 = vmatpush1.msra.mxu0 %v326
        %644 = vmatprep.subr.mxu0 %v335
        %645 = vmatpush1.msra.mxu0 %v334
        %646 = vmatprep.subr.mxu0 %v343
        %647 = vmatpush1.msra.mxu0 %v342
        %648 = vmatprep.subr.mxu0 %v351
        %649 = vmatpush1.msra.mxu0 %v350
        %650 = vmatprep.subr.mxu0 %v359
        %651 = vmatpush1.msra.mxu0 %v358
        %652 = vmatprep.subr.mxu0 %v367
        %653 = vmatpush1.msra.mxu0 %v366
        %654 = vmatprep.subr.mxu0 %v375
        %655 = vmatpush1.msra.mxu0 %v374
        %656 = vmatprep.subr.mxu0 %v383
        %657 = vmatpush1.msra.mxu0 %v382
        %658 = vmatprep.subr.mxu0 %v391
        %659 = vmatpush1.msra.mxu0 %v390
        %660 = vmatprep.subr.mxu0 %v399
        %661 = vmatpush1.msra.mxu0 %v398
        %662 = vmatprep.subr.mxu0 %v407
        %663 = vmatpush1.msra.mxu0 %v406
        %664 = vmatprep.subr.mxu0 %v415
        %665 = vmatpush1.msra.mxu0 %v414
        %666 = vmatprep.subr.mxu0 %v423
        %667 = vmatpush1.msra.mxu0 %v422
        %668 = vmatprep.subr.mxu0 %v431
        %669 = vmatpush1.msra.mxu0 %v430
        %670 = vmatprep.subr.mxu0 %v439
        %671 = vmatpush1.msra.mxu0 %v438
        %672 = vmatprep.subr.mxu0 %v447
        %673 = vmatpush1.msra.mxu0 %v446
        %674 = vmatprep.subr.mxu0 %v455
        %675 = vmatpush1.msra.mxu0 %v454
        %676 = vmatprep.subr.mxu0 %v463
        %677 = vmatpush1.msra.mxu0 %v462
        %678 = vmatprep.subr.mxu0 %v471
        %679 = vmatpush1.msra.mxu0 %v470
        %680 = vmatprep.mubr.f32.mxu0 %v207
        %681 = vmatmul.mubr.f32.gmra.mrb[0].mxu0 %v206
        %v682 = vpop.f32.mrb[0].mxu0
        %v683 = vadd.f32 0.0, %v682
        %v684 = vpop.f32.mrb[0].mxu0
        %v685 = vadd.f32 0.0, %v684
        %686 = vdwg.mxu0
        %687 = vmatprep.subr.mxu0 %v225
        %688 = vmatpush1.msra.mxu0 %v224
        %689 = vmatprep.subr.mxu0 %v233
        %690 = vmatpush1.msra.mxu0 %v232
        %691 = vmatprep.subr.mxu0 %v241
        %692 = vmatpush1.msra.mxu0 %v240
        %693 = vmatprep.subr.mxu0 %v249
        %694 = vmatpush1.msra.mxu0 %v248
        %695 = vmatprep.subr.mxu0 %v257
        %696 = vmatpush1.msra.mxu0 %v256
        %697 = vmatprep.subr.mxu0 %v265
        %698 = vmatpush1.msra.mxu0 %v264
        %699 = vmatprep.subr.mxu0 %v273
        %700 = vmatpush1.msra.mxu0 %v272
        %701 = vmatprep.subr.mxu0 %v281
        %702 = vmatpush1.msra.mxu0 %v280
        %703 = vmatprep.subr.mxu0 %v289
        %704 = vmatpush1.msra.mxu0 %v288
        %705 = vmatprep.subr.mxu0 %v297
        %706 = vmatpush1.msra.mxu0 %v296
        %707 = vmatprep.subr.mxu0 %v305
        %708 = vmatpush1.msra.mxu0 %v304
        %709 = vmatprep.subr.mxu0 %v313
        %710 = vmatpush1.msra.mxu0 %v312
        %711 = vmatprep.subr.mxu0 %v321
        %712 = vmatpush1.msra.mxu0 %v320
        %713 = vmatprep.subr.mxu0 %v329
        %714 = vmatpush1.msra.mxu0 %v328
        %715 = vmatprep.subr.mxu0 %v337
        %716 = vmatpush1.msra.mxu0 %v336
        %717 = vmatprep.subr.mxu0 %v345
        %718 = vmatpush1.msra.mxu0 %v344
        %719 = vmatprep.subr.mxu0 %v353
        %720 = vmatpush1.msra.mxu0 %v352
        %721 = vmatprep.subr.mxu0 %v361
        %722 = vmatpush1.msra.mxu0 %v360
        %723 = vmatprep.subr.mxu0 %v369
        %724 = vmatpush1.msra.mxu0 %v368
        %725 = vmatprep.subr.mxu0 %v377
        %726 = vmatpush1.msra.mxu0 %v376
        %727 = vmatprep.subr.mxu0 %v385
        %728 = vmatpush1.msra.mxu0 %v384
        %729 = vmatprep.subr.mxu0 %v393
        %730 = vmatpush1.msra.mxu0 %v392
        %731 = vmatprep.subr.mxu0 %v401
        %732 = vmatpush1.msra.mxu0 %v400
        %733 = vmatprep.subr.mxu0 %v409
        %734 = vmatpush1.msra.mxu0 %v408
        %735 = vmatprep.subr.mxu0 %v417
        %736 = vmatpush1.msra.mxu0 %v416
        %737 = vmatprep.subr.mxu0 %v425
        %738 = vmatpush1.msra.mxu0 %v424
        %739 = vmatprep.subr.mxu0 %v433
        %740 = vmatpush1.msra.mxu0 %v432
        %741 = vmatprep.subr.mxu0 %v441
        %742 = vmatpush1.msra.mxu0 %v440
        %743 = vmatprep.subr.mxu0 %v449
        %744 = vmatpush1.msra.mxu0 %v448
        %745 = vmatprep.subr.mxu0 %v457
        %746 = vmatpush1.msra.mxu0 %v456
        %747 = vmatprep.subr.mxu0 %v465
        %748 = vmatpush1.msra.mxu0 %v464
        %749 = vmatprep.subr.mxu0 %v473
        %750 = vmatpush1.msra.mxu0 %v472
        %751 = vmatprep.mubr.f32.mxu0 %v207
        %752 = vmatmul.mubr.f32.gmra.mrb[0].mxu0 %v206
        %v753 = vpop.f32.mrb[0].mxu0
        %v754 = vadd.f32 0.0, %v753
        %v755 = vpop.f32.mrb[0].mxu0
        %v756 = vadd.f32 0.0, %v755
        %757 = vdwg.mxu0
        %v758 = vadd.f32 %v210, %v541
        %v759 = vadd.f32 %v211, %v543
        %v760 = vadd.f32 %v212, %v612
        %v761 = vadd.f32 %v213, %v614
        %v762 = vadd.f32 %v214, %v683
        %v763 = vadd.f32 %v215, %v685
        %v764 = vadd.f32 %v216, %v754
        %v765 = vadd.f32 %v217, %v756
        %v766 = vxor.u32 %v758, 2147483648
        %v767 = vxor.u32 %v759, 2147483648
        %v768 = vmul.f32 %v766, 1.442695
        %v769 = vpow.pop %v768
        %v770 = vmul.f32 %v767, 1.442695
        %v771 = vpow.pop %v770
        %v772 = vadd.f32 %v769, 1.0
        %v773 = vadd.f32 %v771, 1.0
        %v774 = vrcp.pop %v772
        %v775 = vmul.f32 1.0, %v774
        %v776 = vrcp.pop %v773
        %v777 = vmul.f32 1.0, %v776
        %v778 = vxor.u32 %v760, 2147483648
        %v779 = vxor.u32 %v761, 2147483648
        %v780 = vmul.f32 %v778, 1.442695
        %v781 = vpow.pop %v780
        %v782 = vmul.f32 %v779, 1.442695
        %v783 = vpow.pop %v782
        %v784 = vadd.f32 %v781, 1.0
        %v785 = vadd.f32 %v783, 1.0
        %v786 = vrcp.pop %v784
        %v787 = vmul.f32 1.0, %v786
        %v788 = vrcp.pop %v785
        %v789 = vmul.f32 1.0, %v788
        %v790 = vtanh.pop %v762
        %v791 = vtanh.pop %v763
        %v792 = vxor.u32 %v764, 2147483648
        %v793 = vxor.u32 %v765, 2147483648
        %v794 = vmul.f32 %v792, 1.442695
        %v795 = vpow.pop %v794
        %v796 = vmul.f32 %v793, 1.442695
        %v797 = vpow.pop %v796
        %v798 = vadd.f32 %v795, 1.0
        %v799 = vadd.f32 %v797, 1.0
        %v800 = vrcp.pop %v798
        %v801 = vmul.f32 1.0, %v800
        %v802 = vrcp.pop %v799
        %v803 = vmul.f32 1.0, %v802
        %v804 = vmul.f32 %v787, %v208
        %v805 = vmul.f32 %v789, %v209
        %v806 = vmul.f32 %v775, %v790
        %v807 = vmul.f32 %v777, %v791
        %v808 = vadd.f32 %v804, %v806
        %v809 = vadd.f32 %v805, %v807
        %v810 = vtanh.pop %v808
        %v811 = vtanh.pop %v809
        %v812 = vmul.f32 %v801, %v810
        %v813 = vmul.f32 %v803, %v811
        %814 = vst [vmem:[#allocation3] sm:$0xff] %v808
        %815 = vst [vmem:[#allocation3 + $0x8] sm:$0xff] %v809
        %816 = vst [vmem:[#allocation2] sm:$0xff] %v812
        %817 = vst [vmem:[#allocation2 + $0x8] sm:$0xff] %v813
        %818 = vst [vmem:[%s195] sm:$0xff] %v812
        %819 = vst [vmem:[%s195 + $0x8] sm:$0xff] %v813
        %v820 = vld [vmem:[#allocation2] sm:$0xff]
        %v821 = vld [vmem:[#allocation2 + $0x8] sm:$0xff]
        %v822 = vld [vmem:[#allocation3] sm:$0xff]
        %v823 = vld [vmem:[#allocation3 + $0x8] sm:$0xff]
        %s824 = scalar_lea.vmem %s171, 64 [#allocation4]
        %v825 = vld [vmem:[%s824] sm:$0xff]
        %v826 = vld [vmem:[%s824 + $0x8] sm:$0xff]
        %v827 = vld [vmem:[%s824 + $0x10] sm:$0xff]
        %v828 = vld [vmem:[%s824 + $0x18] sm:$0xff]
        %v829 = vld [vmem:[%s824 + $0x20] sm:$0xff]
        %v830 = vld [vmem:[%s824 + $0x28] sm:$0xff]
        %v831 = vld [vmem:[%s824 + $0x30] sm:$0xff]
        %v832 = vld [vmem:[%s824 + $0x38] sm:$0xff]
        %v833 = vld [vmem:[#allocation7] sm:$0xff]
        %v834 = vld [vmem:[#allocation7 + $0x8] sm:$0xff]
        %v835 = vld [vmem:[#allocation7 + $0x10] sm:$0xff]
        %v836 = vld [vmem:[#allocation7 + $0x18] sm:$0xff]
        %v837 = vld [vmem:[#allocation7 + $0x20] sm:$0xff]
        %v838 = vld [vmem:[#allocation7 + $0x28] sm:$0xff]
        %v839 = vld [vmem:[#allocation7 + $0x30] sm:$0xff]
        %v840 = vld [vmem:[#allocation7 + $0x38] sm:$0xff]
        %v841 = vld [vmem:[#allocation7 + $0x40] sm:$0xff]
        %v842 = vld [vmem:[#allocation7 + $0x48] sm:$0xff]
        %v843 = vld [vmem:[#allocation7 + $0x50] sm:$0xff]
        %v844 = vld [vmem:[#allocation7 + $0x58] sm:$0xff]
        %v845 = vld [vmem:[#allocation7 + $0x60] sm:$0xff]
        %v846 = vld [vmem:[#allocation7 + $0x68] sm:$0xff]
        %v847 = vld [vmem:[#allocation7 + $0x70] sm:$0xff]
        %v848 = vld [vmem:[#allocation7 + $0x78] sm:$0xff]
        %v849 = vld [vmem:[#allocation7 + $0x80] sm:$0xff]
        %v850 = vld [vmem:[#allocation7 + $0x88] sm:$0xff]
        %v851 = vld [vmem:[#allocation7 + $0x90] sm:$0xff]
        %v852 = vld [vmem:[#allocation7 + $0x98] sm:$0xff]
        %v853 = vld [vmem:[#allocation7 + $0xa0] sm:$0xff]
        %v854 = vld [vmem:[#allocation7 + $0xa8] sm:$0xff]
        %v855 = vld [vmem:[#allocation7 + $0xb0] sm:$0xff]
        %v856 = vld [vmem:[#allocation7 + $0xb8] sm:$0xff]
        %v857 = vld [vmem:[#allocation7 + $0xc0] sm:$0xff]
        %v858 = vld [vmem:[#allocation7 + $0xc8] sm:$0xff]
        %v859 = vld [vmem:[#allocation7 + $0xd0] sm:$0xff]
        %v860 = vld [vmem:[#allocation7 + $0xd8] sm:$0xff]
        %v861 = vld [vmem:[#allocation7 + $0xe0] sm:$0xff]
        %v862 = vld [vmem:[#allocation7 + $0xe8] sm:$0xff]
        %v863 = vld [vmem:[#allocation7 + $0xf0] sm:$0xff]
        %v864 = vld [vmem:[#allocation7 + $0xf8] sm:$0xff]
        %v865 = vld [vmem:[#allocation7 + $0x100] sm:$0xff]
        %v866 = vld [vmem:[#allocation7 + $0x108] sm:$0xff]
        %v867 = vld [vmem:[#allocation7 + $0x110] sm:$0xff]
        %v868 = vld [vmem:[#allocation7 + $0x118] sm:$0xff]
        %v869 = vld [vmem:[#allocation7 + $0x120] sm:$0xff]
        %v870 = vld [vmem:[#allocation7 + $0x128] sm:$0xff]
        %v871 = vld [vmem:[#allocation7 + $0x130] sm:$0xff]
        %v872 = vld [vmem:[#allocation7 + $0x138] sm:$0xff]
        %v873 = vld [vmem:[#allocation7 + $0x140] sm:$0xff]
        %v874 = vld [vmem:[#allocation7 + $0x148] sm:$0xff]
        %v875 = vld [vmem:[#allocation7 + $0x150] sm:$0xff]
        %v876 = vld [vmem:[#allocation7 + $0x158] sm:$0xff]
        %v877 = vld [vmem:[#allocation7 + $0x160] sm:$0xff]
        %v878 = vld [vmem:[#allocation7 + $0x168] sm:$0xff]
        %v879 = vld [vmem:[#allocation7 + $0x170] sm:$0xff]
        %v880 = vld [vmem:[#allocation7 + $0x178] sm:$0xff]
        %v881 = vld [vmem:[#allocation7 + $0x180] sm:$0xff]
        %v882 = vld [vmem:[#allocation7 + $0x188] sm:$0xff]
        %v883 = vld [vmem:[#allocation7 + $0x190] sm:$0xff]
        %v884 = vld [vmem:[#allocation7 + $0x198] sm:$0xff]
        %v885 = vld [vmem:[#allocation7 + $0x1a0] sm:$0xff]
        %v886 = vld [vmem:[#allocation7 + $0x1a8] sm:$0xff]
        %v887 = vld [vmem:[#allocation7 + $0x1b0] sm:$0xff]
        %v888 = vld [vmem:[#allocation7 + $0x1b8] sm:$0xff]
        %v889 = vld [vmem:[#allocation7 + $0x1c0] sm:$0xff]
        %v890 = vld [vmem:[#allocation7 + $0x1c8] sm:$0xff]
        %v891 = vld [vmem:[#allocation7 + $0x1d0] sm:$0xff]
        %v892 = vld [vmem:[#allocation7 + $0x1d8] sm:$0xff]
        %v893 = vld [vmem:[#allocation7 + $0x1e0] sm:$0xff]
        %v894 = vld [vmem:[#allocation7 + $0x1e8] sm:$0xff]
        %v895 = vld [vmem:[#allocation7 + $0x1f0] sm:$0xff]
        %v896 = vld [vmem:[#allocation7 + $0x1f8] sm:$0xff]
        %v897 = vld [vmem:[#allocation7 + $0x200] sm:$0xff]
        %v898 = vld [vmem:[#allocation7 + $0x208] sm:$0xff]
        %v899 = vld [vmem:[#allocation7 + $0x210] sm:$0xff]
        %v900 = vld [vmem:[#allocation7 + $0x218] sm:$0xff]
        %v901 = vld [vmem:[#allocation7 + $0x220] sm:$0xff]
        %v902 = vld [vmem:[#allocation7 + $0x228] sm:$0xff]
        %v903 = vld [vmem:[#allocation7 + $0x230] sm:$0xff]
        %v904 = vld [vmem:[#allocation7 + $0x238] sm:$0xff]
        %v905 = vld [vmem:[#allocation7 + $0x240] sm:$0xff]
        %v906 = vld [vmem:[#allocation7 + $0x248] sm:$0xff]
        %v907 = vld [vmem:[#allocation7 + $0x250] sm:$0xff]
        %v908 = vld [vmem:[#allocation7 + $0x258] sm:$0xff]
        %v909 = vld [vmem:[#allocation7 + $0x260] sm:$0xff]
        %v910 = vld [vmem:[#allocation7 + $0x268] sm:$0xff]
        %v911 = vld [vmem:[#allocation7 + $0x270] sm:$0xff]
        %v912 = vld [vmem:[#allocation7 + $0x278] sm:$0xff]
        %v913 = vld [vmem:[#allocation7 + $0x280] sm:$0xff]
        %v914 = vld [vmem:[#allocation7 + $0x288] sm:$0xff]
        %v915 = vld [vmem:[#allocation7 + $0x290] sm:$0xff]
        %v916 = vld [vmem:[#allocation7 + $0x298] sm:$0xff]
        %v917 = vld [vmem:[#allocation7 + $0x2a0] sm:$0xff]
        %v918 = vld [vmem:[#allocation7 + $0x2a8] sm:$0xff]
        %v919 = vld [vmem:[#allocation7 + $0x2b0] sm:$0xff]
        %v920 = vld [vmem:[#allocation7 + $0x2b8] sm:$0xff]
        %v921 = vld [vmem:[#allocation7 + $0x2c0] sm:$0xff]
        %v922 = vld [vmem:[#allocation7 + $0x2c8] sm:$0xff]
        %v923 = vld [vmem:[#allocation7 + $0x2d0] sm:$0xff]
        %v924 = vld [vmem:[#allocation7 + $0x2d8] sm:$0xff]
        %v925 = vld [vmem:[#allocation7 + $0x2e0] sm:$0xff]
        %v926 = vld [vmem:[#allocation7 + $0x2e8] sm:$0xff]
        %v927 = vld [vmem:[#allocation7 + $0x2f0] sm:$0xff]
        %v928 = vld [vmem:[#allocation7 + $0x2f8] sm:$0xff]
        %v929 = vld [vmem:[#allocation7 + $0x300] sm:$0xff]
        %v930 = vld [vmem:[#allocation7 + $0x308] sm:$0xff]
        %v931 = vld [vmem:[#allocation7 + $0x310] sm:$0xff]
        %v932 = vld [vmem:[#allocation7 + $0x318] sm:$0xff]
        %v933 = vld [vmem:[#allocation7 + $0x320] sm:$0xff]
        %v934 = vld [vmem:[#allocation7 + $0x328] sm:$0xff]
        %v935 = vld [vmem:[#allocation7 + $0x330] sm:$0xff]
        %v936 = vld [vmem:[#allocation7 + $0x338] sm:$0xff]
        %v937 = vld [vmem:[#allocation7 + $0x340] sm:$0xff]
        %v938 = vld [vmem:[#allocation7 + $0x348] sm:$0xff]
        %v939 = vld [vmem:[#allocation7 + $0x350] sm:$0xff]
        %v940 = vld [vmem:[#allocation7 + $0x358] sm:$0xff]
        %v941 = vld [vmem:[#allocation7 + $0x360] sm:$0xff]
        %v942 = vld [vmem:[#allocation7 + $0x368] sm:$0xff]
        %v943 = vld [vmem:[#allocation7 + $0x370] sm:$0xff]
        %v944 = vld [vmem:[#allocation7 + $0x378] sm:$0xff]
        %v945 = vld [vmem:[#allocation7 + $0x380] sm:$0xff]
        %v946 = vld [vmem:[#allocation7 + $0x388] sm:$0xff]
        %v947 = vld [vmem:[#allocation7 + $0x390] sm:$0xff]
        %v948 = vld [vmem:[#allocation7 + $0x398] sm:$0xff]
        %v949 = vld [vmem:[#allocation7 + $0x3a0] sm:$0xff]
        %v950 = vld [vmem:[#allocation7 + $0x3a8] sm:$0xff]
        %v951 = vld [vmem:[#allocation7 + $0x3b0] sm:$0xff]
        %v952 = vld [vmem:[#allocation7 + $0x3b8] sm:$0xff]
        %v953 = vld [vmem:[#allocation7 + $0x3c0] sm:$0xff]
        %v954 = vld [vmem:[#allocation7 + $0x3c8] sm:$0xff]
        %v955 = vld [vmem:[#allocation7 + $0x3d0] sm:$0xff]
        %v956 = vld [vmem:[#allocation7 + $0x3d8] sm:$0xff]
        %v957 = vld [vmem:[#allocation7 + $0x3e0] sm:$0xff]
        %v958 = vld [vmem:[#allocation7 + $0x3e8] sm:$0xff]
        %v959 = vld [vmem:[#allocation7 + $0x3f0] sm:$0xff]
        %v960 = vld [vmem:[#allocation7 + $0x3f8] sm:$0xff]
        %v961 = vld [vmem:[#allocation7 + $0x400] sm:$0xff]
        %v962 = vld [vmem:[#allocation7 + $0x408] sm:$0xff]
        %v963 = vld [vmem:[#allocation7 + $0x410] sm:$0xff]
        %v964 = vld [vmem:[#allocation7 + $0x418] sm:$0xff]
        %v965 = vld [vmem:[#allocation7 + $0x420] sm:$0xff]
        %v966 = vld [vmem:[#allocation7 + $0x428] sm:$0xff]
        %v967 = vld [vmem:[#allocation7 + $0x430] sm:$0xff]
        %v968 = vld [vmem:[#allocation7 + $0x438] sm:$0xff]
        %v969 = vld [vmem:[#allocation7 + $0x440] sm:$0xff]
        %v970 = vld [vmem:[#allocation7 + $0x448] sm:$0xff]
        %v971 = vld [vmem:[#allocation7 + $0x450] sm:$0xff]
        %v972 = vld [vmem:[#allocation7 + $0x458] sm:$0xff]
        %v973 = vld [vmem:[#allocation7 + $0x460] sm:$0xff]
        %v974 = vld [vmem:[#allocation7 + $0x468] sm:$0xff]
        %v975 = vld [vmem:[#allocation7 + $0x470] sm:$0xff]
        %v976 = vld [vmem:[#allocation7 + $0x478] sm:$0xff]
        %v977 = vld [vmem:[#allocation7 + $0x480] sm:$0xff]
        %v978 = vld [vmem:[#allocation7 + $0x488] sm:$0xff]
        %v979 = vld [vmem:[#allocation7 + $0x490] sm:$0xff]
        %v980 = vld [vmem:[#allocation7 + $0x498] sm:$0xff]
        %v981 = vld [vmem:[#allocation7 + $0x4a0] sm:$0xff]
        %v982 = vld [vmem:[#allocation7 + $0x4a8] sm:$0xff]
        %v983 = vld [vmem:[#allocation7 + $0x4b0] sm:$0xff]
        %v984 = vld [vmem:[#allocation7 + $0x4b8] sm:$0xff]
        %v985 = vld [vmem:[#allocation7 + $0x4c0] sm:$0xff]
        %v986 = vld [vmem:[#allocation7 + $0x4c8] sm:$0xff]
        %v987 = vld [vmem:[#allocation7 + $0x4d0] sm:$0xff]
        %v988 = vld [vmem:[#allocation7 + $0x4d8] sm:$0xff]
        %v989 = vld [vmem:[#allocation7 + $0x4e0] sm:$0xff]
        %v990 = vld [vmem:[#allocation7 + $0x4e8] sm:$0xff]
        %v991 = vld [vmem:[#allocation7 + $0x4f0] sm:$0xff]
        %v992 = vld [vmem:[#allocation7 + $0x4f8] sm:$0xff]
        %v993 = vld [vmem:[#allocation7 + $0x500] sm:$0xff]
        %v994 = vld [vmem:[#allocation7 + $0x508] sm:$0xff]
        %v995 = vld [vmem:[#allocation7 + $0x510] sm:$0xff]
        %v996 = vld [vmem:[#allocation7 + $0x518] sm:$0xff]
        %v997 = vld [vmem:[#allocation7 + $0x520] sm:$0xff]
        %v998 = vld [vmem:[#allocation7 + $0x528] sm:$0xff]
        %v999 = vld [vmem:[#allocation7 + $0x530] sm:$0xff]
        %v1000 = vld [vmem:[#allocation7 + $0x538] sm:$0xff]
        %v1001 = vld [vmem:[#allocation7 + $0x540] sm:$0xff]
        %v1002 = vld [vmem:[#allocation7 + $0x548] sm:$0xff]
        %v1003 = vld [vmem:[#allocation7 + $0x550] sm:$0xff]
        %v1004 = vld [vmem:[#allocation7 + $0x558] sm:$0xff]
        %v1005 = vld [vmem:[#allocation7 + $0x560] sm:$0xff]
        %v1006 = vld [vmem:[#allocation7 + $0x568] sm:$0xff]
        %v1007 = vld [vmem:[#allocation7 + $0x570] sm:$0xff]
        %v1008 = vld [vmem:[#allocation7 + $0x578] sm:$0xff]
        %v1009 = vld [vmem:[#allocation7 + $0x580] sm:$0xff]
        %v1010 = vld [vmem:[#allocation7 + $0x588] sm:$0xff]
        %v1011 = vld [vmem:[#allocation7 + $0x590] sm:$0xff]
        %v1012 = vld [vmem:[#allocation7 + $0x598] sm:$0xff]
        %v1013 = vld [vmem:[#allocation7 + $0x5a0] sm:$0xff]
        %v1014 = vld [vmem:[#allocation7 + $0x5a8] sm:$0xff]
        %v1015 = vld [vmem:[#allocation7 + $0x5b0] sm:$0xff]
        %v1016 = vld [vmem:[#allocation7 + $0x5b8] sm:$0xff]
        %v1017 = vld [vmem:[#allocation7 + $0x5c0] sm:$0xff]
        %v1018 = vld [vmem:[#allocation7 + $0x5c8] sm:$0xff]
        %v1019 = vld [vmem:[#allocation7 + $0x5d0] sm:$0xff]
        %v1020 = vld [vmem:[#allocation7 + $0x5d8] sm:$0xff]
        %v1021 = vld [vmem:[#allocation7 + $0x5e0] sm:$0xff]
        %v1022 = vld [vmem:[#allocation7 + $0x5e8] sm:$0xff]
        %v1023 = vld [vmem:[#allocation7 + $0x5f0] sm:$0xff]
        %v1024 = vld [vmem:[#allocation7 + $0x5f8] sm:$0xff]
        %v1025 = vld [vmem:[#allocation7 + $0x600] sm:$0xff]
        %v1026 = vld [vmem:[#allocation7 + $0x608] sm:$0xff]
        %v1027 = vld [vmem:[#allocation7 + $0x610] sm:$0xff]
        %v1028 = vld [vmem:[#allocation7 + $0x618] sm:$0xff]
        %v1029 = vld [vmem:[#allocation7 + $0x620] sm:$0xff]
        %v1030 = vld [vmem:[#allocation7 + $0x628] sm:$0xff]
        %v1031 = vld [vmem:[#allocation7 + $0x630] sm:$0xff]
        %v1032 = vld [vmem:[#allocation7 + $0x638] sm:$0xff]
        %v1033 = vld [vmem:[#allocation7 + $0x640] sm:$0xff]
        %v1034 = vld [vmem:[#allocation7 + $0x648] sm:$0xff]
        %v1035 = vld [vmem:[#allocation7 + $0x650] sm:$0xff]
        %v1036 = vld [vmem:[#allocation7 + $0x658] sm:$0xff]
        %v1037 = vld [vmem:[#allocation7 + $0x660] sm:$0xff]
        %v1038 = vld [vmem:[#allocation7 + $0x668] sm:$0xff]
        %v1039 = vld [vmem:[#allocation7 + $0x670] sm:$0xff]
        %v1040 = vld [vmem:[#allocation7 + $0x678] sm:$0xff]
        %v1041 = vld [vmem:[#allocation7 + $0x680] sm:$0xff]
        %v1042 = vld [vmem:[#allocation7 + $0x688] sm:$0xff]
        %v1043 = vld [vmem:[#allocation7 + $0x690] sm:$0xff]
        %v1044 = vld [vmem:[#allocation7 + $0x698] sm:$0xff]
        %v1045 = vld [vmem:[#allocation7 + $0x6a0] sm:$0xff]
        %v1046 = vld [vmem:[#allocation7 + $0x6a8] sm:$0xff]
        %v1047 = vld [vmem:[#allocation7 + $0x6b0] sm:$0xff]
        %v1048 = vld [vmem:[#allocation7 + $0x6b8] sm:$0xff]
        %v1049 = vld [vmem:[#allocation7 + $0x6c0] sm:$0xff]
        %v1050 = vld [vmem:[#allocation7 + $0x6c8] sm:$0xff]
        %v1051 = vld [vmem:[#allocation7 + $0x6d0] sm:$0xff]
        %v1052 = vld [vmem:[#allocation7 + $0x6d8] sm:$0xff]
        %v1053 = vld [vmem:[#allocation7 + $0x6e0] sm:$0xff]
        %v1054 = vld [vmem:[#allocation7 + $0x6e8] sm:$0xff]
        %v1055 = vld [vmem:[#allocation7 + $0x6f0] sm:$0xff]
        %v1056 = vld [vmem:[#allocation7 + $0x6f8] sm:$0xff]
        %v1057 = vld [vmem:[#allocation7 + $0x700] sm:$0xff]
        %v1058 = vld [vmem:[#allocation7 + $0x708] sm:$0xff]
        %v1059 = vld [vmem:[#allocation7 + $0x710] sm:$0xff]
        %v1060 = vld [vmem:[#allocation7 + $0x718] sm:$0xff]
        %v1061 = vld [vmem:[#allocation7 + $0x720] sm:$0xff]
        %v1062 = vld [vmem:[#allocation7 + $0x728] sm:$0xff]
        %v1063 = vld [vmem:[#allocation7 + $0x730] sm:$0xff]
        %v1064 = vld [vmem:[#allocation7 + $0x738] sm:$0xff]
        %v1065 = vld [vmem:[#allocation7 + $0x740] sm:$0xff]
        %v1066 = vld [vmem:[#allocation7 + $0x748] sm:$0xff]
        %v1067 = vld [vmem:[#allocation7 + $0x750] sm:$0xff]
        %v1068 = vld [vmem:[#allocation7 + $0x758] sm:$0xff]
        %v1069 = vld [vmem:[#allocation7 + $0x760] sm:$0xff]
        %v1070 = vld [vmem:[#allocation7 + $0x768] sm:$0xff]
        %v1071 = vld [vmem:[#allocation7 + $0x770] sm:$0xff]
        %v1072 = vld [vmem:[#allocation7 + $0x778] sm:$0xff]
        %v1073 = vld [vmem:[#allocation7 + $0x780] sm:$0xff]
        %v1074 = vld [vmem:[#allocation7 + $0x788] sm:$0xff]
        %v1075 = vld [vmem:[#allocation7 + $0x790] sm:$0xff]
        %v1076 = vld [vmem:[#allocation7 + $0x798] sm:$0xff]
        %v1077 = vld [vmem:[#allocation7 + $0x7a0] sm:$0xff]
        %v1078 = vld [vmem:[#allocation7 + $0x7a8] sm:$0xff]
        %v1079 = vld [vmem:[#allocation7 + $0x7b0] sm:$0xff]
        %v1080 = vld [vmem:[#allocation7 + $0x7b8] sm:$0xff]
        %v1081 = vld [vmem:[#allocation7 + $0x7c0] sm:$0xff]
        %v1082 = vld [vmem:[#allocation7 + $0x7c8] sm:$0xff]
        %v1083 = vld [vmem:[#allocation7 + $0x7d0] sm:$0xff]
        %v1084 = vld [vmem:[#allocation7 + $0x7d8] sm:$0xff]
        %v1085 = vld [vmem:[#allocation7 + $0x7e0] sm:$0xff]
        %v1086 = vld [vmem:[#allocation7 + $0x7e8] sm:$0xff]
        %v1087 = vld [vmem:[#allocation7 + $0x7f0] sm:$0xff]
        %v1088 = vld [vmem:[#allocation7 + $0x7f8] sm:$0xff]
        %1089 = vmatprep.subr.mxu0 %v834
        %1090 = vmatpush1.msra.mxu0 %v833
        %1091 = vmatprep.subr.mxu0 %v842
        %1092 = vmatpush1.msra.mxu0 %v841
        %1093 = vmatprep.subr.mxu0 %v850
        %1094 = vmatpush1.msra.mxu0 %v849
        %1095 = vmatprep.subr.mxu0 %v858
        %1096 = vmatpush1.msra.mxu0 %v857
        %1097 = vmatprep.subr.mxu0 %v866
        %1098 = vmatpush1.msra.mxu0 %v865
        %1099 = vmatprep.subr.mxu0 %v874
        %1100 = vmatpush1.msra.mxu0 %v873
        %1101 = vmatprep.subr.mxu0 %v882
        %1102 = vmatpush1.msra.mxu0 %v881
        %1103 = vmatprep.subr.mxu0 %v890
        %1104 = vmatpush1.msra.mxu0 %v889
        %1105 = vmatprep.subr.mxu0 %v898
        %1106 = vmatpush1.msra.mxu0 %v897
        %1107 = vmatprep.subr.mxu0 %v906
        %1108 = vmatpush1.msra.mxu0 %v905
        %1109 = vmatprep.subr.mxu0 %v914
        %1110 = vmatpush1.msra.mxu0 %v913
        %1111 = vmatprep.subr.mxu0 %v922
        %1112 = vmatpush1.msra.mxu0 %v921
        %1113 = vmatprep.subr.mxu0 %v930
        %1114 = vmatpush1.msra.mxu0 %v929
        %1115 = vmatprep.subr.mxu0 %v938
        %1116 = vmatpush1.msra.mxu0 %v937
        %1117 = vmatprep.subr.mxu0 %v946
        %1118 = vmatpush1.msra.mxu0 %v945
        %1119 = vmatprep.subr.mxu0 %v954
        %1120 = vmatpush1.msra.mxu0 %v953
        %1121 = vmatprep.subr.mxu0 %v962
        %1122 = vmatpush1.msra.mxu0 %v961
        %1123 = vmatprep.subr.mxu0 %v970
        %1124 = vmatpush1.msra.mxu0 %v969
        %1125 = vmatprep.subr.mxu0 %v978
        %1126 = vmatpush1.msra.mxu0 %v977
        %1127 = vmatprep.subr.mxu0 %v986
        %1128 = vmatpush1.msra.mxu0 %v985
        %1129 = vmatprep.subr.mxu0 %v994
        %1130 = vmatpush1.msra.mxu0 %v993
        %1131 = vmatprep.subr.mxu0 %v1002
        %1132 = vmatpush1.msra.mxu0 %v1001
        %1133 = vmatprep.subr.mxu0 %v1010
        %1134 = vmatpush1.msra.mxu0 %v1009
        %1135 = vmatprep.subr.mxu0 %v1018
        %1136 = vmatpush1.msra.mxu0 %v1017
        %1137 = vmatprep.subr.mxu0 %v1026
        %1138 = vmatpush1.msra.mxu0 %v1025
        %1139 = vmatprep.subr.mxu0 %v1034
        %1140 = vmatpush1.msra.mxu0 %v1033
        %1141 = vmatprep.subr.mxu0 %v1042
        %1142 = vmatpush1.msra.mxu0 %v1041
        %1143 = vmatprep.subr.mxu0 %v1050
        %1144 = vmatpush1.msra.mxu0 %v1049
        %1145 = vmatprep.subr.mxu0 %v1058
        %1146 = vmatpush1.msra.mxu0 %v1057
        %1147 = vmatprep.subr.mxu0 %v1066
        %1148 = vmatpush1.msra.mxu0 %v1065
        %1149 = vmatprep.subr.mxu0 %v1074
        %1150 = vmatpush1.msra.mxu0 %v1073
        %1151 = vmatprep.subr.mxu0 %v1082
        %1152 = vmatpush1.msra.mxu0 %v1081
        %1153 = vmatprep.mubr.f32.mxu0 %v821
        %1154 = vmatmul.mubr.f32.gmra.mrb[0].mxu0 %v820
        %v1155 = vpop.f32.mrb[0].mxu0
        %v1156 = vadd.f32 0.0, %v1155
        %v1157 = vpop.f32.mrb[0].mxu0
        %v1158 = vadd.f32 0.0, %v1157
        %1159 = vdwg.mxu0
        %1160 = vmatprep.subr.mxu0 %v836
        %1161 = vmatpush1.msra.mxu0 %v835
        %1162 = vmatprep.subr.mxu0 %v844
        %1163 = vmatpush1.msra.mxu0 %v843
        %1164 = vmatprep.subr.mxu0 %v852
        %1165 = vmatpush1.msra.mxu0 %v851
        %1166 = vmatprep.subr.mxu0 %v860
        %1167 = vmatpush1.msra.mxu0 %v859
        %1168 = vmatprep.subr.mxu0 %v868
        %1169 = vmatpush1.msra.mxu0 %v867
        %1170 = vmatprep.subr.mxu0 %v876
        %1171 = vmatpush1.msra.mxu0 %v875
        %1172 = vmatprep.subr.mxu0 %v884
        %1173 = vmatpush1.msra.mxu0 %v883
        %1174 = vmatprep.subr.mxu0 %v892
        %1175 = vmatpush1.msra.mxu0 %v891
        %1176 = vmatprep.subr.mxu0 %v900
        %1177 = vmatpush1.msra.mxu0 %v899
        %1178 = vmatprep.subr.mxu0 %v908
        %1179 = vmatpush1.msra.mxu0 %v907
        %1180 = vmatprep.subr.mxu0 %v916
        %1181 = vmatpush1.msra.mxu0 %v915
        %1182 = vmatprep.subr.mxu0 %v924
        %1183 = vmatpush1.msra.mxu0 %v923
        %1184 = vmatprep.subr.mxu0 %v932
        %1185 = vmatpush1.msra.mxu0 %v931
        %1186 = vmatprep.subr.mxu0 %v940
        %1187 = vmatpush1.msra.mxu0 %v939
        %1188 = vmatprep.subr.mxu0 %v948
        %1189 = vmatpush1.msra.mxu0 %v947
        %1190 = vmatprep.subr.mxu0 %v956
        %1191 = vmatpush1.msra.mxu0 %v955
        %1192 = vmatprep.subr.mxu0 %v964
        %1193 = vmatpush1.msra.mxu0 %v963
        %1194 = vmatprep.subr.mxu0 %v972
        %1195 = vmatpush1.msra.mxu0 %v971
        %1196 = vmatprep.subr.mxu0 %v980
        %1197 = vmatpush1.msra.mxu0 %v979
        %1198 = vmatprep.subr.mxu0 %v988
        %1199 = vmatpush1.msra.mxu0 %v987
        %1200 = vmatprep.subr.mxu0 %v996
        %1201 = vmatpush1.msra.mxu0 %v995
        %1202 = vmatprep.subr.mxu0 %v1004
        %1203 = vmatpush1.msra.mxu0 %v1003
        %1204 = vmatprep.subr.mxu0 %v1012
        %1205 = vmatpush1.msra.mxu0 %v1011
        %1206 = vmatprep.subr.mxu0 %v1020
        %1207 = vmatpush1.msra.mxu0 %v1019
        %1208 = vmatprep.subr.mxu0 %v1028
        %1209 = vmatpush1.msra.mxu0 %v1027
        %1210 = vmatprep.subr.mxu0 %v1036
        %1211 = vmatpush1.msra.mxu0 %v1035
        %1212 = vmatprep.subr.mxu0 %v1044
        %1213 = vmatpush1.msra.mxu0 %v1043
        %1214 = vmatprep.subr.mxu0 %v1052
        %1215 = vmatpush1.msra.mxu0 %v1051
        %1216 = vmatprep.subr.mxu0 %v1060
        %1217 = vmatpush1.msra.mxu0 %v1059
        %1218 = vmatprep.subr.mxu0 %v1068
        %1219 = vmatpush1.msra.mxu0 %v1067
        %1220 = vmatprep.subr.mxu0 %v1076
        %1221 = vmatpush1.msra.mxu0 %v1075
        %1222 = vmatprep.subr.mxu0 %v1084
        %1223 = vmatpush1.msra.mxu0 %v1083
        %1224 = vmatprep.mubr.f32.mxu0 %v821
        %1225 = vmatmul.mubr.f32.gmra.mrb[0].mxu0 %v820
        %v1226 = vpop.f32.mrb[0].mxu0
        %v1227 = vadd.f32 0.0, %v1226
        %v1228 = vpop.f32.mrb[0].mxu0
        %v1229 = vadd.f32 0.0, %v1228
        %1230 = vdwg.mxu0
        %1231 = vmatprep.subr.mxu0 %v838
        %1232 = vmatpush1.msra.mxu0 %v837
        %1233 = vmatprep.subr.mxu0 %v846
        %1234 = vmatpush1.msra.mxu0 %v845
        %1235 = vmatprep.subr.mxu0 %v854
        %1236 = vmatpush1.msra.mxu0 %v853
        %1237 = vmatprep.subr.mxu0 %v862
        %1238 = vmatpush1.msra.mxu0 %v861
        %1239 = vmatprep.subr.mxu0 %v870
        %1240 = vmatpush1.msra.mxu0 %v869
        %1241 = vmatprep.subr.mxu0 %v878
        %1242 = vmatpush1.msra.mxu0 %v877
        %1243 = vmatprep.subr.mxu0 %v886
        %1244 = vmatpush1.msra.mxu0 %v885
        %1245 = vmatprep.subr.mxu0 %v894
        %1246 = vmatpush1.msra.mxu0 %v893
        %1247 = vmatprep.subr.mxu0 %v902
        %1248 = vmatpush1.msra.mxu0 %v901
        %1249 = vmatprep.subr.mxu0 %v910
        %1250 = vmatpush1.msra.mxu0 %v909
        %1251 = vmatprep.subr.mxu0 %v918
        %1252 = vmatpush1.msra.mxu0 %v917
        %1253 = vmatprep.subr.mxu0 %v926
        %1254 = vmatpush1.msra.mxu0 %v925
        %1255 = vmatprep.subr.mxu0 %v934
        %1256 = vmatpush1.msra.mxu0 %v933
        %1257 = vmatprep.subr.mxu0 %v942
        %1258 = vmatpush1.msra.mxu0 %v941
        %1259 = vmatprep.subr.mxu0 %v950
        %1260 = vmatpush1.msra.mxu0 %v949
        %1261 = vmatprep.subr.mxu0 %v958
        %1262 = vmatpush1.msra.mxu0 %v957
        %1263 = vmatprep.subr.mxu0 %v966
        %1264 = vmatpush1.msra.mxu0 %v965
        %1265 = vmatprep.subr.mxu0 %v974
        %1266 = vmatpush1.msra.mxu0 %v973
        %1267 = vmatprep.subr.mxu0 %v982
        %1268 = vmatpush1.msra.mxu0 %v981
        %1269 = vmatprep.subr.mxu0 %v990
        %1270 = vmatpush1.msra.mxu0 %v989
        %1271 = vmatprep.subr.mxu0 %v998
        %1272 = vmatpush1.msra.mxu0 %v997
        %1273 = vmatprep.subr.mxu0 %v1006
        %1274 = vmatpush1.msra.mxu0 %v1005
        %1275 = vmatprep.subr.mxu0 %v1014
        %1276 = vmatpush1.msra.mxu0 %v1013
        %1277 = vmatprep.subr.mxu0 %v1022
        %1278 = vmatpush1.msra.mxu0 %v1021
        %1279 = vmatprep.subr.mxu0 %v1030
        %1280 = vmatpush1.msra.mxu0 %v1029
        %1281 = vmatprep.subr.mxu0 %v1038
        %1282 = vmatpush1.msra.mxu0 %v1037
        %1283 = vmatprep.subr.mxu0 %v1046
        %1284 = vmatpush1.msra.mxu0 %v1045
        %1285 = vmatprep.subr.mxu0 %v1054
        %1286 = vmatpush1.msra.mxu0 %v1053
        %1287 = vmatprep.subr.mxu0 %v1062
        %1288 = vmatpush1.msra.mxu0 %v1061
        %1289 = vmatprep.subr.mxu0 %v1070
        %1290 = vmatpush1.msra.mxu0 %v1069
        %1291 = vmatprep.subr.mxu0 %v1078
        %1292 = vmatpush1.msra.mxu0 %v1077
        %1293 = vmatprep.subr.mxu0 %v1086
        %1294 = vmatpush1.msra.mxu0 %v1085
        %1295 = vmatprep.mubr.f32.mxu0 %v821
        %1296 = vmatmul.mubr.f32.gmra.mrb[0].mxu0 %v820
        %v1297 = vpop.f32.mrb[0].mxu0
        %v1298 = vadd.f32 0.0, %v1297
        %v1299 = vpop.f32.mrb[0].mxu0
        %v1300 = vadd.f32 0.0, %v1299
        %1301 = vdwg.mxu0
        %1302 = vmatprep.subr.mxu0 %v840
        %1303 = vmatpush1.msra.mxu0 %v839
        %1304 = vmatprep.subr.mxu0 %v848
        %1305 = vmatpush1.msra.mxu0 %v847
        %1306 = vmatprep.subr.mxu0 %v856
        %1307 = vmatpush1.msra.mxu0 %v855
        %1308 = vmatprep.subr.mxu0 %v864
        %1309 = vmatpush1.msra.mxu0 %v863
        %1310 = vmatprep.subr.mxu0 %v872
        %1311 = vmatpush1.msra.mxu0 %v871
        %1312 = vmatprep.subr.mxu0 %v880
        %1313 = vmatpush1.msra.mxu0 %v879
        %1314 = vmatprep.subr.mxu0 %v888
        %1315 = vmatpush1.msra.mxu0 %v887
        %1316 = vmatprep.subr.mxu0 %v896
        %1317 = vmatpush1.msra.mxu0 %v895
        %1318 = vmatprep.subr.mxu0 %v904
        %1319 = vmatpush1.msra.mxu0 %v903
        %1320 = vmatprep.subr.mxu0 %v912
        %1321 = vmatpush1.msra.mxu0 %v911
        %1322 = vmatprep.subr.mxu0 %v920
        %1323 = vmatpush1.msra.mxu0 %v919
        %1324 = vmatprep.subr.mxu0 %v928
        %1325 = vmatpush1.msra.mxu0 %v927
        %1326 = vmatprep.subr.mxu0 %v936
        %1327 = vmatpush1.msra.mxu0 %v935
        %1328 = vmatprep.subr.mxu0 %v944
        %1329 = vmatpush1.msra.mxu0 %v943
        %1330 = vmatprep.subr.mxu0 %v952
        %1331 = vmatpush1.msra.mxu0 %v951
        %1332 = vmatprep.subr.mxu0 %v960
        %1333 = vmatpush1.msra.mxu0 %v959
        %1334 = vmatprep.subr.mxu0 %v968
        %1335 = vmatpush1.msra.mxu0 %v967
        %1336 = vmatprep.subr.mxu0 %v976
        %1337 = vmatpush1.msra.mxu0 %v975
        %1338 = vmatprep.subr.mxu0 %v984
        %1339 = vmatpush1.msra.mxu0 %v983
        %1340 = vmatprep.subr.mxu0 %v992
        %1341 = vmatpush1.msra.mxu0 %v991
        %1342 = vmatprep.subr.mxu0 %v1000
        %1343 = vmatpush1.msra.mxu0 %v999
        %1344 = vmatprep.subr.mxu0 %v1008
        %1345 = vmatpush1.msra.mxu0 %v1007
        %1346 = vmatprep.subr.mxu0 %v1016
        %1347 = vmatpush1.msra.mxu0 %v1015
        %1348 = vmatprep.subr.mxu0 %v1024
        %1349 = vmatpush1.msra.mxu0 %v1023
        %1350 = vmatprep.subr.mxu0 %v1032
        %1351 = vmatpush1.msra.mxu0 %v1031
        %1352 = vmatprep.subr.mxu0 %v1040
        %1353 = vmatpush1.msra.mxu0 %v1039
        %1354 = vmatprep.subr.mxu0 %v1048
        %1355 = vmatpush1.msra.mxu0 %v1047
        %1356 = vmatprep.subr.mxu0 %v1056
        %1357 = vmatpush1.msra.mxu0 %v1055
        %1358 = vmatprep.subr.mxu0 %v1064
        %1359 = vmatpush1.msra.mxu0 %v1063
        %1360 = vmatprep.subr.mxu0 %v1072
        %1361 = vmatpush1.msra.mxu0 %v1071
        %1362 = vmatprep.subr.mxu0 %v1080
        %1363 = vmatpush1.msra.mxu0 %v1079
        %1364 = vmatprep.subr.mxu0 %v1088
        %1365 = vmatpush1.msra.mxu0 %v1087
        %1366 = vmatprep.mubr.f32.mxu0 %v821
        %1367 = vmatmul.mubr.f32.gmra.mrb[0].mxu0 %v820
        %v1368 = vpop.f32.mrb[0].mxu0
        %v1369 = vadd.f32 0.0, %v1368
        %v1370 = vpop.f32.mrb[0].mxu0
        %v1371 = vadd.f32 0.0, %v1370
        %1372 = vdwg.mxu0
        %v1373 = vadd.f32 %v825, %v1156
        %v1374 = vadd.f32 %v826, %v1158
        %v1375 = vadd.f32 %v827, %v1227
        %v1376 = vadd.f32 %v828, %v1229
        %v1377 = vadd.f32 %v829, %v1298
        %v1378 = vadd.f32 %v830, %v1300
        %v1379 = vadd.f32 %v831, %v1369
        %v1380 = vadd.f32 %v832, %v1371
        %v1381 = vxor.u32 %v1373, 2147483648
        %v1382 = vxor.u32 %v1374, 2147483648
        %v1383 = vmul.f32 %v1381, 1.442695
        %v1384 = vpow.pop %v1383
        %v1385 = vmul.f32 %v1382, 1.442695
        %v1386 = vpow.pop %v1385
        %v1387 = vadd.f32 %v1384, 1.0
        %v1388 = vadd.f32 %v1386, 1.0
        %v1389 = vrcp.pop %v1387
        %v1390 = vmul.f32 1.0, %v1389
        %v1391 = vrcp.pop %v1388
        %v1392 = vmul.f32 1.0, %v1391
        %v1393 = vxor.u32 %v1375, 2147483648
        %v1394 = vxor.u32 %v1376, 2147483648
        %v1395 = vmul.f32 %v1393, 1.442695
        %v1396 = vpow.pop %v1395
        %v1397 = vmul.f32 %v1394, 1.442695
        %v1398 = vpow.pop %v1397
        %v1399 = vadd.f32 %v1396, 1.0
        %v1400 = vadd.f32 %v1398, 1.0
        %v1401 = vrcp.pop %v1399
        %v1402 = vmul.f32 1.0, %v1401
        %v1403 = vrcp.pop %v1400
        %v1404 = vmul.f32 1.0, %v1403
        %v1405 = vtanh.pop %v1377
        %v1406 = vtanh.pop %v1378
        %v1407 = vxor.u32 %v1379, 2147483648
        %v1408 = vxor.u32 %v1380, 2147483648
        %v1409 = vmul.f32 %v1407, 1.442695
        %v1410 = vpow.pop %v1409
        %v1411 = vmul.f32 %v1408, 1.442695
        %v1412 = vpow.pop %v1411
        %v1413 = vadd.f32 %v1410, 1.0
        %v1414 = vadd.f32 %v1412, 1.0
        %v1415 = vrcp.pop %v1413
        %v1416 = vmul.f32 1.0, %v1415
        %v1417 = vrcp.pop %v1414
        %v1418 = vmul.f32 1.0, %v1417
        %v1419 = vmul.f32 %v1402, %v822
        %v1420 = vmul.f32 %v1404, %v823
        %v1421 = vmul.f32 %v1390, %v1405
        %v1422 = vmul.f32 %v1392, %v1406
        %v1423 = vadd.f32 %v1419, %v1421
        %v1424 = vadd.f32 %v1420, %v1422
        %v1425 = vtanh.pop %v1423
        %v1426 = vtanh.pop %v1424
        %v1427 = vmul.f32 %v1416, %v1425
        %v1428 = vmul.f32 %v1418, %v1426
        %1429 = vst [vmem:[#allocation3] sm:$0xff] %v1423
        %1430 = vst [vmem:[#allocation3 + $0x8] sm:$0xff] %v1424
        %1431 = vst [vmem:[#allocation2] sm:$0xff] %v1427
        %1432 = vst [vmem:[#allocation2 + $0x8] sm:$0xff] %v1428
        %s1433 = scalar_lea.vmem %s195, 16 [#allocation9]
        %1434 = vst [vmem:[%s1433] sm:$0xff] %v1427
        %1435 = vst [vmem:[%s1433 + $0x8] sm:$0xff] %v1428
        %v1436 = vld [vmem:[#allocation2] sm:$0xff]
        %v1437 = vld [vmem:[#allocation2 + $0x8] sm:$0xff]
        %v1438 = vld [vmem:[#allocation3] sm:$0xff]
        %v1439 = vld [vmem:[#allocation3 + $0x8] sm:$0xff]
        %s1440 = scalar_lea.vmem %s171, 128 [#allocation4]
        %v1441 = vld [vmem:[%s1440] sm:$0xff]
        %v1442 = vld [vmem:[%s1440 + $0x8] sm:$0xff]
        %v1443 = vld [vmem:[%s1440 + $0x10] sm:$0xff]
        %v1444 = vld [vmem:[%s1440 + $0x18] sm:$0xff]
        %v1445 = vld [vmem:[%s1440 + $0x20] sm:$0xff]
        %v1446 = vld [vmem:[%s1440 + $0x28] sm:$0xff]
        %v1447 = vld [vmem:[%s1440 + $0x30] sm:$0xff]
        %v1448 = vld [vmem:[%s1440 + $0x38] sm:$0xff]
        %v1449 = vld [vmem:[#allocation7] sm:$0xff]
        %v1450 = vld [vmem:[#allocation7 + $0x8] sm:$0xff]
        %v1451 = vld [vmem:[#allocation7 + $0x10] sm:$0xff]
        %v1452 = vld [vmem:[#allocation7 + $0x18] sm:$0xff]
        %v1453 = vld [vmem:[#allocation7 + $0x20] sm:$0xff]
        %v1454 = vld [vmem:[#allocation7 + $0x28] sm:$0xff]
        %v1455 = vld [vmem:[#allocation7 + $0x30] sm:$0xff]
        %v1456 = vld [vmem:[#allocation7 + $0x38] sm:$0xff]
        %v1457 = vld [vmem:[#allocation7 + $0x40] sm:$0xff]
        %v1458 = vld [vmem:[#allocation7 + $0x48] sm:$0xff]
        %v1459 = vld [vmem:[#allocation7 + $0x50] sm:$0xff]
        %v1460 = vld [vmem:[#allocation7 + $0x58] sm:$0xff]
        %v1461 = vld [vmem:[#allocation7 + $0x60] sm:$0xff]
        %v1462 = vld [vmem:[#allocation7 + $0x68] sm:$0xff]
        %v1463 = vld [vmem:[#allocation7 + $0x70] sm:$0xff]
        %v1464 = vld [vmem:[#allocation7 + $0x78] sm:$0xff]
        %v1465 = vld [vmem:[#allocation7 + $0x80] sm:$0xff]
        %v1466 = vld [vmem:[#allocation7 + $0x88] sm:$0xff]
        %v1467 = vld [vmem:[#allocation7 + $0x90] sm:$0xff]
        %v1468 = vld [vmem:[#allocation7 + $0x98] sm:$0xff]
        %v1469 = vld [vmem:[#allocation7 + $0xa0] sm:$0xff]
        %v1470 = vld [vmem:[#allocation7 + $0xa8] sm:$0xff]
        %v1471 = vld [vmem:[#allocation7 + $0xb0] sm:$0xff]
        %v1472 = vld [vmem:[#allocation7 + $0xb8] sm:$0xff]
        %v1473 = vld [vmem:[#allocation7 + $0xc0] sm:$0xff]
        %v1474 = vld [vmem:[#allocation7 + $0xc8] sm:$0xff]
        %v1475 = vld [vmem:[#allocation7 + $0xd0] sm:$0xff]
        %v1476 = vld [vmem:[#allocation7 + $0xd8] sm:$0xff]
        %v1477 = vld [vmem:[#allocation7 + $0xe0] sm:$0xff]
        %v1478 = vld [vmem:[#allocation7 + $0xe8] sm:$0xff]
        %v1479 = vld [vmem:[#allocation7 + $0xf0] sm:$0xff]
        %v1480 = vld [vmem:[#allocation7 + $0xf8] sm:$0xff]
        %v1481 = vld [vmem:[#allocation7 + $0x100] sm:$0xff]
        %v1482 = vld [vmem:[#allocation7 + $0x108] sm:$0xff]
        %v1483 = vld [vmem:[#allocation7 + $0x110] sm:$0xff]
        %v1484 = vld [vmem:[#allocation7 + $0x118] sm:$0xff]
        %v1485 = vld [vmem:[#allocation7 + $0x120] sm:$0xff]
        %v1486 = vld [vmem:[#allocation7 + $0x128] sm:$0xff]
        %v1487 = vld [vmem:[#allocation7 + $0x130] sm:$0xff]
        %v1488 = vld [vmem:[#allocation7 + $0x138] sm:$0xff]
        %v1489 = vld [vmem:[#allocation7 + $0x140] sm:$0xff]
        %v1490 = vld [vmem:[#allocation7 + $0x148] sm:$0xff]
        %v1491 = vld [vmem:[#allocation7 + $0x150] sm:$0xff]
        %v1492 = vld [vmem:[#allocation7 + $0x158] sm:$0xff]
        %v1493 = vld [vmem:[#allocation7 + $0x160] sm:$0xff]
        %v1494 = vld [vmem:[#allocation7 + $0x168] sm:$0xff]
        %v1495 = vld [vmem:[#allocation7 + $0x170] sm:$0xff]
        %v1496 = vld [vmem:[#allocation7 + $0x178] sm:$0xff]
        %v1497 = vld [vmem:[#allocation7 + $0x180] sm:$0xff]
        %v1498 = vld [vmem:[#allocation7 + $0x188] sm:$0xff]
        %v1499 = vld [vmem:[#allocation7 + $0x190] sm:$0xff]
        %v1500 = vld [vmem:[#allocation7 + $0x198] sm:$0xff]
        %v1501 = vld [vmem:[#allocation7 + $0x1a0] sm:$0xff]
        %v1502 = vld [vmem:[#allocation7 + $0x1a8] sm:$0xff]
        %v1503 = vld [vmem:[#allocation7 + $0x1b0] sm:$0xff]
        %v1504 = vld [vmem:[#allocation7 + $0x1b8] sm:$0xff]
        %v1505 = vld [vmem:[#allocation7 + $0x1c0] sm:$0xff]
        %v1506 = vld [vmem:[#allocation7 + $0x1c8] sm:$0xff]
        %v1507 = vld [vmem:[#allocation7 + $0x1d0] sm:$0xff]
        %v1508 = vld [vmem:[#allocation7 + $0x1d8] sm:$0xff]
        %v1509 = vld [vmem:[#allocation7 + $0x1e0] sm:$0xff]
        %v1510 = vld [vmem:[#allocation7 + $0x1e8] sm:$0xff]
        %v1511 = vld [vmem:[#allocation7 + $0x1f0] sm:$0xff]
        %v1512 = vld [vmem:[#allocation7 + $0x1f8] sm:$0xff]
        %v1513 = vld [vmem:[#allocation7 + $0x200] sm:$0xff]
        %v1514 = vld [vmem:[#allocation7 + $0x208] sm:$0xff]
        %v1515 = vld [vmem:[#allocation7 + $0x210] sm:$0xff]
        %v1516 = vld [vmem:[#allocation7 + $0x218] sm:$0xff]
        %v1517 = vld [vmem:[#allocation7 + $0x220] sm:$0xff]
        %v1518 = vld [vmem:[#allocation7 + $0x228] sm:$0xff]
        %v1519 = vld [vmem:[#allocation7 + $0x230] sm:$0xff]
        %v1520 = vld [vmem:[#allocation7 + $0x238] sm:$0xff]
        %v1521 = vld [vmem:[#allocation7 + $0x240] sm:$0xff]
        %v1522 = vld [vmem:[#allocation7 + $0x248] sm:$0xff]
        %v1523 = vld [vmem:[#allocation7 + $0x250] sm:$0xff]
        %v1524 = vld [vmem:[#allocation7 + $0x258] sm:$0xff]
        %v1525 = vld [vmem:[#allocation7 + $0x260] sm:$0xff]
        %v1526 = vld [vmem:[#allocation7 + $0x268] sm:$0xff]
        %v1527 = vld [vmem:[#allocation7 + $0x270] sm:$0xff]
        %v1528 = vld [vmem:[#allocation7 + $0x278] sm:$0xff]
        %v1529 = vld [vmem:[#allocation7 + $0x280] sm:$0xff]
        %v1530 = vld [vmem:[#allocation7 + $0x288] sm:$0xff]
        %v1531 = vld [vmem:[#allocation7 + $0x290] sm:$0xff]
        %v1532 = vld [vmem:[#allocation7 + $0x298] sm:$0xff]
        %v1533 = vld [vmem:[#allocation7 + $0x2a0] sm:$0xff]
        %v1534 = vld [vmem:[#allocation7 + $0x2a8] sm:$0xff]
        %v1535 = vld [vmem:[#allocation7 + $0x2b0] sm:$0xff]
        %v1536 = vld [vmem:[#allocation7 + $0x2b8] sm:$0xff]
        %v1537 = vld [vmem:[#allocation7 + $0x2c0] sm:$0xff]
        %v1538 = vld [vmem:[#allocation7 + $0x2c8] sm:$0xff]
        %v1539 = vld [vmem:[#allocation7 + $0x2d0] sm:$0xff]
        %v1540 = vld [vmem:[#allocation7 + $0x2d8] sm:$0xff]
        %v1541 = vld [vmem:[#allocation7 + $0x2e0] sm:$0xff]
        %v1542 = vld [vmem:[#allocation7 + $0x2e8] sm:$0xff]
        %v1543 = vld [vmem:[#allocation7 + $0x2f0] sm:$0xff]
        %v1544 = vld [vmem:[#allocation7 + $0x2f8] sm:$0xff]
        %v1545 = vld [vmem:[#allocation7 + $0x300] sm:$0xff]
        %v1546 = vld [vmem:[#allocation7 + $0x308] sm:$0xff]
        %v1547 = vld [vmem:[#allocation7 + $0x310] sm:$0xff]
        %v1548 = vld [vmem:[#allocation7 + $0x318] sm:$0xff]
        %v1549 = vld [vmem:[#allocation7 + $0x320] sm:$0xff]
        %v1550 = vld [vmem:[#allocation7 + $0x328] sm:$0xff]
        %v1551 = vld [vmem:[#allocation7 + $0x330] sm:$0xff]
        %v1552 = vld [vmem:[#allocation7 + $0x338] sm:$0xff]
        %v1553 = vld [vmem:[#allocation7 + $0x340] sm:$0xff]
        %v1554 = vld [vmem:[#allocation7 + $0x348] sm:$0xff]
        %v1555 = vld [vmem:[#allocation7 + $0x350] sm:$0xff]
        %v1556 = vld [vmem:[#allocation7 + $0x358] sm:$0xff]
        %v1557 = vld [vmem:[#allocation7 + $0x360] sm:$0xff]
        %v1558 = vld [vmem:[#allocation7 + $0x368] sm:$0xff]
        %v1559 = vld [vmem:[#allocation7 + $0x370] sm:$0xff]
        %v1560 = vld [vmem:[#allocation7 + $0x378] sm:$0xff]
        %v1561 = vld [vmem:[#allocation7 + $0x380] sm:$0xff]
        %v1562 = vld [vmem:[#allocation7 + $0x388] sm:$0xff]
        %v1563 = vld [vmem:[#allocation7 + $0x390] sm:$0xff]
        %v1564 = vld [vmem:[#allocation7 + $0x398] sm:$0xff]
        %v1565 = vld [vmem:[#allocation7 + $0x3a0] sm:$0xff]
        %v1566 = vld [vmem:[#allocation7 + $0x3a8] sm:$0xff]
        %v1567 = vld [vmem:[#allocation7 + $0x3b0] sm:$0xff]
        %v1568 = vld [vmem:[#allocation7 + $0x3b8] sm:$0xff]
        %v1569 = vld [vmem:[#allocation7 + $0x3c0] sm:$0xff]
        %v1570 = vld [vmem:[#allocation7 + $0x3c8] sm:$0xff]
        %v1571 = vld [vmem:[#allocation7 + $0x3d0] sm:$0xff]
        %v1572 = vld [vmem:[#allocation7 + $0x3d8] sm:$0xff]
        %v1573 = vld [vmem:[#allocation7 + $0x3e0] sm:$0xff]
        %v1574 = vld [vmem:[#allocation7 + $0x3e8] sm:$0xff]
        %v1575 = vld [vmem:[#allocation7 + $0x3f0] sm:$0xff]
        %v1576 = vld [vmem:[#allocation7 + $0x3f8] sm:$0xff]
        %v1577 = vld [vmem:[#allocation7 + $0x400] sm:$0xff]
        %v1578 = vld [vmem:[#allocation7 + $0x408] sm:$0xff]
        %v1579 = vld [vmem:[#allocation7 + $0x410] sm:$0xff]
        %v1580 = vld [vmem:[#allocation7 + $0x418] sm:$0xff]
        %v1581 = vld [vmem:[#allocation7 + $0x420] sm:$0xff]
        %v1582 = vld [vmem:[#allocation7 + $0x428] sm:$0xff]
        %v1583 = vld [vmem:[#allocation7 + $0x430] sm:$0xff]
        %v1584 = vld [vmem:[#allocation7 + $0x438] sm:$0xff]
        %v1585 = vld [vmem:[#allocation7 + $0x440] sm:$0xff]
        %v1586 = vld [vmem:[#allocation7 + $0x448] sm:$0xff]
        %v1587 = vld [vmem:[#allocation7 + $0x450] sm:$0xff]
        %v1588 = vld [vmem:[#allocation7 + $0x458] sm:$0xff]
        %v1589 = vld [vmem:[#allocation7 + $0x460] sm:$0xff]
        %v1590 = vld [vmem:[#allocation7 + $0x468] sm:$0xff]
        %v1591 = vld [vmem:[#allocation7 + $0x470] sm:$0xff]
        %v1592 = vld [vmem:[#allocation7 + $0x478] sm:$0xff]
        %v1593 = vld [vmem:[#allocation7 + $0x480] sm:$0xff]
        %v1594 = vld [vmem:[#allocation7 + $0x488] sm:$0xff]
        %v1595 = vld [vmem:[#allocation7 + $0x490] sm:$0xff]
        %v1596 = vld [vmem:[#allocation7 + $0x498] sm:$0xff]
        %v1597 = vld [vmem:[#allocation7 + $0x4a0] sm:$0xff]
        %v1598 = vld [vmem:[#allocation7 + $0x4a8] sm:$0xff]
        %v1599 = vld [vmem:[#allocation7 + $0x4b0] sm:$0xff]
        %v1600 = vld [vmem:[#allocation7 + $0x4b8] sm:$0xff]
        %v1601 = vld [vmem:[#allocation7 + $0x4c0] sm:$0xff]
        %v1602 = vld [vmem:[#allocation7 + $0x4c8] sm:$0xff]
        %v1603 = vld [vmem:[#allocation7 + $0x4d0] sm:$0xff]
        %v1604 = vld [vmem:[#allocation7 + $0x4d8] sm:$0xff]
        %v1605 = vld [vmem:[#allocation7 + $0x4e0] sm:$0xff]
        %v1606 = vld [vmem:[#allocation7 + $0x4e8] sm:$0xff]
        %v1607 = vld [vmem:[#allocation7 + $0x4f0] sm:$0xff]
        %v1608 = vld [vmem:[#allocation7 + $0x4f8] sm:$0xff]
        %v1609 = vld [vmem:[#allocation7 + $0x500] sm:$0xff]
        %v1610 = vld [vmem:[#allocation7 + $0x508] sm:$0xff]
        %v1611 = vld [vmem:[#allocation7 + $0x510] sm:$0xff]
        %v1612 = vld [vmem:[#allocation7 + $0x518] sm:$0xff]
        %v1613 = vld [vmem:[#allocation7 + $0x520] sm:$0xff]
        %v1614 = vld [vmem:[#allocation7 + $0x528] sm:$0xff]
        %v1615 = vld [vmem:[#allocation7 + $0x530] sm:$0xff]
        %v1616 = vld [vmem:[#allocation7 + $0x538] sm:$0xff]
        %v1617 = vld [vmem:[#allocation7 + $0x540] sm:$0xff]
        %v1618 = vld [vmem:[#allocation7 + $0x548] sm:$0xff]
        %v1619 = vld [vmem:[#allocation7 + $0x550] sm:$0xff]
        %v1620 = vld [vmem:[#allocation7 + $0x558] sm:$0xff]
        %v1621 = vld [vmem:[#allocation7 + $0x560] sm:$0xff]
        %v1622 = vld [vmem:[#allocation7 + $0x568] sm:$0xff]
        %v1623 = vld [vmem:[#allocation7 + $0x570] sm:$0xff]
        %v1624 = vld [vmem:[#allocation7 + $0x578] sm:$0xff]
        %v1625 = vld [vmem:[#allocation7 + $0x580] sm:$0xff]
        %v1626 = vld [vmem:[#allocation7 + $0x588] sm:$0xff]
        %v1627 = vld [vmem:[#allocation7 + $0x590] sm:$0xff]
        %v1628 = vld [vmem:[#allocation7 + $0x598] sm:$0xff]
        %v1629 = vld [vmem:[#allocation7 + $0x5a0] sm:$0xff]
        %v1630 = vld [vmem:[#allocation7 + $0x5a8] sm:$0xff]
        %v1631 = vld [vmem:[#allocation7 + $0x5b0] sm:$0xff]
        %v1632 = vld [vmem:[#allocation7 + $0x5b8] sm:$0xff]
        %v1633 = vld [vmem:[#allocation7 + $0x5c0] sm:$0xff]
        %v1634 = vld [vmem:[#allocation7 + $0x5c8] sm:$0xff]
        %v1635 = vld [vmem:[#allocation7 + $0x5d0] sm:$0xff]
        %v1636 = vld [vmem:[#allocation7 + $0x5d8] sm:$0xff]
        %v1637 = vld [vmem:[#allocation7 + $0x5e0] sm:$0xff]
        %v1638 = vld [vmem:[#allocation7 + $0x5e8] sm:$0xff]
        %v1639 = vld [vmem:[#allocation7 + $0x5f0] sm:$0xff]
        %v1640 = vld [vmem:[#allocation7 + $0x5f8] sm:$0xff]
        %v1641 = vld [vmem:[#allocation7 + $0x600] sm:$0xff]
        %v1642 = vld [vmem:[#allocation7 + $0x608] sm:$0xff]
        %v1643 = vld [vmem:[#allocation7 + $0x610] sm:$0xff]
        %v1644 = vld [vmem:[#allocation7 + $0x618] sm:$0xff]
        %v1645 = vld [vmem:[#allocation7 + $0x620] sm:$0xff]
        %v1646 = vld [vmem:[#allocation7 + $0x628] sm:$0xff]
        %v1647 = vld [vmem:[#allocation7 + $0x630] sm:$0xff]
        %v1648 = vld [vmem:[#allocation7 + $0x638] sm:$0xff]
        %v1649 = vld [vmem:[#allocation7 + $0x640] sm:$0xff]
        %v1650 = vld [vmem:[#allocation7 + $0x648] sm:$0xff]
        %v1651 = vld [vmem:[#allocation7 + $0x650] sm:$0xff]
        %v1652 = vld [vmem:[#allocation7 + $0x658] sm:$0xff]
        %v1653 = vld [vmem:[#allocation7 + $0x660] sm:$0xff]
        %v1654 = vld [vmem:[#allocation7 + $0x668] sm:$0xff]
        %v1655 = vld [vmem:[#allocation7 + $0x670] sm:$0xff]
        %v1656 = vld [vmem:[#allocation7 + $0x678] sm:$0xff]
        %v1657 = vld [vmem:[#allocation7 + $0x680] sm:$0xff]
        %v1658 = vld [vmem:[#allocation7 + $0x688] sm:$0xff]
        %v1659 = vld [vmem:[#allocation7 + $0x690] sm:$0xff]
        %v1660 = vld [vmem:[#allocation7 + $0x698] sm:$0xff]
        %v1661 = vld [vmem:[#allocation7 + $0x6a0] sm:$0xff]
        %v1662 = vld [vmem:[#allocation7 + $0x6a8] sm:$0xff]
        %v1663 = vld [vmem:[#allocation7 + $0x6b0] sm:$0xff]
        %v1664 = vld [vmem:[#allocation7 + $0x6b8] sm:$0xff]
        %v1665 = vld [vmem:[#allocation7 + $0x6c0] sm:$0xff]
        %v1666 = vld [vmem:[#allocation7 + $0x6c8] sm:$0xff]
        %v1667 = vld [vmem:[#allocation7 + $0x6d0] sm:$0xff]
        %v1668 = vld [vmem:[#allocation7 + $0x6d8] sm:$0xff]
        %v1669 = vld [vmem:[#allocation7 + $0x6e0] sm:$0xff]
        %v1670 = vld [vmem:[#allocation7 + $0x6e8] sm:$0xff]
        %v1671 = vld [vmem:[#allocation7 + $0x6f0] sm:$0xff]
        %v1672 = vld [vmem:[#allocation7 + $0x6f8] sm:$0xff]
        %v1673 = vld [vmem:[#allocation7 + $0x700] sm:$0xff]
        %v1674 = vld [vmem:[#allocation7 + $0x708] sm:$0xff]
        %v1675 = vld [vmem:[#allocation7 + $0x710] sm:$0xff]
        %v1676 = vld [vmem:[#allocation7 + $0x718] sm:$0xff]
        %v1677 = vld [vmem:[#allocation7 + $0x720] sm:$0xff]
        %v1678 = vld [vmem:[#allocation7 + $0x728] sm:$0xff]
        %v1679 = vld [vmem:[#allocation7 + $0x730] sm:$0xff]
        %v1680 = vld [vmem:[#allocation7 + $0x738] sm:$0xff]
        %v1681 = vld [vmem:[#allocation7 + $0x740] sm:$0xff]
        %v1682 = vld [vmem:[#allocation7 + $0x748] sm:$0xff]
        %v1683 = vld [vmem:[#allocation7 + $0x750] sm:$0xff]
        %v1684 = vld [vmem:[#allocation7 + $0x758] sm:$0xff]
        %v1685 = vld [vmem:[#allocation7 + $0x760] sm:$0xff]
        %v1686 = vld [vmem:[#allocation7 + $0x768] sm:$0xff]
        %v1687 = vld [vmem:[#allocation7 + $0x770] sm:$0xff]
        %v1688 = vld [vmem:[#allocation7 + $0x778] sm:$0xff]
        %v1689 = vld [vmem:[#allocation7 + $0x780] sm:$0xff]
        %v1690 = vld [vmem:[#allocation7 + $0x788] sm:$0xff]
        %v1691 = vld [vmem:[#allocation7 + $0x790] sm:$0xff]
        %v1692 = vld [vmem:[#allocation7 + $0x798] sm:$0xff]
        %v1693 = vld [vmem:[#allocation7 + $0x7a0] sm:$0xff]
        %v1694 = vld [vmem:[#allocation7 + $0x7a8] sm:$0xff]
        %v1695 = vld [vmem:[#allocation7 + $0x7b0] sm:$0xff]
        %v1696 = vld [vmem:[#allocation7 + $0x7b8] sm:$0xff]
        %v1697 = vld [vmem:[#allocation7 + $0x7c0] sm:$0xff]
        %v1698 = vld [vmem:[#allocation7 + $0x7c8] sm:$0xff]
        %v1699 = vld [vmem:[#allocation7 + $0x7d0] sm:$0xff]
        %v1700 = vld [vmem:[#allocation7 + $0x7d8] sm:$0xff]
        %v1701 = vld [vmem:[#allocation7 + $0x7e0] sm:$0xff]
        %v1702 = vld [vmem:[#allocation7 + $0x7e8] sm:$0xff]
        %v1703 = vld [vmem:[#allocation7 + $0x7f0] sm:$0xff]
        %v1704 = vld [vmem:[#allocation7 + $0x7f8] sm:$0xff]
        %1705 = vmatprep.subr.mxu0 %v1450
        %1706 = vmatpush1.msra.mxu0 %v1449
        %1707 = vmatprep.subr.mxu0 %v1458
        %1708 = vmatpush1.msra.mxu0 %v1457
        %1709 = vmatprep.subr.mxu0 %v1466
        %1710 = vmatpush1.msra.mxu0 %v1465
        %1711 = vmatprep.subr.mxu0 %v1474
        %1712 = vmatpush1.msra.mxu0 %v1473
        %1713 = vmatprep.subr.mxu0 %v1482
        %1714 = vmatpush1.msra.mxu0 %v1481
        %1715 = vmatprep.subr.mxu0 %v1490
        %1716 = vmatpush1.msra.mxu0 %v1489
        %1717 = vmatprep.subr.mxu0 %v1498
        %1718 = vmatpush1.msra.mxu0 %v1497
        %1719 = vmatprep.subr.mxu0 %v1506
        %1720 = vmatpush1.msra.mxu0 %v1505
        %1721 = vmatprep.subr.mxu0 %v1514
        %1722 = vmatpush1.msra.mxu0 %v1513
        %1723 = vmatprep.subr.mxu0 %v1522
        %1724 = vmatpush1.msra.mxu0 %v1521
        %1725 = vmatprep.subr.mxu0 %v1530
        %1726 = vmatpush1.msra.mxu0 %v1529
        %1727 = vmatprep.subr.mxu0 %v1538
        %1728 = vmatpush1.msra.mxu0 %v1537
        %1729 = vmatprep.subr.mxu0 %v1546
        %1730 = vmatpush1.msra.mxu0 %v1545
        %1731 = vmatprep.subr.mxu0 %v1554
        %1732 = vmatpush1.msra.mxu0 %v1553
        %1733 = vmatprep.subr.mxu0 %v1562
        %1734 = vmatpush1.msra.mxu0 %v1561
        %1735 = vmatprep.subr.mxu0 %v1570
        %1736 = vmatpush1.msra.mxu0 %v1569
        %1737 = vmatprep.subr.mxu0 %v1578
        %1738 = vmatpush1.msra.mxu0 %v1577
        %1739 = vmatprep.subr.mxu0 %v1586
        %1740 = vmatpush1.msra.mxu0 %v1585
        %1741 = vmatprep.subr.mxu0 %v1594
        %1742 = vmatpush1.msra.mxu0 %v1593
        %1743 = vmatprep.subr.mxu0 %v1602
        %1744 = vmatpush1.msra.mxu0 %v1601
        %1745 = vmatprep.subr.mxu0 %v1610
        %1746 = vmatpush1.msra.mxu0 %v1609
        %1747 = vmatprep.subr.mxu0 %v1618
        %1748 = vmatpush1.msra.mxu0 %v1617
        %1749 = vmatprep.subr.mxu0 %v1626
        %1750 = vmatpush1.msra.mxu0 %v1625
        %1751 = vmatprep.subr.mxu0 %v1634
        %1752 = vmatpush1.msra.mxu0 %v1633
        %1753 = vmatprep.subr.mxu0 %v1642
        %1754 = vmatpush1.msra.mxu0 %v1641
        %1755 = vmatprep.subr.mxu0 %v1650
        %1756 = vmatpush1.msra.mxu0 %v1649
        %1757 = vmatprep.subr.mxu0 %v1658
        %1758 = vmatpush1.msra.mxu0 %v1657
        %1759 = vmatprep.subr.mxu0 %v1666
        %1760 = vmatpush1.msra.mxu0 %v1665
        %1761 = vmatprep.subr.mxu0 %v1674
        %1762 = vmatpush1.msra.mxu0 %v1673
        %1763 = vmatprep.subr.mxu0 %v1682
        %1764 = vmatpush1.msra.mxu0 %v1681
        %1765 = vmatprep.subr.mxu0 %v1690
        %1766 = vmatpush1.msra.mxu0 %v1689
        %1767 = vmatprep.subr.mxu0 %v1698
        %1768 = vmatpush1.msra.mxu0 %v1697
        %1769 = vmatprep.mubr.f32.mxu0 %v1437
        %1770 = vmatmul.mubr.f32.gmra.mrb[0].mxu0 %v1436
        %v1771 = vpop.f32.mrb[0].mxu0
        %v1772 = vadd.f32 0.0, %v1771
        %v1773 = vpop.f32.mrb[0].mxu0
        %v1774 = vadd.f32 0.0, %v1773
        %1775 = vdwg.mxu0
        %1776 = vmatprep.subr.mxu0 %v1452
        %1777 = vmatpush1.msra.mxu0 %v1451
        %1778 = vmatprep.subr.mxu0 %v1460
        %1779 = vmatpush1.msra.mxu0 %v1459
        %1780 = vmatprep.subr.mxu0 %v1468
        %1781 = vmatpush1.msra.mxu0 %v1467
        %1782 = vmatprep.subr.mxu0 %v1476
        %1783 = vmatpush1.msra.mxu0 %v1475
        %1784 = vmatprep.subr.mxu0 %v1484
        %1785 = vmatpush1.msra.mxu0 %v1483
        %1786 = vmatprep.subr.mxu0 %v1492
        %1787 = vmatpush1.msra.mxu0 %v1491
        %1788 = vmatprep.subr.mxu0 %v1500
        %1789 = vmatpush1.msra.mxu0 %v1499
        %1790 = vmatprep.subr.mxu0 %v1508
        %1791 = vmatpush1.msra.mxu0 %v1507
        %1792 = vmatprep.subr.mxu0 %v1516
        %1793 = vmatpush1.msra.mxu0 %v1515
        %1794 = vmatprep.subr.mxu0 %v1524
        %1795 = vmatpush1.msra.mxu0 %v1523
        %1796 = vmatprep.subr.mxu0 %v1532
        %1797 = vmatpush1.msra.mxu0 %v1531
        %1798 = vmatprep.subr.mxu0 %v1540
        %1799 = vmatpush1.msra.mxu0 %v1539
        %1800 = vmatprep.subr.mxu0 %v1548
        %1801 = vmatpush1.msra.mxu0 %v1547
        %1802 = vmatprep.subr.mxu0 %v1556
        %1803 = vmatpush1.msra.mxu0 %v1555
        %1804 = vmatprep.subr.mxu0 %v1564
        %1805 = vmatpush1.msra.mxu0 %v1563
        %1806 = vmatprep.subr.mxu0 %v1572
        %1807 = vmatpush1.msra.mxu0 %v1571
        %1808 = vmatprep.subr.mxu0 %v1580
        %1809 = vmatpush1.msra.mxu0 %v1579
        %1810 = vmatprep.subr.mxu0 %v1588
        %1811 = vmatpush1.msra.mxu0 %v1587
        %1812 = vmatprep.subr.mxu0 %v1596
        %1813 = vmatpush1.msra.mxu0 %v1595
        %1814 = vmatprep.subr.mxu0 %v1604
        %1815 = vmatpush1.msra.mxu0 %v1603
        %1816 = vmatprep.subr.mxu0 %v1612
        %1817 = vmatpush1.msra.mxu0 %v1611
        %1818 = vmatprep.subr.mxu0 %v1620
        %1819 = vmatpush1.msra.mxu0 %v1619
        %1820 = vmatprep.subr.mxu0 %v1628
        %1821 = vmatpush1.msra.mxu0 %v1627
        %1822 = vmatprep.subr.mxu0 %v1636
        %1823 = vmatpush1.msra.mxu0 %v1635
        %1824 = vmatprep.subr.mxu0 %v1644
        %1825 = vmatpush1.msra.mxu0 %v1643
        %1826 = vmatprep.subr.mxu0 %v1652
        %1827 = vmatpush1.msra.mxu0 %v1651
        %1828 = vmatprep.subr.mxu0 %v1660
        %1829 = vmatpush1.msra.mxu0 %v1659
        %1830 = vmatprep.subr.mxu0 %v1668
        %1831 = vmatpush1.msra.mxu0 %v1667
        %1832 = vmatprep.subr.mxu0 %v1676
        %1833 = vmatpush1.msra.mxu0 %v1675
        %1834 = vmatprep.subr.mxu0 %v1684
        %1835 = vmatpush1.msra.mxu0 %v1683
        %1836 = vmatprep.subr.mxu0 %v1692
        %1837 = vmatpush1.msra.mxu0 %v1691
        %1838 = vmatprep.subr.mxu0 %v1700
        %1839 = vmatpush1.msra.mxu0 %v1699
        %1840 = vmatprep.mubr.f32.mxu0 %v1437
        %1841 = vmatmul.mubr.f32.gmra.mrb[0].mxu0 %v1436
        %v1842 = vpop.f32.mrb[0].mxu0
        %v1843 = vadd.f32 0.0, %v1842
        %v1844 = vpop.f32.mrb[0].mxu0
        %v1845 = vadd.f32 0.0, %v1844
        %1846 = vdwg.mxu0
        %1847 = vmatprep.subr.mxu0 %v1454
        %1848 = vmatpush1.msra.mxu0 %v1453
        %1849 = vmatprep.subr.mxu0 %v1462
        %1850 = vmatpush1.msra.mxu0 %v1461
        %1851 = vmatprep.subr.mxu0 %v1470
        %1852 = vmatpush1.msra.mxu0 %v1469
        %1853 = vmatprep.subr.mxu0 %v1478
        %1854 = vmatpush1.msra.mxu0 %v1477
        %1855 = vmatprep.subr.mxu0 %v1486
        %1856 = vmatpush1.msra.mxu0 %v1485
        %1857 = vmatprep.subr.mxu0 %v1494
        %1858 = vmatpush1.msra.mxu0 %v1493
        %1859 = vmatprep.subr.mxu0 %v1502
        %1860 = vmatpush1.msra.mxu0 %v1501
        %1861 = vmatprep.subr.mxu0 %v1510
        %1862 = vmatpush1.msra.mxu0 %v1509
        %1863 = vmatprep.subr.mxu0 %v1518
        %1864 = vmatpush1.msra.mxu0 %v1517
        %1865 = vmatprep.subr.mxu0 %v1526
        %1866 = vmatpush1.msra.mxu0 %v1525
        %1867 = vmatprep.subr.mxu0 %v1534
        %1868 = vmatpush1.msra.mxu0 %v1533
        %1869 = vmatprep.subr.mxu0 %v1542
        %1870 = vmatpush1.msra.mxu0 %v1541
        %1871 = vmatprep.subr.mxu0 %v1550
        %1872 = vmatpush1.msra.mxu0 %v1549
        %1873 = vmatprep.subr.mxu0 %v1558
        %1874 = vmatpush1.msra.mxu0 %v1557
        %1875 = vmatprep.subr.mxu0 %v1566
        %1876 = vmatpush1.msra.mxu0 %v1565
        %1877 = vmatprep.subr.mxu0 %v1574
        %1878 = vmatpush1.msra.mxu0 %v1573
        %1879 = vmatprep.subr.mxu0 %v1582
        %1880 = vmatpush1.msra.mxu0 %v1581
        %1881 = vmatprep.subr.mxu0 %v1590
        %1882 = vmatpush1.msra.mxu0 %v1589
        %1883 = vmatprep.subr.mxu0 %v1598
        %1884 = vmatpush1.msra.mxu0 %v1597
        %1885 = vmatprep.subr.mxu0 %v1606
        %1886 = vmatpush1.msra.mxu0 %v1605
        %1887 = vmatprep.subr.mxu0 %v1614
        %1888 = vmatpush1.msra.mxu0 %v1613
        %1889 = vmatprep.subr.mxu0 %v1622
        %1890 = vmatpush1.msra.mxu0 %v1621
        %1891 = vmatprep.subr.mxu0 %v1630
        %1892 = vmatpush1.msra.mxu0 %v1629
        %1893 = vmatprep.subr.mxu0 %v1638
        %1894 = vmatpush1.msra.mxu0 %v1637
        %1895 = vmatprep.subr.mxu0 %v1646
        %1896 = vmatpush1.msra.mxu0 %v1645
        %1897 = vmatprep.subr.mxu0 %v1654
        %1898 = vmatpush1.msra.mxu0 %v1653
        %1899 = vmatprep.subr.mxu0 %v1662
        %1900 = vmatpush1.msra.mxu0 %v1661
        %1901 = vmatprep.subr.mxu0 %v1670
        %1902 = vmatpush1.msra.mxu0 %v1669
        %1903 = vmatprep.subr.mxu0 %v1678
        %1904 = vmatpush1.msra.mxu0 %v1677
        %1905 = vmatprep.subr.mxu0 %v1686
        %1906 = vmatpush1.msra.mxu0 %v1685
        %1907 = vmatprep.subr.mxu0 %v1694
        %1908 = vmatpush1.msra.mxu0 %v1693
        %1909 = vmatprep.subr.mxu0 %v1702
        %1910 = vmatpush1.msra.mxu0 %v1701
        %1911 = vmatprep.mubr.f32.mxu0 %v1437
        %1912 = vmatmul.mubr.f32.gmra.mrb[0].mxu0 %v1436
        %v1913 = vpop.f32.mrb[0].mxu0
        %v1914 = vadd.f32 0.0, %v1913
        %v1915 = vpop.f32.mrb[0].mxu0
        %v1916 = vadd.f32 0.0, %v1915
        %1917 = vdwg.mxu0
        %1918 = vmatprep.subr.mxu0 %v1456
        %1919 = vmatpush1.msra.mxu0 %v1455
        %1920 = vmatprep.subr.mxu0 %v1464
        %1921 = vmatpush1.msra.mxu0 %v1463
        %1922 = vmatprep.subr.mxu0 %v1472
        %1923 = vmatpush1.msra.mxu0 %v1471
        %1924 = vmatprep.subr.mxu0 %v1480
        %1925 = vmatpush1.msra.mxu0 %v1479
        %1926 = vmatprep.subr.mxu0 %v1488
        %1927 = vmatpush1.msra.mxu0 %v1487
        %1928 = vmatprep.subr.mxu0 %v1496
        %1929 = vmatpush1.msra.mxu0 %v1495
        %1930 = vmatprep.subr.mxu0 %v1504
        %1931 = vmatpush1.msra.mxu0 %v1503
        %1932 = vmatprep.subr.mxu0 %v1512
        %1933 = vmatpush1.msra.mxu0 %v1511
        %1934 = vmatprep.subr.mxu0 %v1520
        %1935 = vmatpush1.msra.mxu0 %v1519
        %1936 = vmatprep.subr.mxu0 %v1528
        %1937 = vmatpush1.msra.mxu0 %v1527
        %1938 = vmatprep.subr.mxu0 %v1536
        %1939 = vmatpush1.msra.mxu0 %v1535
        %1940 = vmatprep.subr.mxu0 %v1544
        %1941 = vmatpush1.msra.mxu0 %v1543
        %1942 = vmatprep.subr.mxu0 %v1552
        %1943 = vmatpush1.msra.mxu0 %v1551
        %1944 = vmatprep.subr.mxu0 %v1560
        %1945 = vmatpush1.msra.mxu0 %v1559
        %1946 = vmatprep.subr.mxu0 %v1568
        %1947 = vmatpush1.msra.mxu0 %v1567
        %1948 = vmatprep.subr.mxu0 %v1576
        %1949 = vmatpush1.msra.mxu0 %v1575
        %1950 = vmatprep.subr.mxu0 %v1584
        %1951 = vmatpush1.msra.mxu0 %v1583
        %1952 = vmatprep.subr.mxu0 %v1592
        %1953 = vmatpush1.msra.mxu0 %v1591
        %1954 = vmatprep.subr.mxu0 %v1600
        %1955 = vmatpush1.msra.mxu0 %v1599
        %1956 = vmatprep.subr.mxu0 %v1608
        %1957 = vmatpush1.msra.mxu0 %v1607
        %1958 = vmatprep.subr.mxu0 %v1616
        %1959 = vmatpush1.msra.mxu0 %v1615
        %1960 = vmatprep.subr.mxu0 %v1624
        %1961 = vmatpush1.msra.mxu0 %v1623
        %1962 = vmatprep.subr.mxu0 %v1632
        %1963 = vmatpush1.msra.mxu0 %v1631
        %1964 = vmatprep.subr.mxu0 %v1640
        %1965 = vmatpush1.msra.mxu0 %v1639
        %1966 = vmatprep.subr.mxu0 %v1648
        %1967 = vmatpush1.msra.mxu0 %v1647
        %1968 = vmatprep.subr.mxu0 %v1656
        %1969 = vmatpush1.msra.mxu0 %v1655
        %1970 = vmatprep.subr.mxu0 %v1664
        %1971 = vmatpush1.msra.mxu0 %v1663
        %1972 = vmatprep.subr.mxu0 %v1672
        %1973 = vmatpush1.msra.mxu0 %v1671
        %1974 = vmatprep.subr.mxu0 %v1680
        %1975 = vmatpush1.msra.mxu0 %v1679
        %1976 = vmatprep.subr.mxu0 %v1688
        %1977 = vmatpush1.msra.mxu0 %v1687
        %1978 = vmatprep.subr.mxu0 %v1696
        %1979 = vmatpush1.msra.mxu0 %v1695
        %1980 = vmatprep.subr.mxu0 %v1704
        %1981 = vmatpush1.msra.mxu0 %v1703
        %1982 = vmatprep.mubr.f32.mxu0 %v1437
        %1983 = vmatmul.mubr.f32.gmra.mrb[0].mxu0 %v1436
        %v1984 = vpop.f32.mrb[0].mxu0
        %v1985 = vadd.f32 0.0, %v1984
        %v1986 = vpop.f32.mrb[0].mxu0
        %v1987 = vadd.f32 0.0, %v1986
        %1988 = vdwg.mxu0
        %v1989 = vadd.f32 %v1441, %v1772
        %v1990 = vadd.f32 %v1442, %v1774
        %v1991 = vadd.f32 %v1443, %v1843
        %v1992 = vadd.f32 %v1444, %v1845
        %v1993 = vadd.f32 %v1445, %v1914
        %v1994 = vadd.f32 %v1446, %v1916
        %v1995 = vadd.f32 %v1447, %v1985
        %v1996 = vadd.f32 %v1448, %v1987
        %v1997 = vxor.u32 %v1989, 2147483648
        %v1998 = vxor.u32 %v1990, 2147483648
        %v1999 = vmul.f32 %v1997, 1.442695
        %v2000 = vpow.pop %v1999
        %v2001 = vmul.f32 %v1998, 1.442695
        %v2002 = vpow.pop %v2001
        %v2003 = vadd.f32 %v2000, 1.0
        %v2004 = vadd.f32 %v2002, 1.0
        %v2005 = vrcp.pop %v2003
        %v2006 = vmul.f32 1.0, %v2005
        %v2007 = vrcp.pop %v2004
        %v2008 = vmul.f32 1.0, %v2007
        %v2009 = vxor.u32 %v1991, 2147483648
        %v2010 = vxor.u32 %v1992, 2147483648
        %v2011 = vmul.f32 %v2009, 1.442695
        %v2012 = vpow.pop %v2011
        %v2013 = vmul.f32 %v2010, 1.442695
        %v2014 = vpow.pop %v2013
        %v2015 = vadd.f32 %v2012, 1.0
        %v2016 = vadd.f32 %v2014, 1.0
        %v2017 = vrcp.pop %v2015
        %v2018 = vmul.f32 1.0, %v2017
        %v2019 = vrcp.pop %v2016
        %v2020 = vmul.f32 1.0, %v2019
        %v2021 = vtanh.pop %v1993
        %v2022 = vtanh.pop %v1994
        %v2023 = vxor.u32 %v1995, 2147483648
        %v2024 = vxor.u32 %v1996, 2147483648
        %v2025 = vmul.f32 %v2023, 1.442695
        %v2026 = vpow.pop %v2025
        %v2027 = vmul.f32 %v2024, 1.442695
        %v2028 = vpow.pop %v2027
        %v2029 = vadd.f32 %v2026, 1.0
        %v2030 = vadd.f32 %v2028, 1.0
        %v2031 = vrcp.pop %v2029
        %v2032 = vmul.f32 1.0, %v2031
        %v2033 = vrcp.pop %v2030
        %v2034 = vmul.f32 1.0, %v2033
        %v2035 = vmul.f32 %v2018, %v1438
        %v2036 = vmul.f32 %v2020, %v1439
        %v2037 = vmul.f32 %v2006, %v2021
        %v2038 = vmul.f32 %v2008, %v2022
        %v2039 = vadd.f32 %v2035, %v2037
        %v2040 = vadd.f32 %v2036, %v2038
        %v2041 = vtanh.pop %v2039
        %v2042 = vtanh.pop %v2040
        %v2043 = vmul.f32 %v2032, %v2041
        %v2044 = vmul.f32 %v2034, %v2042
        %2045 = vst [vmem:[#allocation3] sm:$0xff] %v2039
        %2046 = vst [vmem:[#allocation3 + $0x8] sm:$0xff] %v2040
        %2047 = vst [vmem:[#allocation2] sm:$0xff] %v2043
        %2048 = vst [vmem:[#allocation2 + $0x8] sm:$0xff] %v2044
        %s2049 = scalar_lea.vmem %s195, 32 [#allocation9]
        %2050 = vst [vmem:[%s2049] sm:$0xff] %v2043
        %2051 = vst [vmem:[%s2049 + $0x8] sm:$0xff] %v2044
        %v2052 = vld [vmem:[#allocation2] sm:$0xff]
        %v2053 = vld [vmem:[#allocation2 + $0x8] sm:$0xff]
        %v2054 = vld [vmem:[#allocation3] sm:$0xff]
        %v2055 = vld [vmem:[#allocation3 + $0x8] sm:$0xff]
        %s2056 = scalar_lea.vmem %s171, 192 [#allocation4]
        %v2057 = vld [vmem:[%s2056] sm:$0xff]
        %v2058 = vld [vmem:[%s2056 + $0x8] sm:$0xff]
        %v2059 = vld [vmem:[%s2056 + $0x10] sm:$0xff]
        %v2060 = vld [vmem:[%s2056 + $0x18] sm:$0xff]
        %v2061 = vld [vmem:[%s2056 + $0x20] sm:$0xff]
        %v2062 = vld [vmem:[%s2056 + $0x28] sm:$0xff]
        %v2063 = vld [vmem:[%s2056 + $0x30] sm:$0xff]
        %v2064 = vld [vmem:[%s2056 + $0x38] sm:$0xff]
        %v2065 = vld [vmem:[#allocation7] sm:$0xff]
        %v2066 = vld [vmem:[#allocation7 + $0x8] sm:$0xff]
        %v2067 = vld [vmem:[#allocation7 + $0x10] sm:$0xff]
        %v2068 = vld [vmem:[#allocation7 + $0x18] sm:$0xff]
        %v2069 = vld [vmem:[#allocation7 + $0x20] sm:$0xff]
        %v2070 = vld [vmem:[#allocation7 + $0x28] sm:$0xff]
        %v2071 = vld [vmem:[#allocation7 + $0x30] sm:$0xff]
        %v2072 = vld [vmem:[#allocation7 + $0x38] sm:$0xff]
        %v2073 = vld [vmem:[#allocation7 + $0x40] sm:$0xff]
        %v2074 = vld [vmem:[#allocation7 + $0x48] sm:$0xff]
        %v2075 = vld [vmem:[#allocation7 + $0x50] sm:$0xff]
        %v2076 = vld [vmem:[#allocation7 + $0x58] sm:$0xff]
        %v2077 = vld [vmem:[#allocation7 + $0x60] sm:$0xff]
        %v2078 = vld [vmem:[#allocation7 + $0x68] sm:$0xff]
        %v2079 = vld [vmem:[#allocation7 + $0x70] sm:$0xff]
        %v2080 = vld [vmem:[#allocation7 + $0x78] sm:$0xff]
        %v2081 = vld [vmem:[#allocation7 + $0x80] sm:$0xff]
        %v2082 = vld [vmem:[#allocation7 + $0x88] sm:$0xff]
        %v2083 = vld [vmem:[#allocation7 + $0x90] sm:$0xff]
        %v2084 = vld [vmem:[#allocation7 + $0x98] sm:$0xff]
        %v2085 = vld [vmem:[#allocation7 + $0xa0] sm:$0xff]
        %v2086 = vld [vmem:[#allocation7 + $0xa8] sm:$0xff]
        %v2087 = vld [vmem:[#allocation7 + $0xb0] sm:$0xff]
        %v2088 = vld [vmem:[#allocation7 + $0xb8] sm:$0xff]
        %v2089 = vld [vmem:[#allocation7 + $0xc0] sm:$0xff]
        %v2090 = vld [vmem:[#allocation7 + $0xc8] sm:$0xff]
        %v2091 = vld [vmem:[#allocation7 + $0xd0] sm:$0xff]
        %v2092 = vld [vmem:[#allocation7 + $0xd8] sm:$0xff]
        %v2093 = vld [vmem:[#allocation7 + $0xe0] sm:$0xff]
        %v2094 = vld [vmem:[#allocation7 + $0xe8] sm:$0xff]
        %v2095 = vld [vmem:[#allocation7 + $0xf0] sm:$0xff]
        %v2096 = vld [vmem:[#allocation7 + $0xf8] sm:$0xff]
        %v2097 = vld [vmem:[#allocation7 + $0x100] sm:$0xff]
        %v2098 = vld [vmem:[#allocation7 + $0x108] sm:$0xff]
        %v2099 = vld [vmem:[#allocation7 + $0x110] sm:$0xff]
        %v2100 = vld [vmem:[#allocation7 + $0x118] sm:$0xff]
        %v2101 = vld [vmem:[#allocation7 + $0x120] sm:$0xff]
        %v2102 = vld [vmem:[#allocation7 + $0x128] sm:$0xff]
        %v2103 = vld [vmem:[#allocation7 + $0x130] sm:$0xff]
        %v2104 = vld [vmem:[#allocation7 + $0x138] sm:$0xff]
        %v2105 = vld [vmem:[#allocation7 + $0x140] sm:$0xff]
        %v2106 = vld [vmem:[#allocation7 + $0x148] sm:$0xff]
        %v2107 = vld [vmem:[#allocation7 + $0x150] sm:$0xff]
        %v2108 = vld [vmem:[#allocation7 + $0x158] sm:$0xff]
        %v2109 = vld [vmem:[#allocation7 + $0x160] sm:$0xff]
        %v2110 = vld [vmem:[#allocation7 + $0x168] sm:$0xff]
        %v2111 = vld [vmem:[#allocation7 + $0x170] sm:$0xff]
        %v2112 = vld [vmem:[#allocation7 + $0x178] sm:$0xff]
        %v2113 = vld [vmem:[#allocation7 + $0x180] sm:$0xff]
        %v2114 = vld [vmem:[#allocation7 + $0x188] sm:$0xff]
        %v2115 = vld [vmem:[#allocation7 + $0x190] sm:$0xff]
        %v2116 = vld [vmem:[#allocation7 + $0x198] sm:$0xff]
        %v2117 = vld [vmem:[#allocation7 + $0x1a0] sm:$0xff]
        %v2118 = vld [vmem:[#allocation7 + $0x1a8] sm:$0xff]
        %v2119 = vld [vmem:[#allocation7 + $0x1b0] sm:$0xff]
        %v2120 = vld [vmem:[#allocation7 + $0x1b8] sm:$0xff]
        %v2121 = vld [vmem:[#allocation7 + $0x1c0] sm:$0xff]
        %v2122 = vld [vmem:[#allocation7 + $0x1c8] sm:$0xff]
        %v2123 = vld [vmem:[#allocation7 + $0x1d0] sm:$0xff]
        %v2124 = vld [vmem:[#allocation7 + $0x1d8] sm:$0xff]
        %v2125 = vld [vmem:[#allocation7 + $0x1e0] sm:$0xff]
        %v2126 = vld [vmem:[#allocation7 + $0x1e8] sm:$0xff]
        %v2127 = vld [vmem:[#allocation7 + $0x1f0] sm:$0xff]
        %v2128 = vld [vmem:[#allocation7 + $0x1f8] sm:$0xff]
        %v2129 = vld [vmem:[#allocation7 + $0x200] sm:$0xff]
        %v2130 = vld [vmem:[#allocation7 + $0x208] sm:$0xff]
        %v2131 = vld [vmem:[#allocation7 + $0x210] sm:$0xff]
        %v2132 = vld [vmem:[#allocation7 + $0x218] sm:$0xff]
        %v2133 = vld [vmem:[#allocation7 + $0x220] sm:$0xff]
        %v2134 = vld [vmem:[#allocation7 + $0x228] sm:$0xff]
        %v2135 = vld [vmem:[#allocation7 + $0x230] sm:$0xff]
        %v2136 = vld [vmem:[#allocation7 + $0x238] sm:$0xff]
        %v2137 = vld [vmem:[#allocation7 + $0x240] sm:$0xff]
        %v2138 = vld [vmem:[#allocation7 + $0x248] sm:$0xff]
        %v2139 = vld [vmem:[#allocation7 + $0x250] sm:$0xff]
        %v2140 = vld [vmem:[#allocation7 + $0x258] sm:$0xff]
        %v2141 = vld [vmem:[#allocation7 + $0x260] sm:$0xff]
        %v2142 = vld [vmem:[#allocation7 + $0x268] sm:$0xff]
        %v2143 = vld [vmem:[#allocation7 + $0x270] sm:$0xff]
        %v2144 = vld [vmem:[#allocation7 + $0x278] sm:$0xff]
        %v2145 = vld [vmem:[#allocation7 + $0x280] sm:$0xff]
        %v2146 = vld [vmem:[#allocation7 + $0x288] sm:$0xff]
        %v2147 = vld [vmem:[#allocation7 + $0x290] sm:$0xff]
        %v2148 = vld [vmem:[#allocation7 + $0x298] sm:$0xff]
        %v2149 = vld [vmem:[#allocation7 + $0x2a0] sm:$0xff]
        %v2150 = vld [vmem:[#allocation7 + $0x2a8] sm:$0xff]
        %v2151 = vld [vmem:[#allocation7 + $0x2b0] sm:$0xff]
        %v2152 = vld [vmem:[#allocation7 + $0x2b8] sm:$0xff]
        %v2153 = vld [vmem:[#allocation7 + $0x2c0] sm:$0xff]
        %v2154 = vld [vmem:[#allocation7 + $0x2c8] sm:$0xff]
        %v2155 = vld [vmem:[#allocation7 + $0x2d0] sm:$0xff]
        %v2156 = vld [vmem:[#allocation7 + $0x2d8] sm:$0xff]
        %v2157 = vld [vmem:[#allocation7 + $0x2e0] sm:$0xff]
        %v2158 = vld [vmem:[#allocation7 + $0x2e8] sm:$0xff]
        %v2159 = vld [vmem:[#allocation7 + $0x2f0] sm:$0xff]
        %v2160 = vld [vmem:[#allocation7 + $0x2f8] sm:$0xff]
        %v2161 = vld [vmem:[#allocation7 + $0x300] sm:$0xff]
        %v2162 = vld [vmem:[#allocation7 + $0x308] sm:$0xff]
        %v2163 = vld [vmem:[#allocation7 + $0x310] sm:$0xff]
        %v2164 = vld [vmem:[#allocation7 + $0x318] sm:$0xff]
        %v2165 = vld [vmem:[#allocation7 + $0x320] sm:$0xff]
        %v2166 = vld [vmem:[#allocation7 + $0x328] sm:$0xff]
        %v2167 = vld [vmem:[#allocation7 + $0x330] sm:$0xff]
        %v2168 = vld [vmem:[#allocation7 + $0x338] sm:$0xff]
        %v2169 = vld [vmem:[#allocation7 + $0x340] sm:$0xff]
        %v2170 = vld [vmem:[#allocation7 + $0x348] sm:$0xff]
        %v2171 = vld [vmem:[#allocation7 + $0x350] sm:$0xff]
        %v2172 = vld [vmem:[#allocation7 + $0x358] sm:$0xff]
        %v2173 = vld [vmem:[#allocation7 + $0x360] sm:$0xff]
        %v2174 = vld [vmem:[#allocation7 + $0x368] sm:$0xff]
        %v2175 = vld [vmem:[#allocation7 + $0x370] sm:$0xff]
        %v2176 = vld [vmem:[#allocation7 + $0x378] sm:$0xff]
        %v2177 = vld [vmem:[#allocation7 + $0x380] sm:$0xff]
        %v2178 = vld [vmem:[#allocation7 + $0x388] sm:$0xff]
        %v2179 = vld [vmem:[#allocation7 + $0x390] sm:$0xff]
        %v2180 = vld [vmem:[#allocation7 + $0x398] sm:$0xff]
        %v2181 = vld [vmem:[#allocation7 + $0x3a0] sm:$0xff]
        %v2182 = vld [vmem:[#allocation7 + $0x3a8] sm:$0xff]
        %v2183 = vld [vmem:[#allocation7 + $0x3b0] sm:$0xff]
        %v2184 = vld [vmem:[#allocation7 + $0x3b8] sm:$0xff]
        %v2185 = vld [vmem:[#allocation7 + $0x3c0] sm:$0xff]
        %v2186 = vld [vmem:[#allocation7 + $0x3c8] sm:$0xff]
        %v2187 = vld [vmem:[#allocation7 + $0x3d0] sm:$0xff]
        %v2188 = vld [vmem:[#allocation7 + $0x3d8] sm:$0xff]
        %v2189 = vld [vmem:[#allocation7 + $0x3e0] sm:$0xff]
        %v2190 = vld [vmem:[#allocation7 + $0x3e8] sm:$0xff]
        %v2191 = vld [vmem:[#allocation7 + $0x3f0] sm:$0xff]
        %v2192 = vld [vmem:[#allocation7 + $0x3f8] sm:$0xff]
        %v2193 = vld [vmem:[#allocation7 + $0x400] sm:$0xff]
        %v2194 = vld [vmem:[#allocation7 + $0x408] sm:$0xff]
        %v2195 = vld [vmem:[#allocation7 + $0x410] sm:$0xff]
        %v2196 = vld [vmem:[#allocation7 + $0x418] sm:$0xff]
        %v2197 = vld [vmem:[#allocation7 + $0x420] sm:$0xff]
        %v2198 = vld [vmem:[#allocation7 + $0x428] sm:$0xff]
        %v2199 = vld [vmem:[#allocation7 + $0x430] sm:$0xff]
        %v2200 = vld [vmem:[#allocation7 + $0x438] sm:$0xff]
        %v2201 = vld [vmem:[#allocation7 + $0x440] sm:$0xff]
        %v2202 = vld [vmem:[#allocation7 + $0x448] sm:$0xff]
        %v2203 = vld [vmem:[#allocation7 + $0x450] sm:$0xff]
        %v2204 = vld [vmem:[#allocation7 + $0x458] sm:$0xff]
        %v2205 = vld [vmem:[#allocation7 + $0x460] sm:$0xff]
        %v2206 = vld [vmem:[#allocation7 + $0x468] sm:$0xff]
        %v2207 = vld [vmem:[#allocation7 + $0x470] sm:$0xff]
        %v2208 = vld [vmem:[#allocation7 + $0x478] sm:$0xff]
        %v2209 = vld [vmem:[#allocation7 + $0x480] sm:$0xff]
        %v2210 = vld [vmem:[#allocation7 + $0x488] sm:$0xff]
        %v2211 = vld [vmem:[#allocation7 + $0x490] sm:$0xff]
        %v2212 = vld [vmem:[#allocation7 + $0x498] sm:$0xff]
        %v2213 = vld [vmem:[#allocation7 + $0x4a0] sm:$0xff]
        %v2214 = vld [vmem:[#allocation7 + $0x4a8] sm:$0xff]
        %v2215 = vld [vmem:[#allocation7 + $0x4b0] sm:$0xff]
        %v2216 = vld [vmem:[#allocation7 + $0x4b8] sm:$0xff]
        %v2217 = vld [vmem:[#allocation7 + $0x4c0] sm:$0xff]
        %v2218 = vld [vmem:[#allocation7 + $0x4c8] sm:$0xff]
        %v2219 = vld [vmem:[#allocation7 + $0x4d0] sm:$0xff]
        %v2220 = vld [vmem:[#allocation7 + $0x4d8] sm:$0xff]
        %v2221 = vld [vmem:[#allocation7 + $0x4e0] sm:$0xff]
        %v2222 = vld [vmem:[#allocation7 + $0x4e8] sm:$0xff]
        %v2223 = vld [vmem:[#allocation7 + $0x4f0] sm:$0xff]
        %v2224 = vld [vmem:[#allocation7 + $0x4f8] sm:$0xff]
        %v2225 = vld [vmem:[#allocation7 + $0x500] sm:$0xff]
        %v2226 = vld [vmem:[#allocation7 + $0x508] sm:$0xff]
        %v2227 = vld [vmem:[#allocation7 + $0x510] sm:$0xff]
        %v2228 = vld [vmem:[#allocation7 + $0x518] sm:$0xff]
        %v2229 = vld [vmem:[#allocation7 + $0x520] sm:$0xff]
        %v2230 = vld [vmem:[#allocation7 + $0x528] sm:$0xff]
        %v2231 = vld [vmem:[#allocation7 + $0x530] sm:$0xff]
        %v2232 = vld [vmem:[#allocation7 + $0x538] sm:$0xff]
        %v2233 = vld [vmem:[#allocation7 + $0x540] sm:$0xff]
        %v2234 = vld [vmem:[#allocation7 + $0x548] sm:$0xff]
        %v2235 = vld [vmem:[#allocation7 + $0x550] sm:$0xff]
        %v2236 = vld [vmem:[#allocation7 + $0x558] sm:$0xff]
        %v2237 = vld [vmem:[#allocation7 + $0x560] sm:$0xff]
        %v2238 = vld [vmem:[#allocation7 + $0x568] sm:$0xff]
        %v2239 = vld [vmem:[#allocation7 + $0x570] sm:$0xff]
        %v2240 = vld [vmem:[#allocation7 + $0x578] sm:$0xff]
        %v2241 = vld [vmem:[#allocation7 + $0x580] sm:$0xff]
        %v2242 = vld [vmem:[#allocation7 + $0x588] sm:$0xff]
        %v2243 = vld [vmem:[#allocation7 + $0x590] sm:$0xff]
        %v2244 = vld [vmem:[#allocation7 + $0x598] sm:$0xff]
        %v2245 = vld [vmem:[#allocation7 + $0x5a0] sm:$0xff]
        %v2246 = vld [vmem:[#allocation7 + $0x5a8] sm:$0xff]
        %v2247 = vld [vmem:[#allocation7 + $0x5b0] sm:$0xff]
        %v2248 = vld [vmem:[#allocation7 + $0x5b8] sm:$0xff]
        %v2249 = vld [vmem:[#allocation7 + $0x5c0] sm:$0xff]
        %v2250 = vld [vmem:[#allocation7 + $0x5c8] sm:$0xff]
        %v2251 = vld [vmem:[#allocation7 + $0x5d0] sm:$0xff]
        %v2252 = vld [vmem:[#allocation7 + $0x5d8] sm:$0xff]
        %v2253 = vld [vmem:[#allocation7 + $0x5e0] sm:$0xff]
        %v2254 = vld [vmem:[#allocation7 + $0x5e8] sm:$0xff]
        %v2255 = vld [vmem:[#allocation7 + $0x5f0] sm:$0xff]
        %v2256 = vld [vmem:[#allocation7 + $0x5f8] sm:$0xff]
        %v2257 = vld [vmem:[#allocation7 + $0x600] sm:$0xff]
        %v2258 = vld [vmem:[#allocation7 + $0x608] sm:$0xff]
        %v2259 = vld [vmem:[#allocation7 + $0x610] sm:$0xff]
        %v2260 = vld [vmem:[#allocation7 + $0x618] sm:$0xff]
        %v2261 = vld [vmem:[#allocation7 + $0x620] sm:$0xff]
        %v2262 = vld [vmem:[#allocation7 + $0x628] sm:$0xff]
        %v2263 = vld [vmem:[#allocation7 + $0x630] sm:$0xff]
        %v2264 = vld [vmem:[#allocation7 + $0x638] sm:$0xff]
        %v2265 = vld [vmem:[#allocation7 + $0x640] sm:$0xff]
        %v2266 = vld [vmem:[#allocation7 + $0x648] sm:$0xff]
        %v2267 = vld [vmem:[#allocation7 + $0x650] sm:$0xff]
        %v2268 = vld [vmem:[#allocation7 + $0x658] sm:$0xff]
        %v2269 = vld [vmem:[#allocation7 + $0x660] sm:$0xff]
        %v2270 = vld [vmem:[#allocation7 + $0x668] sm:$0xff]
        %v2271 = vld [vmem:[#allocation7 + $0x670] sm:$0xff]
        %v2272 = vld [vmem:[#allocation7 + $0x678] sm:$0xff]
        %v2273 = vld [vmem:[#allocation7 + $0x680] sm:$0xff]
        %v2274 = vld [vmem:[#allocation7 + $0x688] sm:$0xff]
        %v2275 = vld [vmem:[#allocation7 + $0x690] sm:$0xff]
        %v2276 = vld [vmem:[#allocation7 + $0x698] sm:$0xff]
        %v2277 = vld [vmem:[#allocation7 + $0x6a0] sm:$0xff]
        %v2278 = vld [vmem:[#allocation7 + $0x6a8] sm:$0xff]
        %v2279 = vld [vmem:[#allocation7 + $0x6b0] sm:$0xff]
        %v2280 = vld [vmem:[#allocation7 + $0x6b8] sm:$0xff]
        %v2281 = vld [vmem:[#allocation7 + $0x6c0] sm:$0xff]
        %v2282 = vld [vmem:[#allocation7 + $0x6c8] sm:$0xff]
        %v2283 = vld [vmem:[#allocation7 + $0x6d0] sm:$0xff]
        %v2284 = vld [vmem:[#allocation7 + $0x6d8] sm:$0xff]
        %v2285 = vld [vmem:[#allocation7 + $0x6e0] sm:$0xff]
        %v2286 = vld [vmem:[#allocation7 + $0x6e8] sm:$0xff]
        %v2287 = vld [vmem:[#allocation7 + $0x6f0] sm:$0xff]
        %v2288 = vld [vmem:[#allocation7 + $0x6f8] sm:$0xff]
        %v2289 = vld [vmem:[#allocation7 + $0x700] sm:$0xff]
        %v2290 = vld [vmem:[#allocation7 + $0x708] sm:$0xff]
        %v2291 = vld [vmem:[#allocation7 + $0x710] sm:$0xff]
        %v2292 = vld [vmem:[#allocation7 + $0x718] sm:$0xff]
        %v2293 = vld [vmem:[#allocation7 + $0x720] sm:$0xff]
        %v2294 = vld [vmem:[#allocation7 + $0x728] sm:$0xff]
        %v2295 = vld [vmem:[#allocation7 + $0x730] sm:$0xff]
        %v2296 = vld [vmem:[#allocation7 + $0x738] sm:$0xff]
        %v2297 = vld [vmem:[#allocation7 + $0x740] sm:$0xff]
        %v2298 = vld [vmem:[#allocation7 + $0x748] sm:$0xff]
        %v2299 = vld [vmem:[#allocation7 + $0x750] sm:$0xff]
        %v2300 = vld [vmem:[#allocation7 + $0x758] sm:$0xff]
        %v2301 = vld [vmem:[#allocation7 + $0x760] sm:$0xff]
        %v2302 = vld [vmem:[#allocation7 + $0x768] sm:$0xff]
        %v2303 = vld [vmem:[#allocation7 + $0x770] sm:$0xff]
        %v2304 = vld [vmem:[#allocation7 + $0x778] sm:$0xff]
        %v2305 = vld [vmem:[#allocation7 + $0x780] sm:$0xff]
        %v2306 = vld [vmem:[#allocation7 + $0x788] sm:$0xff]
        %v2307 = vld [vmem:[#allocation7 + $0x790] sm:$0xff]
        %v2308 = vld [vmem:[#allocation7 + $0x798] sm:$0xff]
        %v2309 = vld [vmem:[#allocation7 + $0x7a0] sm:$0xff]
        %v2310 = vld [vmem:[#allocation7 + $0x7a8] sm:$0xff]
        %v2311 = vld [vmem:[#allocation7 + $0x7b0] sm:$0xff]
        %v2312 = vld [vmem:[#allocation7 + $0x7b8] sm:$0xff]
        %v2313 = vld [vmem:[#allocation7 + $0x7c0] sm:$0xff]
        %v2314 = vld [vmem:[#allocation7 + $0x7c8] sm:$0xff]
        %v2315 = vld [vmem:[#allocation7 + $0x7d0] sm:$0xff]
        %v2316 = vld [vmem:[#allocation7 + $0x7d8] sm:$0xff]
        %v2317 = vld [vmem:[#allocation7 + $0x7e0] sm:$0xff]
        %v2318 = vld [vmem:[#allocation7 + $0x7e8] sm:$0xff]
        %v2319 = vld [vmem:[#allocation7 + $0x7f0] sm:$0xff]
        %v2320 = vld [vmem:[#allocation7 + $0x7f8] sm:$0xff]
        %2321 = vmatprep.subr.mxu0 %v2066
        %2322 = vmatpush1.msra.mxu0 %v2065
        %2323 = vmatprep.subr.mxu0 %v2074
        %2324 = vmatpush1.msra.mxu0 %v2073
        %2325 = vmatprep.subr.mxu0 %v2082
        %2326 = vmatpush1.msra.mxu0 %v2081
        %2327 = vmatprep.subr.mxu0 %v2090
        %2328 = vmatpush1.msra.mxu0 %v2089
        %2329 = vmatprep.subr.mxu0 %v2098
        %2330 = vmatpush1.msra.mxu0 %v2097
        %2331 = vmatprep.subr.mxu0 %v2106
        %2332 = vmatpush1.msra.mxu0 %v2105
        %2333 = vmatprep.subr.mxu0 %v2114
        %2334 = vmatpush1.msra.mxu0 %v2113
        %2335 = vmatprep.subr.mxu0 %v2122
        %2336 = vmatpush1.msra.mxu0 %v2121
        %2337 = vmatprep.subr.mxu0 %v2130
        %2338 = vmatpush1.msra.mxu0 %v2129
        %2339 = vmatprep.subr.mxu0 %v2138
        %2340 = vmatpush1.msra.mxu0 %v2137
        %2341 = vmatprep.subr.mxu0 %v2146
        %2342 = vmatpush1.msra.mxu0 %v2145
        %2343 = vmatprep.subr.mxu0 %v2154
        %2344 = vmatpush1.msra.mxu0 %v2153
        %2345 = vmatprep.subr.mxu0 %v2162
        %2346 = vmatpush1.msra.mxu0 %v2161
        %2347 = vmatprep.subr.mxu0 %v2170
        %2348 = vmatpush1.msra.mxu0 %v2169
        %2349 = vmatprep.subr.mxu0 %v2178
        %2350 = vmatpush1.msra.mxu0 %v2177
        %2351 = vmatprep.subr.mxu0 %v2186
        %2352 = vmatpush1.msra.mxu0 %v2185
        %2353 = vmatprep.subr.mxu0 %v2194
        %2354 = vmatpush1.msra.mxu0 %v2193
        %2355 = vmatprep.subr.mxu0 %v2202
        %2356 = vmatpush1.msra.mxu0 %v2201
        %2357 = vmatprep.subr.mxu0 %v2210
        %2358 = vmatpush1.msra.mxu0 %v2209
        %2359 = vmatprep.subr.mxu0 %v2218
        %2360 = vmatpush1.msra.mxu0 %v2217
        %2361 = vmatprep.subr.mxu0 %v2226
        %2362 = vmatpush1.msra.mxu0 %v2225
        %2363 = vmatprep.subr.mxu0 %v2234
        %2364 = vmatpush1.msra.mxu0 %v2233
        %2365 = vmatprep.subr.mxu0 %v2242
        %2366 = vmatpush1.msra.mxu0 %v2241
        %2367 = vmatprep.subr.mxu0 %v2250
        %2368 = vmatpush1.msra.mxu0 %v2249
        %2369 = vmatprep.subr.mxu0 %v2258
        %2370 = vmatpush1.msra.mxu0 %v2257
        %2371 = vmatprep.subr.mxu0 %v2266
        %2372 = vmatpush1.msra.mxu0 %v2265
        %2373 = vmatprep.subr.mxu0 %v2274
        %2374 = vmatpush1.msra.mxu0 %v2273
        %2375 = vmatprep.subr.mxu0 %v2282
        %2376 = vmatpush1.msra.mxu0 %v2281
        %2377 = vmatprep.subr.mxu0 %v2290
        %2378 = vmatpush1.msra.mxu0 %v2289
        %2379 = vmatprep.subr.mxu0 %v2298
        %2380 = vmatpush1.msra.mxu0 %v2297
        %2381 = vmatprep.subr.mxu0 %v2306
        %2382 = vmatpush1.msra.mxu0 %v2305
        %2383 = vmatprep.subr.mxu0 %v2314
        %2384 = vmatpush1.msra.mxu0 %v2313
        %2385 = vmatprep.mubr.f32.mxu0 %v2053
        %2386 = vmatmul.mubr.f32.gmra.mrb[0].mxu0 %v2052
        %v2387 = vpop.f32.mrb[0].mxu0
        %v2388 = vadd.f32 0.0, %v2387
        %v2389 = vpop.f32.mrb[0].mxu0
        %v2390 = vadd.f32 0.0, %v2389
        %2391 = vdwg.mxu0
        %2392 = vmatprep.subr.mxu0 %v2068
        %2393 = vmatpush1.msra.mxu0 %v2067
        %2394 = vmatprep.subr.mxu0 %v2076
        %2395 = vmatpush1.msra.mxu0 %v2075
        %2396 = vmatprep.subr.mxu0 %v2084
        %2397 = vmatpush1.msra.mxu0 %v2083
        %2398 = vmatprep.subr.mxu0 %v2092
        %2399 = vmatpush1.msra.mxu0 %v2091
        %2400 = vmatprep.subr.mxu0 %v2100
        %2401 = vmatpush1.msra.mxu0 %v2099
        %2402 = vmatprep.subr.mxu0 %v2108
        %2403 = vmatpush1.msra.mxu0 %v2107
        %2404 = vmatprep.subr.mxu0 %v2116
        %2405 = vmatpush1.msra.mxu0 %v2115
        %2406 = vmatprep.subr.mxu0 %v2124
        %2407 = vmatpush1.msra.mxu0 %v2123
        %2408 = vmatprep.subr.mxu0 %v2132
        %2409 = vmatpush1.msra.mxu0 %v2131
        %2410 = vmatprep.subr.mxu0 %v2140
        %2411 = vmatpush1.msra.mxu0 %v2139
        %2412 = vmatprep.subr.mxu0 %v2148
        %2413 = vmatpush1.msra.mxu0 %v2147
        %2414 = vmatprep.subr.mxu0 %v2156
        %2415 = vmatpush1.msra.mxu0 %v2155
        %2416 = vmatprep.subr.mxu0 %v2164
        %2417 = vmatpush1.msra.mxu0 %v2163
        %2418 = vmatprep.subr.mxu0 %v2172
        %2419 = vmatpush1.msra.mxu0 %v2171
        %2420 = vmatprep.subr.mxu0 %v2180
        %2421 = vmatpush1.msra.mxu0 %v2179
        %2422 = vmatprep.subr.mxu0 %v2188
        %2423 = vmatpush1.msra.mxu0 %v2187
        %2424 = vmatprep.subr.mxu0 %v2196
        %2425 = vmatpush1.msra.mxu0 %v2195
        %2426 = vmatprep.subr.mxu0 %v2204
        %2427 = vmatpush1.msra.mxu0 %v2203
        %2428 = vmatprep.subr.mxu0 %v2212
        %2429 = vmatpush1.msra.mxu0 %v2211
        %2430 = vmatprep.subr.mxu0 %v2220
        %2431 = vmatpush1.msra.mxu0 %v2219
        %2432 = vmatprep.subr.mxu0 %v2228
        %2433 = vmatpush1.msra.mxu0 %v2227
        %2434 = vmatprep.subr.mxu0 %v2236
        %2435 = vmatpush1.msra.mxu0 %v2235
        %2436 = vmatprep.subr.mxu0 %v2244
        %2437 = vmatpush1.msra.mxu0 %v2243
        %2438 = vmatprep.subr.mxu0 %v2252
        %2439 = vmatpush1.msra.mxu0 %v2251
        %2440 = vmatprep.subr.mxu0 %v2260
        %2441 = vmatpush1.msra.mxu0 %v2259
        %2442 = vmatprep.subr.mxu0 %v2268
        %2443 = vmatpush1.msra.mxu0 %v2267
        %2444 = vmatprep.subr.mxu0 %v2276
        %2445 = vmatpush1.msra.mxu0 %v2275
        %2446 = vmatprep.subr.mxu0 %v2284
        %2447 = vmatpush1.msra.mxu0 %v2283
        %2448 = vmatprep.subr.mxu0 %v2292
        %2449 = vmatpush1.msra.mxu0 %v2291
        %2450 = vmatprep.subr.mxu0 %v2300
        %2451 = vmatpush1.msra.mxu0 %v2299
        %2452 = vmatprep.subr.mxu0 %v2308
        %2453 = vmatpush1.msra.mxu0 %v2307
        %2454 = vmatprep.subr.mxu0 %v2316
        %2455 = vmatpush1.msra.mxu0 %v2315
        %2456 = vmatprep.mubr.f32.mxu0 %v2053
        %2457 = vmatmul.mubr.f32.gmra.mrb[0].mxu0 %v2052
        %v2458 = vpop.f32.mrb[0].mxu0
        %v2459 = vadd.f32 0.0, %v2458
        %v2460 = vpop.f32.mrb[0].mxu0
        %v2461 = vadd.f32 0.0, %v2460
        %2462 = vdwg.mxu0
        %2463 = vmatprep.subr.mxu0 %v2070
        %2464 = vmatpush1.msra.mxu0 %v2069
        %2465 = vmatprep.subr.mxu0 %v2078
        %2466 = vmatpush1.msra.mxu0 %v2077
        %2467 = vmatprep.subr.mxu0 %v2086
        %2468 = vmatpush1.msra.mxu0 %v2085
        %2469 = vmatprep.subr.mxu0 %v2094
        %2470 = vmatpush1.msra.mxu0 %v2093
        %2471 = vmatprep.subr.mxu0 %v2102
        %2472 = vmatpush1.msra.mxu0 %v2101
        %2473 = vmatprep.subr.mxu0 %v2110
        %2474 = vmatpush1.msra.mxu0 %v2109
        %2475 = vmatprep.subr.mxu0 %v2118
        %2476 = vmatpush1.msra.mxu0 %v2117
        %2477 = vmatprep.subr.mxu0 %v2126
        %2478 = vmatpush1.msra.mxu0 %v2125
        %2479 = vmatprep.subr.mxu0 %v2134
        %2480 = vmatpush1.msra.mxu0 %v2133
        %2481 = vmatprep.subr.mxu0 %v2142
        %2482 = vmatpush1.msra.mxu0 %v2141
        %2483 = vmatprep.subr.mxu0 %v2150
        %2484 = vmatpush1.msra.mxu0 %v2149
        %2485 = vmatprep.subr.mxu0 %v2158
        %2486 = vmatpush1.msra.mxu0 %v2157
        %2487 = vmatprep.subr.mxu0 %v2166
        %2488 = vmatpush1.msra.mxu0 %v2165
        %2489 = vmatprep.subr.mxu0 %v2174
        %2490 = vmatpush1.msra.mxu0 %v2173
        %2491 = vmatprep.subr.mxu0 %v2182
        %2492 = vmatpush1.msra.mxu0 %v2181
        %2493 = vmatprep.subr.mxu0 %v2190
        %2494 = vmatpush1.msra.mxu0 %v2189
        %2495 = vmatprep.subr.mxu0 %v2198
        %2496 = vmatpush1.msra.mxu0 %v2197
        %2497 = vmatprep.subr.mxu0 %v2206
        %2498 = vmatpush1.msra.mxu0 %v2205
        %2499 = vmatprep.subr.mxu0 %v2214
        %2500 = vmatpush1.msra.mxu0 %v2213
        %2501 = vmatprep.subr.mxu0 %v2222
        %2502 = vmatpush1.msra.mxu0 %v2221
        %2503 = vmatprep.subr.mxu0 %v2230
        %2504 = vmatpush1.msra.mxu0 %v2229
        %2505 = vmatprep.subr.mxu0 %v2238
        %2506 = vmatpush1.msra.mxu0 %v2237
        %2507 = vmatprep.subr.mxu0 %v2246
        %2508 = vmatpush1.msra.mxu0 %v2245
        %2509 = vmatprep.subr.mxu0 %v2254
        %2510 = vmatpush1.msra.mxu0 %v2253
        %2511 = vmatprep.subr.mxu0 %v2262
        %2512 = vmatpush1.msra.mxu0 %v2261
        %2513 = vmatprep.subr.mxu0 %v2270
        %2514 = vmatpush1.msra.mxu0 %v2269
        %2515 = vmatprep.subr.mxu0 %v2278
        %2516 = vmatpush1.msra.mxu0 %v2277
        %2517 = vmatprep.subr.mxu0 %v2286
        %2518 = vmatpush1.msra.mxu0 %v2285
        %2519 = vmatprep.subr.mxu0 %v2294
        %2520 = vmatpush1.msra.mxu0 %v2293
        %2521 = vmatprep.subr.mxu0 %v2302
        %2522 = vmatpush1.msra.mxu0 %v2301
        %2523 = vmatprep.subr.mxu0 %v2310
        %2524 = vmatpush1.msra.mxu0 %v2309
        %2525 = vmatprep.subr.mxu0 %v2318
        %2526 = vmatpush1.msra.mxu0 %v2317
        %2527 = vmatprep.mubr.f32.mxu0 %v2053
        %2528 = vmatmul.mubr.f32.gmra.mrb[0].mxu0 %v2052
        %v2529 = vpop.f32.mrb[0].mxu0
        %v2530 = vadd.f32 0.0, %v2529
        %v2531 = vpop.f32.mrb[0].mxu0
        %v2532 = vadd.f32 0.0, %v2531
        %2533 = vdwg.mxu0
        %2534 = vmatprep.subr.mxu0 %v2072
        %2535 = vmatpush1.msra.mxu0 %v2071
        %2536 = vmatprep.subr.mxu0 %v2080
        %2537 = vmatpush1.msra.mxu0 %v2079
        %2538 = vmatprep.subr.mxu0 %v2088
        %2539 = vmatpush1.msra.mxu0 %v2087
        %2540 = vmatprep.subr.mxu0 %v2096
        %2541 = vmatpush1.msra.mxu0 %v2095
        %2542 = vmatprep.subr.mxu0 %v2104
        %2543 = vmatpush1.msra.mxu0 %v2103
        %2544 = vmatprep.subr.mxu0 %v2112
        %2545 = vmatpush1.msra.mxu0 %v2111
        %2546 = vmatprep.subr.mxu0 %v2120
        %2547 = vmatpush1.msra.mxu0 %v2119
        %2548 = vmatprep.subr.mxu0 %v2128
        %2549 = vmatpush1.msra.mxu0 %v2127
        %2550 = vmatprep.subr.mxu0 %v2136
        %2551 = vmatpush1.msra.mxu0 %v2135
        %2552 = vmatprep.subr.mxu0 %v2144
        %2553 = vmatpush1.msra.mxu0 %v2143
        %2554 = vmatprep.subr.mxu0 %v2152
        %2555 = vmatpush1.msra.mxu0 %v2151
        %2556 = vmatprep.subr.mxu0 %v2160
        %2557 = vmatpush1.msra.mxu0 %v2159
        %2558 = vmatprep.subr.mxu0 %v2168
        %2559 = vmatpush1.msra.mxu0 %v2167
        %2560 = vmatprep.subr.mxu0 %v2176
        %2561 = vmatpush1.msra.mxu0 %v2175
        %2562 = vmatprep.subr.mxu0 %v2184
        %2563 = vmatpush1.msra.mxu0 %v2183
        %2564 = vmatprep.subr.mxu0 %v2192
        %2565 = vmatpush1.msra.mxu0 %v2191
        %2566 = vmatprep.subr.mxu0 %v2200
        %2567 = vmatpush1.msra.mxu0 %v2199
        %2568 = vmatprep.subr.mxu0 %v2208
        %2569 = vmatpush1.msra.mxu0 %v2207
        %2570 = vmatprep.subr.mxu0 %v2216
        %2571 = vmatpush1.msra.mxu0 %v2215
        %2572 = vmatprep.subr.mxu0 %v2224
        %2573 = vmatpush1.msra.mxu0 %v2223
        %2574 = vmatprep.subr.mxu0 %v2232
        %2575 = vmatpush1.msra.mxu0 %v2231
        %2576 = vmatprep.subr.mxu0 %v2240
        %2577 = vmatpush1.msra.mxu0 %v2239
        %2578 = vmatprep.subr.mxu0 %v2248
        %2579 = vmatpush1.msra.mxu0 %v2247
        %2580 = vmatprep.subr.mxu0 %v2256
        %2581 = vmatpush1.msra.mxu0 %v2255
        %2582 = vmatprep.subr.mxu0 %v2264
        %2583 = vmatpush1.msra.mxu0 %v2263
        %2584 = vmatprep.subr.mxu0 %v2272
        %2585 = vmatpush1.msra.mxu0 %v2271
        %2586 = vmatprep.subr.mxu0 %v2280
        %2587 = vmatpush1.msra.mxu0 %v2279
        %2588 = vmatprep.subr.mxu0 %v2288
        %2589 = vmatpush1.msra.mxu0 %v2287
        %2590 = vmatprep.subr.mxu0 %v2296
        %2591 = vmatpush1.msra.mxu0 %v2295
        %2592 = vmatprep.subr.mxu0 %v2304
        %2593 = vmatpush1.msra.mxu0 %v2303
        %2594 = vmatprep.subr.mxu0 %v2312
        %2595 = vmatpush1.msra.mxu0 %v2311
        %2596 = vmatprep.subr.mxu0 %v2320
        %2597 = vmatpush1.msra.mxu0 %v2319
        %2598 = vmatprep.mubr.f32.mxu0 %v2053
        %2599 = vmatmul.mubr.f32.gmra.mrb[0].mxu0 %v2052
        %v2600 = vpop.f32.mrb[0].mxu0
        %v2601 = vadd.f32 0.0, %v2600
        %v2602 = vpop.f32.mrb[0].mxu0
        %v2603 = vadd.f32 0.0, %v2602
        %2604 = vdwg.mxu0
        %v2605 = vadd.f32 %v2057, %v2388
        %v2606 = vadd.f32 %v2058, %v2390
        %v2607 = vadd.f32 %v2059, %v2459
        %v2608 = vadd.f32 %v2060, %v2461
        %v2609 = vadd.f32 %v2061, %v2530
        %v2610 = vadd.f32 %v2062, %v2532
        %v2611 = vadd.f32 %v2063, %v2601
        %v2612 = vadd.f32 %v2064, %v2603
        %v2613 = vxor.u32 %v2605, 2147483648
        %v2614 = vxor.u32 %v2606, 2147483648
        %v2615 = vmul.f32 %v2613, 1.442695
        %v2616 = vpow.pop %v2615
        %v2617 = vmul.f32 %v2614, 1.442695
        %v2618 = vpow.pop %v2617
        %v2619 = vadd.f32 %v2616, 1.0
        %v2620 = vadd.f32 %v2618, 1.0
        %v2621 = vrcp.pop %v2619
        %v2622 = vmul.f32 1.0, %v2621
        %v2623 = vrcp.pop %v2620
        %v2624 = vmul.f32 1.0, %v2623
        %v2625 = vxor.u32 %v2607, 2147483648
        %v2626 = vxor.u32 %v2608, 2147483648
        %v2627 = vmul.f32 %v2625, 1.442695
        %v2628 = vpow.pop %v2627
        %v2629 = vmul.f32 %v2626, 1.442695
        %v2630 = vpow.pop %v2629
        %v2631 = vadd.f32 %v2628, 1.0
        %v2632 = vadd.f32 %v2630, 1.0
        %v2633 = vrcp.pop %v2631
        %v2634 = vmul.f32 1.0, %v2633
        %v2635 = vrcp.pop %v2632
        %v2636 = vmul.f32 1.0, %v2635
        %v2637 = vtanh.pop %v2609
        %v2638 = vtanh.pop %v2610
        %v2639 = vxor.u32 %v2611, 2147483648
        %v2640 = vxor.u32 %v2612, 2147483648
        %v2641 = vmul.f32 %v2639, 1.442695
        %v2642 = vpow.pop %v2641
        %v2643 = vmul.f32 %v2640, 1.442695
        %v2644 = vpow.pop %v2643
        %v2645 = vadd.f32 %v2642, 1.0
        %v2646 = vadd.f32 %v2644, 1.0
        %v2647 = vrcp.pop %v2645
        %v2648 = vmul.f32 1.0, %v2647
        %v2649 = vrcp.pop %v2646
        %v2650 = vmul.f32 1.0, %v2649
        %v2651 = vmul.f32 %v2634, %v2054
        %v2652 = vmul.f32 %v2636, %v2055
        %v2653 = vmul.f32 %v2622, %v2637
        %v2654 = vmul.f32 %v2624, %v2638
        %v2655 = vadd.f32 %v2651, %v2653
        %v2656 = vadd.f32 %v2652, %v2654
        %v2657 = vtanh.pop %v2655
        %v2658 = vtanh.pop %v2656
        %v2659 = vmul.f32 %v2648, %v2657
        %v2660 = vmul.f32 %v2650, %v2658
        %2661 = vst [vmem:[#allocation3] sm:$0xff] %v2655
        %2662 = vst [vmem:[#allocation3 + $0x8] sm:$0xff] %v2656
        %2663 = vst [vmem:[#allocation2] sm:$0xff] %v2659
        %2664 = vst [vmem:[#allocation2 + $0x8] sm:$0xff] %v2660
        %s2665 = scalar_lea.vmem %s195, 48 [#allocation9]
        %2666 = vst [vmem:[%s2665] sm:$0xff] %v2659
        %2667 = vst [vmem:[%s2665 + $0x8] sm:$0xff] %v2660
        %v2668 = vld [vmem:[#allocation2] sm:$0xff]
        %v2669 = vld [vmem:[#allocation2 + $0x8] sm:$0xff]
        %v2670 = vld [vmem:[#allocation3] sm:$0xff]
        %v2671 = vld [vmem:[#allocation3 + $0x8] sm:$0xff]
        %s2672 = scalar_lea.vmem %s171, 256 [#allocation4]
        %v2673 = vld [vmem:[%s2672] sm:$0xff]
        %v2674 = vld [vmem:[%s2672 + $0x8] sm:$0xff]
        %v2675 = vld [vmem:[%s2672 + $0x10] sm:$0xff]
        %v2676 = vld [vmem:[%s2672 + $0x18] sm:$0xff]
        %v2677 = vld [vmem:[%s2672 + $0x20] sm:$0xff]
        %v2678 = vld [vmem:[%s2672 + $0x28] sm:$0xff]
        %v2679 = vld [vmem:[%s2672 + $0x30] sm:$0xff]
        %v2680 = vld [vmem:[%s2672 + $0x38] sm:$0xff]
        %v2681 = vld [vmem:[#allocation7] sm:$0xff]
        %v2682 = vld [vmem:[#allocation7 + $0x8] sm:$0xff]
        %v2683 = vld [vmem:[#allocation7 + $0x10] sm:$0xff]
        %v2684 = vld [vmem:[#allocation7 + $0x18] sm:$0xff]
        %v2685 = vld [vmem:[#allocation7 + $0x20] sm:$0xff]
        %v2686 = vld [vmem:[#allocation7 + $0x28] sm:$0xff]
        %v2687 = vld [vmem:[#allocation7 + $0x30] sm:$0xff]
        %v2688 = vld [vmem:[#allocation7 + $0x38] sm:$0xff]
        %v2689 = vld [vmem:[#allocation7 + $0x40] sm:$0xff]
        %v2690 = vld [vmem:[#allocation7 + $0x48] sm:$0xff]
        %v2691 = vld [vmem:[#allocation7 + $0x50] sm:$0xff]
        %v2692 = vld [vmem:[#allocation7 + $0x58] sm:$0xff]
        %v2693 = vld [vmem:[#allocation7 + $0x60] sm:$0xff]
        %v2694 = vld [vmem:[#allocation7 + $0x68] sm:$0xff]
        %v2695 = vld [vmem:[#allocation7 + $0x70] sm:$0xff]
        %v2696 = vld [vmem:[#allocation7 + $0x78] sm:$0xff]
        %v2697 = vld [vmem:[#allocation7 + $0x80] sm:$0xff]
        %v2698 = vld [vmem:[#allocation7 + $0x88] sm:$0xff]
        %v2699 = vld [vmem:[#allocation7 + $0x90] sm:$0xff]
        %v2700 = vld [vmem:[#allocation7 + $0x98] sm:$0xff]
        %v2701 = vld [vmem:[#allocation7 + $0xa0] sm:$0xff]
        %v2702 = vld [vmem:[#allocation7 + $0xa8] sm:$0xff]
        %v2703 = vld [vmem:[#allocation7 + $0xb0] sm:$0xff]
        %v2704 = vld [vmem:[#allocation7 + $0xb8] sm:$0xff]
        %v2705 = vld [vmem:[#allocation7 + $0xc0] sm:$0xff]
        %v2706 = vld [vmem:[#allocation7 + $0xc8] sm:$0xff]
        %v2707 = vld [vmem:[#allocation7 + $0xd0] sm:$0xff]
        %v2708 = vld [vmem:[#allocation7 + $0xd8] sm:$0xff]
        %v2709 = vld [vmem:[#allocation7 + $0xe0] sm:$0xff]
        %v2710 = vld [vmem:[#allocation7 + $0xe8] sm:$0xff]
        %v2711 = vld [vmem:[#allocation7 + $0xf0] sm:$0xff]
        %v2712 = vld [vmem:[#allocation7 + $0xf8] sm:$0xff]
        %v2713 = vld [vmem:[#allocation7 + $0x100] sm:$0xff]
        %v2714 = vld [vmem:[#allocation7 + $0x108] sm:$0xff]
        %v2715 = vld [vmem:[#allocation7 + $0x110] sm:$0xff]
        %v2716 = vld [vmem:[#allocation7 + $0x118] sm:$0xff]
        %v2717 = vld [vmem:[#allocation7 + $0x120] sm:$0xff]
        %v2718 = vld [vmem:[#allocation7 + $0x128] sm:$0xff]
        %v2719 = vld [vmem:[#allocation7 + $0x130] sm:$0xff]
        %v2720 = vld [vmem:[#allocation7 + $0x138] sm:$0xff]
        %v2721 = vld [vmem:[#allocation7 + $0x140] sm:$0xff]
        %v2722 = vld [vmem:[#allocation7 + $0x148] sm:$0xff]
        %v2723 = vld [vmem:[#allocation7 + $0x150] sm:$0xff]
        %v2724 = vld [vmem:[#allocation7 + $0x158] sm:$0xff]
        %v2725 = vld [vmem:[#allocation7 + $0x160] sm:$0xff]
        %v2726 = vld [vmem:[#allocation7 + $0x168] sm:$0xff]
        %v2727 = vld [vmem:[#allocation7 + $0x170] sm:$0xff]
        %v2728 = vld [vmem:[#allocation7 + $0x178] sm:$0xff]
        %v2729 = vld [vmem:[#allocation7 + $0x180] sm:$0xff]
        %v2730 = vld [vmem:[#allocation7 + $0x188] sm:$0xff]
        %v2731 = vld [vmem:[#allocation7 + $0x190] sm:$0xff]
        %v2732 = vld [vmem:[#allocation7 + $0x198] sm:$0xff]
        %v2733 = vld [vmem:[#allocation7 + $0x1a0] sm:$0xff]
        %v2734 = vld [vmem:[#allocation7 + $0x1a8] sm:$0xff]
        %v2735 = vld [vmem:[#allocation7 + $0x1b0] sm:$0xff]
        %v2736 = vld [vmem:[#allocation7 + $0x1b8] sm:$0xff]
        %v2737 = vld [vmem:[#allocation7 + $0x1c0] sm:$0xff]
        %v2738 = vld [vmem:[#allocation7 + $0x1c8] sm:$0xff]
        %v2739 = vld [vmem:[#allocation7 + $0x1d0] sm:$0xff]
        %v2740 = vld [vmem:[#allocation7 + $0x1d8] sm:$0xff]
        %v2741 = vld [vmem:[#allocation7 + $0x1e0] sm:$0xff]
        %v2742 = vld [vmem:[#allocation7 + $0x1e8] sm:$0xff]
        %v2743 = vld [vmem:[#allocation7 + $0x1f0] sm:$0xff]
        %v2744 = vld [vmem:[#allocation7 + $0x1f8] sm:$0xff]
        %v2745 = vld [vmem:[#allocation7 + $0x200] sm:$0xff]
        %v2746 = vld [vmem:[#allocation7 + $0x208] sm:$0xff]
        %v2747 = vld [vmem:[#allocation7 + $0x210] sm:$0xff]
        %v2748 = vld [vmem:[#allocation7 + $0x218] sm:$0xff]
        %v2749 = vld [vmem:[#allocation7 + $0x220] sm:$0xff]
        %v2750 = vld [vmem:[#allocation7 + $0x228] sm:$0xff]
        %v2751 = vld [vmem:[#allocation7 + $0x230] sm:$0xff]
        %v2752 = vld [vmem:[#allocation7 + $0x238] sm:$0xff]
        %v2753 = vld [vmem:[#allocation7 + $0x240] sm:$0xff]
        %v2754 = vld [vmem:[#allocation7 + $0x248] sm:$0xff]
        %v2755 = vld [vmem:[#allocation7 + $0x250] sm:$0xff]
        %v2756 = vld [vmem:[#allocation7 + $0x258] sm:$0xff]
        %v2757 = vld [vmem:[#allocation7 + $0x260] sm:$0xff]
        %v2758 = vld [vmem:[#allocation7 + $0x268] sm:$0xff]
        %v2759 = vld [vmem:[#allocation7 + $0x270] sm:$0xff]
        %v2760 = vld [vmem:[#allocation7 + $0x278] sm:$0xff]
        %v2761 = vld [vmem:[#allocation7 + $0x280] sm:$0xff]
        %v2762 = vld [vmem:[#allocation7 + $0x288] sm:$0xff]
        %v2763 = vld [vmem:[#allocation7 + $0x290] sm:$0xff]
        %v2764 = vld [vmem:[#allocation7 + $0x298] sm:$0xff]
        %v2765 = vld [vmem:[#allocation7 + $0x2a0] sm:$0xff]
        %v2766 = vld [vmem:[#allocation7 + $0x2a8] sm:$0xff]
        %v2767 = vld [vmem:[#allocation7 + $0x2b0] sm:$0xff]
        %v2768 = vld [vmem:[#allocation7 + $0x2b8] sm:$0xff]
        %v2769 = vld [vmem:[#allocation7 + $0x2c0] sm:$0xff]
        %v2770 = vld [vmem:[#allocation7 + $0x2c8] sm:$0xff]
        %v2771 = vld [vmem:[#allocation7 + $0x2d0] sm:$0xff]
        %v2772 = vld [vmem:[#allocation7 + $0x2d8] sm:$0xff]
        %v2773 = vld [vmem:[#allocation7 + $0x2e0] sm:$0xff]
        %v2774 = vld [vmem:[#allocation7 + $0x2e8] sm:$0xff]
        %v2775 = vld [vmem:[#allocation7 + $0x2f0] sm:$0xff]
        %v2776 = vld [vmem:[#allocation7 + $0x2f8] sm:$0xff]
        %v2777 = vld [vmem:[#allocation7 + $0x300] sm:$0xff]
        %v2778 = vld [vmem:[#allocation7 + $0x308] sm:$0xff]
        %v2779 = vld [vmem:[#allocation7 + $0x310] sm:$0xff]
        %v2780 = vld [vmem:[#allocation7 + $0x318] sm:$0xff]
        %v2781 = vld [vmem:[#allocation7 + $0x320] sm:$0xff]
        %v2782 = vld [vmem:[#allocation7 + $0x328] sm:$0xff]
        %v2783 = vld [vmem:[#allocation7 + $0x330] sm:$0xff]
        %v2784 = vld [vmem:[#allocation7 + $0x338] sm:$0xff]
        %v2785 = vld [vmem:[#allocation7 + $0x340] sm:$0xff]
        %v2786 = vld [vmem:[#allocation7 + $0x348] sm:$0xff]
        %v2787 = vld [vmem:[#allocation7 + $0x350] sm:$0xff]
        %v2788 = vld [vmem:[#allocation7 + $0x358] sm:$0xff]
        %v2789 = vld [vmem:[#allocation7 + $0x360] sm:$0xff]
        %v2790 = vld [vmem:[#allocation7 + $0x368] sm:$0xff]
        %v2791 = vld [vmem:[#allocation7 + $0x370] sm:$0xff]
        %v2792 = vld [vmem:[#allocation7 + $0x378] sm:$0xff]
        %v2793 = vld [vmem:[#allocation7 + $0x380] sm:$0xff]
        %v2794 = vld [vmem:[#allocation7 + $0x388] sm:$0xff]
        %v2795 = vld [vmem:[#allocation7 + $0x390] sm:$0xff]
        %v2796 = vld [vmem:[#allocation7 + $0x398] sm:$0xff]
        %v2797 = vld [vmem:[#allocation7 + $0x3a0] sm:$0xff]
        %v2798 = vld [vmem:[#allocation7 + $0x3a8] sm:$0xff]
        %v2799 = vld [vmem:[#allocation7 + $0x3b0] sm:$0xff]
        %v2800 = vld [vmem:[#allocation7 + $0x3b8] sm:$0xff]
        %v2801 = vld [vmem:[#allocation7 + $0x3c0] sm:$0xff]
        %v2802 = vld [vmem:[#allocation7 + $0x3c8] sm:$0xff]
        %v2803 = vld [vmem:[#allocation7 + $0x3d0] sm:$0xff]
        %v2804 = vld [vmem:[#allocation7 + $0x3d8] sm:$0xff]
        %v2805 = vld [vmem:[#allocation7 + $0x3e0] sm:$0xff]
        %v2806 = vld [vmem:[#allocation7 + $0x3e8] sm:$0xff]
        %v2807 = vld [vmem:[#allocation7 + $0x3f0] sm:$0xff]
        %v2808 = vld [vmem:[#allocation7 + $0x3f8] sm:$0xff]
        %v2809 = vld [vmem:[#allocation7 + $0x400] sm:$0xff]
        %v2810 = vld [vmem:[#allocation7 + $0x408] sm:$0xff]
        %v2811 = vld [vmem:[#allocation7 + $0x410] sm:$0xff]
        %v2812 = vld [vmem:[#allocation7 + $0x418] sm:$0xff]
        %v2813 = vld [vmem:[#allocation7 + $0x420] sm:$0xff]
        %v2814 = vld [vmem:[#allocation7 + $0x428] sm:$0xff]
        %v2815 = vld [vmem:[#allocation7 + $0x430] sm:$0xff]
        %v2816 = vld [vmem:[#allocation7 + $0x438] sm:$0xff]
        %v2817 = vld [vmem:[#allocation7 + $0x440] sm:$0xff]
        %v2818 = vld [vmem:[#allocation7 + $0x448] sm:$0xff]
        %v2819 = vld [vmem:[#allocation7 + $0x450] sm:$0xff]
        %v2820 = vld [vmem:[#allocation7 + $0x458] sm:$0xff]
        %v2821 = vld [vmem:[#allocation7 + $0x460] sm:$0xff]
        %v2822 = vld [vmem:[#allocation7 + $0x468] sm:$0xff]
        %v2823 = vld [vmem:[#allocation7 + $0x470] sm:$0xff]
        %v2824 = vld [vmem:[#allocation7 + $0x478] sm:$0xff]
        %v2825 = vld [vmem:[#allocation7 + $0x480] sm:$0xff]
        %v2826 = vld [vmem:[#allocation7 + $0x488] sm:$0xff]
        %v2827 = vld [vmem:[#allocation7 + $0x490] sm:$0xff]
        %v2828 = vld [vmem:[#allocation7 + $0x498] sm:$0xff]
        %v2829 = vld [vmem:[#allocation7 + $0x4a0] sm:$0xff]
        %v2830 = vld [vmem:[#allocation7 + $0x4a8] sm:$0xff]
        %v2831 = vld [vmem:[#allocation7 + $0x4b0] sm:$0xff]
        %v2832 = vld [vmem:[#allocation7 + $0x4b8] sm:$0xff]
        %v2833 = vld [vmem:[#allocation7 + $0x4c0] sm:$0xff]
        %v2834 = vld [vmem:[#allocation7 + $0x4c8] sm:$0xff]
        %v2835 = vld [vmem:[#allocation7 + $0x4d0] sm:$0xff]
        %v2836 = vld [vmem:[#allocation7 + $0x4d8] sm:$0xff]
        %v2837 = vld [vmem:[#allocation7 + $0x4e0] sm:$0xff]
        %v2838 = vld [vmem:[#allocation7 + $0x4e8] sm:$0xff]
        %v2839 = vld [vmem:[#allocation7 + $0x4f0] sm:$0xff]
        %v2840 = vld [vmem:[#allocation7 + $0x4f8] sm:$0xff]
        %v2841 = vld [vmem:[#allocation7 + $0x500] sm:$0xff]
        %v2842 = vld [vmem:[#allocation7 + $0x508] sm:$0xff]
        %v2843 = vld [vmem:[#allocation7 + $0x510] sm:$0xff]
        %v2844 = vld [vmem:[#allocation7 + $0x518] sm:$0xff]
        %v2845 = vld [vmem:[#allocation7 + $0x520] sm:$0xff]
        %v2846 = vld [vmem:[#allocation7 + $0x528] sm:$0xff]
        %v2847 = vld [vmem:[#allocation7 + $0x530] sm:$0xff]
        %v2848 = vld [vmem:[#allocation7 + $0x538] sm:$0xff]
        %v2849 = vld [vmem:[#allocation7 + $0x540] sm:$0xff]
        %v2850 = vld [vmem:[#allocation7 + $0x548] sm:$0xff]
        %v2851 = vld [vmem:[#allocation7 + $0x550] sm:$0xff]
        %v2852 = vld [vmem:[#allocation7 + $0x558] sm:$0xff]
        %v2853 = vld [vmem:[#allocation7 + $0x560] sm:$0xff]
        %v2854 = vld [vmem:[#allocation7 + $0x568] sm:$0xff]
        %v2855 = vld [vmem:[#allocation7 + $0x570] sm:$0xff]
        %v2856 = vld [vmem:[#allocation7 + $0x578] sm:$0xff]
        %v2857 = vld [vmem:[#allocation7 + $0x580] sm:$0xff]
        %v2858 = vld [vmem:[#allocation7 + $0x588] sm:$0xff]
        %v2859 = vld [vmem:[#allocation7 + $0x590] sm:$0xff]
        %v2860 = vld [vmem:[#allocation7 + $0x598] sm:$0xff]
        %v2861 = vld [vmem:[#allocation7 + $0x5a0] sm:$0xff]
        %v2862 = vld [vmem:[#allocation7 + $0x5a8] sm:$0xff]
        %v2863 = vld [vmem:[#allocation7 + $0x5b0] sm:$0xff]
        %v2864 = vld [vmem:[#allocation7 + $0x5b8] sm:$0xff]
        %v2865 = vld [vmem:[#allocation7 + $0x5c0] sm:$0xff]
        %v2866 = vld [vmem:[#allocation7 + $0x5c8] sm:$0xff]
        %v2867 = vld [vmem:[#allocation7 + $0x5d0] sm:$0xff]
        %v2868 = vld [vmem:[#allocation7 + $0x5d8] sm:$0xff]
        %v2869 = vld [vmem:[#allocation7 + $0x5e0] sm:$0xff]
        %v2870 = vld [vmem:[#allocation7 + $0x5e8] sm:$0xff]
        %v2871 = vld [vmem:[#allocation7 + $0x5f0] sm:$0xff]
        %v2872 = vld [vmem:[#allocation7 + $0x5f8] sm:$0xff]
        %v2873 = vld [vmem:[#allocation7 + $0x600] sm:$0xff]
        %v2874 = vld [vmem:[#allocation7 + $0x608] sm:$0xff]
        %v2875 = vld [vmem:[#allocation7 + $0x610] sm:$0xff]
        %v2876 = vld [vmem:[#allocation7 + $0x618] sm:$0xff]
        %v2877 = vld [vmem:[#allocation7 + $0x620] sm:$0xff]
        %v2878 = vld [vmem:[#allocation7 + $0x628] sm:$0xff]
        %v2879 = vld [vmem:[#allocation7 + $0x630] sm:$0xff]
        %v2880 = vld [vmem:[#allocation7 + $0x638] sm:$0xff]
        %v2881 = vld [vmem:[#allocation7 + $0x640] sm:$0xff]
        %v2882 = vld [vmem:[#allocation7 + $0x648] sm:$0xff]
        %v2883 = vld [vmem:[#allocation7 + $0x650] sm:$0xff]
        %v2884 = vld [vmem:[#allocation7 + $0x658] sm:$0xff]
        %v2885 = vld [vmem:[#allocation7 + $0x660] sm:$0xff]
        %v2886 = vld [vmem:[#allocation7 + $0x668] sm:$0xff]
        %v2887 = vld [vmem:[#allocation7 + $0x670] sm:$0xff]
        %v2888 = vld [vmem:[#allocation7 + $0x678] sm:$0xff]
        %v2889 = vld [vmem:[#allocation7 + $0x680] sm:$0xff]
        %v2890 = vld [vmem:[#allocation7 + $0x688] sm:$0xff]
        %v2891 = vld [vmem:[#allocation7 + $0x690] sm:$0xff]
        %v2892 = vld [vmem:[#allocation7 + $0x698] sm:$0xff]
        %v2893 = vld [vmem:[#allocation7 + $0x6a0] sm:$0xff]
        %v2894 = vld [vmem:[#allocation7 + $0x6a8] sm:$0xff]
        %v2895 = vld [vmem:[#allocation7 + $0x6b0] sm:$0xff]
        %v2896 = vld [vmem:[#allocation7 + $0x6b8] sm:$0xff]
        %v2897 = vld [vmem:[#allocation7 + $0x6c0] sm:$0xff]
        %v2898 = vld [vmem:[#allocation7 + $0x6c8] sm:$0xff]
        %v2899 = vld [vmem:[#allocation7 + $0x6d0] sm:$0xff]
        %v2900 = vld [vmem:[#allocation7 + $0x6d8] sm:$0xff]
        %v2901 = vld [vmem:[#allocation7 + $0x6e0] sm:$0xff]
        %v2902 = vld [vmem:[#allocation7 + $0x6e8] sm:$0xff]
        %v2903 = vld [vmem:[#allocation7 + $0x6f0] sm:$0xff]
        %v2904 = vld [vmem:[#allocation7 + $0x6f8] sm:$0xff]
        %v2905 = vld [vmem:[#allocation7 + $0x700] sm:$0xff]
        %v2906 = vld [vmem:[#allocation7 + $0x708] sm:$0xff]
        %v2907 = vld [vmem:[#allocation7 + $0x710] sm:$0xff]
        %v2908 = vld [vmem:[#allocation7 + $0x718] sm:$0xff]
        %v2909 = vld [vmem:[#allocation7 + $0x720] sm:$0xff]
        %v2910 = vld [vmem:[#allocation7 + $0x728] sm:$0xff]
        %v2911 = vld [vmem:[#allocation7 + $0x730] sm:$0xff]
        %v2912 = vld [vmem:[#allocation7 + $0x738] sm:$0xff]
        %v2913 = vld [vmem:[#allocation7 + $0x740] sm:$0xff]
        %v2914 = vld [vmem:[#allocation7 + $0x748] sm:$0xff]
        %v2915 = vld [vmem:[#allocation7 + $0x750] sm:$0xff]
        %v2916 = vld [vmem:[#allocation7 + $0x758] sm:$0xff]
        %v2917 = vld [vmem:[#allocation7 + $0x760] sm:$0xff]
        %v2918 = vld [vmem:[#allocation7 + $0x768] sm:$0xff]
        %v2919 = vld [vmem:[#allocation7 + $0x770] sm:$0xff]
        %v2920 = vld [vmem:[#allocation7 + $0x778] sm:$0xff]
        %v2921 = vld [vmem:[#allocation7 + $0x780] sm:$0xff]
        %v2922 = vld [vmem:[#allocation7 + $0x788] sm:$0xff]
        %v2923 = vld [vmem:[#allocation7 + $0x790] sm:$0xff]
        %v2924 = vld [vmem:[#allocation7 + $0x798] sm:$0xff]
        %v2925 = vld [vmem:[#allocation7 + $0x7a0] sm:$0xff]
        %v2926 = vld [vmem:[#allocation7 + $0x7a8] sm:$0xff]
        %v2927 = vld [vmem:[#allocation7 + $0x7b0] sm:$0xff]
        %v2928 = vld [vmem:[#allocation7 + $0x7b8] sm:$0xff]
        %v2929 = vld [vmem:[#allocation7 + $0x7c0] sm:$0xff]
        %v2930 = vld [vmem:[#allocation7 + $0x7c8] sm:$0xff]
        %v2931 = vld [vmem:[#allocation7 + $0x7d0] sm:$0xff]
        %v2932 = vld [vmem:[#allocation7 + $0x7d8] sm:$0xff]
        %v2933 = vld [vmem:[#allocation7 + $0x7e0] sm:$0xff]
        %v2934 = vld [vmem:[#allocation7 + $0x7e8] sm:$0xff]
        %v2935 = vld [vmem:[#allocation7 + $0x7f0] sm:$0xff]
        %v2936 = vld [vmem:[#allocation7 + $0x7f8] sm:$0xff]
        %2937 = vmatprep.subr.mxu0 %v2682
        %2938 = vmatpush1.msra.mxu0 %v2681
        %2939 = vmatprep.subr.mxu0 %v2690
        %2940 = vmatpush1.msra.mxu0 %v2689
        %2941 = vmatprep.subr.mxu0 %v2698
        %2942 = vmatpush1.msra.mxu0 %v2697
        %2943 = vmatprep.subr.mxu0 %v2706
        %2944 = vmatpush1.msra.mxu0 %v2705
        %2945 = vmatprep.subr.mxu0 %v2714
        %2946 = vmatpush1.msra.mxu0 %v2713
        %2947 = vmatprep.subr.mxu0 %v2722
        %2948 = vmatpush1.msra.mxu0 %v2721
        %2949 = vmatprep.subr.mxu0 %v2730
        %2950 = vmatpush1.msra.mxu0 %v2729
        %2951 = vmatprep.subr.mxu0 %v2738
        %2952 = vmatpush1.msra.mxu0 %v2737
        %2953 = vmatprep.subr.mxu0 %v2746
        %2954 = vmatpush1.msra.mxu0 %v2745
        %2955 = vmatprep.subr.mxu0 %v2754
        %2956 = vmatpush1.msra.mxu0 %v2753
        %2957 = vmatprep.subr.mxu0 %v2762
        %2958 = vmatpush1.msra.mxu0 %v2761
        %2959 = vmatprep.subr.mxu0 %v2770
        %2960 = vmatpush1.msra.mxu0 %v2769
        %2961 = vmatprep.subr.mxu0 %v2778
        %2962 = vmatpush1.msra.mxu0 %v2777
        %2963 = vmatprep.subr.mxu0 %v2786
        %2964 = vmatpush1.msra.mxu0 %v2785
        %2965 = vmatprep.subr.mxu0 %v2794
        %2966 = vmatpush1.msra.mxu0 %v2793
        %2967 = vmatprep.subr.mxu0 %v2802
        %2968 = vmatpush1.msra.mxu0 %v2801
        %2969 = vmatprep.subr.mxu0 %v2810
        %2970 = vmatpush1.msra.mxu0 %v2809
        %2971 = vmatprep.subr.mxu0 %v2818
        %2972 = vmatpush1.msra.mxu0 %v2817
        %2973 = vmatprep.subr.mxu0 %v2826
        %2974 = vmatpush1.msra.mxu0 %v2825
        %2975 = vmatprep.subr.mxu0 %v2834
        %2976 = vmatpush1.msra.mxu0 %v2833
        %2977 = vmatprep.subr.mxu0 %v2842
        %2978 = vmatpush1.msra.mxu0 %v2841
        %2979 = vmatprep.subr.mxu0 %v2850
        %2980 = vmatpush1.msra.mxu0 %v2849
        %2981 = vmatprep.subr.mxu0 %v2858
        %2982 = vmatpush1.msra.mxu0 %v2857
        %2983 = vmatprep.subr.mxu0 %v2866
        %2984 = vmatpush1.msra.mxu0 %v2865
        %2985 = vmatprep.subr.mxu0 %v2874
        %2986 = vmatpush1.msra.mxu0 %v2873
        %2987 = vmatprep.subr.mxu0 %v2882
        %2988 = vmatpush1.msra.mxu0 %v2881
        %2989 = vmatprep.subr.mxu0 %v2890
        %2990 = vmatpush1.msra.mxu0 %v2889
        %2991 = vmatprep.subr.mxu0 %v2898
        %2992 = vmatpush1.msra.mxu0 %v2897
        %2993 = vmatprep.subr.mxu0 %v2906
        %2994 = vmatpush1.msra.mxu0 %v2905
        %2995 = vmatprep.subr.mxu0 %v2914
        %2996 = vmatpush1.msra.mxu0 %v2913
        %2997 = vmatprep.subr.mxu0 %v2922
        %2998 = vmatpush1.msra.mxu0 %v2921
        %2999 = vmatprep.subr.mxu0 %v2930
        %3000 = vmatpush1.msra.mxu0 %v2929
        %3001 = vmatprep.mubr.f32.mxu0 %v2669
        %3002 = vmatmul.mubr.f32.gmra.mrb[0].mxu0 %v2668
        %v3003 = vpop.f32.mrb[0].mxu0
        %v3004 = vadd.f32 0.0, %v3003
        %v3005 = vpop.f32.mrb[0].mxu0
        %v3006 = vadd.f32 0.0, %v3005
        %3007 = vdwg.mxu0
        %3008 = vmatprep.subr.mxu0 %v2684
        %3009 = vmatpush1.msra.mxu0 %v2683
        %3010 = vmatprep.subr.mxu0 %v2692
        %3011 = vmatpush1.msra.mxu0 %v2691
        %3012 = vmatprep.subr.mxu0 %v2700
        %3013 = vmatpush1.msra.mxu0 %v2699
        %3014 = vmatprep.subr.mxu0 %v2708
        %3015 = vmatpush1.msra.mxu0 %v2707
        %3016 = vmatprep.subr.mxu0 %v2716
        %3017 = vmatpush1.msra.mxu0 %v2715
        %3018 = vmatprep.subr.mxu0 %v2724
        %3019 = vmatpush1.msra.mxu0 %v2723
        %3020 = vmatprep.subr.mxu0 %v2732
        %3021 = vmatpush1.msra.mxu0 %v2731
        %3022 = vmatprep.subr.mxu0 %v2740
        %3023 = vmatpush1.msra.mxu0 %v2739
        %3024 = vmatprep.subr.mxu0 %v2748
        %3025 = vmatpush1.msra.mxu0 %v2747
        %3026 = vmatprep.subr.mxu0 %v2756
        %3027 = vmatpush1.msra.mxu0 %v2755
        %3028 = vmatprep.subr.mxu0 %v2764
        %3029 = vmatpush1.msra.mxu0 %v2763
        %3030 = vmatprep.subr.mxu0 %v2772
        %3031 = vmatpush1.msra.mxu0 %v2771
        %3032 = vmatprep.subr.mxu0 %v2780
        %3033 = vmatpush1.msra.mxu0 %v2779
        %3034 = vmatprep.subr.mxu0 %v2788
        %3035 = vmatpush1.msra.mxu0 %v2787
        %3036 = vmatprep.subr.mxu0 %v2796
        %3037 = vmatpush1.msra.mxu0 %v2795
        %3038 = vmatprep.subr.mxu0 %v2804
        %3039 = vmatpush1.msra.mxu0 %v2803
        %3040 = vmatprep.subr.mxu0 %v2812
        %3041 = vmatpush1.msra.mxu0 %v2811
        %3042 = vmatprep.subr.mxu0 %v2820
        %3043 = vmatpush1.msra.mxu0 %v2819
        %3044 = vmatprep.subr.mxu0 %v2828
        %3045 = vmatpush1.msra.mxu0 %v2827
        %3046 = vmatprep.subr.mxu0 %v2836
        %3047 = vmatpush1.msra.mxu0 %v2835
        %3048 = vmatprep.subr.mxu0 %v2844
        %3049 = vmatpush1.msra.mxu0 %v2843
        %3050 = vmatprep.subr.mxu0 %v2852
        %3051 = vmatpush1.msra.mxu0 %v2851
        %3052 = vmatprep.subr.mxu0 %v2860
        %3053 = vmatpush1.msra.mxu0 %v2859
        %3054 = vmatprep.subr.mxu0 %v2868
        %3055 = vmatpush1.msra.mxu0 %v2867
        %3056 = vmatprep.subr.mxu0 %v2876
        %3057 = vmatpush1.msra.mxu0 %v2875
        %3058 = vmatprep.subr.mxu0 %v2884
        %3059 = vmatpush1.msra.mxu0 %v2883
        %3060 = vmatprep.subr.mxu0 %v2892
        %3061 = vmatpush1.msra.mxu0 %v2891
        %3062 = vmatprep.subr.mxu0 %v2900
        %3063 = vmatpush1.msra.mxu0 %v2899
        %3064 = vmatprep.subr.mxu0 %v2908
        %3065 = vmatpush1.msra.mxu0 %v2907
        %3066 = vmatprep.subr.mxu0 %v2916
        %3067 = vmatpush1.msra.mxu0 %v2915
        %3068 = vmatprep.subr.mxu0 %v2924
        %3069 = vmatpush1.msra.mxu0 %v2923
        %3070 = vmatprep.subr.mxu0 %v2932
        %3071 = vmatpush1.msra.mxu0 %v2931
        %3072 = vmatprep.mubr.f32.mxu0 %v2669
        %3073 = vmatmul.mubr.f32.gmra.mrb[0].mxu0 %v2668
        %v3074 = vpop.f32.mrb[0].mxu0
        %v3075 = vadd.f32 0.0, %v3074
        %v3076 = vpop.f32.mrb[0].mxu0
        %v3077 = vadd.f32 0.0, %v3076
        %3078 = vdwg.mxu0
        %3079 = vmatprep.subr.mxu0 %v2686
        %3080 = vmatpush1.msra.mxu0 %v2685
        %3081 = vmatprep.subr.mxu0 %v2694
        %3082 = vmatpush1.msra.mxu0 %v2693
        %3083 = vmatprep.subr.mxu0 %v2702
        %3084 = vmatpush1.msra.mxu0 %v2701
        %3085 = vmatprep.subr.mxu0 %v2710
        %3086 = vmatpush1.msra.mxu0 %v2709
        %3087 = vmatprep.subr.mxu0 %v2718
        %3088 = vmatpush1.msra.mxu0 %v2717
        %3089 = vmatprep.subr.mxu0 %v2726
        %3090 = vmatpush1.msra.mxu0 %v2725
        %3091 = vmatprep.subr.mxu0 %v2734
        %3092 = vmatpush1.msra.mxu0 %v2733
        %3093 = vmatprep.subr.mxu0 %v2742
        %3094 = vmatpush1.msra.mxu0 %v2741
        %3095 = vmatprep.subr.mxu0 %v2750
        %3096 = vmatpush1.msra.mxu0 %v2749
        %3097 = vmatprep.subr.mxu0 %v2758
        %3098 = vmatpush1.msra.mxu0 %v2757
        %3099 = vmatprep.subr.mxu0 %v2766
        %3100 = vmatpush1.msra.mxu0 %v2765
        %3101 = vmatprep.subr.mxu0 %v2774
        %3102 = vmatpush1.msra.mxu0 %v2773
        %3103 = vmatprep.subr.mxu0 %v2782
        %3104 = vmatpush1.msra.mxu0 %v2781
        %3105 = vmatprep.subr.mxu0 %v2790
        %3106 = vmatpush1.msra.mxu0 %v2789
        %3107 = vmatprep.subr.mxu0 %v2798
        %3108 = vmatpush1.msra.mxu0 %v2797
        %3109 = vmatprep.subr.mxu0 %v2806
        %3110 = vmatpush1.msra.mxu0 %v2805
        %3111 = vmatprep.subr.mxu0 %v2814
        %3112 = vmatpush1.msra.mxu0 %v2813
        %3113 = vmatprep.subr.mxu0 %v2822
        %3114 = vmatpush1.msra.mxu0 %v2821
        %3115 = vmatprep.subr.mxu0 %v2830
        %3116 = vmatpush1.msra.mxu0 %v2829
        %3117 = vmatprep.subr.mxu0 %v2838
        %3118 = vmatpush1.msra.mxu0 %v2837
        %3119 = vmatprep.subr.mxu0 %v2846
        %3120 = vmatpush1.msra.mxu0 %v2845
        %3121 = vmatprep.subr.mxu0 %v2854
        %3122 = vmatpush1.msra.mxu0 %v2853
        %3123 = vmatprep.subr.mxu0 %v2862
        %3124 = vmatpush1.msra.mxu0 %v2861
        %3125 = vmatprep.subr.mxu0 %v2870
        %3126 = vmatpush1.msra.mxu0 %v2869
        %3127 = vmatprep.subr.mxu0 %v2878
        %3128 = vmatpush1.msra.mxu0 %v2877
        %3129 = vmatprep.subr.mxu0 %v2886
        %3130 = vmatpush1.msra.mxu0 %v2885
        %3131 = vmatprep.subr.mxu0 %v2894
        %3132 = vmatpush1.msra.mxu0 %v2893
        %3133 = vmatprep.subr.mxu0 %v2902
        %3134 = vmatpush1.msra.mxu0 %v2901
        %3135 = vmatprep.subr.mxu0 %v2910
        %3136 = vmatpush1.msra.mxu0 %v2909
        %3137 = vmatprep.subr.mxu0 %v2918
        %3138 = vmatpush1.msra.mxu0 %v2917
        %3139 = vmatprep.subr.mxu0 %v2926
        %3140 = vmatpush1.msra.mxu0 %v2925
        %3141 = vmatprep.subr.mxu0 %v2934
        %3142 = vmatpush1.msra.mxu0 %v2933
        %3143 = vmatprep.mubr.f32.mxu0 %v2669
        %3144 = vmatmul.mubr.f32.gmra.mrb[0].mxu0 %v2668
        %v3145 = vpop.f32.mrb[0].mxu0
        %v3146 = vadd.f32 0.0, %v3145
        %v3147 = vpop.f32.mrb[0].mxu0
        %v3148 = vadd.f32 0.0, %v3147
        %3149 = vdwg.mxu0
        %3150 = vmatprep.subr.mxu0 %v2688
        %3151 = vmatpush1.msra.mxu0 %v2687
        %3152 = vmatprep.subr.mxu0 %v2696
        %3153 = vmatpush1.msra.mxu0 %v2695
        %3154 = vmatprep.subr.mxu0 %v2704
        %3155 = vmatpush1.msra.mxu0 %v2703
        %3156 = vmatprep.subr.mxu0 %v2712
        %3157 = vmatpush1.msra.mxu0 %v2711
        %3158 = vmatprep.subr.mxu0 %v2720
        %3159 = vmatpush1.msra.mxu0 %v2719
        %3160 = vmatprep.subr.mxu0 %v2728
        %3161 = vmatpush1.msra.mxu0 %v2727
        %3162 = vmatprep.subr.mxu0 %v2736
        %3163 = vmatpush1.msra.mxu0 %v2735
        %3164 = vmatprep.subr.mxu0 %v2744
        %3165 = vmatpush1.msra.mxu0 %v2743
        %3166 = vmatprep.subr.mxu0 %v2752
        %3167 = vmatpush1.msra.mxu0 %v2751
        %3168 = vmatprep.subr.mxu0 %v2760
        %3169 = vmatpush1.msra.mxu0 %v2759
        %3170 = vmatprep.subr.mxu0 %v2768
        %3171 = vmatpush1.msra.mxu0 %v2767
        %3172 = vmatprep.subr.mxu0 %v2776
        %3173 = vmatpush1.msra.mxu0 %v2775
        %3174 = vmatprep.subr.mxu0 %v2784
        %3175 = vmatpush1.msra.mxu0 %v2783
        %3176 = vmatprep.subr.mxu0 %v2792
        %3177 = vmatpush1.msra.mxu0 %v2791
        %3178 = vmatprep.subr.mxu0 %v2800
        %3179 = vmatpush1.msra.mxu0 %v2799
        %3180 = vmatprep.subr.mxu0 %v2808
        %3181 = vmatpush1.msra.mxu0 %v2807
        %3182 = vmatprep.subr.mxu0 %v2816
        %3183 = vmatpush1.msra.mxu0 %v2815
        %3184 = vmatprep.subr.mxu0 %v2824
        %3185 = vmatpush1.msra.mxu0 %v2823
        %3186 = vmatprep.subr.mxu0 %v2832
        %3187 = vmatpush1.msra.mxu0 %v2831
        %3188 = vmatprep.subr.mxu0 %v2840
        %3189 = vmatpush1.msra.mxu0 %v2839
        %3190 = vmatprep.subr.mxu0 %v2848
        %3191 = vmatpush1.msra.mxu0 %v2847
        %3192 = vmatprep.subr.mxu0 %v2856
        %3193 = vmatpush1.msra.mxu0 %v2855
        %3194 = vmatprep.subr.mxu0 %v2864
        %3195 = vmatpush1.msra.mxu0 %v2863
        %3196 = vmatprep.subr.mxu0 %v2872
        %3197 = vmatpush1.msra.mxu0 %v2871
        %3198 = vmatprep.subr.mxu0 %v2880
        %3199 = vmatpush1.msra.mxu0 %v2879
        %3200 = vmatprep.subr.mxu0 %v2888
        %3201 = vmatpush1.msra.mxu0 %v2887
        %3202 = vmatprep.subr.mxu0 %v2896
        %3203 = vmatpush1.msra.mxu0 %v2895
        %3204 = vmatprep.subr.mxu0 %v2904
        %3205 = vmatpush1.msra.mxu0 %v2903
        %3206 = vmatprep.subr.mxu0 %v2912
        %3207 = vmatpush1.msra.mxu0 %v2911
        %3208 = vmatprep.subr.mxu0 %v2920
        %3209 = vmatpush1.msra.mxu0 %v2919
        %3210 = vmatprep.subr.mxu0 %v2928
        %3211 = vmatpush1.msra.mxu0 %v2927
        %3212 = vmatprep.subr.mxu0 %v2936
        %3213 = vmatpush1.msra.mxu0 %v2935
        %3214 = vmatprep.mubr.f32.mxu0 %v2669
        %3215 = vmatmul.mubr.f32.gmra.mrb[0].mxu0 %v2668
        %v3216 = vpop.f32.mrb[0].mxu0
        %v3217 = vadd.f32 0.0, %v3216
        %v3218 = vpop.f32.mrb[0].mxu0
        %v3219 = vadd.f32 0.0, %v3218
        %3220 = vdwg.mxu0
        %v3221 = vadd.f32 %v2673, %v3004
        %v3222 = vadd.f32 %v2674, %v3006
        %v3223 = vadd.f32 %v2675, %v3075
        %v3224 = vadd.f32 %v2676, %v3077
        %v3225 = vadd.f32 %v2677, %v3146
        %v3226 = vadd.f32 %v2678, %v3148
        %v3227 = vadd.f32 %v2679, %v3217
        %v3228 = vadd.f32 %v2680, %v3219
        %v3229 = vxor.u32 %v3221, 2147483648
        %v3230 = vxor.u32 %v3222, 2147483648
        %v3231 = vmul.f32 %v3229, 1.442695
        %v3232 = vpow.pop %v3231
        %v3233 = vmul.f32 %v3230, 1.442695
        %v3234 = vpow.pop %v3233
        %v3235 = vadd.f32 %v3232, 1.0
        %v3236 = vadd.f32 %v3234, 1.0
        %v3237 = vrcp.pop %v3235
        %v3238 = vmul.f32 1.0, %v3237
        %v3239 = vrcp.pop %v3236
        %v3240 = vmul.f32 1.0, %v3239
        %v3241 = vxor.u32 %v3223, 2147483648
        %v3242 = vxor.u32 %v3224, 2147483648
        %v3243 = vmul.f32 %v3241, 1.442695
        %v3244 = vpow.pop %v3243
        %v3245 = vmul.f32 %v3242, 1.442695
        %v3246 = vpow.pop %v3245
        %v3247 = vadd.f32 %v3244, 1.0
        %v3248 = vadd.f32 %v3246, 1.0
        %v3249 = vrcp.pop %v3247
        %v3250 = vmul.f32 1.0, %v3249
        %v3251 = vrcp.pop %v3248
        %v3252 = vmul.f32 1.0, %v3251
        %v3253 = vtanh.pop %v3225
        %v3254 = vtanh.pop %v3226
        %v3255 = vxor.u32 %v3227, 2147483648
        %v3256 = vxor.u32 %v3228, 2147483648
        %v3257 = vmul.f32 %v3255, 1.442695
        %v3258 = vpow.pop %v3257
        %v3259 = vmul.f32 %v3256, 1.442695
        %v3260 = vpow.pop %v3259
        %v3261 = vadd.f32 %v3258, 1.0
        %v3262 = vadd.f32 %v3260, 1.0
        %v3263 = vrcp.pop %v3261
        %v3264 = vmul.f32 1.0, %v3263
        %v3265 = vrcp.pop %v3262
        %v3266 = vmul.f32 1.0, %v3265
        %v3267 = vmul.f32 %v3250, %v2670
        %v3268 = vmul.f32 %v3252, %v2671
        %v3269 = vmul.f32 %v3238, %v3253
        %v3270 = vmul.f32 %v3240, %v3254
        %v3271 = vadd.f32 %v3267, %v3269
        %v3272 = vadd.f32 %v3268, %v3270
        %v3273 = vtanh.pop %v3271
        %v3274 = vtanh.pop %v3272
        %v3275 = vmul.f32 %v3264, %v3273
        %v3276 = vmul.f32 %v3266, %v3274
        %3277 = vst [vmem:[#allocation3] sm:$0xff] %v3271
        %3278 = vst [vmem:[#allocation3 + $0x8] sm:$0xff] %v3272
        %3279 = vst [vmem:[#allocation2] sm:$0xff] %v3275
        %3280 = vst [vmem:[#allocation2 + $0x8] sm:$0xff] %v3276
        %s3281 = scalar_lea.vmem %s195, 64 [#allocation9]
        %3282 = vst [vmem:[%s3281] sm:$0xff] %v3275
        %3283 = vst [vmem:[%s3281 + $0x8] sm:$0xff] %v3276
        %v3284 = vld [vmem:[#allocation2] sm:$0xff]
        %v3285 = vld [vmem:[#allocation2 + $0x8] sm:$0xff]
        %v3286 = vld [vmem:[#allocation3] sm:$0xff]
        %v3287 = vld [vmem:[#allocation3 + $0x8] sm:$0xff]
        %s3288 = scalar_lea.vmem %s171, 320 [#allocation4]
        %v3289 = vld [vmem:[%s3288] sm:$0xff]
        %v3290 = vld [vmem:[%s3288 + $0x8] sm:$0xff]
        %v3291 = vld [vmem:[%s3288 + $0x10] sm:$0xff]
        %v3292 = vld [vmem:[%s3288 + $0x18] sm:$0xff]
        %v3293 = vld [vmem:[%s3288 + $0x20] sm:$0xff]
        %v3294 = vld [vmem:[%s3288 + $0x28] sm:$0xff]
        %v3295 = vld [vmem:[%s3288 + $0x30] sm:$0xff]
        %v3296 = vld [vmem:[%s3288 + $0x38] sm:$0xff]
        %v3297 = vld [vmem:[#allocation7] sm:$0xff]
        %v3298 = vld [vmem:[#allocation7 + $0x8] sm:$0xff]
        %v3299 = vld [vmem:[#allocation7 + $0x10] sm:$0xff]
        %v3300 = vld [vmem:[#allocation7 + $0x18] sm:$0xff]
        %v3301 = vld [vmem:[#allocation7 + $0x20] sm:$0xff]
        %v3302 = vld [vmem:[#allocation7 + $0x28] sm:$0xff]
        %v3303 = vld [vmem:[#allocation7 + $0x30] sm:$0xff]
        %v3304 = vld [vmem:[#allocation7 + $0x38] sm:$0xff]
        %v3305 = vld [vmem:[#allocation7 + $0x40] sm:$0xff]
        %v3306 = vld [vmem:[#allocation7 + $0x48] sm:$0xff]
        %v3307 = vld [vmem:[#allocation7 + $0x50] sm:$0xff]
        %v3308 = vld [vmem:[#allocation7 + $0x58] sm:$0xff]
        %v3309 = vld [vmem:[#allocation7 + $0x60] sm:$0xff]
        %v3310 = vld [vmem:[#allocation7 + $0x68] sm:$0xff]
        %v3311 = vld [vmem:[#allocation7 + $0x70] sm:$0xff]
        %v3312 = vld [vmem:[#allocation7 + $0x78] sm:$0xff]
        %v3313 = vld [vmem:[#allocation7 + $0x80] sm:$0xff]
        %v3314 = vld [vmem:[#allocation7 + $0x88] sm:$0xff]
        %v3315 = vld [vmem:[#allocation7 + $0x90] sm:$0xff]
        %v3316 = vld [vmem:[#allocation7 + $0x98] sm:$0xff]
        %v3317 = vld [vmem:[#allocation7 + $0xa0] sm:$0xff]
        %v3318 = vld [vmem:[#allocation7 + $0xa8] sm:$0xff]
        %v3319 = vld [vmem:[#allocation7 + $0xb0] sm:$0xff]
        %v3320 = vld [vmem:[#allocation7 + $0xb8] sm:$0xff]
        %v3321 = vld [vmem:[#allocation7 + $0xc0] sm:$0xff]
        %v3322 = vld [vmem:[#allocation7 + $0xc8] sm:$0xff]
        %v3323 = vld [vmem:[#allocation7 + $0xd0] sm:$0xff]
        %v3324 = vld [vmem:[#allocation7 + $0xd8] sm:$0xff]
        %v3325 = vld [vmem:[#allocation7 + $0xe0] sm:$0xff]
        %v3326 = vld [vmem:[#allocation7 + $0xe8] sm:$0xff]
        %v3327 = vld [vmem:[#allocation7 + $0xf0] sm:$0xff]
        %v3328 = vld [vmem:[#allocation7 + $0xf8] sm:$0xff]
        %v3329 = vld [vmem:[#allocation7 + $0x100] sm:$0xff]
        %v3330 = vld [vmem:[#allocation7 + $0x108] sm:$0xff]
        %v3331 = vld [vmem:[#allocation7 + $0x110] sm:$0xff]
        %v3332 = vld [vmem:[#allocation7 + $0x118] sm:$0xff]
        %v3333 = vld [vmem:[#allocation7 + $0x120] sm:$0xff]
        %v3334 = vld [vmem:[#allocation7 + $0x128] sm:$0xff]
        %v3335 = vld [vmem:[#allocation7 + $0x130] sm:$0xff]
        %v3336 = vld [vmem:[#allocation7 + $0x138] sm:$0xff]
        %v3337 = vld [vmem:[#allocation7 + $0x140] sm:$0xff]
        %v3338 = vld [vmem:[#allocation7 + $0x148] sm:$0xff]
        %v3339 = vld [vmem:[#allocation7 + $0x150] sm:$0xff]
        %v3340 = vld [vmem:[#allocation7 + $0x158] sm:$0xff]
        %v3341 = vld [vmem:[#allocation7 + $0x160] sm:$0xff]
        %v3342 = vld [vmem:[#allocation7 + $0x168] sm:$0xff]
        %v3343 = vld [vmem:[#allocation7 + $0x170] sm:$0xff]
        %v3344 = vld [vmem:[#allocation7 + $0x178] sm:$0xff]
        %v3345 = vld [vmem:[#allocation7 + $0x180] sm:$0xff]
        %v3346 = vld [vmem:[#allocation7 + $0x188] sm:$0xff]
        %v3347 = vld [vmem:[#allocation7 + $0x190] sm:$0xff]
        %v3348 = vld [vmem:[#allocation7 + $0x198] sm:$0xff]
        %v3349 = vld [vmem:[#allocation7 + $0x1a0] sm:$0xff]
        %v3350 = vld [vmem:[#allocation7 + $0x1a8] sm:$0xff]
        %v3351 = vld [vmem:[#allocation7 + $0x1b0] sm:$0xff]
        %v3352 = vld [vmem:[#allocation7 + $0x1b8] sm:$0xff]
        %v3353 = vld [vmem:[#allocation7 + $0x1c0] sm:$0xff]
        %v3354 = vld [vmem:[#allocation7 + $0x1c8] sm:$0xff]
        %v3355 = vld [vmem:[#allocation7 + $0x1d0] sm:$0xff]
        %v3356 = vld [vmem:[#allocation7 + $0x1d8] sm:$0xff]
        %v3357 = vld [vmem:[#allocation7 + $0x1e0] sm:$0xff]
        %v3358 = vld [vmem:[#allocation7 + $0x1e8] sm:$0xff]
        %v3359 = vld [vmem:[#allocation7 + $0x1f0] sm:$0xff]
        %v3360 = vld [vmem:[#allocation7 + $0x1f8] sm:$0xff]
        %v3361 = vld [vmem:[#allocation7 + $0x200] sm:$0xff]
        %v3362 = vld [vmem:[#allocation7 + $0x208] sm:$0xff]
        %v3363 = vld [vmem:[#allocation7 + $0x210] sm:$0xff]
        %v3364 = vld [vmem:[#allocation7 + $0x218] sm:$0xff]
        %v3365 = vld [vmem:[#allocation7 + $0x220] sm:$0xff]
        %v3366 = vld [vmem:[#allocation7 + $0x228] sm:$0xff]
        %v3367 = vld [vmem:[#allocation7 + $0x230] sm:$0xff]
        %v3368 = vld [vmem:[#allocation7 + $0x238] sm:$0xff]
        %v3369 = vld [vmem:[#allocation7 + $0x240] sm:$0xff]
        %v3370 = vld [vmem:[#allocation7 + $0x248] sm:$0xff]
        %v3371 = vld [vmem:[#allocation7 + $0x250] sm:$0xff]
        %v3372 = vld [vmem:[#allocation7 + $0x258] sm:$0xff]
        %v3373 = vld [vmem:[#allocation7 + $0x260] sm:$0xff]
        %v3374 = vld [vmem:[#allocation7 + $0x268] sm:$0xff]
        %v3375 = vld [vmem:[#allocation7 + $0x270] sm:$0xff]
        %v3376 = vld [vmem:[#allocation7 + $0x278] sm:$0xff]
        %v3377 = vld [vmem:[#allocation7 + $0x280] sm:$0xff]
        %v3378 = vld [vmem:[#allocation7 + $0x288] sm:$0xff]
        %v3379 = vld [vmem:[#allocation7 + $0x290] sm:$0xff]
        %v3380 = vld [vmem:[#allocation7 + $0x298] sm:$0xff]
        %v3381 = vld [vmem:[#allocation7 + $0x2a0] sm:$0xff]
        %v3382 = vld [vmem:[#allocation7 + $0x2a8] sm:$0xff]
        %v3383 = vld [vmem:[#allocation7 + $0x2b0] sm:$0xff]
        %v3384 = vld [vmem:[#allocation7 + $0x2b8] sm:$0xff]
        %v3385 = vld [vmem:[#allocation7 + $0x2c0] sm:$0xff]
        %v3386 = vld [vmem:[#allocation7 + $0x2c8] sm:$0xff]
        %v3387 = vld [vmem:[#allocation7 + $0x2d0] sm:$0xff]
        %v3388 = vld [vmem:[#allocation7 + $0x2d8] sm:$0xff]
        %v3389 = vld [vmem:[#allocation7 + $0x2e0] sm:$0xff]
        %v3390 = vld [vmem:[#allocation7 + $0x2e8] sm:$0xff]
        %v3391 = vld [vmem:[#allocation7 + $0x2f0] sm:$0xff]
        %v3392 = vld [vmem:[#allocation7 + $0x2f8] sm:$0xff]
        %v3393 = vld [vmem:[#allocation7 + $0x300] sm:$0xff]
        %v3394 = vld [vmem:[#allocation7 + $0x308] sm:$0xff]
        %v3395 = vld [vmem:[#allocation7 + $0x310] sm:$0xff]
        %v3396 = vld [vmem:[#allocation7 + $0x318] sm:$0xff]
        %v3397 = vld [vmem:[#allocation7 + $0x320] sm:$0xff]
        %v3398 = vld [vmem:[#allocation7 + $0x328] sm:$0xff]
        %v3399 = vld [vmem:[#allocation7 + $0x330] sm:$0xff]
        %v3400 = vld [vmem:[#allocation7 + $0x338] sm:$0xff]
        %v3401 = vld [vmem:[#allocation7 + $0x340] sm:$0xff]
        %v3402 = vld [vmem:[#allocation7 + $0x348] sm:$0xff]
        %v3403 = vld [vmem:[#allocation7 + $0x350] sm:$0xff]
        %v3404 = vld [vmem:[#allocation7 + $0x358] sm:$0xff]
        %v3405 = vld [vmem:[#allocation7 + $0x360] sm:$0xff]
        %v3406 = vld [vmem:[#allocation7 + $0x368] sm:$0xff]
        %v3407 = vld [vmem:[#allocation7 + $0x370] sm:$0xff]
        %v3408 = vld [vmem:[#allocation7 + $0x378] sm:$0xff]
        %v3409 = vld [vmem:[#allocation7 + $0x380] sm:$0xff]
        %v3410 = vld [vmem:[#allocation7 + $0x388] sm:$0xff]
        %v3411 = vld [vmem:[#allocation7 + $0x390] sm:$0xff]
        %v3412 = vld [vmem:[#allocation7 + $0x398] sm:$0xff]
        %v3413 = vld [vmem:[#allocation7 + $0x3a0] sm:$0xff]
        %v3414 = vld [vmem:[#allocation7 + $0x3a8] sm:$0xff]
        %v3415 = vld [vmem:[#allocation7 + $0x3b0] sm:$0xff]
        %v3416 = vld [vmem:[#allocation7 + $0x3b8] sm:$0xff]
        %v3417 = vld [vmem:[#allocation7 + $0x3c0] sm:$0xff]
        %v3418 = vld [vmem:[#allocation7 + $0x3c8] sm:$0xff]
        %v3419 = vld [vmem:[#allocation7 + $0x3d0] sm:$0xff]
        %v3420 = vld [vmem:[#allocation7 + $0x3d8] sm:$0xff]
        %v3421 = vld [vmem:[#allocation7 + $0x3e0] sm:$0xff]
        %v3422 = vld [vmem:[#allocation7 + $0x3e8] sm:$0xff]
        %v3423 = vld [vmem:[#allocation7 + $0x3f0] sm:$0xff]
        %v3424 = vld [vmem:[#allocation7 + $0x3f8] sm:$0xff]
        %v3425 = vld [vmem:[#allocation7 + $0x400] sm:$0xff]
        %v3426 = vld [vmem:[#allocation7 + $0x408] sm:$0xff]
        %v3427 = vld [vmem:[#allocation7 + $0x410] sm:$0xff]
        %v3428 = vld [vmem:[#allocation7 + $0x418] sm:$0xff]
        %v3429 = vld [vmem:[#allocation7 + $0x420] sm:$0xff]
        %v3430 = vld [vmem:[#allocation7 + $0x428] sm:$0xff]
        %v3431 = vld [vmem:[#allocation7 + $0x430] sm:$0xff]
        %v3432 = vld [vmem:[#allocation7 + $0x438] sm:$0xff]
        %v3433 = vld [vmem:[#allocation7 + $0x440] sm:$0xff]
        %v3434 = vld [vmem:[#allocation7 + $0x448] sm:$0xff]
        %v3435 = vld [vmem:[#allocation7 + $0x450] sm:$0xff]
        %v3436 = vld [vmem:[#allocation7 + $0x458] sm:$0xff]
        %v3437 = vld [vmem:[#allocation7 + $0x460] sm:$0xff]
        %v3438 = vld [vmem:[#allocation7 + $0x468] sm:$0xff]
        %v3439 = vld [vmem:[#allocation7 + $0x470] sm:$0xff]
        %v3440 = vld [vmem:[#allocation7 + $0x478] sm:$0xff]
        %v3441 = vld [vmem:[#allocation7 + $0x480] sm:$0xff]
        %v3442 = vld [vmem:[#allocation7 + $0x488] sm:$0xff]
        %v3443 = vld [vmem:[#allocation7 + $0x490] sm:$0xff]
        %v3444 = vld [vmem:[#allocation7 + $0x498] sm:$0xff]
        %v3445 = vld [vmem:[#allocation7 + $0x4a0] sm:$0xff]
        %v3446 = vld [vmem:[#allocation7 + $0x4a8] sm:$0xff]
        %v3447 = vld [vmem:[#allocation7 + $0x4b0] sm:$0xff]
        %v3448 = vld [vmem:[#allocation7 + $0x4b8] sm:$0xff]
        %v3449 = vld [vmem:[#allocation7 + $0x4c0] sm:$0xff]
        %v3450 = vld [vmem:[#allocation7 + $0x4c8] sm:$0xff]
        %v3451 = vld [vmem:[#allocation7 + $0x4d0] sm:$0xff]
        %v3452 = vld [vmem:[#allocation7 + $0x4d8] sm:$0xff]
        %v3453 = vld [vmem:[#allocation7 + $0x4e0] sm:$0xff]
        %v3454 = vld [vmem:[#allocation7 + $0x4e8] sm:$0xff]
        %v3455 = vld [vmem:[#allocation7 + $0x4f0] sm:$0xff]
        %v3456 = vld [vmem:[#allocation7 + $0x4f8] sm:$0xff]
        %v3457 = vld [vmem:[#allocation7 + $0x500] sm:$0xff]
        %v3458 = vld [vmem:[#allocation7 + $0x508] sm:$0xff]
        %v3459 = vld [vmem:[#allocation7 + $0x510] sm:$0xff]
        %v3460 = vld [vmem:[#allocation7 + $0x518] sm:$0xff]
        %v3461 = vld [vmem:[#allocation7 + $0x520] sm:$0xff]
        %v3462 = vld [vmem:[#allocation7 + $0x528] sm:$0xff]
        %v3463 = vld [vmem:[#allocation7 + $0x530] sm:$0xff]
        %v3464 = vld [vmem:[#allocation7 + $0x538] sm:$0xff]
        %v3465 = vld [vmem:[#allocation7 + $0x540] sm:$0xff]
        %v3466 = vld [vmem:[#allocation7 + $0x548] sm:$0xff]
        %v3467 = vld [vmem:[#allocation7 + $0x550] sm:$0xff]
        %v3468 = vld [vmem:[#allocation7 + $0x558] sm:$0xff]
        %v3469 = vld [vmem:[#allocation7 + $0x560] sm:$0xff]
        %v3470 = vld [vmem:[#allocation7 + $0x568] sm:$0xff]
        %v3471 = vld [vmem:[#allocation7 + $0x570] sm:$0xff]
        %v3472 = vld [vmem:[#allocation7 + $0x578] sm:$0xff]
        %v3473 = vld [vmem:[#allocation7 + $0x580] sm:$0xff]
        %v3474 = vld [vmem:[#allocation7 + $0x588] sm:$0xff]
        %v3475 = vld [vmem:[#allocation7 + $0x590] sm:$0xff]
        %v3476 = vld [vmem:[#allocation7 + $0x598] sm:$0xff]
        %v3477 = vld [vmem:[#allocation7 + $0x5a0] sm:$0xff]
        %v3478 = vld [vmem:[#allocation7 + $0x5a8] sm:$0xff]
        %v3479 = vld [vmem:[#allocation7 + $0x5b0] sm:$0xff]
        %v3480 = vld [vmem:[#allocation7 + $0x5b8] sm:$0xff]
        %v3481 = vld [vmem:[#allocation7 + $0x5c0] sm:$0xff]
        %v3482 = vld [vmem:[#allocation7 + $0x5c8] sm:$0xff]
        %v3483 = vld [vmem:[#allocation7 + $0x5d0] sm:$0xff]
        %v3484 = vld [vmem:[#allocation7 + $0x5d8] sm:$0xff]
        %v3485 = vld [vmem:[#allocation7 + $0x5e0] sm:$0xff]
        %v3486 = vld [vmem:[#allocation7 + $0x5e8] sm:$0xff]
        %v3487 = vld [vmem:[#allocation7 + $0x5f0] sm:$0xff]
        %v3488 = vld [vmem:[#allocation7 + $0x5f8] sm:$0xff]
        %v3489 = vld [vmem:[#allocation7 + $0x600] sm:$0xff]
        %v3490 = vld [vmem:[#allocation7 + $0x608] sm:$0xff]
        %v3491 = vld [vmem:[#allocation7 + $0x610] sm:$0xff]
        %v3492 = vld [vmem:[#allocation7 + $0x618] sm:$0xff]
        %v3493 = vld [vmem:[#allocation7 + $0x620] sm:$0xff]
        %v3494 = vld [vmem:[#allocation7 + $0x628] sm:$0xff]
        %v3495 = vld [vmem:[#allocation7 + $0x630] sm:$0xff]
        %v3496 = vld [vmem:[#allocation7 + $0x638] sm:$0xff]
        %v3497 = vld [vmem:[#allocation7 + $0x640] sm:$0xff]
        %v3498 = vld [vmem:[#allocation7 + $0x648] sm:$0xff]
        %v3499 = vld [vmem:[#allocation7 + $0x650] sm:$0xff]
        %v3500 = vld [vmem:[#allocation7 + $0x658] sm:$0xff]
        %v3501 = vld [vmem:[#allocation7 + $0x660] sm:$0xff]
        %v3502 = vld [vmem:[#allocation7 + $0x668] sm:$0xff]
        %v3503 = vld [vmem:[#allocation7 + $0x670] sm:$0xff]
        %v3504 = vld [vmem:[#allocation7 + $0x678] sm:$0xff]
        %v3505 = vld [vmem:[#allocation7 + $0x680] sm:$0xff]
        %v3506 = vld [vmem:[#allocation7 + $0x688] sm:$0xff]
        %v3507 = vld [vmem:[#allocation7 + $0x690] sm:$0xff]
        %v3508 = vld [vmem:[#allocation7 + $0x698] sm:$0xff]
        %v3509 = vld [vmem:[#allocation7 + $0x6a0] sm:$0xff]
        %v3510 = vld [vmem:[#allocation7 + $0x6a8] sm:$0xff]
        %v3511 = vld [vmem:[#allocation7 + $0x6b0] sm:$0xff]
        %v3512 = vld [vmem:[#allocation7 + $0x6b8] sm:$0xff]
        %v3513 = vld [vmem:[#allocation7 + $0x6c0] sm:$0xff]
        %v3514 = vld [vmem:[#allocation7 + $0x6c8] sm:$0xff]
        %v3515 = vld [vmem:[#allocation7 + $0x6d0] sm:$0xff]
        %v3516 = vld [vmem:[#allocation7 + $0x6d8] sm:$0xff]
        %v3517 = vld [vmem:[#allocation7 + $0x6e0] sm:$0xff]
        %v3518 = vld [vmem:[#allocation7 + $0x6e8] sm:$0xff]
        %v3519 = vld [vmem:[#allocation7 + $0x6f0] sm:$0xff]
        %v3520 = vld [vmem:[#allocation7 + $0x6f8] sm:$0xff]
        %v3521 = vld [vmem:[#allocation7 + $0x700] sm:$0xff]
        %v3522 = vld [vmem:[#allocation7 + $0x708] sm:$0xff]
        %v3523 = vld [vmem:[#allocation7 + $0x710] sm:$0xff]
        %v3524 = vld [vmem:[#allocation7 + $0x718] sm:$0xff]
        %v3525 = vld [vmem:[#allocation7 + $0x720] sm:$0xff]
        %v3526 = vld [vmem:[#allocation7 + $0x728] sm:$0xff]
        %v3527 = vld [vmem:[#allocation7 + $0x730] sm:$0xff]
        %v3528 = vld [vmem:[#allocation7 + $0x738] sm:$0xff]
        %v3529 = vld [vmem:[#allocation7 + $0x740] sm:$0xff]
        %v3530 = vld [vmem:[#allocation7 + $0x748] sm:$0xff]
        %v3531 = vld [vmem:[#allocation7 + $0x750] sm:$0xff]
        %v3532 = vld [vmem:[#allocation7 + $0x758] sm:$0xff]
        %v3533 = vld [vmem:[#allocation7 + $0x760] sm:$0xff]
        %v3534 = vld [vmem:[#allocation7 + $0x768] sm:$0xff]
        %v3535 = vld [vmem:[#allocation7 + $0x770] sm:$0xff]
        %v3536 = vld [vmem:[#allocation7 + $0x778] sm:$0xff]
        %v3537 = vld [vmem:[#allocation7 + $0x780] sm:$0xff]
        %v3538 = vld [vmem:[#allocation7 + $0x788] sm:$0xff]
        %v3539 = vld [vmem:[#allocation7 + $0x790] sm:$0xff]
        %v3540 = vld [vmem:[#allocation7 + $0x798] sm:$0xff]
        %v3541 = vld [vmem:[#allocation7 + $0x7a0] sm:$0xff]
        %v3542 = vld [vmem:[#allocation7 + $0x7a8] sm:$0xff]
        %v3543 = vld [vmem:[#allocation7 + $0x7b0] sm:$0xff]
        %v3544 = vld [vmem:[#allocation7 + $0x7b8] sm:$0xff]
        %v3545 = vld [vmem:[#allocation7 + $0x7c0] sm:$0xff]
        %v3546 = vld [vmem:[#allocation7 + $0x7c8] sm:$0xff]
        %v3547 = vld [vmem:[#allocation7 + $0x7d0] sm:$0xff]
        %v3548 = vld [vmem:[#allocation7 + $0x7d8] sm:$0xff]
        %v3549 = vld [vmem:[#allocation7 + $0x7e0] sm:$0xff]
        %v3550 = vld [vmem:[#allocation7 + $0x7e8] sm:$0xff]
        %v3551 = vld [vmem:[#allocation7 + $0x7f0] sm:$0xff]
        %v3552 = vld [vmem:[#allocation7 + $0x7f8] sm:$0xff]
        %3553 = vmatprep.subr.mxu0 %v3298
        %3554 = vmatpush1.msra.mxu0 %v3297
        %3555 = vmatprep.subr.mxu0 %v3306
        %3556 = vmatpush1.msra.mxu0 %v3305
        %3557 = vmatprep.subr.mxu0 %v3314
        %3558 = vmatpush1.msra.mxu0 %v3313
        %3559 = vmatprep.subr.mxu0 %v3322
        %3560 = vmatpush1.msra.mxu0 %v3321
        %3561 = vmatprep.subr.mxu0 %v3330
        %3562 = vmatpush1.msra.mxu0 %v3329
        %3563 = vmatprep.subr.mxu0 %v3338
        %3564 = vmatpush1.msra.mxu0 %v3337
        %3565 = vmatprep.subr.mxu0 %v3346
        %3566 = vmatpush1.msra.mxu0 %v3345
        %3567 = vmatprep.subr.mxu0 %v3354
        %3568 = vmatpush1.msra.mxu0 %v3353
        %3569 = vmatprep.subr.mxu0 %v3362
        %3570 = vmatpush1.msra.mxu0 %v3361
        %3571 = vmatprep.subr.mxu0 %v3370
        %3572 = vmatpush1.msra.mxu0 %v3369
        %3573 = vmatprep.subr.mxu0 %v3378
        %3574 = vmatpush1.msra.mxu0 %v3377
        %3575 = vmatprep.subr.mxu0 %v3386
        %3576 = vmatpush1.msra.mxu0 %v3385
        %3577 = vmatprep.subr.mxu0 %v3394
        %3578 = vmatpush1.msra.mxu0 %v3393
        %3579 = vmatprep.subr.mxu0 %v3402
        %3580 = vmatpush1.msra.mxu0 %v3401
        %3581 = vmatprep.subr.mxu0 %v3410
        %3582 = vmatpush1.msra.mxu0 %v3409
        %3583 = vmatprep.subr.mxu0 %v3418
        %3584 = vmatpush1.msra.mxu0 %v3417
        %3585 = vmatprep.subr.mxu0 %v3426
        %3586 = vmatpush1.msra.mxu0 %v3425
        %3587 = vmatprep.subr.mxu0 %v3434
        %3588 = vmatpush1.msra.mxu0 %v3433
        %3589 = vmatprep.subr.mxu0 %v3442
        %3590 = vmatpush1.msra.mxu0 %v3441
        %3591 = vmatprep.subr.mxu0 %v3450
        %3592 = vmatpush1.msra.mxu0 %v3449
        %3593 = vmatprep.subr.mxu0 %v3458
        %3594 = vmatpush1.msra.mxu0 %v3457
        %3595 = vmatprep.subr.mxu0 %v3466
        %3596 = vmatpush1.msra.mxu0 %v3465
        %3597 = vmatprep.subr.mxu0 %v3474
        %3598 = vmatpush1.msra.mxu0 %v3473
        %3599 = vmatprep.subr.mxu0 %v3482
        %3600 = vmatpush1.msra.mxu0 %v3481
        %3601 = vmatprep.subr.mxu0 %v3490
        %3602 = vmatpush1.msra.mxu0 %v3489
        %3603 = vmatprep.subr.mxu0 %v3498
        %3604 = vmatpush1.msra.mxu0 %v3497
        %3605 = vmatprep.subr.mxu0 %v3506
        %3606 = vmatpush1.msra.mxu0 %v3505
        %3607 = vmatprep.subr.mxu0 %v3514
        %3608 = vmatpush1.msra.mxu0 %v3513
        %3609 = vmatprep.subr.mxu0 %v3522
        %3610 = vmatpush1.msra.mxu0 %v3521
        %3611 = vmatprep.subr.mxu0 %v3530
        %3612 = vmatpush1.msra.mxu0 %v3529
        %3613 = vmatprep.subr.mxu0 %v3538
        %3614 = vmatpush1.msra.mxu0 %v3537
        %3615 = vmatprep.subr.mxu0 %v3546
        %3616 = vmatpush1.msra.mxu0 %v3545
        %3617 = vmatprep.mubr.f32.mxu0 %v3285
        %3618 = vmatmul.mubr.f32.gmra.mrb[0].mxu0 %v3284
        %v3619 = vpop.f32.mrb[0].mxu0
        %v3620 = vadd.f32 0.0, %v3619
        %v3621 = vpop.f32.mrb[0].mxu0
        %v3622 = vadd.f32 0.0, %v3621
        %3623 = vdwg.mxu0
        %3624 = vmatprep.subr.mxu0 %v3300
        %3625 = vmatpush1.msra.mxu0 %v3299
        %3626 = vmatprep.subr.mxu0 %v3308
        %3627 = vmatpush1.msra.mxu0 %v3307
        %3628 = vmatprep.subr.mxu0 %v3316
        %3629 = vmatpush1.msra.mxu0 %v3315
        %3630 = vmatprep.subr.mxu0 %v3324
        %3631 = vmatpush1.msra.mxu0 %v3323
        %3632 = vmatprep.subr.mxu0 %v3332
        %3633 = vmatpush1.msra.mxu0 %v3331
        %3634 = vmatprep.subr.mxu0 %v3340
        %3635 = vmatpush1.msra.mxu0 %v3339
        %3636 = vmatprep.subr.mxu0 %v3348
        %3637 = vmatpush1.msra.mxu0 %v3347
        %3638 = vmatprep.subr.mxu0 %v3356
        %3639 = vmatpush1.msra.mxu0 %v3355
        %3640 = vmatprep.subr.mxu0 %v3364
        %3641 = vmatpush1.msra.mxu0 %v3363
        %3642 = vmatprep.subr.mxu0 %v3372
        %3643 = vmatpush1.msra.mxu0 %v3371
        %3644 = vmatprep.subr.mxu0 %v3380
        %3645 = vmatpush1.msra.mxu0 %v3379
        %3646 = vmatprep.subr.mxu0 %v3388
        %3647 = vmatpush1.msra.mxu0 %v3387
        %3648 = vmatprep.subr.mxu0 %v3396
        %3649 = vmatpush1.msra.mxu0 %v3395
        %3650 = vmatprep.subr.mxu0 %v3404
        %3651 = vmatpush1.msra.mxu0 %v3403
        %3652 = vmatprep.subr.mxu0 %v3412
        %3653 = vmatpush1.msra.mxu0 %v3411
        %3654 = vmatprep.subr.mxu0 %v3420
        %3655 = vmatpush1.msra.mxu0 %v3419
        %3656 = vmatprep.subr.mxu0 %v3428
        %3657 = vmatpush1.msra.mxu0 %v3427
        %3658 = vmatprep.subr.mxu0 %v3436
        %3659 = vmatpush1.msra.mxu0 %v3435
        %3660 = vmatprep.subr.mxu0 %v3444
        %3661 = vmatpush1.msra.mxu0 %v3443
        %3662 = vmatprep.subr.mxu0 %v3452
        %3663 = vmatpush1.msra.mxu0 %v3451
        %3664 = vmatprep.subr.mxu0 %v3460
        %3665 = vmatpush1.msra.mxu0 %v3459
        %3666 = vmatprep.subr.mxu0 %v3468
        %3667 = vmatpush1.msra.mxu0 %v3467
        %3668 = vmatprep.subr.mxu0 %v3476
        %3669 = vmatpush1.msra.mxu0 %v3475
        %3670 = vmatprep.subr.mxu0 %v3484
        %3671 = vmatpush1.msra.mxu0 %v3483
        %3672 = vmatprep.subr.mxu0 %v3492
        %3673 = vmatpush1.msra.mxu0 %v3491
        %3674 = vmatprep.subr.mxu0 %v3500
        %3675 = vmatpush1.msra.mxu0 %v3499
        %3676 = vmatprep.subr.mxu0 %v3508
        %3677 = vmatpush1.msra.mxu0 %v3507
        %3678 = vmatprep.subr.mxu0 %v3516
        %3679 = vmatpush1.msra.mxu0 %v3515
        %3680 = vmatprep.subr.mxu0 %v3524
        %3681 = vmatpush1.msra.mxu0 %v3523
        %3682 = vmatprep.subr.mxu0 %v3532
        %3683 = vmatpush1.msra.mxu0 %v3531
        %3684 = vmatprep.subr.mxu0 %v3540
        %3685 = vmatpush1.msra.mxu0 %v3539
        %3686 = vmatprep.subr.mxu0 %v3548
        %3687 = vmatpush1.msra.mxu0 %v3547
        %3688 = vmatprep.mubr.f32.mxu0 %v3285
        %3689 = vmatmul.mubr.f32.gmra.mrb[0].mxu0 %v3284
        %v3690 = vpop.f32.mrb[0].mxu0
        %v3691 = vadd.f32 0.0, %v3690
        %v3692 = vpop.f32.mrb[0].mxu0
        %v3693 = vadd.f32 0.0, %v3692
        %3694 = vdwg.mxu0
        %3695 = vmatprep.subr.mxu0 %v3302
        %3696 = vmatpush1.msra.mxu0 %v3301
        %3697 = vmatprep.subr.mxu0 %v3310
        %3698 = vmatpush1.msra.mxu0 %v3309
        %3699 = vmatprep.subr.mxu0 %v3318
        %3700 = vmatpush1.msra.mxu0 %v3317
        %3701 = vmatprep.subr.mxu0 %v3326
        %3702 = vmatpush1.msra.mxu0 %v3325
        %3703 = vmatprep.subr.mxu0 %v3334
        %3704 = vmatpush1.msra.mxu0 %v3333
        %3705 = vmatprep.subr.mxu0 %v3342
        %3706 = vmatpush1.msra.mxu0 %v3341
        %3707 = vmatprep.subr.mxu0 %v3350
        %3708 = vmatpush1.msra.mxu0 %v3349
        %3709 = vmatprep.subr.mxu0 %v3358
        %3710 = vmatpush1.msra.mxu0 %v3357
        %3711 = vmatprep.subr.mxu0 %v3366
        %3712 = vmatpush1.msra.mxu0 %v3365
        %3713 = vmatprep.subr.mxu0 %v3374
        %3714 = vmatpush1.msra.mxu0 %v3373
        %3715 = vmatprep.subr.mxu0 %v3382
        %3716 = vmatpush1.msra.mxu0 %v3381
        %3717 = vmatprep.subr.mxu0 %v3390
        %3718 = vmatpush1.msra.mxu0 %v3389
        %3719 = vmatprep.subr.mxu0 %v3398
        %3720 = vmatpush1.msra.mxu0 %v3397
        %3721 = vmatprep.subr.mxu0 %v3406
        %3722 = vmatpush1.msra.mxu0 %v3405
        %3723 = vmatprep.subr.mxu0 %v3414
        %3724 = vmatpush1.msra.mxu0 %v3413
        %3725 = vmatprep.subr.mxu0 %v3422
        %3726 = vmatpush1.msra.mxu0 %v3421
        %3727 = vmatprep.subr.mxu0 %v3430
        %3728 = vmatpush1.msra.mxu0 %v3429
        %3729 = vmatprep.subr.mxu0 %v3438
        %3730 = vmatpush1.msra.mxu0 %v3437
        %3731 = vmatprep.subr.mxu0 %v3446
        %3732 = vmatpush1.msra.mxu0 %v3445
        %3733 = vmatprep.subr.mxu0 %v3454
        %3734 = vmatpush1.msra.mxu0 %v3453
        %3735 = vmatprep.subr.mxu0 %v3462
        %3736 = vmatpush1.msra.mxu0 %v3461
        %3737 = vmatprep.subr.mxu0 %v3470
        %3738 = vmatpush1.msra.mxu0 %v3469
        %3739 = vmatprep.subr.mxu0 %v3478
        %3740 = vmatpush1.msra.mxu0 %v3477
        %3741 = vmatprep.subr.mxu0 %v3486
        %3742 = vmatpush1.msra.mxu0 %v3485
        %3743 = vmatprep.subr.mxu0 %v3494
        %3744 = vmatpush1.msra.mxu0 %v3493
        %3745 = vmatprep.subr.mxu0 %v3502
        %3746 = vmatpush1.msra.mxu0 %v3501
        %3747 = vmatprep.subr.mxu0 %v3510
        %3748 = vmatpush1.msra.mxu0 %v3509
        %3749 = vmatprep.subr.mxu0 %v3518
        %3750 = vmatpush1.msra.mxu0 %v3517
        %3751 = vmatprep.subr.mxu0 %v3526
        %3752 = vmatpush1.msra.mxu0 %v3525
        %3753 = vmatprep.subr.mxu0 %v3534
        %3754 = vmatpush1.msra.mxu0 %v3533
        %3755 = vmatprep.subr.mxu0 %v3542
        %3756 = vmatpush1.msra.mxu0 %v3541
        %3757 = vmatprep.subr.mxu0 %v3550
        %3758 = vmatpush1.msra.mxu0 %v3549
        %3759 = vmatprep.mubr.f32.mxu0 %v3285
        %3760 = vmatmul.mubr.f32.gmra.mrb[0].mxu0 %v3284
        %v3761 = vpop.f32.mrb[0].mxu0
        %v3762 = vadd.f32 0.0, %v3761
        %v3763 = vpop.f32.mrb[0].mxu0
        %v3764 = vadd.f32 0.0, %v3763
        %3765 = vdwg.mxu0
        %3766 = vmatprep.subr.mxu0 %v3304
        %3767 = vmatpush1.msra.mxu0 %v3303
        %3768 = vmatprep.subr.mxu0 %v3312
        %3769 = vmatpush1.msra.mxu0 %v3311
        %3770 = vmatprep.subr.mxu0 %v3320
        %3771 = vmatpush1.msra.mxu0 %v3319
        %3772 = vmatprep.subr.mxu0 %v3328
        %3773 = vmatpush1.msra.mxu0 %v3327
        %3774 = vmatprep.subr.mxu0 %v3336
        %3775 = vmatpush1.msra.mxu0 %v3335
        %3776 = vmatprep.subr.mxu0 %v3344
        %3777 = vmatpush1.msra.mxu0 %v3343
        %3778 = vmatprep.subr.mxu0 %v3352
        %3779 = vmatpush1.msra.mxu0 %v3351
        %3780 = vmatprep.subr.mxu0 %v3360
        %3781 = vmatpush1.msra.mxu0 %v3359
        %3782 = vmatprep.subr.mxu0 %v3368
        %3783 = vmatpush1.msra.mxu0 %v3367
        %3784 = vmatprep.subr.mxu0 %v3376
        %3785 = vmatpush1.msra.mxu0 %v3375
        %3786 = vmatprep.subr.mxu0 %v3384
        %3787 = vmatpush1.msra.mxu0 %v3383
        %3788 = vmatprep.subr.mxu0 %v3392
        %3789 = vmatpush1.msra.mxu0 %v3391
        %3790 = vmatprep.subr.mxu0 %v3400
        %3791 = vmatpush1.msra.mxu0 %v3399
        %3792 = vmatprep.subr.mxu0 %v3408
        %3793 = vmatpush1.msra.mxu0 %v3407
        %3794 = vmatprep.subr.mxu0 %v3416
        %3795 = vmatpush1.msra.mxu0 %v3415
        %3796 = vmatprep.subr.mxu0 %v3424
        %3797 = vmatpush1.msra.mxu0 %v3423
        %3798 = vmatprep.subr.mxu0 %v3432
        %3799 = vmatpush1.msra.mxu0 %v3431
        %3800 = vmatprep.subr.mxu0 %v3440
        %3801 = vmatpush1.msra.mxu0 %v3439
        %3802 = vmatprep.subr.mxu0 %v3448
        %3803 = vmatpush1.msra.mxu0 %v3447
        %3804 = vmatprep.subr.mxu0 %v3456
        %3805 = vmatpush1.msra.mxu0 %v3455
        %3806 = vmatprep.subr.mxu0 %v3464
        %3807 = vmatpush1.msra.mxu0 %v3463
        %3808 = vmatprep.subr.mxu0 %v3472
        %3809 = vmatpush1.msra.mxu0 %v3471
        %3810 = vmatprep.subr.mxu0 %v3480
        %3811 = vmatpush1.msra.mxu0 %v3479
        %3812 = vmatprep.subr.mxu0 %v3488
        %3813 = vmatpush1.msra.mxu0 %v3487
        %3814 = vmatprep.subr.mxu0 %v3496
        %3815 = vmatpush1.msra.mxu0 %v3495
        %3816 = vmatprep.subr.mxu0 %v3504
        %3817 = vmatpush1.msra.mxu0 %v3503
        %3818 = vmatprep.subr.mxu0 %v3512
        %3819 = vmatpush1.msra.mxu0 %v3511
        %3820 = vmatprep.subr.mxu0 %v3520
        %3821 = vmatpush1.msra.mxu0 %v3519
        %3822 = vmatprep.subr.mxu0 %v3528
        %3823 = vmatpush1.msra.mxu0 %v3527
        %3824 = vmatprep.subr.mxu0 %v3536
        %3825 = vmatpush1.msra.mxu0 %v3535
        %3826 = vmatprep.subr.mxu0 %v3544
        %3827 = vmatpush1.msra.mxu0 %v3543
        %3828 = vmatprep.subr.mxu0 %v3552
        %3829 = vmatpush1.msra.mxu0 %v3551
        %3830 = vmatprep.mubr.f32.mxu0 %v3285
        %3831 = vmatmul.mubr.f32.gmra.mrb[0].mxu0 %v3284
        %v3832 = vpop.f32.mrb[0].mxu0
        %v3833 = vadd.f32 0.0, %v3832
        %v3834 = vpop.f32.mrb[0].mxu0
        %v3835 = vadd.f32 0.0, %v3834
        %3836 = vdwg.mxu0
        %v3837 = vadd.f32 %v3289, %v3620
        %v3838 = vadd.f32 %v3290, %v3622
        %v3839 = vadd.f32 %v3291, %v3691
        %v3840 = vadd.f32 %v3292, %v3693
        %v3841 = vadd.f32 %v3293, %v3762
        %v3842 = vadd.f32 %v3294, %v3764
        %v3843 = vadd.f32 %v3295, %v3833
        %v3844 = vadd.f32 %v3296, %v3835
        %v3845 = vxor.u32 %v3837, 2147483648
        %v3846 = vxor.u32 %v3838, 2147483648
        %v3847 = vmul.f32 %v3845, 1.442695
        %v3848 = vpow.pop %v3847
        %v3849 = vmul.f32 %v3846, 1.442695
        %v3850 = vpow.pop %v3849
        %v3851 = vadd.f32 %v3848, 1.0
        %v3852 = vadd.f32 %v3850, 1.0
        %v3853 = vrcp.pop %v3851
        %v3854 = vmul.f32 1.0, %v3853
        %v3855 = vrcp.pop %v3852
        %v3856 = vmul.f32 1.0, %v3855
        %v3857 = vxor.u32 %v3839, 2147483648
        %v3858 = vxor.u32 %v3840, 2147483648
        %v3859 = vmul.f32 %v3857, 1.442695
        %v3860 = vpow.pop %v3859
        %v3861 = vmul.f32 %v3858, 1.442695
        %v3862 = vpow.pop %v3861
        %v3863 = vadd.f32 %v3860, 1.0
        %v3864 = vadd.f32 %v3862, 1.0
        %v3865 = vrcp.pop %v3863
        %v3866 = vmul.f32 1.0, %v3865
        %v3867 = vrcp.pop %v3864
        %v3868 = vmul.f32 1.0, %v3867
        %v3869 = vtanh.pop %v3841
        %v3870 = vtanh.pop %v3842
        %v3871 = vxor.u32 %v3843, 2147483648
        %v3872 = vxor.u32 %v3844, 2147483648
        %v3873 = vmul.f32 %v3871, 1.442695
        %v3874 = vpow.pop %v3873
        %v3875 = vmul.f32 %v3872, 1.442695
        %v3876 = vpow.pop %v3875
        %v3877 = vadd.f32 %v3874, 1.0
        %v3878 = vadd.f32 %v3876, 1.0
        %v3879 = vrcp.pop %v3877
        %v3880 = vmul.f32 1.0, %v3879
        %v3881 = vrcp.pop %v3878
        %v3882 = vmul.f32 1.0, %v3881
        %v3883 = vmul.f32 %v3866, %v3286
        %v3884 = vmul.f32 %v3868, %v3287
        %v3885 = vmul.f32 %v3854, %v3869
        %v3886 = vmul.f32 %v3856, %v3870
        %v3887 = vadd.f32 %v3883, %v3885
        %v3888 = vadd.f32 %v3884, %v3886
        %v3889 = vtanh.pop %v3887
        %v3890 = vtanh.pop %v3888
        %v3891 = vmul.f32 %v3880, %v3889
        %v3892 = vmul.f32 %v3882, %v3890
        %3893 = vst [vmem:[#allocation3] sm:$0xff] %v3887
        %3894 = vst [vmem:[#allocation3 + $0x8] sm:$0xff] %v3888
        %3895 = vst [vmem:[#allocation2] sm:$0xff] %v3891
        %3896 = vst [vmem:[#allocation2 + $0x8] sm:$0xff] %v3892
        %s3897 = scalar_lea.vmem %s195, 80 [#allocation9]
        %3898 = vst [vmem:[%s3897] sm:$0xff] %v3891
        %3899 = vst [vmem:[%s3897 + $0x8] sm:$0xff] %v3892
        %v3900 = vld [vmem:[#allocation2] sm:$0xff]
        %v3901 = vld [vmem:[#allocation2 + $0x8] sm:$0xff]
        %v3902 = vld [vmem:[#allocation3] sm:$0xff]
        %v3903 = vld [vmem:[#allocation3 + $0x8] sm:$0xff]
        %s3904 = scalar_lea.vmem %s171, 384 [#allocation4]
        %v3905 = vld [vmem:[%s3904] sm:$0xff]
        %v3906 = vld [vmem:[%s3904 + $0x8] sm:$0xff]
        %v3907 = vld [vmem:[%s3904 + $0x10] sm:$0xff]
        %v3908 = vld [vmem:[%s3904 + $0x18] sm:$0xff]
        %v3909 = vld [vmem:[%s3904 + $0x20] sm:$0xff]
        %v3910 = vld [vmem:[%s3904 + $0x28] sm:$0xff]
        %v3911 = vld [vmem:[%s3904 + $0x30] sm:$0xff]
        %v3912 = vld [vmem:[%s3904 + $0x38] sm:$0xff]
        %v3913 = vld [vmem:[#allocation7] sm:$0xff]
        %v3914 = vld [vmem:[#allocation7 + $0x8] sm:$0xff]
        %v3915 = vld [vmem:[#allocation7 + $0x10] sm:$0xff]
        %v3916 = vld [vmem:[#allocation7 + $0x18] sm:$0xff]
        %v3917 = vld [vmem:[#allocation7 + $0x20] sm:$0xff]
        %v3918 = vld [vmem:[#allocation7 + $0x28] sm:$0xff]
        %v3919 = vld [vmem:[#allocation7 + $0x30] sm:$0xff]
        %v3920 = vld [vmem:[#allocation7 + $0x38] sm:$0xff]
        %v3921 = vld [vmem:[#allocation7 + $0x40] sm:$0xff]
        %v3922 = vld [vmem:[#allocation7 + $0x48] sm:$0xff]
        %v3923 = vld [vmem:[#allocation7 + $0x50] sm:$0xff]
        %v3924 = vld [vmem:[#allocation7 + $0x58] sm:$0xff]
        %v3925 = vld [vmem:[#allocation7 + $0x60] sm:$0xff]
        %v3926 = vld [vmem:[#allocation7 + $0x68] sm:$0xff]
        %v3927 = vld [vmem:[#allocation7 + $0x70] sm:$0xff]
        %v3928 = vld [vmem:[#allocation7 + $0x78] sm:$0xff]
        %v3929 = vld [vmem:[#allocation7 + $0x80] sm:$0xff]
        %v3930 = vld [vmem:[#allocation7 + $0x88] sm:$0xff]
        %v3931 = vld [vmem:[#allocation7 + $0x90] sm:$0xff]
        %v3932 = vld [vmem:[#allocation7 + $0x98] sm:$0xff]
        %v3933 = vld [vmem:[#allocation7 + $0xa0] sm:$0xff]
        %v3934 = vld [vmem:[#allocation7 + $0xa8] sm:$0xff]
        %v3935 = vld [vmem:[#allocation7 + $0xb0] sm:$0xff]
        %v3936 = vld [vmem:[#allocation7 + $0xb8] sm:$0xff]
        %v3937 = vld [vmem:[#allocation7 + $0xc0] sm:$0xff]
        %v3938 = vld [vmem:[#allocation7 + $0xc8] sm:$0xff]
        %v3939 = vld [vmem:[#allocation7 + $0xd0] sm:$0xff]
        %v3940 = vld [vmem:[#allocation7 + $0xd8] sm:$0xff]
        %v3941 = vld [vmem:[#allocation7 + $0xe0] sm:$0xff]
        %v3942 = vld [vmem:[#allocation7 + $0xe8] sm:$0xff]
        %v3943 = vld [vmem:[#allocation7 + $0xf0] sm:$0xff]
        %v3944 = vld [vmem:[#allocation7 + $0xf8] sm:$0xff]
        %v3945 = vld [vmem:[#allocation7 + $0x100] sm:$0xff]
        %v3946 = vld [vmem:[#allocation7 + $0x108] sm:$0xff]
        %v3947 = vld [vmem:[#allocation7 + $0x110] sm:$0xff]
        %v3948 = vld [vmem:[#allocation7 + $0x118] sm:$0xff]
        %v3949 = vld [vmem:[#allocation7 + $0x120] sm:$0xff]
        %v3950 = vld [vmem:[#allocation7 + $0x128] sm:$0xff]
        %v3951 = vld [vmem:[#allocation7 + $0x130] sm:$0xff]
        %v3952 = vld [vmem:[#allocation7 + $0x138] sm:$0xff]
        %v3953 = vld [vmem:[#allocation7 + $0x140] sm:$0xff]
        %v3954 = vld [vmem:[#allocation7 + $0x148] sm:$0xff]
        %v3955 = vld [vmem:[#allocation7 + $0x150] sm:$0xff]
        %v3956 = vld [vmem:[#allocation7 + $0x158] sm:$0xff]
        %v3957 = vld [vmem:[#allocation7 + $0x160] sm:$0xff]
        %v3958 = vld [vmem:[#allocation7 + $0x168] sm:$0xff]
        %v3959 = vld [vmem:[#allocation7 + $0x170] sm:$0xff]
        %v3960 = vld [vmem:[#allocation7 + $0x178] sm:$0xff]
        %v3961 = vld [vmem:[#allocation7 + $0x180] sm:$0xff]
        %v3962 = vld [vmem:[#allocation7 + $0x188] sm:$0xff]
        %v3963 = vld [vmem:[#allocation7 + $0x190] sm:$0xff]
        %v3964 = vld [vmem:[#allocation7 + $0x198] sm:$0xff]
        %v3965 = vld [vmem:[#allocation7 + $0x1a0] sm:$0xff]
        %v3966 = vld [vmem:[#allocation7 + $0x1a8] sm:$0xff]
        %v3967 = vld [vmem:[#allocation7 + $0x1b0] sm:$0xff]
        %v3968 = vld [vmem:[#allocation7 + $0x1b8] sm:$0xff]
        %v3969 = vld [vmem:[#allocation7 + $0x1c0] sm:$0xff]
        %v3970 = vld [vmem:[#allocation7 + $0x1c8] sm:$0xff]
        %v3971 = vld [vmem:[#allocation7 + $0x1d0] sm:$0xff]
        %v3972 = vld [vmem:[#allocation7 + $0x1d8] sm:$0xff]
        %v3973 = vld [vmem:[#allocation7 + $0x1e0] sm:$0xff]
        %v3974 = vld [vmem:[#allocation7 + $0x1e8] sm:$0xff]
        %v3975 = vld [vmem:[#allocation7 + $0x1f0] sm:$0xff]
        %v3976 = vld [vmem:[#allocation7 + $0x1f8] sm:$0xff]
        %v3977 = vld [vmem:[#allocation7 + $0x200] sm:$0xff]
        %v3978 = vld [vmem:[#allocation7 + $0x208] sm:$0xff]
        %v3979 = vld [vmem:[#allocation7 + $0x210] sm:$0xff]
        %v3980 = vld [vmem:[#allocation7 + $0x218] sm:$0xff]
        %v3981 = vld [vmem:[#allocation7 + $0x220] sm:$0xff]
        %v3982 = vld [vmem:[#allocation7 + $0x228] sm:$0xff]
        %v3983 = vld [vmem:[#allocation7 + $0x230] sm:$0xff]
        %v3984 = vld [vmem:[#allocation7 + $0x238] sm:$0xff]
        %v3985 = vld [vmem:[#allocation7 + $0x240] sm:$0xff]
        %v3986 = vld [vmem:[#allocation7 + $0x248] sm:$0xff]
        %v3987 = vld [vmem:[#allocation7 + $0x250] sm:$0xff]
        %v3988 = vld [vmem:[#allocation7 + $0x258] sm:$0xff]
        %v3989 = vld [vmem:[#allocation7 + $0x260] sm:$0xff]
        %v3990 = vld [vmem:[#allocation7 + $0x268] sm:$0xff]
        %v3991 = vld [vmem:[#allocation7 + $0x270] sm:$0xff]
        %v3992 = vld [vmem:[#allocation7 + $0x278] sm:$0xff]
        %v3993 = vld [vmem:[#allocation7 + $0x280] sm:$0xff]
        %v3994 = vld [vmem:[#allocation7 + $0x288] sm:$0xff]
        %v3995 = vld [vmem:[#allocation7 + $0x290] sm:$0xff]
        %v3996 = vld [vmem:[#allocation7 + $0x298] sm:$0xff]
        %v3997 = vld [vmem:[#allocation7 + $0x2a0] sm:$0xff]
        %v3998 = vld [vmem:[#allocation7 + $0x2a8] sm:$0xff]
        %v3999 = vld [vmem:[#allocation7 + $0x2b0] sm:$0xff]
        %v4000 = vld [vmem:[#allocation7 + $0x2b8] sm:$0xff]
        %v4001 = vld [vmem:[#allocation7 + $0x2c0] sm:$0xff]
        %v4002 = vld [vmem:[#allocation7 + $0x2c8] sm:$0xff]
        %v4003 = vld [vmem:[#allocation7 + $0x2d0] sm:$0xff]
        %v4004 = vld [vmem:[#allocation7 + $0x2d8] sm:$0xff]
        %v4005 = vld [vmem:[#allocation7 + $0x2e0] sm:$0xff]
        %v4006 = vld [vmem:[#allocation7 + $0x2e8] sm:$0xff]
        %v4007 = vld [vmem:[#allocation7 + $0x2f0] sm:$0xff]
        %v4008 = vld [vmem:[#allocation7 + $0x2f8] sm:$0xff]
        %v4009 = vld [vmem:[#allocation7 + $0x300] sm:$0xff]
        %v4010 = vld [vmem:[#allocation7 + $0x308] sm:$0xff]
        %v4011 = vld [vmem:[#allocation7 + $0x310] sm:$0xff]
        %v4012 = vld [vmem:[#allocation7 + $0x318] sm:$0xff]
        %v4013 = vld [vmem:[#allocation7 + $0x320] sm:$0xff]
        %v4014 = vld [vmem:[#allocation7 + $0x328] sm:$0xff]
        %v4015 = vld [vmem:[#allocation7 + $0x330] sm:$0xff]
        %v4016 = vld [vmem:[#allocation7 + $0x338] sm:$0xff]
        %v4017 = vld [vmem:[#allocation7 + $0x340] sm:$0xff]
        %v4018 = vld [vmem:[#allocation7 + $0x348] sm:$0xff]
        %v4019 = vld [vmem:[#allocation7 + $0x350] sm:$0xff]
        %v4020 = vld [vmem:[#allocation7 + $0x358] sm:$0xff]
        %v4021 = vld [vmem:[#allocation7 + $0x360] sm:$0xff]
        %v4022 = vld [vmem:[#allocation7 + $0x368] sm:$0xff]
        %v4023 = vld [vmem:[#allocation7 + $0x370] sm:$0xff]
        %v4024 = vld [vmem:[#allocation7 + $0x378] sm:$0xff]
        %v4025 = vld [vmem:[#allocation7 + $0x380] sm:$0xff]
        %v4026 = vld [vmem:[#allocation7 + $0x388] sm:$0xff]
        %v4027 = vld [vmem:[#allocation7 + $0x390] sm:$0xff]
        %v4028 = vld [vmem:[#allocation7 + $0x398] sm:$0xff]
        %v4029 = vld [vmem:[#allocation7 + $0x3a0] sm:$0xff]
        %v4030 = vld [vmem:[#allocation7 + $0x3a8] sm:$0xff]
        %v4031 = vld [vmem:[#allocation7 + $0x3b0] sm:$0xff]
        %v4032 = vld [vmem:[#allocation7 + $0x3b8] sm:$0xff]
        %v4033 = vld [vmem:[#allocation7 + $0x3c0] sm:$0xff]
        %v4034 = vld [vmem:[#allocation7 + $0x3c8] sm:$0xff]
        %v4035 = vld [vmem:[#allocation7 + $0x3d0] sm:$0xff]
        %v4036 = vld [vmem:[#allocation7 + $0x3d8] sm:$0xff]
        %v4037 = vld [vmem:[#allocation7 + $0x3e0] sm:$0xff]
        %v4038 = vld [vmem:[#allocation7 + $0x3e8] sm:$0xff]
        %v4039 = vld [vmem:[#allocation7 + $0x3f0] sm:$0xff]
        %v4040 = vld [vmem:[#allocation7 + $0x3f8] sm:$0xff]
        %v4041 = vld [vmem:[#allocation7 + $0x400] sm:$0xff]
        %v4042 = vld [vmem:[#allocation7 + $0x408] sm:$0xff]
        %v4043 = vld [vmem:[#allocation7 + $0x410] sm:$0xff]
        %v4044 = vld [vmem:[#allocation7 + $0x418] sm:$0xff]
        %v4045 = vld [vmem:[#allocation7 + $0x420] sm:$0xff]
        %v4046 = vld [vmem:[#allocation7 + $0x428] sm:$0xff]
        %v4047 = vld [vmem:[#allocation7 + $0x430] sm:$0xff]
        %v4048 = vld [vmem:[#allocation7 + $0x438] sm:$0xff]
        %v4049 = vld [vmem:[#allocation7 + $0x440] sm:$0xff]
        %v4050 = vld [vmem:[#allocation7 + $0x448] sm:$0xff]
        %v4051 = vld [vmem:[#allocation7 + $0x450] sm:$0xff]
        %v4052 = vld [vmem:[#allocation7 + $0x458] sm:$0xff]
        %v4053 = vld [vmem:[#allocation7 + $0x460] sm:$0xff]
        %v4054 = vld [vmem:[#allocation7 + $0x468] sm:$0xff]
        %v4055 = vld [vmem:[#allocation7 + $0x470] sm:$0xff]
        %v4056 = vld [vmem:[#allocation7 + $0x478] sm:$0xff]
        %v4057 = vld [vmem:[#allocation7 + $0x480] sm:$0xff]
        %v4058 = vld [vmem:[#allocation7 + $0x488] sm:$0xff]
        %v4059 = vld [vmem:[#allocation7 + $0x490] sm:$0xff]
        %v4060 = vld [vmem:[#allocation7 + $0x498] sm:$0xff]
        %v4061 = vld [vmem:[#allocation7 + $0x4a0] sm:$0xff]
        %v4062 = vld [vmem:[#allocation7 + $0x4a8] sm:$0xff]
        %v4063 = vld [vmem:[#allocation7 + $0x4b0] sm:$0xff]
        %v4064 = vld [vmem:[#allocation7 + $0x4b8] sm:$0xff]
        %v4065 = vld [vmem:[#allocation7 + $0x4c0] sm:$0xff]
        %v4066 = vld [vmem:[#allocation7 + $0x4c8] sm:$0xff]
        %v4067 = vld [vmem:[#allocation7 + $0x4d0] sm:$0xff]
        %v4068 = vld [vmem:[#allocation7 + $0x4d8] sm:$0xff]
        %v4069 = vld [vmem:[#allocation7 + $0x4e0] sm:$0xff]
        %v4070 = vld [vmem:[#allocation7 + $0x4e8] sm:$0xff]
        %v4071 = vld [vmem:[#allocation7 + $0x4f0] sm:$0xff]
        %v4072 = vld [vmem:[#allocation7 + $0x4f8] sm:$0xff]
        %v4073 = vld [vmem:[#allocation7 + $0x500] sm:$0xff]
        %v4074 = vld [vmem:[#allocation7 + $0x508] sm:$0xff]
        %v4075 = vld [vmem:[#allocation7 + $0x510] sm:$0xff]
        %v4076 = vld [vmem:[#allocation7 + $0x518] sm:$0xff]
        %v4077 = vld [vmem:[#allocation7 + $0x520] sm:$0xff]
        %v4078 = vld [vmem:[#allocation7 + $0x528] sm:$0xff]
        %v4079 = vld [vmem:[#allocation7 + $0x530] sm:$0xff]
        %v4080 = vld [vmem:[#allocation7 + $0x538] sm:$0xff]
        %v4081 = vld [vmem:[#allocation7 + $0x540] sm:$0xff]
        %v4082 = vld [vmem:[#allocation7 + $0x548] sm:$0xff]
        %v4083 = vld [vmem:[#allocation7 + $0x550] sm:$0xff]
        %v4084 = vld [vmem:[#allocation7 + $0x558] sm:$0xff]
        %v4085 = vld [vmem:[#allocation7 + $0x560] sm:$0xff]
        %v4086 = vld [vmem:[#allocation7 + $0x568] sm:$0xff]
        %v4087 = vld [vmem:[#allocation7 + $0x570] sm:$0xff]
        %v4088 = vld [vmem:[#allocation7 + $0x578] sm:$0xff]
        %v4089 = vld [vmem:[#allocation7 + $0x580] sm:$0xff]
        %v4090 = vld [vmem:[#allocation7 + $0x588] sm:$0xff]
        %v4091 = vld [vmem:[#allocation7 + $0x590] sm:$0xff]
        %v4092 = vld [vmem:[#allocation7 + $0x598] sm:$0xff]
        %v4093 = vld [vmem:[#allocation7 + $0x5a0] sm:$0xff]
        %v4094 = vld [vmem:[#allocation7 + $0x5a8] sm:$0xff]
        %v4095 = vld [vmem:[#allocation7 + $0x5b0] sm:$0xff]
        %v4096 = vld [vmem:[#allocation7 + $0x5b8] sm:$0xff]
        %v4097 = vld [vmem:[#allocation7 + $0x5c0] sm:$0xff]
        %v4098 = vld [vmem:[#allocation7 + $0x5c8] sm:$0xff]
        %v4099 = vld [vmem:[#allocation7 + $0x5d0] sm:$0xff]
        %v4100 = vld [vmem:[#allocation7 + $0x5d8] sm:$0xff]
        %v4101 = vld [vmem:[#allocation7 + $0x5e0] sm:$0xff]
        %v4102 = vld [vmem:[#allocation7 + $0x5e8] sm:$0xff]
        %v4103 = vld [vmem:[#allocation7 + $0x5f0] sm:$0xff]
        %v4104 = vld [vmem:[#allocation7 + $0x5f8] sm:$0xff]
        %v4105 = vld [vmem:[#allocation7 + $0x600] sm:$0xff]
        %v4106 = vld [vmem:[#allocation7 + $0x608] sm:$0xff]
        %v4107 = vld [vmem:[#allocation7 + $0x610] sm:$0xff]
        %v4108 = vld [vmem:[#allocation7 + $0x618] sm:$0xff]
        %v4109 = vld [vmem:[#allocation7 + $0x620] sm:$0xff]
        %v4110 = vld [vmem:[#allocation7 + $0x628] sm:$0xff]
        %v4111 = vld [vmem:[#allocation7 + $0x630] sm:$0xff]
        %v4112 = vld [vmem:[#allocation7 + $0x638] sm:$0xff]
        %v4113 = vld [vmem:[#allocation7 + $0x640] sm:$0xff]
        %v4114 = vld [vmem:[#allocation7 + $0x648] sm:$0xff]
        %v4115 = vld [vmem:[#allocation7 + $0x650] sm:$0xff]
        %v4116 = vld [vmem:[#allocation7 + $0x658] sm:$0xff]
        %v4117 = vld [vmem:[#allocation7 + $0x660] sm:$0xff]
        %v4118 = vld [vmem:[#allocation7 + $0x668] sm:$0xff]
        %v4119 = vld [vmem:[#allocation7 + $0x670] sm:$0xff]
        %v4120 = vld [vmem:[#allocation7 + $0x678] sm:$0xff]
        %v4121 = vld [vmem:[#allocation7 + $0x680] sm:$0xff]
        %v4122 = vld [vmem:[#allocation7 + $0x688] sm:$0xff]
        %v4123 = vld [vmem:[#allocation7 + $0x690] sm:$0xff]
        %v4124 = vld [vmem:[#allocation7 + $0x698] sm:$0xff]
        %v4125 = vld [vmem:[#allocation7 + $0x6a0] sm:$0xff]
        %v4126 = vld [vmem:[#allocation7 + $0x6a8] sm:$0xff]
        %v4127 = vld [vmem:[#allocation7 + $0x6b0] sm:$0xff]
        %v4128 = vld [vmem:[#allocation7 + $0x6b8] sm:$0xff]
        %v4129 = vld [vmem:[#allocation7 + $0x6c0] sm:$0xff]
        %v4130 = vld [vmem:[#allocation7 + $0x6c8] sm:$0xff]
        %v4131 = vld [vmem:[#allocation7 + $0x6d0] sm:$0xff]
        %v4132 = vld [vmem:[#allocation7 + $0x6d8] sm:$0xff]
        %v4133 = vld [vmem:[#allocation7 + $0x6e0] sm:$0xff]
        %v4134 = vld [vmem:[#allocation7 + $0x6e8] sm:$0xff]
        %v4135 = vld [vmem:[#allocation7 + $0x6f0] sm:$0xff]
        %v4136 = vld [vmem:[#allocation7 + $0x6f8] sm:$0xff]
        %v4137 = vld [vmem:[#allocation7 + $0x700] sm:$0xff]
        %v4138 = vld [vmem:[#allocation7 + $0x708] sm:$0xff]
        %v4139 = vld [vmem:[#allocation7 + $0x710] sm:$0xff]
        %v4140 = vld [vmem:[#allocation7 + $0x718] sm:$0xff]
        %v4141 = vld [vmem:[#allocation7 + $0x720] sm:$0xff]
        %v4142 = vld [vmem:[#allocation7 + $0x728] sm:$0xff]
        %v4143 = vld [vmem:[#allocation7 + $0x730] sm:$0xff]
        %v4144 = vld [vmem:[#allocation7 + $0x738] sm:$0xff]
        %v4145 = vld [vmem:[#allocation7 + $0x740] sm:$0xff]
        %v4146 = vld [vmem:[#allocation7 + $0x748] sm:$0xff]
        %v4147 = vld [vmem:[#allocation7 + $0x750] sm:$0xff]
        %v4148 = vld [vmem:[#allocation7 + $0x758] sm:$0xff]
        %v4149 = vld [vmem:[#allocation7 + $0x760] sm:$0xff]
        %v4150 = vld [vmem:[#allocation7 + $0x768] sm:$0xff]
        %v4151 = vld [vmem:[#allocation7 + $0x770] sm:$0xff]
        %v4152 = vld [vmem:[#allocation7 + $0x778] sm:$0xff]
        %v4153 = vld [vmem:[#allocation7 + $0x780] sm:$0xff]
        %v4154 = vld [vmem:[#allocation7 + $0x788] sm:$0xff]
        %v4155 = vld [vmem:[#allocation7 + $0x790] sm:$0xff]
        %v4156 = vld [vmem:[#allocation7 + $0x798] sm:$0xff]
        %v4157 = vld [vmem:[#allocation7 + $0x7a0] sm:$0xff]
        %v4158 = vld [vmem:[#allocation7 + $0x7a8] sm:$0xff]
        %v4159 = vld [vmem:[#allocation7 + $0x7b0] sm:$0xff]
        %v4160 = vld [vmem:[#allocation7 + $0x7b8] sm:$0xff]
        %v4161 = vld [vmem:[#allocation7 + $0x7c0] sm:$0xff]
        %v4162 = vld [vmem:[#allocation7 + $0x7c8] sm:$0xff]
        %v4163 = vld [vmem:[#allocation7 + $0x7d0] sm:$0xff]
        %v4164 = vld [vmem:[#allocation7 + $0x7d8] sm:$0xff]
        %v4165 = vld [vmem:[#allocation7 + $0x7e0] sm:$0xff]
        %v4166 = vld [vmem:[#allocation7 + $0x7e8] sm:$0xff]
        %v4167 = vld [vmem:[#allocation7 + $0x7f0] sm:$0xff]
        %v4168 = vld [vmem:[#allocation7 + $0x7f8] sm:$0xff]
        %4169 = vmatprep.subr.mxu0 %v3914
        %4170 = vmatpush1.msra.mxu0 %v3913
        %4171 = vmatprep.subr.mxu0 %v3922
        %4172 = vmatpush1.msra.mxu0 %v3921
        %4173 = vmatprep.subr.mxu0 %v3930
        %4174 = vmatpush1.msra.mxu0 %v3929
        %4175 = vmatprep.subr.mxu0 %v3938
        %4176 = vmatpush1.msra.mxu0 %v3937
        %4177 = vmatprep.subr.mxu0 %v3946
        %4178 = vmatpush1.msra.mxu0 %v3945
        %4179 = vmatprep.subr.mxu0 %v3954
        %4180 = vmatpush1.msra.mxu0 %v3953
        %4181 = vmatprep.subr.mxu0 %v3962
        %4182 = vmatpush1.msra.mxu0 %v3961
        %4183 = vmatprep.subr.mxu0 %v3970
        %4184 = vmatpush1.msra.mxu0 %v3969
        %4185 = vmatprep.subr.mxu0 %v3978
        %4186 = vmatpush1.msra.mxu0 %v3977
        %4187 = vmatprep.subr.mxu0 %v3986
        %4188 = vmatpush1.msra.mxu0 %v3985
        %4189 = vmatprep.subr.mxu0 %v3994
        %4190 = vmatpush1.msra.mxu0 %v3993
        %4191 = vmatprep.subr.mxu0 %v4002
        %4192 = vmatpush1.msra.mxu0 %v4001
        %4193 = vmatprep.subr.mxu0 %v4010
        %4194 = vmatpush1.msra.mxu0 %v4009
        %4195 = vmatprep.subr.mxu0 %v4018
        %4196 = vmatpush1.msra.mxu0 %v4017
        %4197 = vmatprep.subr.mxu0 %v4026
        %4198 = vmatpush1.msra.mxu0 %v4025
        %4199 = vmatprep.subr.mxu0 %v4034
        %4200 = vmatpush1.msra.mxu0 %v4033
        %4201 = vmatprep.subr.mxu0 %v4042
        %4202 = vmatpush1.msra.mxu0 %v4041
        %4203 = vmatprep.subr.mxu0 %v4050
        %4204 = vmatpush1.msra.mxu0 %v4049
        %4205 = vmatprep.subr.mxu0 %v4058
        %4206 = vmatpush1.msra.mxu0 %v4057
        %4207 = vmatprep.subr.mxu0 %v4066
        %4208 = vmatpush1.msra.mxu0 %v4065
        %4209 = vmatprep.subr.mxu0 %v4074
        %4210 = vmatpush1.msra.mxu0 %v4073
        %4211 = vmatprep.subr.mxu0 %v4082
        %4212 = vmatpush1.msra.mxu0 %v4081
        %4213 = vmatprep.subr.mxu0 %v4090
        %4214 = vmatpush1.msra.mxu0 %v4089
        %4215 = vmatprep.subr.mxu0 %v4098
        %4216 = vmatpush1.msra.mxu0 %v4097
        %4217 = vmatprep.subr.mxu0 %v4106
        %4218 = vmatpush1.msra.mxu0 %v4105
        %4219 = vmatprep.subr.mxu0 %v4114
        %4220 = vmatpush1.msra.mxu0 %v4113
        %4221 = vmatprep.subr.mxu0 %v4122
        %4222 = vmatpush1.msra.mxu0 %v4121
        %4223 = vmatprep.subr.mxu0 %v4130
        %4224 = vmatpush1.msra.mxu0 %v4129
        %4225 = vmatprep.subr.mxu0 %v4138
        %4226 = vmatpush1.msra.mxu0 %v4137
        %4227 = vmatprep.subr.mxu0 %v4146
        %4228 = vmatpush1.msra.mxu0 %v4145
        %4229 = vmatprep.subr.mxu0 %v4154
        %4230 = vmatpush1.msra.mxu0 %v4153
        %4231 = vmatprep.subr.mxu0 %v4162
        %4232 = vmatpush1.msra.mxu0 %v4161
        %4233 = vmatprep.mubr.f32.mxu0 %v3901
        %4234 = vmatmul.mubr.f32.gmra.mrb[0].mxu0 %v3900
        %v4235 = vpop.f32.mrb[0].mxu0
        %v4236 = vadd.f32 0.0, %v4235
        %v4237 = vpop.f32.mrb[0].mxu0
        %v4238 = vadd.f32 0.0, %v4237
        %4239 = vdwg.mxu0
        %4240 = vmatprep.subr.mxu0 %v3916
        %4241 = vmatpush1.msra.mxu0 %v3915
        %4242 = vmatprep.subr.mxu0 %v3924
        %4243 = vmatpush1.msra.mxu0 %v3923
        %4244 = vmatprep.subr.mxu0 %v3932
        %4245 = vmatpush1.msra.mxu0 %v3931
        %4246 = vmatprep.subr.mxu0 %v3940
        %4247 = vmatpush1.msra.mxu0 %v3939
        %4248 = vmatprep.subr.mxu0 %v3948
        %4249 = vmatpush1.msra.mxu0 %v3947
        %4250 = vmatprep.subr.mxu0 %v3956
        %4251 = vmatpush1.msra.mxu0 %v3955
        %4252 = vmatprep.subr.mxu0 %v3964
        %4253 = vmatpush1.msra.mxu0 %v3963
        %4254 = vmatprep.subr.mxu0 %v3972
        %4255 = vmatpush1.msra.mxu0 %v3971
        %4256 = vmatprep.subr.mxu0 %v3980
        %4257 = vmatpush1.msra.mxu0 %v3979
        %4258 = vmatprep.subr.mxu0 %v3988
        %4259 = vmatpush1.msra.mxu0 %v3987
        %4260 = vmatprep.subr.mxu0 %v3996
        %4261 = vmatpush1.msra.mxu0 %v3995
        %4262 = vmatprep.subr.mxu0 %v4004
        %4263 = vmatpush1.msra.mxu0 %v4003
        %4264 = vmatprep.subr.mxu0 %v4012
        %4265 = vmatpush1.msra.mxu0 %v4011
        %4266 = vmatprep.subr.mxu0 %v4020
        %4267 = vmatpush1.msra.mxu0 %v4019
        %4268 = vmatprep.subr.mxu0 %v4028
        %4269 = vmatpush1.msra.mxu0 %v4027
        %4270 = vmatprep.subr.mxu0 %v4036
        %4271 = vmatpush1.msra.mxu0 %v4035
        %4272 = vmatprep.subr.mxu0 %v4044
        %4273 = vmatpush1.msra.mxu0 %v4043
        %4274 = vmatprep.subr.mxu0 %v4052
        %4275 = vmatpush1.msra.mxu0 %v4051
        %4276 = vmatprep.subr.mxu0 %v4060
        %4277 = vmatpush1.msra.mxu0 %v4059
        %4278 = vmatprep.subr.mxu0 %v4068
        %4279 = vmatpush1.msra.mxu0 %v4067
        %4280 = vmatprep.subr.mxu0 %v4076
        %4281 = vmatpush1.msra.mxu0 %v4075
        %4282 = vmatprep.subr.mxu0 %v4084
        %4283 = vmatpush1.msra.mxu0 %v4083
        %4284 = vmatprep.subr.mxu0 %v4092
        %4285 = vmatpush1.msra.mxu0 %v4091
        %4286 = vmatprep.subr.mxu0 %v4100
        %4287 = vmatpush1.msra.mxu0 %v4099
        %4288 = vmatprep.subr.mxu0 %v4108
        %4289 = vmatpush1.msra.mxu0 %v4107
        %4290 = vmatprep.subr.mxu0 %v4116
        %4291 = vmatpush1.msra.mxu0 %v4115
        %4292 = vmatprep.subr.mxu0 %v4124
        %4293 = vmatpush1.msra.mxu0 %v4123
        %4294 = vmatprep.subr.mxu0 %v4132
        %4295 = vmatpush1.msra.mxu0 %v4131
        %4296 = vmatprep.subr.mxu0 %v4140
        %4297 = vmatpush1.msra.mxu0 %v4139
        %4298 = vmatprep.subr.mxu0 %v4148
        %4299 = vmatpush1.msra.mxu0 %v4147
        %4300 = vmatprep.subr.mxu0 %v4156
        %4301 = vmatpush1.msra.mxu0 %v4155
        %4302 = vmatprep.subr.mxu0 %v4164
        %4303 = vmatpush1.msra.mxu0 %v4163
        %4304 = vmatprep.mubr.f32.mxu0 %v3901
        %4305 = vmatmul.mubr.f32.gmra.mrb[0].mxu0 %v3900
        %v4306 = vpop.f32.mrb[0].mxu0
        %v4307 = vadd.f32 0.0, %v4306
        %v4308 = vpop.f32.mrb[0].mxu0
        %v4309 = vadd.f32 0.0, %v4308
        %4310 = vdwg.mxu0
        %4311 = vmatprep.subr.mxu0 %v3918
        %4312 = vmatpush1.msra.mxu0 %v3917
        %4313 = vmatprep.subr.mxu0 %v3926
        %4314 = vmatpush1.msra.mxu0 %v3925
        %4315 = vmatprep.subr.mxu0 %v3934
        %4316 = vmatpush1.msra.mxu0 %v3933
        %4317 = vmatprep.subr.mxu0 %v3942
        %4318 = vmatpush1.msra.mxu0 %v3941
        %4319 = vmatprep.subr.mxu0 %v3950
        %4320 = vmatpush1.msra.mxu0 %v3949
        %4321 = vmatprep.subr.mxu0 %v3958
        %4322 = vmatpush1.msra.mxu0 %v3957
        %4323 = vmatprep.subr.mxu0 %v3966
        %4324 = vmatpush1.msra.mxu0 %v3965
        %4325 = vmatprep.subr.mxu0 %v3974
        %4326 = vmatpush1.msra.mxu0 %v3973
        %4327 = vmatprep.subr.mxu0 %v3982
        %4328 = vmatpush1.msra.mxu0 %v3981
        %4329 = vmatprep.subr.mxu0 %v3990
        %4330 = vmatpush1.msra.mxu0 %v3989
        %4331 = vmatprep.subr.mxu0 %v3998
        %4332 = vmatpush1.msra.mxu0 %v3997
        %4333 = vmatprep.subr.mxu0 %v4006
        %4334 = vmatpush1.msra.mxu0 %v4005
        %4335 = vmatprep.subr.mxu0 %v4014
        %4336 = vmatpush1.msra.mxu0 %v4013
        %4337 = vmatprep.subr.mxu0 %v4022
        %4338 = vmatpush1.msra.mxu0 %v4021
        %4339 = vmatprep.subr.mxu0 %v4030
        %4340 = vmatpush1.msra.mxu0 %v4029
        %4341 = vmatprep.subr.mxu0 %v4038
        %4342 = vmatpush1.msra.mxu0 %v4037
        %4343 = vmatprep.subr.mxu0 %v4046
        %4344 = vmatpush1.msra.mxu0 %v4045
        %4345 = vmatprep.subr.mxu0 %v4054
        %4346 = vmatpush1.msra.mxu0 %v4053
        %4347 = vmatprep.subr.mxu0 %v4062
        %4348 = vmatpush1.msra.mxu0 %v4061
        %4349 = vmatprep.subr.mxu0 %v4070
        %4350 = vmatpush1.msra.mxu0 %v4069
        %4351 = vmatprep.subr.mxu0 %v4078
        %4352 = vmatpush1.msra.mxu0 %v4077
        %4353 = vmatprep.subr.mxu0 %v4086
        %4354 = vmatpush1.msra.mxu0 %v4085
        %4355 = vmatprep.subr.mxu0 %v4094
        %4356 = vmatpush1.msra.mxu0 %v4093
        %4357 = vmatprep.subr.mxu0 %v4102
        %4358 = vmatpush1.msra.mxu0 %v4101
        %4359 = vmatprep.subr.mxu0 %v4110
        %4360 = vmatpush1.msra.mxu0 %v4109
        %4361 = vmatprep.subr.mxu0 %v4118
        %4362 = vmatpush1.msra.mxu0 %v4117
        %4363 = vmatprep.subr.mxu0 %v4126
        %4364 = vmatpush1.msra.mxu0 %v4125
        %4365 = vmatprep.subr.mxu0 %v4134
        %4366 = vmatpush1.msra.mxu0 %v4133
        %4367 = vmatprep.subr.mxu0 %v4142
        %4368 = vmatpush1.msra.mxu0 %v4141
        %4369 = vmatprep.subr.mxu0 %v4150
        %4370 = vmatpush1.msra.mxu0 %v4149
        %4371 = vmatprep.subr.mxu0 %v4158
        %4372 = vmatpush1.msra.mxu0 %v4157
        %4373 = vmatprep.subr.mxu0 %v4166
        %4374 = vmatpush1.msra.mxu0 %v4165
        %4375 = vmatprep.mubr.f32.mxu0 %v3901
        %4376 = vmatmul.mubr.f32.gmra.mrb[0].mxu0 %v3900
        %v4377 = vpop.f32.mrb[0].mxu0
        %v4378 = vadd.f32 0.0, %v4377
        %v4379 = vpop.f32.mrb[0].mxu0
        %v4380 = vadd.f32 0.0, %v4379
        %4381 = vdwg.mxu0
        %4382 = vmatprep.subr.mxu0 %v3920
        %4383 = vmatpush1.msra.mxu0 %v3919
        %4384 = vmatprep.subr.mxu0 %v3928
        %4385 = vmatpush1.msra.mxu0 %v3927
        %4386 = vmatprep.subr.mxu0 %v3936
        %4387 = vmatpush1.msra.mxu0 %v3935
        %4388 = vmatprep.subr.mxu0 %v3944
        %4389 = vmatpush1.msra.mxu0 %v3943
        %4390 = vmatprep.subr.mxu0 %v3952
        %4391 = vmatpush1.msra.mxu0 %v3951
        %4392 = vmatprep.subr.mxu0 %v3960
        %4393 = vmatpush1.msra.mxu0 %v3959
        %4394 = vmatprep.subr.mxu0 %v3968
        %4395 = vmatpush1.msra.mxu0 %v3967
        %4396 = vmatprep.subr.mxu0 %v3976
        %4397 = vmatpush1.msra.mxu0 %v3975
        %4398 = vmatprep.subr.mxu0 %v3984
        %4399 = vmatpush1.msra.mxu0 %v3983
        %4400 = vmatprep.subr.mxu0 %v3992
        %4401 = vmatpush1.msra.mxu0 %v3991
        %4402 = vmatprep.subr.mxu0 %v4000
        %4403 = vmatpush1.msra.mxu0 %v3999
        %4404 = vmatprep.subr.mxu0 %v4008
        %4405 = vmatpush1.msra.mxu0 %v4007
        %4406 = vmatprep.subr.mxu0 %v4016
        %4407 = vmatpush1.msra.mxu0 %v4015
        %4408 = vmatprep.subr.mxu0 %v4024
        %4409 = vmatpush1.msra.mxu0 %v4023
        %4410 = vmatprep.subr.mxu0 %v4032
        %4411 = vmatpush1.msra.mxu0 %v4031
        %4412 = vmatprep.subr.mxu0 %v4040
        %4413 = vmatpush1.msra.mxu0 %v4039
        %4414 = vmatprep.subr.mxu0 %v4048
        %4415 = vmatpush1.msra.mxu0 %v4047
        %4416 = vmatprep.subr.mxu0 %v4056
        %4417 = vmatpush1.msra.mxu0 %v4055
        %4418 = vmatprep.subr.mxu0 %v4064
        %4419 = vmatpush1.msra.mxu0 %v4063
        %4420 = vmatprep.subr.mxu0 %v4072
        %4421 = vmatpush1.msra.mxu0 %v4071
        %4422 = vmatprep.subr.mxu0 %v4080
        %4423 = vmatpush1.msra.mxu0 %v4079
        %4424 = vmatprep.subr.mxu0 %v4088
        %4425 = vmatpush1.msra.mxu0 %v4087
        %4426 = vmatprep.subr.mxu0 %v4096
        %4427 = vmatpush1.msra.mxu0 %v4095
        %4428 = vmatprep.subr.mxu0 %v4104
        %4429 = vmatpush1.msra.mxu0 %v4103
        %4430 = vmatprep.subr.mxu0 %v4112
        %4431 = vmatpush1.msra.mxu0 %v4111
        %4432 = vmatprep.subr.mxu0 %v4120
        %4433 = vmatpush1.msra.mxu0 %v4119
        %4434 = vmatprep.subr.mxu0 %v4128
        %4435 = vmatpush1.msra.mxu0 %v4127
        %4436 = vmatprep.subr.mxu0 %v4136
        %4437 = vmatpush1.msra.mxu0 %v4135
        %4438 = vmatprep.subr.mxu0 %v4144
        %4439 = vmatpush1.msra.mxu0 %v4143
        %4440 = vmatprep.subr.mxu0 %v4152
        %4441 = vmatpush1.msra.mxu0 %v4151
        %4442 = vmatprep.subr.mxu0 %v4160
        %4443 = vmatpush1.msra.mxu0 %v4159
        %4444 = vmatprep.subr.mxu0 %v4168
        %4445 = vmatpush1.msra.mxu0 %v4167
        %4446 = vmatprep.mubr.f32.mxu0 %v3901
        %4447 = vmatmul.mubr.f32.gmra.mrb[0].mxu0 %v3900
        %v4448 = vpop.f32.mrb[0].mxu0
        %v4449 = vadd.f32 0.0, %v4448
        %v4450 = vpop.f32.mrb[0].mxu0
        %v4451 = vadd.f32 0.0, %v4450
        %4452 = vdwg.mxu0
        %v4453 = vadd.f32 %v3905, %v4236
        %v4454 = vadd.f32 %v3906, %v4238
        %v4455 = vadd.f32 %v3907, %v4307
        %v4456 = vadd.f32 %v3908, %v4309
        %v4457 = vadd.f32 %v3909, %v4378
        %v4458 = vadd.f32 %v3910, %v4380
        %v4459 = vadd.f32 %v3911, %v4449
        %v4460 = vadd.f32 %v3912, %v4451
        %v4461 = vxor.u32 %v4453, 2147483648
        %v4462 = vxor.u32 %v4454, 2147483648
        %v4463 = vmul.f32 %v4461, 1.442695
        %v4464 = vpow.pop %v4463
        %v4465 = vmul.f32 %v4462, 1.442695
        %v4466 = vpow.pop %v4465
        %v4467 = vadd.f32 %v4464, 1.0
        %v4468 = vadd.f32 %v4466, 1.0
        %v4469 = vrcp.pop %v4467
        %v4470 = vmul.f32 1.0, %v4469
        %v4471 = vrcp.pop %v4468
        %v4472 = vmul.f32 1.0, %v4471
        %v4473 = vxor.u32 %v4455, 2147483648
        %v4474 = vxor.u32 %v4456, 2147483648
        %v4475 = vmul.f32 %v4473, 1.442695
        %v4476 = vpow.pop %v4475
        %v4477 = vmul.f32 %v4474, 1.442695
        %v4478 = vpow.pop %v4477
        %v4479 = vadd.f32 %v4476, 1.0
        %v4480 = vadd.f32 %v4478, 1.0
        %v4481 = vrcp.pop %v4479
        %v4482 = vmul.f32 1.0, %v4481
        %v4483 = vrcp.pop %v4480
        %v4484 = vmul.f32 1.0, %v4483
        %v4485 = vtanh.pop %v4457
        %v4486 = vtanh.pop %v4458
        %v4487 = vxor.u32 %v4459, 2147483648
        %v4488 = vxor.u32 %v4460, 2147483648
        %v4489 = vmul.f32 %v4487, 1.442695
        %v4490 = vpow.pop %v4489
        %v4491 = vmul.f32 %v4488, 1.442695
        %v4492 = vpow.pop %v4491
        %v4493 = vadd.f32 %v4490, 1.0
        %v4494 = vadd.f32 %v4492, 1.0
        %v4495 = vrcp.pop %v4493
        %v4496 = vmul.f32 1.0, %v4495
        %v4497 = vrcp.pop %v4494
        %v4498 = vmul.f32 1.0, %v4497
        %v4499 = vmul.f32 %v4482, %v3902
        %v4500 = vmul.f32 %v4484, %v3903
        %v4501 = vmul.f32 %v4470, %v4485
        %v4502 = vmul.f32 %v4472, %v4486
        %v4503 = vadd.f32 %v4499, %v4501
        %v4504 = vadd.f32 %v4500, %v4502
        %v4505 = vtanh.pop %v4503
        %v4506 = vtanh.pop %v4504
        %v4507 = vmul.f32 %v4496, %v4505
        %v4508 = vmul.f32 %v4498, %v4506
        %4509 = vst [vmem:[#allocation3] sm:$0xff] %v4503
        %4510 = vst [vmem:[#allocation3 + $0x8] sm:$0xff] %v4504
        %4511 = vst [vmem:[#allocation2] sm:$0xff] %v4507
        %4512 = vst [vmem:[#allocation2 + $0x8] sm:$0xff] %v4508
        %s4513 = scalar_lea.vmem %s195, 96 [#allocation9]
        %4514 = vst [vmem:[%s4513] sm:$0xff] %v4507
        %4515 = vst [vmem:[%s4513 + $0x8] sm:$0xff] %v4508
        %v4516 = vld [vmem:[#allocation2] sm:$0xff]
        %v4517 = vld [vmem:[#allocation2 + $0x8] sm:$0xff]
        %v4518 = vld [vmem:[#allocation3] sm:$0xff]
        %v4519 = vld [vmem:[#allocation3 + $0x8] sm:$0xff]
        %s4520 = scalar_lea.vmem %s171, 448 [#allocation4]
        %v4521 = vld [vmem:[%s4520] sm:$0xff]
        %v4522 = vld [vmem:[%s4520 + $0x8] sm:$0xff]
        %v4523 = vld [vmem:[%s4520 + $0x10] sm:$0xff]
        %v4524 = vld [vmem:[%s4520 + $0x18] sm:$0xff]
        %v4525 = vld [vmem:[%s4520 + $0x20] sm:$0xff]
        %v4526 = vld [vmem:[%s4520 + $0x28] sm:$0xff]
        %v4527 = vld [vmem:[%s4520 + $0x30] sm:$0xff]
        %v4528 = vld [vmem:[%s4520 + $0x38] sm:$0xff]
        %v4529 = vld [vmem:[#allocation7] sm:$0xff]
        %v4530 = vld [vmem:[#allocation7 + $0x8] sm:$0xff]
        %v4531 = vld [vmem:[#allocation7 + $0x10] sm:$0xff]
        %v4532 = vld [vmem:[#allocation7 + $0x18] sm:$0xff]
        %v4533 = vld [vmem:[#allocation7 + $0x20] sm:$0xff]
        %v4534 = vld [vmem:[#allocation7 + $0x28] sm:$0xff]
        %v4535 = vld [vmem:[#allocation7 + $0x30] sm:$0xff]
        %v4536 = vld [vmem:[#allocation7 + $0x38] sm:$0xff]
        %v4537 = vld [vmem:[#allocation7 + $0x40] sm:$0xff]
        %v4538 = vld [vmem:[#allocation7 + $0x48] sm:$0xff]
        %v4539 = vld [vmem:[#allocation7 + $0x50] sm:$0xff]
        %v4540 = vld [vmem:[#allocation7 + $0x58] sm:$0xff]
        %v4541 = vld [vmem:[#allocation7 + $0x60] sm:$0xff]
        %v4542 = vld [vmem:[#allocation7 + $0x68] sm:$0xff]
        %v4543 = vld [vmem:[#allocation7 + $0x70] sm:$0xff]
        %v4544 = vld [vmem:[#allocation7 + $0x78] sm:$0xff]
        %v4545 = vld [vmem:[#allocation7 + $0x80] sm:$0xff]
        %v4546 = vld [vmem:[#allocation7 + $0x88] sm:$0xff]
        %v4547 = vld [vmem:[#allocation7 + $0x90] sm:$0xff]
        %v4548 = vld [vmem:[#allocation7 + $0x98] sm:$0xff]
        %v4549 = vld [vmem:[#allocation7 + $0xa0] sm:$0xff]
        %v4550 = vld [vmem:[#allocation7 + $0xa8] sm:$0xff]
        %v4551 = vld [vmem:[#allocation7 + $0xb0] sm:$0xff]
        %v4552 = vld [vmem:[#allocation7 + $0xb8] sm:$0xff]
        %v4553 = vld [vmem:[#allocation7 + $0xc0] sm:$0xff]
        %v4554 = vld [vmem:[#allocation7 + $0xc8] sm:$0xff]
        %v4555 = vld [vmem:[#allocation7 + $0xd0] sm:$0xff]
        %v4556 = vld [vmem:[#allocation7 + $0xd8] sm:$0xff]
        %v4557 = vld [vmem:[#allocation7 + $0xe0] sm:$0xff]
        %v4558 = vld [vmem:[#allocation7 + $0xe8] sm:$0xff]
        %v4559 = vld [vmem:[#allocation7 + $0xf0] sm:$0xff]
        %v4560 = vld [vmem:[#allocation7 + $0xf8] sm:$0xff]
        %v4561 = vld [vmem:[#allocation7 + $0x100] sm:$0xff]
        %v4562 = vld [vmem:[#allocation7 + $0x108] sm:$0xff]
        %v4563 = vld [vmem:[#allocation7 + $0x110] sm:$0xff]
        %v4564 = vld [vmem:[#allocation7 + $0x118] sm:$0xff]
        %v4565 = vld [vmem:[#allocation7 + $0x120] sm:$0xff]
        %v4566 = vld [vmem:[#allocation7 + $0x128] sm:$0xff]
        %v4567 = vld [vmem:[#allocation7 + $0x130] sm:$0xff]
        %v4568 = vld [vmem:[#allocation7 + $0x138] sm:$0xff]
        %v4569 = vld [vmem:[#allocation7 + $0x140] sm:$0xff]
        %v4570 = vld [vmem:[#allocation7 + $0x148] sm:$0xff]
        %v4571 = vld [vmem:[#allocation7 + $0x150] sm:$0xff]
        %v4572 = vld [vmem:[#allocation7 + $0x158] sm:$0xff]
        %v4573 = vld [vmem:[#allocation7 + $0x160] sm:$0xff]
        %v4574 = vld [vmem:[#allocation7 + $0x168] sm:$0xff]
        %v4575 = vld [vmem:[#allocation7 + $0x170] sm:$0xff]
        %v4576 = vld [vmem:[#allocation7 + $0x178] sm:$0xff]
        %v4577 = vld [vmem:[#allocation7 + $0x180] sm:$0xff]
        %v4578 = vld [vmem:[#allocation7 + $0x188] sm:$0xff]
        %v4579 = vld [vmem:[#allocation7 + $0x190] sm:$0xff]
        %v4580 = vld [vmem:[#allocation7 + $0x198] sm:$0xff]
        %v4581 = vld [vmem:[#allocation7 + $0x1a0] sm:$0xff]
        %v4582 = vld [vmem:[#allocation7 + $0x1a8] sm:$0xff]
        %v4583 = vld [vmem:[#allocation7 + $0x1b0] sm:$0xff]
        %v4584 = vld [vmem:[#allocation7 + $0x1b8] sm:$0xff]
        %v4585 = vld [vmem:[#allocation7 + $0x1c0] sm:$0xff]
        %v4586 = vld [vmem:[#allocation7 + $0x1c8] sm:$0xff]
        %v4587 = vld [vmem:[#allocation7 + $0x1d0] sm:$0xff]
        %v4588 = vld [vmem:[#allocation7 + $0x1d8] sm:$0xff]
        %v4589 = vld [vmem:[#allocation7 + $0x1e0] sm:$0xff]
        %v4590 = vld [vmem:[#allocation7 + $0x1e8] sm:$0xff]
        %v4591 = vld [vmem:[#allocation7 + $0x1f0] sm:$0xff]
        %v4592 = vld [vmem:[#allocation7 + $0x1f8] sm:$0xff]
        %v4593 = vld [vmem:[#allocation7 + $0x200] sm:$0xff]
        %v4594 = vld [vmem:[#allocation7 + $0x208] sm:$0xff]
        %v4595 = vld [vmem:[#allocation7 + $0x210] sm:$0xff]
        %v4596 = vld [vmem:[#allocation7 + $0x218] sm:$0xff]
        %v4597 = vld [vmem:[#allocation7 + $0x220] sm:$0xff]
        %v4598 = vld [vmem:[#allocation7 + $0x228] sm:$0xff]
        %v4599 = vld [vmem:[#allocation7 + $0x230] sm:$0xff]
        %v4600 = vld [vmem:[#allocation7 + $0x238] sm:$0xff]
        %v4601 = vld [vmem:[#allocation7 + $0x240] sm:$0xff]
        %v4602 = vld [vmem:[#allocation7 + $0x248] sm:$0xff]
        %v4603 = vld [vmem:[#allocation7 + $0x250] sm:$0xff]
        %v4604 = vld [vmem:[#allocation7 + $0x258] sm:$0xff]
        %v4605 = vld [vmem:[#allocation7 + $0x260] sm:$0xff]
        %v4606 = vld [vmem:[#allocation7 + $0x268] sm:$0xff]
        %v4607 = vld [vmem:[#allocation7 + $0x270] sm:$0xff]
        %v4608 = vld [vmem:[#allocation7 + $0x278] sm:$0xff]
        %v4609 = vld [vmem:[#allocation7 + $0x280] sm:$0xff]
        %v4610 = vld [vmem:[#allocation7 + $0x288] sm:$0xff]
        %v4611 = vld [vmem:[#allocation7 + $0x290] sm:$0xff]
        %v4612 = vld [vmem:[#allocation7 + $0x298] sm:$0xff]
        %v4613 = vld [vmem:[#allocation7 + $0x2a0] sm:$0xff]
        %v4614 = vld [vmem:[#allocation7 + $0x2a8] sm:$0xff]
        %v4615 = vld [vmem:[#allocation7 + $0x2b0] sm:$0xff]
        %v4616 = vld [vmem:[#allocation7 + $0x2b8] sm:$0xff]
        %v4617 = vld [vmem:[#allocation7 + $0x2c0] sm:$0xff]
        %v4618 = vld [vmem:[#allocation7 + $0x2c8] sm:$0xff]
        %v4619 = vld [vmem:[#allocation7 + $0x2d0] sm:$0xff]
        %v4620 = vld [vmem:[#allocation7 + $0x2d8] sm:$0xff]
        %v4621 = vld [vmem:[#allocation7 + $0x2e0] sm:$0xff]
        %v4622 = vld [vmem:[#allocation7 + $0x2e8] sm:$0xff]
        %v4623 = vld [vmem:[#allocation7 + $0x2f0] sm:$0xff]
        %v4624 = vld [vmem:[#allocation7 + $0x2f8] sm:$0xff]
        %v4625 = vld [vmem:[#allocation7 + $0x300] sm:$0xff]
        %v4626 = vld [vmem:[#allocation7 + $0x308] sm:$0xff]
        %v4627 = vld [vmem:[#allocation7 + $0x310] sm:$0xff]
        %v4628 = vld [vmem:[#allocation7 + $0x318] sm:$0xff]
        %v4629 = vld [vmem:[#allocation7 + $0x320] sm:$0xff]
        %v4630 = vld [vmem:[#allocation7 + $0x328] sm:$0xff]
        %v4631 = vld [vmem:[#allocation7 + $0x330] sm:$0xff]
        %v4632 = vld [vmem:[#allocation7 + $0x338] sm:$0xff]
        %v4633 = vld [vmem:[#allocation7 + $0x340] sm:$0xff]
        %v4634 = vld [vmem:[#allocation7 + $0x348] sm:$0xff]
        %v4635 = vld [vmem:[#allocation7 + $0x350] sm:$0xff]
        %v4636 = vld [vmem:[#allocation7 + $0x358] sm:$0xff]
        %v4637 = vld [vmem:[#allocation7 + $0x360] sm:$0xff]
        %v4638 = vld [vmem:[#allocation7 + $0x368] sm:$0xff]
        %v4639 = vld [vmem:[#allocation7 + $0x370] sm:$0xff]
        %v4640 = vld [vmem:[#allocation7 + $0x378] sm:$0xff]
        %v4641 = vld [vmem:[#allocation7 + $0x380] sm:$0xff]
        %v4642 = vld [vmem:[#allocation7 + $0x388] sm:$0xff]
        %v4643 = vld [vmem:[#allocation7 + $0x390] sm:$0xff]
        %v4644 = vld [vmem:[#allocation7 + $0x398] sm:$0xff]
        %v4645 = vld [vmem:[#allocation7 + $0x3a0] sm:$0xff]
        %v4646 = vld [vmem:[#allocation7 + $0x3a8] sm:$0xff]
        %v4647 = vld [vmem:[#allocation7 + $0x3b0] sm:$0xff]
        %v4648 = vld [vmem:[#allocation7 + $0x3b8] sm:$0xff]
        %v4649 = vld [vmem:[#allocation7 + $0x3c0] sm:$0xff]
        %v4650 = vld [vmem:[#allocation7 + $0x3c8] sm:$0xff]
        %v4651 = vld [vmem:[#allocation7 + $0x3d0] sm:$0xff]
        %v4652 = vld [vmem:[#allocation7 + $0x3d8] sm:$0xff]
        %v4653 = vld [vmem:[#allocation7 + $0x3e0] sm:$0xff]
        %v4654 = vld [vmem:[#allocation7 + $0x3e8] sm:$0xff]
        %v4655 = vld [vmem:[#allocation7 + $0x3f0] sm:$0xff]
        %v4656 = vld [vmem:[#allocation7 + $0x3f8] sm:$0xff]
        %v4657 = vld [vmem:[#allocation7 + $0x400] sm:$0xff]
        %v4658 = vld [vmem:[#allocation7 + $0x408] sm:$0xff]
        %v4659 = vld [vmem:[#allocation7 + $0x410] sm:$0xff]
        %v4660 = vld [vmem:[#allocation7 + $0x418] sm:$0xff]
        %v4661 = vld [vmem:[#allocation7 + $0x420] sm:$0xff]
        %v4662 = vld [vmem:[#allocation7 + $0x428] sm:$0xff]
        %v4663 = vld [vmem:[#allocation7 + $0x430] sm:$0xff]
        %v4664 = vld [vmem:[#allocation7 + $0x438] sm:$0xff]
        %v4665 = vld [vmem:[#allocation7 + $0x440] sm:$0xff]
        %v4666 = vld [vmem:[#allocation7 + $0x448] sm:$0xff]
        %v4667 = vld [vmem:[#allocation7 + $0x450] sm:$0xff]
        %v4668 = vld [vmem:[#allocation7 + $0x458] sm:$0xff]
        %v4669 = vld [vmem:[#allocation7 + $0x460] sm:$0xff]
        %v4670 = vld [vmem:[#allocation7 + $0x468] sm:$0xff]
        %v4671 = vld [vmem:[#allocation7 + $0x470] sm:$0xff]
        %v4672 = vld [vmem:[#allocation7 + $0x478] sm:$0xff]
        %v4673 = vld [vmem:[#allocation7 + $0x480] sm:$0xff]
        %v4674 = vld [vmem:[#allocation7 + $0x488] sm:$0xff]
        %v4675 = vld [vmem:[#allocation7 + $0x490] sm:$0xff]
        %v4676 = vld [vmem:[#allocation7 + $0x498] sm:$0xff]
        %v4677 = vld [vmem:[#allocation7 + $0x4a0] sm:$0xff]
        %v4678 = vld [vmem:[#allocation7 + $0x4a8] sm:$0xff]
        %v4679 = vld [vmem:[#allocation7 + $0x4b0] sm:$0xff]
        %v4680 = vld [vmem:[#allocation7 + $0x4b8] sm:$0xff]
        %v4681 = vld [vmem:[#allocation7 + $0x4c0] sm:$0xff]
        %v4682 = vld [vmem:[#allocation7 + $0x4c8] sm:$0xff]
        %v4683 = vld [vmem:[#allocation7 + $0x4d0] sm:$0xff]
        %v4684 = vld [vmem:[#allocation7 + $0x4d8] sm:$0xff]
        %v4685 = vld [vmem:[#allocation7 + $0x4e0] sm:$0xff]
        %v4686 = vld [vmem:[#allocation7 + $0x4e8] sm:$0xff]
        %v4687 = vld [vmem:[#allocation7 + $0x4f0] sm:$0xff]
        %v4688 = vld [vmem:[#allocation7 + $0x4f8] sm:$0xff]
        %v4689 = vld [vmem:[#allocation7 + $0x500] sm:$0xff]
        %v4690 = vld [vmem:[#allocation7 + $0x508] sm:$0xff]
        %v4691 = vld [vmem:[#allocation7 + $0x510] sm:$0xff]
        %v4692 = vld [vmem:[#allocation7 + $0x518] sm:$0xff]
        %v4693 = vld [vmem:[#allocation7 + $0x520] sm:$0xff]
        %v4694 = vld [vmem:[#allocation7 + $0x528] sm:$0xff]
        %v4695 = vld [vmem:[#allocation7 + $0x530] sm:$0xff]
        %v4696 = vld [vmem:[#allocation7 + $0x538] sm:$0xff]
        %v4697 = vld [vmem:[#allocation7 + $0x540] sm:$0xff]
        %v4698 = vld [vmem:[#allocation7 + $0x548] sm:$0xff]
        %v4699 = vld [vmem:[#allocation7 + $0x550] sm:$0xff]
        %v4700 = vld [vmem:[#allocation7 + $0x558] sm:$0xff]
        %v4701 = vld [vmem:[#allocation7 + $0x560] sm:$0xff]
        %v4702 = vld [vmem:[#allocation7 + $0x568] sm:$0xff]
        %v4703 = vld [vmem:[#allocation7 + $0x570] sm:$0xff]
        %v4704 = vld [vmem:[#allocation7 + $0x578] sm:$0xff]
        %v4705 = vld [vmem:[#allocation7 + $0x580] sm:$0xff]
        %v4706 = vld [vmem:[#allocation7 + $0x588] sm:$0xff]
        %v4707 = vld [vmem:[#allocation7 + $0x590] sm:$0xff]
        %v4708 = vld [vmem:[#allocation7 + $0x598] sm:$0xff]
        %v4709 = vld [vmem:[#allocation7 + $0x5a0] sm:$0xff]
        %v4710 = vld [vmem:[#allocation7 + $0x5a8] sm:$0xff]
        %v4711 = vld [vmem:[#allocation7 + $0x5b0] sm:$0xff]
        %v4712 = vld [vmem:[#allocation7 + $0x5b8] sm:$0xff]
        %v4713 = vld [vmem:[#allocation7 + $0x5c0] sm:$0xff]
        %v4714 = vld [vmem:[#allocation7 + $0x5c8] sm:$0xff]
        %v4715 = vld [vmem:[#allocation7 + $0x5d0] sm:$0xff]
        %v4716 = vld [vmem:[#allocation7 + $0x5d8] sm:$0xff]
        %v4717 = vld [vmem:[#allocation7 + $0x5e0] sm:$0xff]
        %v4718 = vld [vmem:[#allocation7 + $0x5e8] sm:$0xff]
        %v4719 = vld [vmem:[#allocation7 + $0x5f0] sm:$0xff]
        %v4720 = vld [vmem:[#allocation7 + $0x5f8] sm:$0xff]
        %v4721 = vld [vmem:[#allocation7 + $0x600] sm:$0xff]
        %v4722 = vld [vmem:[#allocation7 + $0x608] sm:$0xff]
        %v4723 = vld [vmem:[#allocation7 + $0x610] sm:$0xff]
        %v4724 = vld [vmem:[#allocation7 + $0x618] sm:$0xff]
        %v4725 = vld [vmem:[#allocation7 + $0x620] sm:$0xff]
        %v4726 = vld [vmem:[#allocation7 + $0x628] sm:$0xff]
        %v4727 = vld [vmem:[#allocation7 + $0x630] sm:$0xff]
        %v4728 = vld [vmem:[#allocation7 + $0x638] sm:$0xff]
        %v4729 = vld [vmem:[#allocation7 + $0x640] sm:$0xff]
        %v4730 = vld [vmem:[#allocation7 + $0x648] sm:$0xff]
        %v4731 = vld [vmem:[#allocation7 + $0x650] sm:$0xff]
        %v4732 = vld [vmem:[#allocation7 + $0x658] sm:$0xff]
        %v4733 = vld [vmem:[#allocation7 + $0x660] sm:$0xff]
        %v4734 = vld [vmem:[#allocation7 + $0x668] sm:$0xff]
        %v4735 = vld [vmem:[#allocation7 + $0x670] sm:$0xff]
        %v4736 = vld [vmem:[#allocation7 + $0x678] sm:$0xff]
        %v4737 = vld [vmem:[#allocation7 + $0x680] sm:$0xff]
        %v4738 = vld [vmem:[#allocation7 + $0x688] sm:$0xff]
        %v4739 = vld [vmem:[#allocation7 + $0x690] sm:$0xff]
        %v4740 = vld [vmem:[#allocation7 + $0x698] sm:$0xff]
        %v4741 = vld [vmem:[#allocation7 + $0x6a0] sm:$0xff]
        %v4742 = vld [vmem:[#allocation7 + $0x6a8] sm:$0xff]
        %v4743 = vld [vmem:[#allocation7 + $0x6b0] sm:$0xff]
        %v4744 = vld [vmem:[#allocation7 + $0x6b8] sm:$0xff]
        %v4745 = vld [vmem:[#allocation7 + $0x6c0] sm:$0xff]
        %v4746 = vld [vmem:[#allocation7 + $0x6c8] sm:$0xff]
        %v4747 = vld [vmem:[#allocation7 + $0x6d0] sm:$0xff]
        %v4748 = vld [vmem:[#allocation7 + $0x6d8] sm:$0xff]
        %v4749 = vld [vmem:[#allocation7 + $0x6e0] sm:$0xff]
        %v4750 = vld [vmem:[#allocation7 + $0x6e8] sm:$0xff]
        %v4751 = vld [vmem:[#allocation7 + $0x6f0] sm:$0xff]
        %v4752 = vld [vmem:[#allocation7 + $0x6f8] sm:$0xff]
        %v4753 = vld [vmem:[#allocation7 + $0x700] sm:$0xff]
        %v4754 = vld [vmem:[#allocation7 + $0x708] sm:$0xff]
        %v4755 = vld [vmem:[#allocation7 + $0x710] sm:$0xff]
        %v4756 = vld [vmem:[#allocation7 + $0x718] sm:$0xff]
        %v4757 = vld [vmem:[#allocation7 + $0x720] sm:$0xff]
        %v4758 = vld [vmem:[#allocation7 + $0x728] sm:$0xff]
        %v4759 = vld [vmem:[#allocation7 + $0x730] sm:$0xff]
        %v4760 = vld [vmem:[#allocation7 + $0x738] sm:$0xff]
        %v4761 = vld [vmem:[#allocation7 + $0x740] sm:$0xff]
        %v4762 = vld [vmem:[#allocation7 + $0x748] sm:$0xff]
        %v4763 = vld [vmem:[#allocation7 + $0x750] sm:$0xff]
        %v4764 = vld [vmem:[#allocation7 + $0x758] sm:$0xff]
        %v4765 = vld [vmem:[#allocation7 + $0x760] sm:$0xff]
        %v4766 = vld [vmem:[#allocation7 + $0x768] sm:$0xff]
        %v4767 = vld [vmem:[#allocation7 + $0x770] sm:$0xff]
        %v4768 = vld [vmem:[#allocation7 + $0x778] sm:$0xff]
        %v4769 = vld [vmem:[#allocation7 + $0x780] sm:$0xff]
        %v4770 = vld [vmem:[#allocation7 + $0x788] sm:$0xff]
        %v4771 = vld [vmem:[#allocation7 + $0x790] sm:$0xff]
        %v4772 = vld [vmem:[#allocation7 + $0x798] sm:$0xff]
        %v4773 = vld [vmem:[#allocation7 + $0x7a0] sm:$0xff]
        %v4774 = vld [vmem:[#allocation7 + $0x7a8] sm:$0xff]
        %v4775 = vld [vmem:[#allocation7 + $0x7b0] sm:$0xff]
        %v4776 = vld [vmem:[#allocation7 + $0x7b8] sm:$0xff]
        %v4777 = vld [vmem:[#allocation7 + $0x7c0] sm:$0xff]
        %v4778 = vld [vmem:[#allocation7 + $0x7c8] sm:$0xff]
        %v4779 = vld [vmem:[#allocation7 + $0x7d0] sm:$0xff]
        %v4780 = vld [vmem:[#allocation7 + $0x7d8] sm:$0xff]
        %v4781 = vld [vmem:[#allocation7 + $0x7e0] sm:$0xff]
        %v4782 = vld [vmem:[#allocation7 + $0x7e8] sm:$0xff]
        %v4783 = vld [vmem:[#allocation7 + $0x7f0] sm:$0xff]
        %v4784 = vld [vmem:[#allocation7 + $0x7f8] sm:$0xff]
        %4785 = vmatprep.subr.mxu0 %v4530
        %4786 = vmatpush1.msra.mxu0 %v4529
        %4787 = vmatprep.subr.mxu0 %v4538
        %4788 = vmatpush1.msra.mxu0 %v4537
        %4789 = vmatprep.subr.mxu0 %v4546
        %4790 = vmatpush1.msra.mxu0 %v4545
        %4791 = vmatprep.subr.mxu0 %v4554
        %4792 = vmatpush1.msra.mxu0 %v4553
        %4793 = vmatprep.subr.mxu0 %v4562
        %4794 = vmatpush1.msra.mxu0 %v4561
        %4795 = vmatprep.subr.mxu0 %v4570
        %4796 = vmatpush1.msra.mxu0 %v4569
        %4797 = vmatprep.subr.mxu0 %v4578
        %4798 = vmatpush1.msra.mxu0 %v4577
        %4799 = vmatprep.subr.mxu0 %v4586
        %4800 = vmatpush1.msra.mxu0 %v4585
        %4801 = vmatprep.subr.mxu0 %v4594
        %4802 = vmatpush1.msra.mxu0 %v4593
        %4803 = vmatprep.subr.mxu0 %v4602
        %4804 = vmatpush1.msra.mxu0 %v4601
        %4805 = vmatprep.subr.mxu0 %v4610
        %4806 = vmatpush1.msra.mxu0 %v4609
        %4807 = vmatprep.subr.mxu0 %v4618
        %4808 = vmatpush1.msra.mxu0 %v4617
        %4809 = vmatprep.subr.mxu0 %v4626
        %4810 = vmatpush1.msra.mxu0 %v4625
        %4811 = vmatprep.subr.mxu0 %v4634
        %4812 = vmatpush1.msra.mxu0 %v4633
        %4813 = vmatprep.subr.mxu0 %v4642
        %4814 = vmatpush1.msra.mxu0 %v4641
        %4815 = vmatprep.subr.mxu0 %v4650
        %4816 = vmatpush1.msra.mxu0 %v4649
        %4817 = vmatprep.subr.mxu0 %v4658
        %4818 = vmatpush1.msra.mxu0 %v4657
        %4819 = vmatprep.subr.mxu0 %v4666
        %4820 = vmatpush1.msra.mxu0 %v4665
        %4821 = vmatprep.subr.mxu0 %v4674
        %4822 = vmatpush1.msra.mxu0 %v4673
        %4823 = vmatprep.subr.mxu0 %v4682
        %4824 = vmatpush1.msra.mxu0 %v4681
        %4825 = vmatprep.subr.mxu0 %v4690
        %4826 = vmatpush1.msra.mxu0 %v4689
        %4827 = vmatprep.subr.mxu0 %v4698
        %4828 = vmatpush1.msra.mxu0 %v4697
        %4829 = vmatprep.subr.mxu0 %v4706
        %4830 = vmatpush1.msra.mxu0 %v4705
        %4831 = vmatprep.subr.mxu0 %v4714
        %4832 = vmatpush1.msra.mxu0 %v4713
        %4833 = vmatprep.subr.mxu0 %v4722
        %4834 = vmatpush1.msra.mxu0 %v4721
        %4835 = vmatprep.subr.mxu0 %v4730
        %4836 = vmatpush1.msra.mxu0 %v4729
        %4837 = vmatprep.subr.mxu0 %v4738
        %4838 = vmatpush1.msra.mxu0 %v4737
        %4839 = vmatprep.subr.mxu0 %v4746
        %4840 = vmatpush1.msra.mxu0 %v4745
        %4841 = vmatprep.subr.mxu0 %v4754
        %4842 = vmatpush1.msra.mxu0 %v4753
        %4843 = vmatprep.subr.mxu0 %v4762
        %4844 = vmatpush1.msra.mxu0 %v4761
        %4845 = vmatprep.subr.mxu0 %v4770
        %4846 = vmatpush1.msra.mxu0 %v4769
        %4847 = vmatprep.subr.mxu0 %v4778
        %4848 = vmatpush1.msra.mxu0 %v4777
        %4849 = vmatprep.mubr.f32.mxu0 %v4517
        %4850 = vmatmul.mubr.f32.gmra.mrb[0].mxu0 %v4516
        %v4851 = vpop.f32.mrb[0].mxu0
        %v4852 = vadd.f32 0.0, %v4851
        %v4853 = vpop.f32.mrb[0].mxu0
        %v4854 = vadd.f32 0.0, %v4853
        %4855 = vdwg.mxu0
        %4856 = vmatprep.subr.mxu0 %v4532
        %4857 = vmatpush1.msra.mxu0 %v4531
        %4858 = vmatprep.subr.mxu0 %v4540
        %4859 = vmatpush1.msra.mxu0 %v4539
        %4860 = vmatprep.subr.mxu0 %v4548
        %4861 = vmatpush1.msra.mxu0 %v4547
        %4862 = vmatprep.subr.mxu0 %v4556
        %4863 = vmatpush1.msra.mxu0 %v4555
        %4864 = vmatprep.subr.mxu0 %v4564
        %4865 = vmatpush1.msra.mxu0 %v4563
        %4866 = vmatprep.subr.mxu0 %v4572
        %4867 = vmatpush1.msra.mxu0 %v4571
        %4868 = vmatprep.subr.mxu0 %v4580
        %4869 = vmatpush1.msra.mxu0 %v4579
        %4870 = vmatprep.subr.mxu0 %v4588
        %4871 = vmatpush1.msra.mxu0 %v4587
        %4872 = vmatprep.subr.mxu0 %v4596
        %4873 = vmatpush1.msra.mxu0 %v4595
        %4874 = vmatprep.subr.mxu0 %v4604
        %4875 = vmatpush1.msra.mxu0 %v4603
        %4876 = vmatprep.subr.mxu0 %v4612
        %4877 = vmatpush1.msra.mxu0 %v4611
        %4878 = vmatprep.subr.mxu0 %v4620
        %4879 = vmatpush1.msra.mxu0 %v4619
        %4880 = vmatprep.subr.mxu0 %v4628
        %4881 = vmatpush1.msra.mxu0 %v4627
        %4882 = vmatprep.subr.mxu0 %v4636
        %4883 = vmatpush1.msra.mxu0 %v4635
        %4884 = vmatprep.subr.mxu0 %v4644
        %4885 = vmatpush1.msra.mxu0 %v4643
        %4886 = vmatprep.subr.mxu0 %v4652
        %4887 = vmatpush1.msra.mxu0 %v4651
        %4888 = vmatprep.subr.mxu0 %v4660
        %4889 = vmatpush1.msra.mxu0 %v4659
        %4890 = vmatprep.subr.mxu0 %v4668
        %4891 = vmatpush1.msra.mxu0 %v4667
        %4892 = vmatprep.subr.mxu0 %v4676
        %4893 = vmatpush1.msra.mxu0 %v4675
        %4894 = vmatprep.subr.mxu0 %v4684
        %4895 = vmatpush1.msra.mxu0 %v4683
        %4896 = vmatprep.subr.mxu0 %v4692
        %4897 = vmatpush1.msra.mxu0 %v4691
        %4898 = vmatprep.subr.mxu0 %v4700
        %4899 = vmatpush1.msra.mxu0 %v4699
        %4900 = vmatprep.subr.mxu0 %v4708
        %4901 = vmatpush1.msra.mxu0 %v4707
        %4902 = vmatprep.subr.mxu0 %v4716
        %4903 = vmatpush1.msra.mxu0 %v4715
        %4904 = vmatprep.subr.mxu0 %v4724
        %4905 = vmatpush1.msra.mxu0 %v4723
        %4906 = vmatprep.subr.mxu0 %v4732
        %4907 = vmatpush1.msra.mxu0 %v4731
        %4908 = vmatprep.subr.mxu0 %v4740
        %4909 = vmatpush1.msra.mxu0 %v4739
        %4910 = vmatprep.subr.mxu0 %v4748
        %4911 = vmatpush1.msra.mxu0 %v4747
        %4912 = vmatprep.subr.mxu0 %v4756
        %4913 = vmatpush1.msra.mxu0 %v4755
        %4914 = vmatprep.subr.mxu0 %v4764
        %4915 = vmatpush1.msra.mxu0 %v4763
        %4916 = vmatprep.subr.mxu0 %v4772
        %4917 = vmatpush1.msra.mxu0 %v4771
        %4918 = vmatprep.subr.mxu0 %v4780
        %4919 = vmatpush1.msra.mxu0 %v4779
        %4920 = vmatprep.mubr.f32.mxu0 %v4517
        %4921 = vmatmul.mubr.f32.gmra.mrb[0].mxu0 %v4516
        %v4922 = vpop.f32.mrb[0].mxu0
        %v4923 = vadd.f32 0.0, %v4922
        %v4924 = vpop.f32.mrb[0].mxu0
        %v4925 = vadd.f32 0.0, %v4924
        %4926 = vdwg.mxu0
        %4927 = vmatprep.subr.mxu0 %v4534
        %4928 = vmatpush1.msra.mxu0 %v4533
        %4929 = vmatprep.subr.mxu0 %v4542
        %4930 = vmatpush1.msra.mxu0 %v4541
        %4931 = vmatprep.subr.mxu0 %v4550
        %4932 = vmatpush1.msra.mxu0 %v4549
        %4933 = vmatprep.subr.mxu0 %v4558
        %4934 = vmatpush1.msra.mxu0 %v4557
        %4935 = vmatprep.subr.mxu0 %v4566
        %4936 = vmatpush1.msra.mxu0 %v4565
        %4937 = vmatprep.subr.mxu0 %v4574
        %4938 = vmatpush1.msra.mxu0 %v4573
        %4939 = vmatprep.subr.mxu0 %v4582
        %4940 = vmatpush1.msra.mxu0 %v4581
        %4941 = vmatprep.subr.mxu0 %v4590
        %4942 = vmatpush1.msra.mxu0 %v4589
        %4943 = vmatprep.subr.mxu0 %v4598
        %4944 = vmatpush1.msra.mxu0 %v4597
        %4945 = vmatprep.subr.mxu0 %v4606
        %4946 = vmatpush1.msra.mxu0 %v4605
        %4947 = vmatprep.subr.mxu0 %v4614
        %4948 = vmatpush1.msra.mxu0 %v4613
        %4949 = vmatprep.subr.mxu0 %v4622
        %4950 = vmatpush1.msra.mxu0 %v4621
        %4951 = vmatprep.subr.mxu0 %v4630
        %4952 = vmatpush1.msra.mxu0 %v4629
        %4953 = vmatprep.subr.mxu0 %v4638
        %4954 = vmatpush1.msra.mxu0 %v4637
        %4955 = vmatprep.subr.mxu0 %v4646
        %4956 = vmatpush1.msra.mxu0 %v4645
        %4957 = vmatprep.subr.mxu0 %v4654
        %4958 = vmatpush1.msra.mxu0 %v4653
        %4959 = vmatprep.subr.mxu0 %v4662
        %4960 = vmatpush1.msra.mxu0 %v4661
        %4961 = vmatprep.subr.mxu0 %v4670
        %4962 = vmatpush1.msra.mxu0 %v4669
        %4963 = vmatprep.subr.mxu0 %v4678
        %4964 = vmatpush1.msra.mxu0 %v4677
        %4965 = vmatprep.subr.mxu0 %v4686
        %4966 = vmatpush1.msra.mxu0 %v4685
        %4967 = vmatprep.subr.mxu0 %v4694
        %4968 = vmatpush1.msra.mxu0 %v4693
        %4969 = vmatprep.subr.mxu0 %v4702
        %4970 = vmatpush1.msra.mxu0 %v4701
        %4971 = vmatprep.subr.mxu0 %v4710
        %4972 = vmatpush1.msra.mxu0 %v4709
        %4973 = vmatprep.subr.mxu0 %v4718
        %4974 = vmatpush1.msra.mxu0 %v4717
        %4975 = vmatprep.subr.mxu0 %v4726
        %4976 = vmatpush1.msra.mxu0 %v4725
        %4977 = vmatprep.subr.mxu0 %v4734
        %4978 = vmatpush1.msra.mxu0 %v4733
        %4979 = vmatprep.subr.mxu0 %v4742
        %4980 = vmatpush1.msra.mxu0 %v4741
        %4981 = vmatprep.subr.mxu0 %v4750
        %4982 = vmatpush1.msra.mxu0 %v4749
        %4983 = vmatprep.subr.mxu0 %v4758
        %4984 = vmatpush1.msra.mxu0 %v4757
        %4985 = vmatprep.subr.mxu0 %v4766
        %4986 = vmatpush1.msra.mxu0 %v4765
        %4987 = vmatprep.subr.mxu0 %v4774
        %4988 = vmatpush1.msra.mxu0 %v4773
        %4989 = vmatprep.subr.mxu0 %v4782
        %4990 = vmatpush1.msra.mxu0 %v4781
        %4991 = vmatprep.mubr.f32.mxu0 %v4517
        %4992 = vmatmul.mubr.f32.gmra.mrb[0].mxu0 %v4516
        %v4993 = vpop.f32.mrb[0].mxu0
        %v4994 = vadd.f32 0.0, %v4993
        %v4995 = vpop.f32.mrb[0].mxu0
        %v4996 = vadd.f32 0.0, %v4995
        %4997 = vdwg.mxu0
        %4998 = vmatprep.subr.mxu0 %v4536
        %4999 = vmatpush1.msra.mxu0 %v4535
        %5000 = vmatprep.subr.mxu0 %v4544
        %5001 = vmatpush1.msra.mxu0 %v4543
        %5002 = vmatprep.subr.mxu0 %v4552
        %5003 = vmatpush1.msra.mxu0 %v4551
        %5004 = vmatprep.subr.mxu0 %v4560
        %5005 = vmatpush1.msra.mxu0 %v4559
        %5006 = vmatprep.subr.mxu0 %v4568
        %5007 = vmatpush1.msra.mxu0 %v4567
        %5008 = vmatprep.subr.mxu0 %v4576
        %5009 = vmatpush1.msra.mxu0 %v4575
        %5010 = vmatprep.subr.mxu0 %v4584
        %5011 = vmatpush1.msra.mxu0 %v4583
        %5012 = vmatprep.subr.mxu0 %v4592
        %5013 = vmatpush1.msra.mxu0 %v4591
        %5014 = vmatprep.subr.mxu0 %v4600
        %5015 = vmatpush1.msra.mxu0 %v4599
        %5016 = vmatprep.subr.mxu0 %v4608
        %5017 = vmatpush1.msra.mxu0 %v4607
        %5018 = vmatprep.subr.mxu0 %v4616
        %5019 = vmatpush1.msra.mxu0 %v4615
        %5020 = vmatprep.subr.mxu0 %v4624
        %5021 = vmatpush1.msra.mxu0 %v4623
        %5022 = vmatprep.subr.mxu0 %v4632
        %5023 = vmatpush1.msra.mxu0 %v4631
        %5024 = vmatprep.subr.mxu0 %v4640
        %5025 = vmatpush1.msra.mxu0 %v4639
        %5026 = vmatprep.subr.mxu0 %v4648
        %5027 = vmatpush1.msra.mxu0 %v4647
        %5028 = vmatprep.subr.mxu0 %v4656
        %5029 = vmatpush1.msra.mxu0 %v4655
        %5030 = vmatprep.subr.mxu0 %v4664
        %5031 = vmatpush1.msra.mxu0 %v4663
        %5032 = vmatprep.subr.mxu0 %v4672
        %5033 = vmatpush1.msra.mxu0 %v4671
        %5034 = vmatprep.subr.mxu0 %v4680
        %5035 = vmatpush1.msra.mxu0 %v4679
        %5036 = vmatprep.subr.mxu0 %v4688
        %5037 = vmatpush1.msra.mxu0 %v4687
        %5038 = vmatprep.subr.mxu0 %v4696
        %5039 = vmatpush1.msra.mxu0 %v4695
        %5040 = vmatprep.subr.mxu0 %v4704
        %5041 = vmatpush1.msra.mxu0 %v4703
        %5042 = vmatprep.subr.mxu0 %v4712
        %5043 = vmatpush1.msra.mxu0 %v4711
        %5044 = vmatprep.subr.mxu0 %v4720
        %5045 = vmatpush1.msra.mxu0 %v4719
        %5046 = vmatprep.subr.mxu0 %v4728
        %5047 = vmatpush1.msra.mxu0 %v4727
        %5048 = vmatprep.subr.mxu0 %v4736
        %5049 = vmatpush1.msra.mxu0 %v4735
        %5050 = vmatprep.subr.mxu0 %v4744
        %5051 = vmatpush1.msra.mxu0 %v4743
        %5052 = vmatprep.subr.mxu0 %v4752
        %5053 = vmatpush1.msra.mxu0 %v4751
        %5054 = vmatprep.subr.mxu0 %v4760
        %5055 = vmatpush1.msra.mxu0 %v4759
        %5056 = vmatprep.subr.mxu0 %v4768
        %5057 = vmatpush1.msra.mxu0 %v4767
        %5058 = vmatprep.subr.mxu0 %v4776
        %5059 = vmatpush1.msra.mxu0 %v4775
        %5060 = vmatprep.subr.mxu0 %v4784
        %5061 = vmatpush1.msra.mxu0 %v4783
        %5062 = vmatprep.mubr.f32.mxu0 %v4517
        %5063 = vmatmul.mubr.f32.gmra.mrb[0].mxu0 %v4516
        %v5064 = vpop.f32.mrb[0].mxu0
        %v5065 = vadd.f32 0.0, %v5064
        %v5066 = vpop.f32.mrb[0].mxu0
        %v5067 = vadd.f32 0.0, %v5066
        %5068 = vdwg.mxu0
        %v5069 = vadd.f32 %v4521, %v4852
        %v5070 = vadd.f32 %v4522, %v4854
        %v5071 = vadd.f32 %v4523, %v4923
        %v5072 = vadd.f32 %v4524, %v4925
        %v5073 = vadd.f32 %v4525, %v4994
        %v5074 = vadd.f32 %v4526, %v4996
        %v5075 = vadd.f32 %v4527, %v5065
        %v5076 = vadd.f32 %v4528, %v5067
        %v5077 = vxor.u32 %v5069, 2147483648
        %v5078 = vxor.u32 %v5070, 2147483648
        %v5079 = vmul.f32 %v5077, 1.442695
        %v5080 = vpow.pop %v5079
        %v5081 = vmul.f32 %v5078, 1.442695
        %v5082 = vpow.pop %v5081
        %v5083 = vadd.f32 %v5080, 1.0
        %v5084 = vadd.f32 %v5082, 1.0
        %v5085 = vrcp.pop %v5083
        %v5086 = vmul.f32 1.0, %v5085
        %v5087 = vrcp.pop %v5084
        %v5088 = vmul.f32 1.0, %v5087
        %v5089 = vxor.u32 %v5071, 2147483648
        %v5090 = vxor.u32 %v5072, 2147483648
        %v5091 = vmul.f32 %v5089, 1.442695
        %v5092 = vpow.pop %v5091
        %v5093 = vmul.f32 %v5090, 1.442695
        %v5094 = vpow.pop %v5093
        %v5095 = vadd.f32 %v5092, 1.0
        %v5096 = vadd.f32 %v5094, 1.0
        %v5097 = vrcp.pop %v5095
        %v5098 = vmul.f32 1.0, %v5097
        %v5099 = vrcp.pop %v5096
        %v5100 = vmul.f32 1.0, %v5099
        %v5101 = vtanh.pop %v5073
        %v5102 = vtanh.pop %v5074
        %v5103 = vxor.u32 %v5075, 2147483648
        %v5104 = vxor.u32 %v5076, 2147483648
        %v5105 = vmul.f32 %v5103, 1.442695
        %v5106 = vpow.pop %v5105
        %v5107 = vmul.f32 %v5104, 1.442695
        %v5108 = vpow.pop %v5107
        %v5109 = vadd.f32 %v5106, 1.0
        %v5110 = vadd.f32 %v5108, 1.0
        %v5111 = vrcp.pop %v5109
        %v5112 = vmul.f32 1.0, %v5111
        %v5113 = vrcp.pop %v5110
        %v5114 = vmul.f32 1.0, %v5113
        %v5115 = vmul.f32 %v5098, %v4518
        %v5116 = vmul.f32 %v5100, %v4519
        %v5117 = vmul.f32 %v5086, %v5101
        %v5118 = vmul.f32 %v5088, %v5102
        %v5119 = vadd.f32 %v5115, %v5117
        %v5120 = vadd.f32 %v5116, %v5118
        %v5121 = vtanh.pop %v5119
        %v5122 = vtanh.pop %v5120
        %v5123 = vmul.f32 %v5112, %v5121
        %v5124 = vmul.f32 %v5114, %v5122
        %5125 = vst [vmem:[#allocation3] sm:$0xff] %v5119
        %5126 = vst [vmem:[#allocation3 + $0x8] sm:$0xff] %v5120
        %5127 = vst [vmem:[#allocation2] sm:$0xff] %v5123
        %5128 = vst [vmem:[#allocation2 + $0x8] sm:$0xff] %v5124
        %s5129 = scalar_lea.vmem %s195, 112 [#allocation9]
        %5130 = vst [vmem:[%s5129] sm:$0xff] %v5123
        %5131 = vst [vmem:[%s5129 + $0x8] sm:$0xff] %v5124
        %s5132 = sand.u32 %s91, 1
        %s5133 = scalar_lea.sflag [#allocation6], %s5132
        %s5134 = sand.u32 %s91, 1
        %s5135 = smul.addr %s5134, 128
        %s5136 = scalar_lea.vmem [#allocation9], %s5135
        // Predicated region
        $region41: #{tpu_custom_call.1} parent=27 // pred_check
          %p5137 = pneg %p101
        $region42: #{tpu_custom_call.1} parent=27 // pred_check_branch
          %5139 = sbr.rel (%p5137) target = $region44
        $region43: #{tpu_custom_call.1} parent=27 // pred_region
          %s5140 = smul.u32 8, %s25
          %s5142 = ssub.s32 2048, 2048
          %5143 = vsyncadd %s5133, %s5142
          %s5144 = smul.addr %s24, 2
          %s5145 = smul.addr %s5140, 2
          %s5146 = sadd.s32 %s5144, %s5145
          %s5147 = smul.addr %s5146, 128
          %s5148 = scalar_lea.hbm %s2, %s5147
          %s5149 = sshll.u32 %s5136, 4
          %s5150 = int_to_ptr.vmem [resolvable:$true] %s5149
          %5155 = dma.vmem_to_hbm [thread:$0]  %s5150, 2048, %s5148, %s5133, 256, 256, 16
        $region44: #{tpu_custom_call.1} parent=27 // pred_fallthru
          _
      $region28: #{tpu_custom_call.1} parent=5 // pred_fallthru
        _
      %p5156 = scmp.le.s32.totalorder 2, %s15
      // Predicated region
      $region45: #{tpu_custom_call.1} parent=5 // pred_check
        %p5157 = pneg %p5156
      $region46: #{tpu_custom_call.1} parent=5 // pred_check_branch
        %5159 = sbr.rel (%p5157) target = $region48
      $region47: #{tpu_custom_call.1} parent=5 // pred_region
        %s5160 = ssub.s32 %s15, 2
        // Predicated region
        $region49: #{tpu_custom_call.1} parent=47 // pred_check
          %p5161 = pneg %p107
        $region50: #{tpu_custom_call.1} parent=47 // pred_check_branch
          %5163 = sbr.rel (%p5161) target = $region52
        $region51: #{tpu_custom_call.1} parent=47 // pred_region
          %s5164 = sand.u32 %s92, 1
          %s5165 = scalar_lea.sflag [#allocation6], %s5164
          %s5166 = sand.u32 %s92, 1
          %s5167 = smul.addr %s5166, 128
          %s5168 = scalar_lea.vmem [#allocation9], %s5167
          %5169 = dma.done %s5165, 2048
        $region52: #{tpu_custom_call.1} parent=47 // pred_fallthru
          _
      $region48: #{tpu_custom_call.1} parent=5 // pred_fallthru
        _
    $region6: #{tpu_custom_call.1} parent=1 // loop_footer
      %s19 = sadd.s32 1, %s15
    $region7: #{tpu_custom_call.1} parent=1 // loop_footer_branch
      %14 = sbr.rel target = $region3
    $region8: #{tpu_custom_call.1} parent=1 // loop_exit
      _
    %5170 = vsyncpa [#allocation5], 1
    %s5171 = scalar_lea.sflag [#allocation5], 1
    %5172 = vsyncpa %s5171, 1
    %5173 = vsyncpa [#allocation8], 1
    %5174 = vsyncpa [#allocation6], 1
    %s5175 = scalar_lea.sflag [#allocation6], 1
    %5176 = vsyncpa %s5175, 1

</llo_original>
